<compile_context>
chip_gen: v6e
topology: v6e:2x2x1
jax: 0.10.0
libtpu: 0.0.40
codegen_flags: <defaults>
</compile_context>

<pallas_src>
import functools

import numpy as np
import jax
import jax.numpy as jnp
from jax.experimental import pallas as pl
from jax.experimental.pallas import tpu as pltpu


# ----------------------------------------------------------------------------
# In-kernel math helpers (f32)
# ----------------------------------------------------------------------------
_ERF_A = (0.254829592, -0.284496736, 1.421413741, -1.453152027, 1.061405429)
_ERF_P = 0.3275911


def _erf_approx(x):
    # Abramowitz & Stegun 7.1.26; the reciprocal goes to the EUP (approx).
    a1, a2, a3, a4, a5 = _ERF_A
    ax = jnp.abs(x)
    t = pl.reciprocal(1.0 + _ERF_P * ax, approx=True)
    poly = ((((a5 * t + a4) * t + a3) * t + a2) * t + a1) * t
    y = 1.0 - poly * jnp.exp(-ax * ax)
    return jnp.where(x < 0, -y, y)


def _gelu(x):
    # exact (erf-based) GELU, matching torch.nn.GELU default.
    return 0.5 * x * (1.0 + _erf_approx(x * 0.7071067811865476))


def _ceil_to(x, m):
    return ((x + m - 1) // m) * m


_TARGET_ROWS = 512  # target output rows per grid step (pipeline sweet spot)


# ----------------------------------------------------------------------------
# Pallas kernels
# ----------------------------------------------------------------------------
def _pcnn_layer_kernel(*refs, K, TR, WP, cout_true, has_res):
    """Fused: KxK conv (K^2 shifted matmuls) + LayerNorm + positional encoder
    + GELU + residual (1x1 conv or identity)."""
    if has_res:
        (xh_ref, parg_ref, wk_ref, g_ref, b_ref, fs_ref, ph_ref,
         w1_ref, b1_ref, w2_ref, b2_ref, wr_ref, br_ref, o_ref) = refs
    else:
        (xh_ref, parg_ref, wk_ref, g_ref, b_ref, fs_ref, ph_ref,
         w1_ref, b1_ref, w2_ref, b2_ref, o_ref) = refs

    rows = TR * WP
    cpad = o_ref.shape[-1]
    p = K // 2

    # Load the bf16 halo tile once and upcast: the f32 (8,128) layout keeps the
    # shifted slices and (TR,WP,C)->(rows,C) reshapes on clean tiles.
    xh = xh_ref[0].astype(jnp.float32)                      # (TR+2p, WPH, C)

    # ---- KxK conv as K^2 shifted MXU matmuls (bf16 operands, f32 acc) ----
    acc = jnp.zeros((rows, cpad), jnp.float32)
    for kh in range(K):
        for kw in range(K):
            patch = xh[kh:kh + TR, kw:kw + WP, :].reshape(rows, -1)
            acc = acc + jnp.dot(patch.astype(jnp.bfloat16),
                                wk_ref[kh * K + kw],
                                preferred_element_type=jnp.float32)

    # ---- LayerNorm over the *true* channels (padded lanes are exactly 0) ----
    inv_c = 1.0 / float(cout_true)
    mean = jnp.sum(acc, axis=-1, keepdims=True) * inv_c
    var = jnp.sum(acc * acc, axis=-1, keepdims=True) * inv_c - mean * mean
    y = (acc - mean) * jax.lax.rsqrt(var + 1e-5) * g_ref[...] + b_ref[...]

    # ---- fused positional encoder: sin(pos*freq*|scale| + phase) -> MLP ----
    arg = parg_ref[...] * fs_ref[...] + ph_ref[...]
    enc = jnp.sin(arg).astype(jnp.bfloat16)
    h = jnp.dot(enc, w1_ref[...], preferred_element_type=jnp.float32) + b1_ref[...]
    h = _gelu(h).astype(jnp.bfloat16)
    pf = jnp.dot(h, w2_ref[...], preferred_element_type=jnp.float32) + b2_ref[...]

    y = _gelu(y + pf)

    # ---- residual: center tap of the same halo tile (no extra x stream) ----
    xc = xh[p:p + TR, p:p + WP, :].reshape(rows, -1)
    if has_res:
        res = jnp.dot(xc.astype(jnp.bfloat16), wr_ref[...],
                      preferred_element_type=jnp.float32) + br_ref[...]
    else:
        res = xc  # nn.Identity: channel counts already match (incl. padding)

    o_ref[...] = (y + res).astype(o_ref.dtype)


def _matmul_bias_kernel(x_ref, w_ref, b_ref, o_ref):
    o_ref[...] = (jnp.dot(x_ref[...], w_ref[...],
                          preferred_element_type=jnp.float32)
                  + b_ref[...]).astype(o_ref.dtype)


# ----------------------------------------------------------------------------
# pallas_call wrappers
# ----------------------------------------------------------------------------
def pcnn_layer_pallas(xh, parg, wk, gamma, beta, fscale, phase,
                      pe_w1, pe_b1, pe_w2, pe_b2, wres, bres, *,
                      K, TR, WP, cout_true, cout_pad, out_dtype=jnp.bfloat16):
    G, TRH, WPH, C = xh.shape
    rows = TR * WP
    E = parg.shape[-1]
    has_res = wres is not None

    kernel = functools.partial(_pcnn_layer_kernel, K=K, TR=TR, WP=WP,
                               cout_true=cout_true, has_res=has_res)

    bcast2 = lambda i: (0, 0)
    in_specs = [
        pl.BlockSpec((1, TRH, WPH, C), lambda i: (i, 0, 0, 0)),   # halo tile
        pl.BlockSpec((rows, E), lambda i: (i, 0)),                # pos * freq
        pl.BlockSpec((K * K, C, cout_pad), lambda i: (0, 0, 0)),  # conv weight
        pl.BlockSpec((1, cout_pad), bcast2),                      # LN gamma
        pl.BlockSpec((1, cout_pad), bcast2),                      # LN beta
        pl.BlockSpec((1, E), bcast2),                             # freq*|scale|
        pl.BlockSpec((1, E), bcast2),                             # phase (0/pi2)
        pl.BlockSpec((E, cout_pad), bcast2),                      # pe_w1
        pl.BlockSpec((1, cout_pad), bcast2),                      # pe_b1
        pl.BlockSpec((cout_pad, cout_pad), bcast2),               # pe_w2
        pl.BlockSpec((1, cout_pad), bcast2),                      # pe_b2
    ]
    args = [xh, parg, wk, gamma, beta, fscale, phase, pe_w1, pe_b1, pe_w2, pe_b2]
    if has_res:
        in_specs += [pl.BlockSpec((C, cout_pad), bcast2),         # res weight
                     pl.BlockSpec((1, cout_pad), bcast2)]         # res bias
        args += [wres, bres]

    return pl.pallas_call(
        kernel,
        out_shape=jax.ShapeDtypeStruct((G * rows, cout_pad), out_dtype),
        grid=(G,),
        in_specs=in_specs,
        out_specs=pl.BlockSpec((rows, cout_pad), lambda i: (i, 0)),
        compiler_params=pltpu.CompilerParams(
            dimension_semantics=("parallel",),
            vmem_limit_bytes=48 * 1024 * 1024),
    )(*args)


def matmul_bias_pallas(x, w, b, *, block_rows):
    N, Cx = x.shape
    Co = w.shape[1]
    G = N // block_rows
    return pl.pallas_call(
        _matmul_bias_kernel,
        out_shape=jax.ShapeDtypeStruct((N, Co), jnp.float32),
        grid=(G,),
        in_specs=[pl.BlockSpec((block_rows, Cx), lambda i: (i, 0)),
                  pl.BlockSpec((Cx, Co), lambda i: (0, 0)),
                  pl.BlockSpec((1, Co), lambda i: (0, 0))],
        out_specs=pl.BlockSpec((block_rows, Co), lambda i: (i, 0)),
        compiler_params=pltpu.CompilerParams(
            dimension_semantics=("parallel",),
            vmem_limit_bytes=48 * 1024 * 1024),
    )(x, w, b)


# ----------------------------------------------------------------------------
# Plain-JAX glue
# ----------------------------------------------------------------------------
def build_halo_tiles(x, K, TR, H_pad, WPH):
    """x: (B, H, W, C) -> (B * n_tiles, TR + 2p, WPH, C) halo-inclusive tiles.
    Zero padding doubles as the conv's spatial zero padding."""
    B, H, W, C = x.shape
    p = K // 2
    n_tiles = H_pad // TR
    xp = jnp.pad(x, ((0, 0), (p, H_pad - H + p), (p, WPH - W - p), (0, 0)))
    tiles = [xp[:, t * TR: t * TR + TR + 2 * p] for t in range(n_tiles)]
    xt = jnp.stack(tiles, axis=1)
    return xt.reshape(B * n_tiles, TR + 2 * p, WPH, C)


def _nrm(key, shape, fan_in):
    return jax.random.normal(key, shape, jnp.float32) / float(fan_in) ** 0.5


def init_params(key, in_channels, hidden_dims, position_dim, num_freq=6):
    F = num_freq
    E = position_dim * 2 * F
    layers = []
    cur = in_channels
    for idx, (ksz, cout) in enumerate(hidden_dims):
        key, *ks = jax.random.split(key, 10)
        lp = dict(
            kernel_size=ksz,
            identity=(cur == cout),
            conv_w=_nrm(ks[0], (cout, cur, ksz, ksz), cur * ksz * ksz),
            ln_gamma=1.0 + 0.05 * jax.random.normal(ks[1], (cout,), jnp.float32),
            ln_beta=0.05 * jax.random.normal(ks[2], (cout,), jnp.float32),
            scale=jnp.float32(1.0 / (idx + 1)),          # depth-aware scaling
            pe_w1=_nrm(ks[3], (E, cout), E),
            pe_b1=0.05 * jax.random.normal(ks[4], (cout,), jnp.float32),
            pe_w2=_nrm(ks[5], (cout, cout), cout),
            pe_b2=0.05 * jax.random.normal(ks[6], (cout,), jnp.float32),
        )
        if cur != cout:
            lp['res_w'] = _nrm(ks[7], (cur, cout), cur)
            lp['res_b'] = 0.05 * jax.random.normal(ks[8], (cout,), jnp.float32)
        else:
            lp['res_w'] = jnp.eye(cur, dtype=jnp.float32)   # nn.Identity
            lp['res_b'] = jnp.zeros((cout,), jnp.float32)
        layers.append(lp)
        cur = cout
    key, kw, kb = jax.random.split(key, 3)
    return dict(
        layers=layers,
        freq_bands=2.0 ** jnp.arange(F, dtype=jnp.float32),
        final_w=_nrm(kw, (cur, cur // 2), cur),
        final_b=0.05 * jax.random.normal(kb, (cur // 2,), jnp.float32),
    )


def pcnn_forward_pallas(params, x_nchw, positions):
    B, cin0, H, W = x_nchw.shape
    pdim = positions.shape[-1]
    F = int(params['freq_bands'].shape[0])
    E = pdim * 2 * F

    # --- spatial tiling geometry, shared by all layers (divides exactly) ----
    W_pad = _ceil_to(W, 8)
    TR = max(1, min(H, max(1, _TARGET_ROWS // W_pad)))
    H_pad = _ceil_to(H, TR)
    n_tiles = H_pad // TR
    G = B * n_tiles
    rows = TR * W_pad

    # --- positional base features: pos[d] replicated to torch column order ---
    pos_sp = jnp.pad(positions.astype(jnp.float32),
                     ((0, 0), (0, H_pad - H), (0, W_pad - W), (0, 0)))
    pos_rep = jnp.repeat(pos_sp, 2 * F, axis=-1).reshape(B * H_pad * W_pad, E)

    freq_full = jnp.tile(params['freq_bands'], pdim * 2)              # (E,)
    phase_row = jnp.tile(
        jnp.concatenate([jnp.zeros((F,), jnp.float32),
                         jnp.full((F,), np.pi / 2, jnp.float32)]),
        pdim).reshape(1, E)

    act = jnp.transpose(x_nchw, (0, 2, 3, 1)).astype(jnp.bfloat16)    # NHWC
    cur_true = cin0
    out_flat = None

    for lp in params['layers']:
        K = lp['kernel_size']
        p = K // 2
        cout = lp['conv_w'].shape[0]
        cout_pad = _ceil_to(cout, 128)
        C_x = act.shape[-1]
        WPH = _ceil_to(W_pad + 2 * p, 8)

        xh = build_halo_tiles(act, K, TR, H_pad, WPH)

        # conv weight (cout, cin, K, K) -> (K*K, C_x, cout_pad), (kh, kw) major
        wk = jnp.transpose(lp['conv_w'], (2, 3, 1, 0)).reshape(K * K, cur_true, cout)
        wk = jnp.pad(wk, ((0, 0), (0, C_x - cur_true),
                          (0, cout_pad - cout))).astype(jnp.bfloat16)

        pc = cout_pad - cout
        gamma = jnp.pad(lp['ln_gamma'], (0, pc)).reshape(1, -1).astype(jnp.float32)
        beta = jnp.pad(lp['ln_beta'], (0, pc)).reshape(1, -1).astype(jnp.float32)
        fscale = (freq_full * jnp.abs(lp['scale'])).reshape(1, E).astype(jnp.float32)
        pe_w1 = jnp.pad(lp['pe_w1'], ((0, 0), (0, pc))).astype(jnp.bfloat16)
        pe_b1 = jnp.pad(lp['pe_b1'], (0, pc)).reshape(1, -1).astype(jnp.float32)
        pe_w2 = jnp.pad(lp['pe_w2'], ((0, pc), (0, pc))).astype(jnp.bfloat16)
        pe_b2 = jnp.pad(lp['pe_b2'], (0, pc)).reshape(1, -1).astype(jnp.float32)

        identity_res = lp['identity'] and (C_x == cout_pad)
        if identity_res:
            wres = bres = None
        else:
            wres = jnp.pad(lp['res_w'], ((0, C_x - cur_true),
                                         (0, pc))).astype(jnp.bfloat16)
            bres = jnp.pad(lp['res_b'], (0, pc)).reshape(1, -1).astype(jnp.float32)

        out_flat = pcnn_layer_pallas(
            xh, pos_rep, wk, gamma, beta, fscale, phase_row,
            pe_w1, pe_b1, pe_w2, pe_b2, wres, bres,
            K=K, TR=TR, WP=W_pad, cout_true=cout, cout_pad=cout_pad)

        # true spatial region (bf16, channel-padded) feeds the next layer
        act = out_flat.reshape(B, H_pad, W_pad, cout_pad)[:, :H, :W, :]
        cur_true = cout

    # --- final 1x1 projection on the (spatially padded) last activation -----
    cfin = params['final_w'].shape[1]
    cfin_pad = _ceil_to(cfin, 128)
    C_x = out_flat.shape[-1]
    fw = jnp.pad(params['final_w'], ((0, C_x - cur_true),
                                     (0, cfin_pad - cfin))).astype(jnp.bfloat16)
    fb = jnp.pad(params['final_b'], (0, cfin_pad - cfin)).reshape(1, -1).astype(jnp.float32)
    proj = matmul_bias_pallas(out_flat, fw, fb, block_rows=rows)
    proj = proj.reshape(B, H_pad, W_pad, cfin_pad)[:, :H, :W, :cfin]
    return jnp.transpose(proj, (0, 3, 1, 2))


# ----------------------------------------------------------------------------
# Pure-JAX f32 reference (mirrors the PyTorch module)
# ----------------------------------------------------------------------------
def pcnn_forward_ref(params, x, positions):
    HI = jax.lax.Precision.HIGHEST
    fb = params['freq_bands']
    for lp in params['layers']:
        k = lp['kernel_size']
        p = k // 2
        residual = jnp.einsum('bihw,io->bohw', x, lp['res_w'], precision=HI) \
            + lp['res_b'][None, :, None, None]
        y = jax.lax.conv_general_dilated(
            x, lp['conv_w'], (1, 1), [(p, p), (p, p)],
            dimension_numbers=('NCHW', 'OIHW', 'NCHW'), precision=HI)
        yl = jnp.transpose(y, (0, 2, 3, 1))
        mean = yl.mean(-1, keepdims=True)
        var = jnp.square(yl - mean).mean(-1, keepdims=True)
        yl = (yl - mean) / jnp.sqrt(var + 1e-5) * lp['ln_gamma'] + lp['ln_beta']
        y = jnp.transpose(yl, (0, 3, 1, 2))

        arg = positions[..., None] * fb * jnp.abs(lp['scale'])          # (B,H,W,2,F)
        enc = jnp.concatenate([jnp.sin(arg), jnp.cos(arg)], axis=-1)    # (B,H,W,2,2F)
        enc = enc.reshape(*positions.shape[:-1], -1)
        h = jax.nn.gelu(jnp.einsum('bhwe,ec->bhwc', enc, lp['pe_w1'], precision=HI)
                        + lp['pe_b1'], approximate=False)
        pf = jnp.einsum('bhwc,cd->bhwd', h, lp['pe_w2'], precision=HI) + lp['pe_b2']
        pf = jnp.transpose(pf, (0, 3, 1, 2))

        y = jax.nn.gelu(y + pf, approximate=False)
        x = y + residual
    return jnp.einsum('bihw,io->bohw', x, params['final_w'], precision=HI) \
        + params['final_b'][None, :, None, None]


# ----------------------------------------------------------------------------
if __name__ == "__main__":
    key = jax.random.PRNGKey(0)
    B, Cin, H, W = 2, 10, 8, 8
    hidden_dims = [(3, 64), (3, 128)]
    position_dim = 2

    k_x, k_p, k_w = jax.random.split(key, 3)
    x = jax.random.normal(k_x, (B, Cin, H, W), jnp.float32)
    positions = jax.random.uniform(k_p, (B, H, W, position_dim), jnp.float32)
    params = init_params(k_w, Cin, hidden_dims, position_dim)

    fwd = jax.jit(lambda xx, pp: pcnn_forward_pallas(params, xx, pp))
    out = jax.block_until_ready(fwd(x, positions))
    ref = jax.block_until_ready(pcnn_forward_ref(params, x, positions))

    assert out.shape == (B, hidden_dims[-1][1] // 2, H, W), out.shape
    if not jnp.allclose(out, ref, atol=5e-2, rtol=5e-2):
        err = float(jnp.max(jnp.abs(out - ref)))
        raise AssertionError(f"Pallas output does not match reference (max abs err {err})")
    print("KERNEL_OK")
</pallas_src>

<mosaic_0001>
module attributes {stable_mosaic.version = 11 : i64} {
  func.func @_pcnn_layer_kernel(%arg0: i32, %arg1: memref<1x10x16x10xbf16, #tpu.memory_space<vmem>>, %arg2: memref<64x24xf32, #tpu.memory_space<vmem>>, %arg3: memref<9x10x128xbf16, #tpu.memory_space<vmem>>, %arg4: memref<1x128xf32, #tpu.memory_space<vmem>>, %arg5: memref<1x128xf32, #tpu.memory_space<vmem>>, %arg6: memref<1x24xf32, #tpu.memory_space<vmem>>, %arg7: memref<1x24xf32, #tpu.memory_space<vmem>>, %arg8: memref<24x128xbf16, #tpu.memory_space<vmem>>, %arg9: memref<1x128xf32, #tpu.memory_space<vmem>>, %arg10: memref<128x128xbf16, #tpu.memory_space<vmem>>, %arg11: memref<1x128xf32, #tpu.memory_space<vmem>>, %arg12: memref<10x128xbf16, #tpu.memory_space<vmem>>, %arg13: memref<1x128xf32, #tpu.memory_space<vmem>>, %arg14: memref<64x128xbf16, #tpu.memory_space<vmem>>) attributes {dimension_semantics = [#tpu.dimension_semantics<parallel>], iteration_bounds = array<i64: 2>, scalar_prefetch = 0 : i64, scratch_operands = 0 : i64, tpu.core_type = #tpu.core_type<tc>, window_params = [{transform_indices = @transform_0, window_bounds = array<i64: 1, 10, 16, 10>}, {transform_indices = @transform_1, window_bounds = array<i64: 64, 24>}, {pipeline_mode = #tpu.pipeline_mode<synchronous>, transform_indices = @transform_2, window_bounds = array<i64: 9, 10, 128>}, {pipeline_mode = #tpu.pipeline_mode<synchronous>, transform_indices = @transform_3, window_bounds = array<i64: 1, 128>}, {pipeline_mode = #tpu.pipeline_mode<synchronous>, transform_indices = @transform_4, window_bounds = array<i64: 1, 128>}, {pipeline_mode = #tpu.pipeline_mode<synchronous>, transform_indices = @transform_5, window_bounds = array<i64: 1, 24>}, {pipeline_mode = #tpu.pipeline_mode<synchronous>, transform_indices = @transform_6, window_bounds = array<i64: 1, 24>}, {pipeline_mode = #tpu.pipeline_mode<synchronous>, transform_indices = @transform_7, window_bounds = array<i64: 24, 128>}, {pipeline_mode = #tpu.pipeline_mode<synchronous>, transform_indices = @transform_8, window_bounds = array<i64: 1, 128>}, {pipeline_mode = #tpu.pipeline_mode<synchronous>, transform_indices = @transform_9, window_bounds = array<i64: 128, 128>}, {pipeline_mode = #tpu.pipeline_mode<synchronous>, transform_indices = @transform_10, window_bounds = array<i64: 1, 128>}, {pipeline_mode = #tpu.pipeline_mode<synchronous>, transform_indices = @transform_11, window_bounds = array<i64: 10, 128>}, {pipeline_mode = #tpu.pipeline_mode<synchronous>, transform_indices = @transform_12, window_bounds = array<i64: 1, 128>}, {transform_indices = @transform_13, window_bounds = array<i64: 64, 128>}]} {
    %c0 = arith.constant 0 : index
    %c0_0 = arith.constant 0 : index
    %c0_1 = arith.constant 0 : index
    %c0_2 = arith.constant 0 : index
    %0 = vector.load %arg1[%c0, %c0_0, %c0_1, %c0_2] : memref<1x10x16x10xbf16, #tpu.memory_space<vmem>>, vector<1x10x16x10xbf16>
    %1 = vector.shape_cast %0 : vector<1x10x16x10xbf16> to vector<10x16x10xbf16>
    %2 = arith.extf %1 : vector<10x16x10xbf16> to vector<10x16x10xf32>
    %cst = arith.constant 0.000000e+00 : f32
    %3 = vector.broadcast %cst : f32 to vector<64x128xf32>
    %4 = vector.extract_strided_slice %2 {offsets = [0, 0, 0], sizes = [8, 8, 10], strides = [1, 1, 1]} : vector<10x16x10xf32> to vector<8x8x10xf32>
    %5 = vector.shape_cast %4 : vector<8x8x10xf32> to vector<64x10xf32>
    %6 = arith.truncf %5 : vector<64x10xf32> to vector<64x10xbf16>
    %c0_3 = arith.constant 0 : index
    %c0_4 = arith.constant 0 : index
    %c0_5 = arith.constant 0 : index
    %7 = vector.load %arg3[%c0_3, %c0_4, %c0_5] : memref<9x10x128xbf16, #tpu.memory_space<vmem>>, vector<1x10x128xbf16>
    %8 = vector.shape_cast %7 : vector<1x10x128xbf16> to vector<10x128xbf16>
    %cst_6 = arith.constant dense<0.000000e+00> : vector<64x128xf32>
    %9 = tpu.matmul %6, %8, %cst_6 {dimension_numbers = #tpu.dot_dimension_numbers<[1], [0], [0], [1], [0, 0, 1, 1], [], []>} : vector<64x10xbf16>, vector<10x128xbf16>, vector<64x128xf32> -> vector<64x128xf32>
    %10 = arith.addf %3, %9 : vector<64x128xf32>
    %11 = vector.extract_strided_slice %2 {offsets = [0, 1, 0], sizes = [8, 8, 10], strides = [1, 1, 1]} : vector<10x16x10xf32> to vector<8x8x10xf32>
    %12 = vector.shape_cast %11 : vector<8x8x10xf32> to vector<64x10xf32>
    %13 = arith.truncf %12 : vector<64x10xf32> to vector<64x10xbf16>
    %c1 = arith.constant 1 : index
    %c0_7 = arith.constant 0 : index
    %c0_8 = arith.constant 0 : index
    %14 = vector.load %arg3[%c1, %c0_7, %c0_8] : memref<9x10x128xbf16, #tpu.memory_space<vmem>>, vector<1x10x128xbf16>
    %15 = vector.shape_cast %14 : vector<1x10x128xbf16> to vector<10x128xbf16>
    %cst_9 = arith.constant dense<0.000000e+00> : vector<64x128xf32>
    %16 = tpu.matmul %13, %15, %cst_9 {dimension_numbers = #tpu.dot_dimension_numbers<[1], [0], [0], [1], [0, 0, 1, 1], [], []>} : vector<64x10xbf16>, vector<10x128xbf16>, vector<64x128xf32> -> vector<64x128xf32>
    %17 = arith.addf %10, %16 : vector<64x128xf32>
    %18 = vector.extract_strided_slice %2 {offsets = [0, 2, 0], sizes = [8, 8, 10], strides = [1, 1, 1]} : vector<10x16x10xf32> to vector<8x8x10xf32>
    %19 = vector.shape_cast %18 : vector<8x8x10xf32> to vector<64x10xf32>
    %20 = arith.truncf %19 : vector<64x10xf32> to vector<64x10xbf16>
    %c2 = arith.constant 2 : index
    %c0_10 = arith.constant 0 : index
    %c0_11 = arith.constant 0 : index
    %21 = vector.load %arg3[%c2, %c0_10, %c0_11] : memref<9x10x128xbf16, #tpu.memory_space<vmem>>, vector<1x10x128xbf16>
    %22 = vector.shape_cast %21 : vector<1x10x128xbf16> to vector<10x128xbf16>
    %cst_12 = arith.constant dense<0.000000e+00> : vector<64x128xf32>
    %23 = tpu.matmul %20, %22, %cst_12 {dimension_numbers = #tpu.dot_dimension_numbers<[1], [0], [0], [1], [0, 0, 1, 1], [], []>} : vector<64x10xbf16>, vector<10x128xbf16>, vector<64x128xf32> -> vector<64x128xf32>
    %24 = arith.addf %17, %23 : vector<64x128xf32>
    %25 = vector.extract_strided_slice %2 {offsets = [1, 0, 0], sizes = [8, 8, 10], strides = [1, 1, 1]} : vector<10x16x10xf32> to vector<8x8x10xf32>
    %26 = vector.shape_cast %25 : vector<8x8x10xf32> to vector<64x10xf32>
    %27 = arith.truncf %26 : vector<64x10xf32> to vector<64x10xbf16>
    %c3 = arith.constant 3 : index
    %c0_13 = arith.constant 0 : index
    %c0_14 = arith.constant 0 : index
    %28 = vector.load %arg3[%c3, %c0_13, %c0_14] : memref<9x10x128xbf16, #tpu.memory_space<vmem>>, vector<1x10x128xbf16>
    %29 = vector.shape_cast %28 : vector<1x10x128xbf16> to vector<10x128xbf16>
    %cst_15 = arith.constant dense<0.000000e+00> : vector<64x128xf32>
    %30 = tpu.matmul %27, %29, %cst_15 {dimension_numbers = #tpu.dot_dimension_numbers<[1], [0], [0], [1], [0, 0, 1, 1], [], []>} : vector<64x10xbf16>, vector<10x128xbf16>, vector<64x128xf32> -> vector<64x128xf32>
    %31 = arith.addf %24, %30 : vector<64x128xf32>
    %32 = vector.extract_strided_slice %2 {offsets = [1, 1, 0], sizes = [8, 8, 10], strides = [1, 1, 1]} : vector<10x16x10xf32> to vector<8x8x10xf32>
    %33 = vector.shape_cast %32 : vector<8x8x10xf32> to vector<64x10xf32>
    %34 = arith.truncf %33 : vector<64x10xf32> to vector<64x10xbf16>
    %c4 = arith.constant 4 : index
    %c0_16 = arith.constant 0 : index
    %c0_17 = arith.constant 0 : index
    %35 = vector.load %arg3[%c4, %c0_16, %c0_17] : memref<9x10x128xbf16, #tpu.memory_space<vmem>>, vector<1x10x128xbf16>
    %36 = vector.shape_cast %35 : vector<1x10x128xbf16> to vector<10x128xbf16>
    %cst_18 = arith.constant dense<0.000000e+00> : vector<64x128xf32>
    %37 = tpu.matmul %34, %36, %cst_18 {dimension_numbers = #tpu.dot_dimension_numbers<[1], [0], [0], [1], [0, 0, 1, 1], [], []>} : vector<64x10xbf16>, vector<10x128xbf16>, vector<64x128xf32> -> vector<64x128xf32>
    %38 = arith.addf %31, %37 : vector<64x128xf32>
    %39 = vector.extract_strided_slice %2 {offsets = [1, 2, 0], sizes = [8, 8, 10], strides = [1, 1, 1]} : vector<10x16x10xf32> to vector<8x8x10xf32>
    %40 = vector.shape_cast %39 : vector<8x8x10xf32> to vector<64x10xf32>
    %41 = arith.truncf %40 : vector<64x10xf32> to vector<64x10xbf16>
    %c5 = arith.constant 5 : index
    %c0_19 = arith.constant 0 : index
    %c0_20 = arith.constant 0 : index
    %42 = vector.load %arg3[%c5, %c0_19, %c0_20] : memref<9x10x128xbf16, #tpu.memory_space<vmem>>, vector<1x10x128xbf16>
    %43 = vector.shape_cast %42 : vector<1x10x128xbf16> to vector<10x128xbf16>
    %cst_21 = arith.constant dense<0.000000e+00> : vector<64x128xf32>
    %44 = tpu.matmul %41, %43, %cst_21 {dimension_numbers = #tpu.dot_dimension_numbers<[1], [0], [0], [1], [0, 0, 1, 1], [], []>} : vector<64x10xbf16>, vector<10x128xbf16>, vector<64x128xf32> -> vector<64x128xf32>
    %45 = arith.addf %38, %44 : vector<64x128xf32>
    %46 = vector.extract_strided_slice %2 {offsets = [2, 0, 0], sizes = [8, 8, 10], strides = [1, 1, 1]} : vector<10x16x10xf32> to vector<8x8x10xf32>
    %47 = vector.shape_cast %46 : vector<8x8x10xf32> to vector<64x10xf32>
    %48 = arith.truncf %47 : vector<64x10xf32> to vector<64x10xbf16>
    %c6 = arith.constant 6 : index
    %c0_22 = arith.constant 0 : index
    %c0_23 = arith.constant 0 : index
    %49 = vector.load %arg3[%c6, %c0_22, %c0_23] : memref<9x10x128xbf16, #tpu.memory_space<vmem>>, vector<1x10x128xbf16>
    %50 = vector.shape_cast %49 : vector<1x10x128xbf16> to vector<10x128xbf16>
    %cst_24 = arith.constant dense<0.000000e+00> : vector<64x128xf32>
    %51 = tpu.matmul %48, %50, %cst_24 {dimension_numbers = #tpu.dot_dimension_numbers<[1], [0], [0], [1], [0, 0, 1, 1], [], []>} : vector<64x10xbf16>, vector<10x128xbf16>, vector<64x128xf32> -> vector<64x128xf32>
    %52 = arith.addf %45, %51 : vector<64x128xf32>
    %53 = vector.extract_strided_slice %2 {offsets = [2, 1, 0], sizes = [8, 8, 10], strides = [1, 1, 1]} : vector<10x16x10xf32> to vector<8x8x10xf32>
    %54 = vector.shape_cast %53 : vector<8x8x10xf32> to vector<64x10xf32>
    %55 = arith.truncf %54 : vector<64x10xf32> to vector<64x10xbf16>
    %c7 = arith.constant 7 : index
    %c0_25 = arith.constant 0 : index
    %c0_26 = arith.constant 0 : index
    %56 = vector.load %arg3[%c7, %c0_25, %c0_26] : memref<9x10x128xbf16, #tpu.memory_space<vmem>>, vector<1x10x128xbf16>
    %57 = vector.shape_cast %56 : vector<1x10x128xbf16> to vector<10x128xbf16>
    %cst_27 = arith.constant dense<0.000000e+00> : vector<64x128xf32>
    %58 = tpu.matmul %55, %57, %cst_27 {dimension_numbers = #tpu.dot_dimension_numbers<[1], [0], [0], [1], [0, 0, 1, 1], [], []>} : vector<64x10xbf16>, vector<10x128xbf16>, vector<64x128xf32> -> vector<64x128xf32>
    %59 = arith.addf %52, %58 : vector<64x128xf32>
    %60 = vector.extract_strided_slice %2 {offsets = [2, 2, 0], sizes = [8, 8, 10], strides = [1, 1, 1]} : vector<10x16x10xf32> to vector<8x8x10xf32>
    %61 = vector.shape_cast %60 : vector<8x8x10xf32> to vector<64x10xf32>
    %62 = arith.truncf %61 : vector<64x10xf32> to vector<64x10xbf16>
    %c8 = arith.constant 8 : index
    %c0_28 = arith.constant 0 : index
    %c0_29 = arith.constant 0 : index
    %63 = vector.load %arg3[%c8, %c0_28, %c0_29] : memref<9x10x128xbf16, #tpu.memory_space<vmem>>, vector<1x10x128xbf16>
    %64 = vector.shape_cast %63 : vector<1x10x128xbf16> to vector<10x128xbf16>
    %cst_30 = arith.constant dense<0.000000e+00> : vector<64x128xf32>
    %65 = tpu.matmul %62, %64, %cst_30 {dimension_numbers = #tpu.dot_dimension_numbers<[1], [0], [0], [1], [0, 0, 1, 1], [], []>} : vector<64x10xbf16>, vector<10x128xbf16>, vector<64x128xf32> -> vector<64x128xf32>
    %66 = arith.addf %59, %65 : vector<64x128xf32>
    %cst_31 = arith.constant dense<0.000000e+00> : vector<64xf32>
    %67 = vector.multi_reduction <add>, %66, %cst_31 [1] : vector<64x128xf32> to vector<64xf32>
    %68 = vector.shape_cast %67 : vector<64xf32> to vector<64x1xf32>
    %cst_32 = arith.constant 1.562500e-02 : f32
    %69 = vector.broadcast %cst_32 : f32 to vector<64x1xf32>
    %70 = arith.mulf %68, %69 : vector<64x1xf32>
    %71 = arith.mulf %66, %66 : vector<64x128xf32>
    %cst_33 = arith.constant dense<0.000000e+00> : vector<64xf32>
    %72 = vector.multi_reduction <add>, %71, %cst_33 [1] : vector<64x128xf32> to vector<64xf32>
    %73 = vector.shape_cast %72 : vector<64xf32> to vector<64x1xf32>
    %cst_34 = arith.constant 1.562500e-02 : f32
    %74 = vector.broadcast %cst_34 : f32 to vector<64x1xf32>
    %75 = arith.mulf %73, %74 : vector<64x1xf32>
    %76 = arith.mulf %70, %70 : vector<64x1xf32>
    %77 = arith.subf %75, %76 : vector<64x1xf32>
    %78 = vector.broadcast %70 : vector<64x1xf32> to vector<64x128xf32>
    %79 = arith.subf %66, %78 : vector<64x128xf32>
    %cst_35 = arith.constant 9.99999974E-6 : f32
    %80 = vector.broadcast %cst_35 : f32 to vector<64x1xf32>
    %81 = arith.addf %77, %80 : vector<64x1xf32>
    %82 = math.rsqrt %81 : vector<64x1xf32>
    %83 = vector.broadcast %82 : vector<64x1xf32> to vector<64x128xf32>
    %84 = arith.mulf %79, %83 : vector<64x128xf32>
    %c0_36 = arith.constant 0 : index
    %c0_37 = arith.constant 0 : index
    %85 = vector.load %arg4[%c0_36, %c0_37] : memref<1x128xf32, #tpu.memory_space<vmem>>, vector<1x128xf32>
    %86 = vector.broadcast %85 : vector<1x128xf32> to vector<64x128xf32>
    %87 = arith.mulf %84, %86 : vector<64x128xf32>
    %c0_38 = arith.constant 0 : index
    %c0_39 = arith.constant 0 : index
    %88 = vector.load %arg5[%c0_38, %c0_39] : memref<1x128xf32, #tpu.memory_space<vmem>>, vector<1x128xf32>
    %89 = vector.broadcast %88 : vector<1x128xf32> to vector<64x128xf32>
    %90 = arith.addf %87, %89 : vector<64x128xf32>
    %c0_40 = arith.constant 0 : index
    %c0_41 = arith.constant 0 : index
    %91 = vector.load %arg2[%c0_40, %c0_41] : memref<64x24xf32, #tpu.memory_space<vmem>>, vector<64x24xf32>
    %c0_42 = arith.constant 0 : index
    %c0_43 = arith.constant 0 : index
    %92 = vector.load %arg6[%c0_42, %c0_43] : memref<1x24xf32, #tpu.memory_space<vmem>>, vector<1x24xf32>
    %93 = vector.broadcast %92 : vector<1x24xf32> to vector<64x24xf32>
    %94 = arith.mulf %91, %93 : vector<64x24xf32>
    %c0_44 = arith.constant 0 : index
    %c0_45 = arith.constant 0 : index
    %95 = vector.load %arg7[%c0_44, %c0_45] : memref<1x24xf32, #tpu.memory_space<vmem>>, vector<1x24xf32>
    %96 = vector.broadcast %95 : vector<1x24xf32> to vector<64x24xf32>
    %97 = arith.addf %94, %96 : vector<64x24xf32>
    %98 = math.sin %97 : vector<64x24xf32>
    %99 = arith.truncf %98 : vector<64x24xf32> to vector<64x24xbf16>
    %c0_46 = arith.constant 0 : index
    %c0_47 = arith.constant 0 : index
    %100 = vector.load %arg8[%c0_46, %c0_47] : memref<24x128xbf16, #tpu.memory_space<vmem>>, vector<24x128xbf16>
    %cst_48 = arith.constant dense<0.000000e+00> : vector<64x128xf32>
    %101 = tpu.matmul %99, %100, %cst_48 {dimension_numbers = #tpu.dot_dimension_numbers<[1], [0], [0], [1], [0, 0, 1, 1], [], []>} : vector<64x24xbf16>, vector<24x128xbf16>, vector<64x128xf32> -> vector<64x128xf32>
    %c0_49 = arith.constant 0 : index
    %c0_50 = arith.constant 0 : index
    %102 = vector.load %arg9[%c0_49, %c0_50] : memref<1x128xf32, #tpu.memory_space<vmem>>, vector<1x128xf32>
    %103 = vector.broadcast %102 : vector<1x128xf32> to vector<64x128xf32>
    %104 = arith.addf %101, %103 : vector<64x128xf32>
    %cst_51 = arith.constant 5.000000e-01 : f32
    %105 = vector.broadcast %cst_51 : f32 to vector<64x128xf32>
    %106 = arith.mulf %105, %104 : vector<64x128xf32>
    %cst_52 = arith.constant 0.707106769 : f32
    %107 = vector.broadcast %cst_52 : f32 to vector<64x128xf32>
    %108 = arith.mulf %104, %107 : vector<64x128xf32>
    %109 = math.absf %108 : vector<64x128xf32>
    %cst_53 = arith.constant 0.327591091 : f32
    %110 = vector.broadcast %cst_53 : f32 to vector<64x128xf32>
    %111 = arith.mulf %110, %109 : vector<64x128xf32>
    %cst_54 = arith.constant 1.000000e+00 : f32
    %112 = vector.broadcast %cst_54 : f32 to vector<64x128xf32>
    %113 = arith.addf %112, %111 : vector<64x128xf32>
    %114 = tpu.reciprocal %113 {approx = true} : vector<64x128xf32> -> vector<64x128xf32>
    %cst_55 = arith.constant 1.06140542 : f32
    %115 = vector.broadcast %cst_55 : f32 to vector<64x128xf32>
    %116 = arith.mulf %115, %114 : vector<64x128xf32>
    %cst_56 = arith.constant -1.45315206 : f32
    %117 = vector.broadcast %cst_56 : f32 to vector<64x128xf32>
    %118 = arith.addf %116, %117 : vector<64x128xf32>
    %119 = arith.mulf %118, %114 : vector<64x128xf32>
    %cst_57 = arith.constant 1.42141378 : f32
    %120 = vector.broadcast %cst_57 : f32 to vector<64x128xf32>
    %121 = arith.addf %119, %120 : vector<64x128xf32>
    %122 = arith.mulf %121, %114 : vector<64x128xf32>
    %cst_58 = arith.constant -0.284496725 : f32
    %123 = vector.broadcast %cst_58 : f32 to vector<64x128xf32>
    %124 = arith.addf %122, %123 : vector<64x128xf32>
    %125 = arith.mulf %124, %114 : vector<64x128xf32>
    %cst_59 = arith.constant 0.254829586 : f32
    %126 = vector.broadcast %cst_59 : f32 to vector<64x128xf32>
    %127 = arith.addf %125, %126 : vector<64x128xf32>
    %128 = arith.mulf %127, %114 : vector<64x128xf32>
    %cst_60 = arith.constant 0.000000e+00 : f32
    %129 = vector.broadcast %cst_60 : f32 to vector<64x128xf32>
    %130 = arith.subf %129, %109 : vector<64x128xf32>
    %131 = arith.mulf %130, %109 : vector<64x128xf32>
    %132 = math.exp %131 : vector<64x128xf32>
    %133 = arith.mulf %128, %132 : vector<64x128xf32>
    %cst_61 = arith.constant 1.000000e+00 : f32
    %134 = vector.broadcast %cst_61 : f32 to vector<64x128xf32>
    %135 = arith.subf %134, %133 : vector<64x128xf32>
    %cst_62 = arith.constant 0.000000e+00 : f32
    %136 = vector.broadcast %cst_62 : f32 to vector<64x128xf32>
    %137 = arith.cmpf olt, %108, %136 : vector<64x128xf32>
    %cst_63 = arith.constant 0.000000e+00 : f32
    %138 = vector.broadcast %cst_63 : f32 to vector<64x128xf32>
    %139 = arith.subf %138, %135 : vector<64x128xf32>
    %140 = arith.select %137, %139, %135 : vector<64x128xi1>, vector<64x128xf32>
    %cst_64 = arith.constant 1.000000e+00 : f32
    %141 = vector.broadcast %cst_64 : f32 to vector<64x128xf32>
    %142 = arith.addf %141, %140 : vector<64x128xf32>
    %143 = arith.mulf %106, %142 : vector<64x128xf32>
    %144 = arith.truncf %143 : vector<64x128xf32> to vector<64x128xbf16>
    %c0_65 = arith.constant 0 : index
    %c0_66 = arith.constant 0 : index
    %145 = vector.load %arg10[%c0_65, %c0_66] : memref<128x128xbf16, #tpu.memory_space<vmem>>, vector<128x128xbf16>
    %cst_67 = arith.constant dense<0.000000e+00> : vector<64x128xf32>
    %146 = tpu.matmul %144, %145, %cst_67 {dimension_numbers = #tpu.dot_dimension_numbers<[1], [0], [0], [1], [0, 0, 1, 1], [], []>} : vector<64x128xbf16>, vector<128x128xbf16>, vector<64x128xf32> -> vector<64x128xf32>
    %c0_68 = arith.constant 0 : index
    %c0_69 = arith.constant 0 : index
    %147 = vector.load %arg11[%c0_68, %c0_69] : memref<1x128xf32, #tpu.memory_space<vmem>>, vector<1x128xf32>
    %148 = vector.broadcast %147 : vector<1x128xf32> to vector<64x128xf32>
    %149 = arith.addf %146, %148 : vector<64x128xf32>
    %150 = arith.addf %90, %149 : vector<64x128xf32>
    %cst_70 = arith.constant 5.000000e-01 : f32
    %151 = vector.broadcast %cst_70 : f32 to vector<64x128xf32>
    %152 = arith.mulf %151, %150 : vector<64x128xf32>
    %cst_71 = arith.constant 0.707106769 : f32
    %153 = vector.broadcast %cst_71 : f32 to vector<64x128xf32>
    %154 = arith.mulf %150, %153 : vector<64x128xf32>
    %155 = math.absf %154 : vector<64x128xf32>
    %cst_72 = arith.constant 0.327591091 : f32
    %156 = vector.broadcast %cst_72 : f32 to vector<64x128xf32>
    %157 = arith.mulf %156, %155 : vector<64x128xf32>
    %cst_73 = arith.constant 1.000000e+00 : f32
    %158 = vector.broadcast %cst_73 : f32 to vector<64x128xf32>
    %159 = arith.addf %158, %157 : vector<64x128xf32>
    %160 = tpu.reciprocal %159 {approx = true} : vector<64x128xf32> -> vector<64x128xf32>
    %cst_74 = arith.constant 1.06140542 : f32
    %161 = vector.broadcast %cst_74 : f32 to vector<64x128xf32>
    %162 = arith.mulf %161, %160 : vector<64x128xf32>
    %cst_75 = arith.constant -1.45315206 : f32
    %163 = vector.broadcast %cst_75 : f32 to vector<64x128xf32>
    %164 = arith.addf %162, %163 : vector<64x128xf32>
    %165 = arith.mulf %164, %160 : vector<64x128xf32>
    %cst_76 = arith.constant 1.42141378 : f32
    %166 = vector.broadcast %cst_76 : f32 to vector<64x128xf32>
    %167 = arith.addf %165, %166 : vector<64x128xf32>
    %168 = arith.mulf %167, %160 : vector<64x128xf32>
    %cst_77 = arith.constant -0.284496725 : f32
    %169 = vector.broadcast %cst_77 : f32 to vector<64x128xf32>
    %170 = arith.addf %168, %169 : vector<64x128xf32>
    %171 = arith.mulf %170, %160 : vector<64x128xf32>
    %cst_78 = arith.constant 0.254829586 : f32
    %172 = vector.broadcast %cst_78 : f32 to vector<64x128xf32>
    %173 = arith.addf %171, %172 : vector<64x128xf32>
    %174 = arith.mulf %173, %160 : vector<64x128xf32>
    %cst_79 = arith.constant 0.000000e+00 : f32
    %175 = vector.broadcast %cst_79 : f32 to vector<64x128xf32>
    %176 = arith.subf %175, %155 : vector<64x128xf32>
    %177 = arith.mulf %176, %155 : vector<64x128xf32>
    %178 = math.exp %177 : vector<64x128xf32>
    %179 = arith.mulf %174, %178 : vector<64x128xf32>
    %cst_80 = arith.constant 1.000000e+00 : f32
    %180 = vector.broadcast %cst_80 : f32 to vector<64x128xf32>
    %181 = arith.subf %180, %179 : vector<64x128xf32>
    %cst_81 = arith.constant 0.000000e+00 : f32
    %182 = vector.broadcast %cst_81 : f32 to vector<64x128xf32>
    %183 = arith.cmpf olt, %154, %182 : vector<64x128xf32>
    %cst_82 = arith.constant 0.000000e+00 : f32
    %184 = vector.broadcast %cst_82 : f32 to vector<64x128xf32>
    %185 = arith.subf %184, %181 : vector<64x128xf32>
    %186 = arith.select %183, %185, %181 : vector<64x128xi1>, vector<64x128xf32>
    %cst_83 = arith.constant 1.000000e+00 : f32
    %187 = vector.broadcast %cst_83 : f32 to vector<64x128xf32>
    %188 = arith.addf %187, %186 : vector<64x128xf32>
    %189 = arith.mulf %152, %188 : vector<64x128xf32>
    %190 = vector.extract_strided_slice %2 {offsets = [1, 1, 0], sizes = [8, 8, 10], strides = [1, 1, 1]} : vector<10x16x10xf32> to vector<8x8x10xf32>
    %191 = vector.shape_cast %190 : vector<8x8x10xf32> to vector<64x10xf32>
    %192 = arith.truncf %191 : vector<64x10xf32> to vector<64x10xbf16>
    %c0_84 = arith.constant 0 : index
    %c0_85 = arith.constant 0 : index
    %193 = vector.load %arg12[%c0_84, %c0_85] : memref<10x128xbf16, #tpu.memory_space<vmem>>, vector<10x128xbf16>
    %cst_86 = arith.constant dense<0.000000e+00> : vector<64x128xf32>
    %194 = tpu.matmul %192, %193, %cst_86 {dimension_numbers = #tpu.dot_dimension_numbers<[1], [0], [0], [1], [0, 0, 1, 1], [], []>} : vector<64x10xbf16>, vector<10x128xbf16>, vector<64x128xf32> -> vector<64x128xf32>
    %c0_87 = arith.constant 0 : index
    %c0_88 = arith.constant 0 : index
    %195 = vector.load %arg13[%c0_87, %c0_88] : memref<1x128xf32, #tpu.memory_space<vmem>>, vector<1x128xf32>
    %196 = vector.broadcast %195 : vector<1x128xf32> to vector<64x128xf32>
    %197 = arith.addf %194, %196 : vector<64x128xf32>
    %198 = arith.addf %189, %197 : vector<64x128xf32>
    %199 = arith.truncf %198 : vector<64x128xf32> to vector<64x128xbf16>
    %c0_89 = arith.constant 0 : index
    %c0_90 = arith.constant 0 : index
    %200 = vector.load %arg14[%c0_89, %c0_90] : memref<64x128xbf16, #tpu.memory_space<vmem>>, vector<64x128xbf16>
    tpu.vector_store %arg14[%c0_89, %c0_90], %199 {strides = array<i32>} : memref<64x128xbf16, #tpu.memory_space<vmem>>, vector<64x128xbf16>,
    return
  }
  func.func @transform_0(%arg0: i32) -> (i32, i32, i32, i32) {
    %c0_i32 = arith.constant 0 : i32
    %c0_i32_0 = arith.constant 0 : i32
    %c0_i32_1 = arith.constant 0 : i32
    %c0_i32_2 = arith.constant 0 : i32
    return %arg0, %c0_i32, %c0_i32_0, %c0_i32_1 : i32, i32, i32, i32
  }
  func.func @transform_1(%arg0: i32) -> (i32, i32) {
    %c0_i32 = arith.constant 0 : i32
    %c0_i32_0 = arith.constant 0 : i32
    return %arg0, %c0_i32 : i32, i32
  }
  func.func @transform_2(%arg0: i32) -> (i32, i32, i32) {
    %c0_i32 = arith.constant 0 : i32
    %c0_i32_0 = arith.constant 0 : i32
    %c0_i32_1 = arith.constant 0 : i32
    %c0_i32_2 = arith.constant 0 : i32
    return %c0_i32, %c0_i32_0, %c0_i32_1 : i32, i32, i32
  }
  func.func @transform_3(%arg0: i32) -> (i32, i32) {
    %c0_i32 = arith.constant 0 : i32
    %c0_i32_0 = arith.constant 0 : i32
    %c0_i32_1 = arith.constant 0 : i32
    return %c0_i32, %c0_i32_0 : i32, i32
  }
  func.func @transform_4(%arg0: i32) -> (i32, i32) {
    %c0_i32 = arith.constant 0 : i32
    %c0_i32_0 = arith.constant 0 : i32
    %c0_i32_1 = arith.constant 0 : i32
    return %c0_i32, %c0_i32_0 : i32, i32
  }
  func.func @transform_5(%arg0: i32) -> (i32, i32) {
    %c0_i32 = arith.constant 0 : i32
    %c0_i32_0 = arith.constant 0 : i32
    %c0_i32_1 = arith.constant 0 : i32
    return %c0_i32, %c0_i32_0 : i32, i32
  }
  func.func @transform_6(%arg0: i32) -> (i32, i32) {
    %c0_i32 = arith.constant 0 : i32
    %c0_i32_0 = arith.constant 0 : i32
    %c0_i32_1 = arith.constant 0 : i32
    return %c0_i32, %c0_i32_0 : i32, i32
  }
  func.func @transform_7(%arg0: i32) -> (i32, i32) {
    %c0_i32 = arith.constant 0 : i32
    %c0_i32_0 = arith.constant 0 : i32
    %c0_i32_1 = arith.constant 0 : i32
    return %c0_i32, %c0_i32_0 : i32, i32
  }
  func.func @transform_8(%arg0: i32) -> (i32, i32) {
    %c0_i32 = arith.constant 0 : i32
    %c0_i32_0 = arith.constant 0 : i32
    %c0_i32_1 = arith.constant 0 : i32
    return %c0_i32, %c0_i32_0 : i32, i32
  }
  func.func @transform_9(%arg0: i32) -> (i32, i32) {
    %c0_i32 = arith.constant 0 : i32
    %c0_i32_0 = arith.constant 0 : i32
    %c0_i32_1 = arith.constant 0 : i32
    return %c0_i32, %c0_i32_0 : i32, i32
  }
  func.func @transform_10(%arg0: i32) -> (i32, i32) {
    %c0_i32 = arith.constant 0 : i32
    %c0_i32_0 = arith.constant 0 : i32
    %c0_i32_1 = arith.constant 0 : i32
    return %c0_i32, %c0_i32_0 : i32, i32
  }
  func.func @transform_11(%arg0: i32) -> (i32, i32) {
    %c0_i32 = arith.constant 0 : i32
    %c0_i32_0 = arith.constant 0 : i32
    %c0_i32_1 = arith.constant 0 : i32
    return %c0_i32, %c0_i32_0 : i32, i32
  }
  func.func @transform_12(%arg0: i32) -> (i32, i32) {
    %c0_i32 = arith.constant 0 : i32
    %c0_i32_0 = arith.constant 0 : i32
    %c0_i32_1 = arith.constant 0 : i32
    return %c0_i32, %c0_i32_0 : i32, i32
  }
  func.func @transform_13(%arg0: i32) -> (i32, i32) {
    %c0_i32 = arith.constant 0 : i32
    %c0_i32_0 = arith.constant 0 : i32
    return %arg0, %c0_i32 : i32, i32
  }
}

module attributes {stable_mosaic.version = 11 : i64} {
  func.func @_pcnn_layer_kernel(%arg0: i32, %arg1: memref<1x10x16x128xbf16, #tpu.memory_space<vmem>>, %arg2: memref<64x24xf32, #tpu.memory_space<vmem>>, %arg3: memref<9x128x128xbf16, #tpu.memory_space<vmem>>, %arg4: memref<1x128xf32, #tpu.memory_space<vmem>>, %arg5: memref<1x128xf32, #tpu.memory_space<vmem>>, %arg6: memref<1x24xf32, #tpu.memory_space<vmem>>, %arg7: memref<1x24xf32, #tpu.memory_space<vmem>>, %arg8: memref<24x128xbf16, #tpu.memory_space<vmem>>, %arg9: memref<1x128xf32, #tpu.memory_space<vmem>>, %arg10: memref<128x128xbf16, #tpu.memory_space<vmem>>, %arg11: memref<1x128xf32, #tpu.memory_space<vmem>>, %arg12: memref<128x128xbf16, #tpu.memory_space<vmem>>, %arg13: memref<1x128xf32, #tpu.memory_space<vmem>>, %arg14: memref<64x128xbf16, #tpu.memory_space<vmem>>) attributes {dimension_semantics = [#tpu.dimension_semantics<parallel>], iteration_bounds = array<i64: 2>, scalar_prefetch = 0 : i64, scratch_operands = 0 : i64, tpu.core_type = #tpu.core_type<tc>, window_params = [{transform_indices = @transform_0, window_bounds = array<i64: 1, 10, 16, 128>}, {transform_indices = @transform_1, window_bounds = array<i64: 64, 24>}, {pipeline_mode = #tpu.pipeline_mode<synchronous>, transform_indices = @transform_2, window_bounds = array<i64: 9, 128, 128>}, {pipeline_mode = #tpu.pipeline_mode<synchronous>, transform_indices = @transform_3, window_bounds = array<i64: 1, 128>}, {pipeline_mode = #tpu.pipeline_mode<synchronous>, transform_indices = @transform_4, window_bounds = array<i64: 1, 128>}, {pipeline_mode = #tpu.pipeline_mode<synchronous>, transform_indices = @transform_5, window_bounds = array<i64: 1, 24>}, {pipeline_mode = #tpu.pipeline_mode<synchronous>, transform_indices = @transform_6, window_bounds = array<i64: 1, 24>}, {pipeline_mode = #tpu.pipeline_mode<synchronous>, transform_indices = @transform_7, window_bounds = array<i64: 24, 128>}, {pipeline_mode = #tpu.pipeline_mode<synchronous>, transform_indices = @transform_8, window_bounds = array<i64: 1, 128>}, {pipeline_mode = #tpu.pipeline_mode<synchronous>, transform_indices = @transform_9, window_bounds = array<i64: 128, 128>}, {pipeline_mode = #tpu.pipeline_mode<synchronous>, transform_indices = @transform_10, window_bounds = array<i64: 1, 128>}, {pipeline_mode = #tpu.pipeline_mode<synchronous>, transform_indices = @transform_11, window_bounds = array<i64: 128, 128>}, {pipeline_mode = #tpu.pipeline_mode<synchronous>, transform_indices = @transform_12, window_bounds = array<i64: 1, 128>}, {transform_indices = @transform_13, window_bounds = array<i64: 64, 128>}]} {
    %c0 = arith.constant 0 : index
    %c0_0 = arith.constant 0 : index
    %c0_1 = arith.constant 0 : index
    %c0_2 = arith.constant 0 : index
    %0 = vector.load %arg1[%c0, %c0_0, %c0_1, %c0_2] : memref<1x10x16x128xbf16, #tpu.memory_space<vmem>>, vector<1x10x16x128xbf16>
    %1 = vector.shape_cast %0 : vector<1x10x16x128xbf16> to vector<10x16x128xbf16>
    %2 = arith.extf %1 : vector<10x16x128xbf16> to vector<10x16x128xf32>
    %cst = arith.constant 0.000000e+00 : f32
    %3 = vector.broadcast %cst : f32 to vector<64x128xf32>
    %4 = vector.extract_strided_slice %2 {offsets = [0, 0, 0], sizes = [8, 8, 128], strides = [1, 1, 1]} : vector<10x16x128xf32> to vector<8x8x128xf32>
    %5 = vector.shape_cast %4 : vector<8x8x128xf32> to vector<64x128xf32>
    %6 = arith.truncf %5 : vector<64x128xf32> to vector<64x128xbf16>
    %c0_3 = arith.constant 0 : index
    %c0_4 = arith.constant 0 : index
    %c0_5 = arith.constant 0 : index
    %7 = vector.load %arg3[%c0_3, %c0_4, %c0_5] : memref<9x128x128xbf16, #tpu.memory_space<vmem>>, vector<1x128x128xbf16>
    %8 = vector.shape_cast %7 : vector<1x128x128xbf16> to vector<128x128xbf16>
    %cst_6 = arith.constant dense<0.000000e+00> : vector<64x128xf32>
    %9 = tpu.matmul %6, %8, %cst_6 {dimension_numbers = #tpu.dot_dimension_numbers<[1], [0], [0], [1], [0, 0, 1, 1], [], []>} : vector<64x128xbf16>, vector<128x128xbf16>, vector<64x128xf32> -> vector<64x128xf32>
    %10 = arith.addf %3, %9 : vector<64x128xf32>
    %11 = vector.extract_strided_slice %2 {offsets = [0, 1, 0], sizes = [8, 8, 128], strides = [1, 1, 1]} : vector<10x16x128xf32> to vector<8x8x128xf32>
    %12 = vector.shape_cast %11 : vector<8x8x128xf32> to vector<64x128xf32>
    %13 = arith.truncf %12 : vector<64x128xf32> to vector<64x128xbf16>
    %c1 = arith.constant 1 : index
    %c0_7 = arith.constant 0 : index
    %c0_8 = arith.constant 0 : index
    %14 = vector.load %arg3[%c1, %c0_7, %c0_8] : memref<9x128x128xbf16, #tpu.memory_space<vmem>>, vector<1x128x128xbf16>
    %15 = vector.shape_cast %14 : vector<1x128x128xbf16> to vector<128x128xbf16>
    %cst_9 = arith.constant dense<0.000000e+00> : vector<64x128xf32>
    %16 = tpu.matmul %13, %15, %cst_9 {dimension_numbers = #tpu.dot_dimension_numbers<[1], [0], [0], [1], [0, 0, 1, 1], [], []>} : vector<64x128xbf16>, vector<128x128xbf16>, vector<64x128xf32> -> vector<64x128xf32>
    %17 = arith.addf %10, %16 : vector<64x128xf32>
    %18 = vector.extract_strided_slice %2 {offsets = [0, 2, 0], sizes = [8, 8, 128], strides = [1, 1, 1]} : vector<10x16x128xf32> to vector<8x8x128xf32>
    %19 = vector.shape_cast %18 : vector<8x8x128xf32> to vector<64x128xf32>
    %20 = arith.truncf %19 : vector<64x128xf32> to vector<64x128xbf16>
    %c2 = arith.constant 2 : index
    %c0_10 = arith.constant 0 : index
    %c0_11 = arith.constant 0 : index
    %21 = vector.load %arg3[%c2, %c0_10, %c0_11] : memref<9x128x128xbf16, #tpu.memory_space<vmem>>, vector<1x128x128xbf16>
    %22 = vector.shape_cast %21 : vector<1x128x128xbf16> to vector<128x128xbf16>
    %cst_12 = arith.constant dense<0.000000e+00> : vector<64x128xf32>
    %23 = tpu.matmul %20, %22, %cst_12 {dimension_numbers = #tpu.dot_dimension_numbers<[1], [0], [0], [1], [0, 0, 1, 1], [], []>} : vector<64x128xbf16>, vector<128x128xbf16>, vector<64x128xf32> -> vector<64x128xf32>
    %24 = arith.addf %17, %23 : vector<64x128xf32>
    %25 = vector.extract_strided_slice %2 {offsets = [1, 0, 0], sizes = [8, 8, 128], strides = [1, 1, 1]} : vector<10x16x128xf32> to vector<8x8x128xf32>
    %26 = vector.shape_cast %25 : vector<8x8x128xf32> to vector<64x128xf32>
    %27 = arith.truncf %26 : vector<64x128xf32> to vector<64x128xbf16>
    %c3 = arith.constant 3 : index
    %c0_13 = arith.constant 0 : index
    %c0_14 = arith.constant 0 : index
    %28 = vector.load %arg3[%c3, %c0_13, %c0_14] : memref<9x128x128xbf16, #tpu.memory_space<vmem>>, vector<1x128x128xbf16>
    %29 = vector.shape_cast %28 : vector<1x128x128xbf16> to vector<128x128xbf16>
    %cst_15 = arith.constant dense<0.000000e+00> : vector<64x128xf32>
    %30 = tpu.matmul %27, %29, %cst_15 {dimension_numbers = #tpu.dot_dimension_numbers<[1], [0], [0], [1], [0, 0, 1, 1], [], []>} : vector<64x128xbf16>, vector<128x128xbf16>, vector<64x128xf32> -> vector<64x128xf32>
    %31 = arith.addf %24, %30 : vector<64x128xf32>
    %32 = vector.extract_strided_slice %2 {offsets = [1, 1, 0], sizes = [8, 8, 128], strides = [1, 1, 1]} : vector<10x16x128xf32> to vector<8x8x128xf32>
    %33 = vector.shape_cast %32 : vector<8x8x128xf32> to vector<64x128xf32>
    %34 = arith.truncf %33 : vector<64x128xf32> to vector<64x128xbf16>
    %c4 = arith.constant 4 : index
    %c0_16 = arith.constant 0 : index
    %c0_17 = arith.constant 0 : index
    %35 = vector.load %arg3[%c4, %c0_16, %c0_17] : memref<9x128x128xbf16, #tpu.memory_space<vmem>>, vector<1x128x128xbf16>
    %36 = vector.shape_cast %35 : vector<1x128x128xbf16> to vector<128x128xbf16>
    %cst_18 = arith.constant dense<0.000000e+00> : vector<64x128xf32>
    %37 = tpu.matmul %34, %36, %cst_18 {dimension_numbers = #tpu.dot_dimension_numbers<[1], [0], [0], [1], [0, 0, 1, 1], [], []>} : vector<64x128xbf16>, vector<128x128xbf16>, vector<64x128xf32> -> vector<64x128xf32>
    %38 = arith.addf %31, %37 : vector<64x128xf32>
    %39 = vector.extract_strided_slice %2 {offsets = [1, 2, 0], sizes = [8, 8, 128], strides = [1, 1, 1]} : vector<10x16x128xf32> to vector<8x8x128xf32>
    %40 = vector.shape_cast %39 : vector<8x8x128xf32> to vector<64x128xf32>
    %41 = arith.truncf %40 : vector<64x128xf32> to vector<64x128xbf16>
    %c5 = arith.constant 5 : index
    %c0_19 = arith.constant 0 : index
    %c0_20 = arith.constant 0 : index
    %42 = vector.load %arg3[%c5, %c0_19, %c0_20] : memref<9x128x128xbf16, #tpu.memory_space<vmem>>, vector<1x128x128xbf16>
    %43 = vector.shape_cast %42 : vector<1x128x128xbf16> to vector<128x128xbf16>
    %cst_21 = arith.constant dense<0.000000e+00> : vector<64x128xf32>
    %44 = tpu.matmul %41, %43, %cst_21 {dimension_numbers = #tpu.dot_dimension_numbers<[1], [0], [0], [1], [0, 0, 1, 1], [], []>} : vector<64x128xbf16>, vector<128x128xbf16>, vector<64x128xf32> -> vector<64x128xf32>
    %45 = arith.addf %38, %44 : vector<64x128xf32>
    %46 = vector.extract_strided_slice %2 {offsets = [2, 0, 0], sizes = [8, 8, 128], strides = [1, 1, 1]} : vector<10x16x128xf32> to vector<8x8x128xf32>
    %47 = vector.shape_cast %46 : vector<8x8x128xf32> to vector<64x128xf32>
    %48 = arith.truncf %47 : vector<64x128xf32> to vector<64x128xbf16>
    %c6 = arith.constant 6 : index
    %c0_22 = arith.constant 0 : index
    %c0_23 = arith.constant 0 : index
    %49 = vector.load %arg3[%c6, %c0_22, %c0_23] : memref<9x128x128xbf16, #tpu.memory_space<vmem>>, vector<1x128x128xbf16>
    %50 = vector.shape_cast %49 : vector<1x128x128xbf16> to vector<128x128xbf16>
    %cst_24 = arith.constant dense<0.000000e+00> : vector<64x128xf32>
    %51 = tpu.matmul %48, %50, %cst_24 {dimension_numbers = #tpu.dot_dimension_numbers<[1], [0], [0], [1], [0, 0, 1, 1], [], []>} : vector<64x128xbf16>, vector<128x128xbf16>, vector<64x128xf32> -> vector<64x128xf32>
    %52 = arith.addf %45, %51 : vector<64x128xf32>
    %53 = vector.extract_strided_slice %2 {offsets = [2, 1, 0], sizes = [8, 8, 128], strides = [1, 1, 1]} : vector<10x16x128xf32> to vector<8x8x128xf32>
    %54 = vector.shape_cast %53 : vector<8x8x128xf32> to vector<64x128xf32>
    %55 = arith.truncf %54 : vector<64x128xf32> to vector<64x128xbf16>
    %c7 = arith.constant 7 : index
    %c0_25 = arith.constant 0 : index
    %c0_26 = arith.constant 0 : index
    %56 = vector.load %arg3[%c7, %c0_25, %c0_26] : memref<9x128x128xbf16, #tpu.memory_space<vmem>>, vector<1x128x128xbf16>
    %57 = vector.shape_cast %56 : vector<1x128x128xbf16> to vector<128x128xbf16>
    %cst_27 = arith.constant dense<0.000000e+00> : vector<64x128xf32>
    %58 = tpu.matmul %55, %57, %cst_27 {dimension_numbers = #tpu.dot_dimension_numbers<[1], [0], [0], [1], [0, 0, 1, 1], [], []>} : vector<64x128xbf16>, vector<128x128xbf16>, vector<64x128xf32> -> vector<64x128xf32>
    %59 = arith.addf %52, %58 : vector<64x128xf32>
    %60 = vector.extract_strided_slice %2 {offsets = [2, 2, 0], sizes = [8, 8, 128], strides = [1, 1, 1]} : vector<10x16x128xf32> to vector<8x8x128xf32>
    %61 = vector.shape_cast %60 : vector<8x8x128xf32> to vector<64x128xf32>
    %62 = arith.truncf %61 : vector<64x128xf32> to vector<64x128xbf16>
    %c8 = arith.constant 8 : index
    %c0_28 = arith.constant 0 : index
    %c0_29 = arith.constant 0 : index
    %63 = vector.load %arg3[%c8, %c0_28, %c0_29] : memref<9x128x128xbf16, #tpu.memory_space<vmem>>, vector<1x128x128xbf16>
    %64 = vector.shape_cast %63 : vector<1x128x128xbf16> to vector<128x128xbf16>
    %cst_30 = arith.constant dense<0.000000e+00> : vector<64x128xf32>
    %65 = tpu.matmul %62, %64, %cst_30 {dimension_numbers = #tpu.dot_dimension_numbers<[1], [0], [0], [1], [0, 0, 1, 1], [], []>} : vector<64x128xbf16>, vector<128x128xbf16>, vector<64x128xf32> -> vector<64x128xf32>
    %66 = arith.addf %59, %65 : vector<64x128xf32>
    %cst_31 = arith.constant dense<0.000000e+00> : vector<64xf32>
    %67 = vector.multi_reduction <add>, %66, %cst_31 [1] : vector<64x128xf32> to vector<64xf32>
    %68 = vector.shape_cast %67 : vector<64xf32> to vector<64x1xf32>
    %cst_32 = arith.constant 7.812500e-03 : f32
    %69 = vector.broadcast %cst_32 : f32 to vector<64x1xf32>
    %70 = arith.mulf %68, %69 : vector<64x1xf32>
    %71 = arith.mulf %66, %66 : vector<64x128xf32>
    %cst_33 = arith.constant dense<0.000000e+00> : vector<64xf32>
    %72 = vector.multi_reduction <add>, %71, %cst_33 [1] : vector<64x128xf32> to vector<64xf32>
    %73 = vector.shape_cast %72 : vector<64xf32> to vector<64x1xf32>
    %cst_34 = arith.constant 7.812500e-03 : f32
    %74 = vector.broadcast %cst_34 : f32 to vector<64x1xf32>
    %75 = arith.mulf %73, %74 : vector<64x1xf32>
    %76 = arith.mulf %70, %70 : vector<64x1xf32>
    %77 = arith.subf %75, %76 : vector<64x1xf32>
    %78 = vector.broadcast %70 : vector<64x1xf32> to vector<64x128xf32>
    %79 = arith.subf %66, %78 : vector<64x128xf32>
    %cst_35 = arith.constant 9.99999974E-6 : f32
    %80 = vector.broadcast %cst_35 : f32 to vector<64x1xf32>
    %81 = arith.addf %77, %80 : vector<64x1xf32>
    %82 = math.rsqrt %81 : vector<64x1xf32>
    %83 = vector.broadcast %82 : vector<64x1xf32> to vector<64x128xf32>
    %84 = arith.mulf %79, %83 : vector<64x128xf32>
    %c0_36 = arith.constant 0 : index
    %c0_37 = arith.constant 0 : index
    %85 = vector.load %arg4[%c0_36, %c0_37] : memref<1x128xf32, #tpu.memory_space<vmem>>, vector<1x128xf32>
    %86 = vector.broadcast %85 : vector<1x128xf32> to vector<64x128xf32>
    %87 = arith.mulf %84, %86 : vector<64x128xf32>
    %c0_38 = arith.constant 0 : index
    %c0_39 = arith.constant 0 : index
    %88 = vector.load %arg5[%c0_38, %c0_39] : memref<1x128xf32, #tpu.memory_space<vmem>>, vector<1x128xf32>
    %89 = vector.broadcast %88 : vector<1x128xf32> to vector<64x128xf32>
    %90 = arith.addf %87, %89 : vector<64x128xf32>
    %c0_40 = arith.constant 0 : index
    %c0_41 = arith.constant 0 : index
    %91 = vector.load %arg2[%c0_40, %c0_41] : memref<64x24xf32, #tpu.memory_space<vmem>>, vector<64x24xf32>
    %c0_42 = arith.constant 0 : index
    %c0_43 = arith.constant 0 : index
    %92 = vector.load %arg6[%c0_42, %c0_43] : memref<1x24xf32, #tpu.memory_space<vmem>>, vector<1x24xf32>
    %93 = vector.broadcast %92 : vector<1x24xf32> to vector<64x24xf32>
    %94 = arith.mulf %91, %93 : vector<64x24xf32>
    %c0_44 = arith.constant 0 : index
    %c0_45 = arith.constant 0 : index
    %95 = vector.load %arg7[%c0_44, %c0_45] : memref<1x24xf32, #tpu.memory_space<vmem>>, vector<1x24xf32>
    %96 = vector.broadcast %95 : vector<1x24xf32> to vector<64x24xf32>
    %97 = arith.addf %94, %96 : vector<64x24xf32>
    %98 = math.sin %97 : vector<64x24xf32>
    %99 = arith.truncf %98 : vector<64x24xf32> to vector<64x24xbf16>
    %c0_46 = arith.constant 0 : index
    %c0_47 = arith.constant 0 : index
    %100 = vector.load %arg8[%c0_46, %c0_47] : memref<24x128xbf16, #tpu.memory_space<vmem>>, vector<24x128xbf16>
    %cst_48 = arith.constant dense<0.000000e+00> : vector<64x128xf32>
    %101 = tpu.matmul %99, %100, %cst_48 {dimension_numbers = #tpu.dot_dimension_numbers<[1], [0], [0], [1], [0, 0, 1, 1], [], []>} : vector<64x24xbf16>, vector<24x128xbf16>, vector<64x128xf32> -> vector<64x128xf32>
    %c0_49 = arith.constant 0 : index
    %c0_50 = arith.constant 0 : index
    %102 = vector.load %arg9[%c0_49, %c0_50] : memref<1x128xf32, #tpu.memory_space<vmem>>, vector<1x128xf32>
    %103 = vector.broadcast %102 : vector<1x128xf32> to vector<64x128xf32>
    %104 = arith.addf %101, %103 : vector<64x128xf32>
    %cst_51 = arith.constant 5.000000e-01 : f32
    %105 = vector.broadcast %cst_51 : f32 to vector<64x128xf32>
    %106 = arith.mulf %105, %104 : vector<64x128xf32>
    %cst_52 = arith.constant 0.707106769 : f32
    %107 = vector.broadcast %cst_52 : f32 to vector<64x128xf32>
    %108 = arith.mulf %104, %107 : vector<64x128xf32>
    %109 = math.absf %108 : vector<64x128xf32>
    %cst_53 = arith.constant 0.327591091 : f32
    %110 = vector.broadcast %cst_53 : f32 to vector<64x128xf32>
    %111 = arith.mulf %110, %109 : vector<64x128xf32>
    %cst_54 = arith.constant 1.000000e+00 : f32
    %112 = vector.broadcast %cst_54 : f32 to vector<64x128xf32>
    %113 = arith.addf %112, %111 : vector<64x128xf32>
    %114 = tpu.reciprocal %113 {approx = true} : vector<64x128xf32> -> vector<64x128xf32>
    %cst_55 = arith.constant 1.06140542 : f32
    %115 = vector.broadcast %cst_55 : f32 to vector<64x128xf32>
    %116 = arith.mulf %115, %114 : vector<64x128xf32>
    %cst_56 = arith.constant -1.45315206 : f32
    %117 = vector.broadcast %cst_56 : f32 to vector<64x128xf32>
    %118 = arith.addf %116, %117 : vector<64x128xf32>
    %119 = arith.mulf %118, %114 : vector<64x128xf32>
    %cst_57 = arith.constant 1.42141378 : f32
    %120 = vector.broadcast %cst_57 : f32 to vector<64x128xf32>
    %121 = arith.addf %119, %120 : vector<64x128xf32>
    %122 = arith.mulf %121, %114 : vector<64x128xf32>
    %cst_58 = arith.constant -0.284496725 : f32
    %123 = vector.broadcast %cst_58 : f32 to vector<64x128xf32>
    %124 = arith.addf %122, %123 : vector<64x128xf32>
    %125 = arith.mulf %124, %114 : vector<64x128xf32>
    %cst_59 = arith.constant 0.254829586 : f32
    %126 = vector.broadcast %cst_59 : f32 to vector<64x128xf32>
    %127 = arith.addf %125, %126 : vector<64x128xf32>
    %128 = arith.mulf %127, %114 : vector<64x128xf32>
    %cst_60 = arith.constant 0.000000e+00 : f32
    %129 = vector.broadcast %cst_60 : f32 to vector<64x128xf32>
    %130 = arith.subf %129, %109 : vector<64x128xf32>
    %131 = arith.mulf %130, %109 : vector<64x128xf32>
    %132 = math.exp %131 : vector<64x128xf32>
    %133 = arith.mulf %128, %132 : vector<64x128xf32>
    %cst_61 = arith.constant 1.000000e+00 : f32
    %134 = vector.broadcast %cst_61 : f32 to vector<64x128xf32>
    %135 = arith.subf %134, %133 : vector<64x128xf32>
    %cst_62 = arith.constant 0.000000e+00 : f32
    %136 = vector.broadcast %cst_62 : f32 to vector<64x128xf32>
    %137 = arith.cmpf olt, %108, %136 : vector<64x128xf32>
    %cst_63 = arith.constant 0.000000e+00 : f32
    %138 = vector.broadcast %cst_63 : f32 to vector<64x128xf32>
    %139 = arith.subf %138, %135 : vector<64x128xf32>
    %140 = arith.select %137, %139, %135 : vector<64x128xi1>, vector<64x128xf32>
    %cst_64 = arith.constant 1.000000e+00 : f32
    %141 = vector.broadcast %cst_64 : f32 to vector<64x128xf32>
    %142 = arith.addf %141, %140 : vector<64x128xf32>
    %143 = arith.mulf %106, %142 : vector<64x128xf32>
    %144 = arith.truncf %143 : vector<64x128xf32> to vector<64x128xbf16>
    %c0_65 = arith.constant 0 : index
    %c0_66 = arith.constant 0 : index
    %145 = vector.load %arg10[%c0_65, %c0_66] : memref<128x128xbf16, #tpu.memory_space<vmem>>, vector<128x128xbf16>
    %cst_67 = arith.constant dense<0.000000e+00> : vector<64x128xf32>
    %146 = tpu.matmul %144, %145, %cst_67 {dimension_numbers = #tpu.dot_dimension_numbers<[1], [0], [0], [1], [0, 0, 1, 1], [], []>} : vector<64x128xbf16>, vector<128x128xbf16>, vector<64x128xf32> -> vector<64x128xf32>
    %c0_68 = arith.constant 0 : index
    %c0_69 = arith.constant 0 : index
    %147 = vector.load %arg11[%c0_68, %c0_69] : memref<1x128xf32, #tpu.memory_space<vmem>>, vector<1x128xf32>
    %148 = vector.broadcast %147 : vector<1x128xf32> to vector<64x128xf32>
    %149 = arith.addf %146, %148 : vector<64x128xf32>
    %150 = arith.addf %90, %149 : vector<64x128xf32>
    %cst_70 = arith.constant 5.000000e-01 : f32
    %151 = vector.broadcast %cst_70 : f32 to vector<64x128xf32>
    %152 = arith.mulf %151, %150 : vector<64x128xf32>
    %cst_71 = arith.constant 0.707106769 : f32
    %153 = vector.broadcast %cst_71 : f32 to vector<64x128xf32>
    %154 = arith.mulf %150, %153 : vector<64x128xf32>
    %155 = math.absf %154 : vector<64x128xf32>
    %cst_72 = arith.constant 0.327591091 : f32
    %156 = vector.broadcast %cst_72 : f32 to vector<64x128xf32>
    %157 = arith.mulf %156, %155 : vector<64x128xf32>
    %cst_73 = arith.constant 1.000000e+00 : f32
    %158 = vector.broadcast %cst_73 : f32 to vector<64x128xf32>
    %159 = arith.addf %158, %157 : vector<64x128xf32>
    %160 = tpu.reciprocal %159 {approx = true} : vector<64x128xf32> -> vector<64x128xf32>
    %cst_74 = arith.constant 1.06140542 : f32
    %161 = vector.broadcast %cst_74 : f32 to vector<64x128xf32>
    %162 = arith.mulf %161, %160 : vector<64x128xf32>
    %cst_75 = arith.constant -1.45315206 : f32
    %163 = vector.broadcast %cst_75 : f32 to vector<64x128xf32>
    %164 = arith.addf %162, %163 : vector<64x128xf32>
    %165 = arith.mulf %164, %160 : vector<64x128xf32>
    %cst_76 = arith.constant 1.42141378 : f32
    %166 = vector.broadcast %cst_76 : f32 to vector<64x128xf32>
    %167 = arith.addf %165, %166 : vector<64x128xf32>
    %168 = arith.mulf %167, %160 : vector<64x128xf32>
    %cst_77 = arith.constant -0.284496725 : f32
    %169 = vector.broadcast %cst_77 : f32 to vector<64x128xf32>
    %170 = arith.addf %168, %169 : vector<64x128xf32>
    %171 = arith.mulf %170, %160 : vector<64x128xf32>
    %cst_78 = arith.constant 0.254829586 : f32
    %172 = vector.broadcast %cst_78 : f32 to vector<64x128xf32>
    %173 = arith.addf %171, %172 : vector<64x128xf32>
    %174 = arith.mulf %173, %160 : vector<64x128xf32>
    %cst_79 = arith.constant 0.000000e+00 : f32
    %175 = vector.broadcast %cst_79 : f32 to vector<64x128xf32>
    %176 = arith.subf %175, %155 : vector<64x128xf32>
    %177 = arith.mulf %176, %155 : vector<64x128xf32>
    %178 = math.exp %177 : vector<64x128xf32>
    %179 = arith.mulf %174, %178 : vector<64x128xf32>
    %cst_80 = arith.constant 1.000000e+00 : f32
    %180 = vector.broadcast %cst_80 : f32 to vector<64x128xf32>
    %181 = arith.subf %180, %179 : vector<64x128xf32>
    %cst_81 = arith.constant 0.000000e+00 : f32
    %182 = vector.broadcast %cst_81 : f32 to vector<64x128xf32>
    %183 = arith.cmpf olt, %154, %182 : vector<64x128xf32>
    %cst_82 = arith.constant 0.000000e+00 : f32
    %184 = vector.broadcast %cst_82 : f32 to vector<64x128xf32>
    %185 = arith.subf %184, %181 : vector<64x128xf32>
    %186 = arith.select %183, %185, %181 : vector<64x128xi1>, vector<64x128xf32>
    %cst_83 = arith.constant 1.000000e+00 : f32
    %187 = vector.broadcast %cst_83 : f32 to vector<64x128xf32>
    %188 = arith.addf %187, %186 : vector<64x128xf32>
    %189 = arith.mulf %152, %188 : vector<64x128xf32>
    %190 = vector.extract_strided_slice %2 {offsets = [1, 1, 0], sizes = [8, 8, 128], strides = [1, 1, 1]} : vector<10x16x128xf32> to vector<8x8x128xf32>
    %191 = vector.shape_cast %190 : vector<8x8x128xf32> to vector<64x128xf32>
    %192 = arith.truncf %191 : vector<64x128xf32> to vector<64x128xbf16>
    %c0_84 = arith.constant 0 : index
    %c0_85 = arith.constant 0 : index
    %193 = vector.load %arg12[%c0_84, %c0_85] : memref<128x128xbf16, #tpu.memory_space<vmem>>, vector<128x128xbf16>
    %cst_86 = arith.constant dense<0.000000e+00> : vector<64x128xf32>
    %194 = tpu.matmul %192, %193, %cst_86 {dimension_numbers = #tpu.dot_dimension_numbers<[1], [0], [0], [1], [0, 0, 1, 1], [], []>} : vector<64x128xbf16>, vector<128x128xbf16>, vector<64x128xf32> -> vector<64x128xf32>
    %c0_87 = arith.constant 0 : index
    %c0_88 = arith.constant 0 : index
    %195 = vector.load %arg13[%c0_87, %c0_88] : memref<1x128xf32, #tpu.memory_space<vmem>>, vector<1x128xf32>
    %196 = vector.broadcast %195 : vector<1x128xf32> to vector<64x128xf32>
    %197 = arith.addf %194, %196 : vector<64x128xf32>
    %198 = arith.addf %189, %197 : vector<64x128xf32>
    %199 = arith.truncf %198 : vector<64x128xf32> to vector<64x128xbf16>
    %c0_89 = arith.constant 0 : index
    %c0_90 = arith.constant 0 : index
    %200 = vector.load %arg14[%c0_89, %c0_90] : memref<64x128xbf16, #tpu.memory_space<vmem>>, vector<64x128xbf16>
    tpu.vector_store %arg14[%c0_89, %c0_90], %199 {strides = array<i32>} : memref<64x128xbf16, #tpu.memory_space<vmem>>, vector<64x128xbf16>,
    return
  }
  func.func @transform_0(%arg0: i32) -> (i32, i32, i32, i32) {
    %c0_i32 = arith.constant 0 : i32
    %c0_i32_0 = arith.constant 0 : i32
    %c0_i32_1 = arith.constant 0 : i32
    %c0_i32_2 = arith.constant 0 : i32
    return %arg0, %c0_i32, %c0_i32_0, %c0_i32_1 : i32, i32, i32, i32
  }
  func.func @transform_1(%arg0: i32) -> (i32, i32) {
    %c0_i32 = arith.constant 0 : i32
    %c0_i32_0 = arith.constant 0 : i32
    return %arg0, %c0_i32 : i32, i32
  }
  func.func @transform_2(%arg0: i32) -> (i32, i32, i32) {
    %c0_i32 = arith.constant 0 : i32
    %c0_i32_0 = arith.constant 0 : i32
    %c0_i32_1 = arith.constant 0 : i32
    %c0_i32_2 = arith.constant 0 : i32
    return %c0_i32, %c0_i32_0, %c0_i32_1 : i32, i32, i32
  }
  func.func @transform_3(%arg0: i32) -> (i32, i32) {
    %c0_i32 = arith.constant 0 : i32
    %c0_i32_0 = arith.constant 0 : i32
    %c0_i32_1 = arith.constant 0 : i32
    return %c0_i32, %c0_i32_0 : i32, i32
  }
  func.func @transform_4(%arg0: i32) -> (i32, i32) {
    %c0_i32 = arith.constant 0 : i32
    %c0_i32_0 = arith.constant 0 : i32
    %c0_i32_1 = arith.constant 0 : i32
    return %c0_i32, %c0_i32_0 : i32, i32
  }
  func.func @transform_5(%arg0: i32) -> (i32, i32) {
    %c0_i32 = arith.constant 0 : i32
    %c0_i32_0 = arith.constant 0 : i32
    %c0_i32_1 = arith.constant 0 : i32
    return %c0_i32, %c0_i32_0 : i32, i32
  }
  func.func @transform_6(%arg0: i32) -> (i32, i32) {
    %c0_i32 = arith.constant 0 : i32
    %c0_i32_0 = arith.constant 0 : i32
    %c0_i32_1 = arith.constant 0 : i32
    return %c0_i32, %c0_i32_0 : i32, i32
  }
  func.func @transform_7(%arg0: i32) -> (i32, i32) {
    %c0_i32 = arith.constant 0 : i32
    %c0_i32_0 = arith.constant 0 : i32
    %c0_i32_1 = arith.constant 0 : i32
    return %c0_i32, %c0_i32_0 : i32, i32
  }
  func.func @transform_8(%arg0: i32) -> (i32, i32) {
    %c0_i32 = arith.constant 0 : i32
    %c0_i32_0 = arith.constant 0 : i32
    %c0_i32_1 = arith.constant 0 : i32
    return %c0_i32, %c0_i32_0 : i32, i32
  }
  func.func @transform_9(%arg0: i32) -> (i32, i32) {
    %c0_i32 = arith.constant 0 : i32
    %c0_i32_0 = arith.constant 0 : i32
    %c0_i32_1 = arith.constant 0 : i32
    return %c0_i32, %c0_i32_0 : i32, i32
  }
  func.func @transform_10(%arg0: i32) -> (i32, i32) {
    %c0_i32 = arith.constant 0 : i32
    %c0_i32_0 = arith.constant 0 : i32
    %c0_i32_1 = arith.constant 0 : i32
    return %c0_i32, %c0_i32_0 : i32, i32
  }
  func.func @transform_11(%arg0: i32) -> (i32, i32) {
    %c0_i32 = arith.constant 0 : i32
    %c0_i32_0 = arith.constant 0 : i32
    %c0_i32_1 = arith.constant 0 : i32
    return %c0_i32, %c0_i32_0 : i32, i32
  }
  func.func @transform_12(%arg0: i32) -> (i32, i32) {
    %c0_i32 = arith.constant 0 : i32
    %c0_i32_0 = arith.constant 0 : i32
    %c0_i32_1 = arith.constant 0 : i32
    return %c0_i32, %c0_i32_0 : i32, i32
  }
  func.func @transform_13(%arg0: i32) -> (i32, i32) {
    %c0_i32 = arith.constant 0 : i32
    %c0_i32_0 = arith.constant 0 : i32
    return %arg0, %c0_i32 : i32, i32
  }
}

module attributes {stable_mosaic.version = 11 : i64} {
  func.func @_matmul_bias_kernel(%arg0: i32, %arg1: memref<64x128xbf16, #tpu.memory_space<vmem>>, %arg2: memref<128x128xbf16, #tpu.memory_space<vmem>>, %arg3: memref<1x128xf32, #tpu.memory_space<vmem>>, %arg4: memref<64x128xf32, #tpu.memory_space<vmem>>) attributes {dimension_semantics = [#tpu.dimension_semantics<parallel>], iteration_bounds = array<i64: 2>, scalar_prefetch = 0 : i64, scratch_operands = 0 : i64, tpu.core_type = #tpu.core_type<tc>, window_params = [{transform_indices = @transform_0, window_bounds = array<i64: 64, 128>}, {pipeline_mode = #tpu.pipeline_mode<synchronous>, transform_indices = @transform_1, window_bounds = array<i64: 128, 128>}, {pipeline_mode = #tpu.pipeline_mode<synchronous>, transform_indices = @transform_2, window_bounds = array<i64: 1, 128>}, {transform_indices = @transform_3, window_bounds = array<i64: 64, 128>}]} {
    %c0 = arith.constant 0 : index
    %c0_0 = arith.constant 0 : index
    %0 = vector.load %arg1[%c0, %c0_0] : memref<64x128xbf16, #tpu.memory_space<vmem>>, vector<64x128xbf16>
    %c0_1 = arith.constant 0 : index
    %c0_2 = arith.constant 0 : index
    %1 = vector.load %arg2[%c0_1, %c0_2] : memref<128x128xbf16, #tpu.memory_space<vmem>>, vector<128x128xbf16>
    %cst = arith.constant dense<0.000000e+00> : vector<64x128xf32>
    %2 = tpu.matmul %0, %1, %cst {dimension_numbers = #tpu.dot_dimension_numbers<[1], [0], [0], [1], [0, 0, 1, 1], [], []>} : vector<64x128xbf16>, vector<128x128xbf16>, vector<64x128xf32> -> vector<64x128xf32>
    %c0_3 = arith.constant 0 : index
    %c0_4 = arith.constant 0 : index
    %3 = vector.load %arg3[%c0_3, %c0_4] : memref<1x128xf32, #tpu.memory_space<vmem>>, vector<1x128xf32>
    %4 = vector.broadcast %3 : vector<1x128xf32> to vector<64x128xf32>
    %5 = arith.addf %2, %4 : vector<64x128xf32>
    %c0_5 = arith.constant 0 : index
    %c0_6 = arith.constant 0 : index
    %6 = vector.load %arg4[%c0_5, %c0_6] : memref<64x128xf32, #tpu.memory_space<vmem>>, vector<64x128xf32>
    tpu.vector_store %arg4[%c0_5, %c0_6], %5 {strides = array<i32>} : memref<64x128xf32, #tpu.memory_space<vmem>>, vector<64x128xf32>,
    return
  }
  func.func @transform_0(%arg0: i32) -> (i32, i32) {
    %c0_i32 = arith.constant 0 : i32
    %c0_i32_0 = arith.constant 0 : i32
    return %arg0, %c0_i32 : i32, i32
  }
  func.func @transform_1(%arg0: i32) -> (i32, i32) {
    %c0_i32 = arith.constant 0 : i32
    %c0_i32_0 = arith.constant 0 : i32
    %c0_i32_1 = arith.constant 0 : i32
    return %c0_i32, %c0_i32_0 : i32, i32
  }
  func.func @transform_2(%arg0: i32) -> (i32, i32) {
    %c0_i32 = arith.constant 0 : i32
    %c0_i32_0 = arith.constant 0 : i32
    %c0_i32_1 = arith.constant 0 : i32
    return %c0_i32, %c0_i32_0 : i32, i32
  }
  func.func @transform_3(%arg0: i32) -> (i32, i32) {
    %c0_i32 = arith.constant 0 : i32
    %c0_i32_0 = arith.constant 0 : i32
    return %arg0, %c0_i32 : i32, i32
  }
}

</mosaic_0001>

<llo_original>
// kernel: tile.11
$region0: #{tile.11}
  #allocation0 [shape = 's32[1]{0}', space=sflag, size = 0x4, scoped, tag = 'scoped memory for tile.11']
  %s0 = inlined_call_operand.vmem [shape: f32[6], index: 0, kind: input, shape index: {}]
  %s1 = inlined_call_operand.vmem [shape: f32[4,6], index: 1, kind: output, shape index: {}]
  // Predicated region
  $region2: #{tile.11} parent=0 // pred_check
    _
  $region3: #{tile.11} parent=0 // pred_check_branch
    %3 = sbr.rel (0) target = $region5
  $region4: #{tile.11} parent=0 // pred_region
    _
  $region5: #{tile.11} parent=0 // pred_fallthru
    _
  %v4 = vld [vmem:[%s0] ss:$0 sm:$0xff]
  %5 = vst [vmem:[%s1] sm:$0xf] %v4

// kernel: tile.16
$region0: #{tile.16}
  %s0 = inlined_call_operand.vmem [shape: f32[2,12], index: 0, kind: input, shape index: {}]
  %s1 = inlined_call_operand.vmem [shape: f32[1,24], index: 1, kind: output, shape index: {}]
  $region1: #{tile.16} parent=0
    #allocation0 [shape = 'u8[4096]{0}', space=vmem, size = 0x1000, scoped, tag = 'scoped mem for output reshape']
    #allocation1 [shape = 'u8[4096]{0}', space=vmem, size = 0x1000, scoped, tag = 'scoped mem for input reshape']
    %s3 = sshll.u32 1, 2
    %s4 = ssub.s32 %s3, 1
    %v5 = vld [vmem:[%s0] sm:%s4]
    %6 = vst [vmem:[#allocation1] sm:%s4] %v5
    %v7 = vld [vmem:[#allocation1] sm:$0x1]
    %vm8 = vcmask 97280
    %9 = vst.msk [vmem:[#allocation0] sm:$0x1] %vm8, %v7
    %s10 = scalar_lea.vmem [#allocation1], 1
    %v11 = vld [vmem:[%s10] sm:$0x1]
    %12 = vrot.lane.b32.xlu0 %v11, 12
    %v13 = vpop.permute.xlu0 %12
    %vm14 = vcmask 195680
    %15 = vst.msk [vmem:[#allocation0] sm:$0x1] %vm14, %v13
    %s17 = sshll.u32 1, 1
    %s18 = ssub.s32 %s17, 1
    %v20 = vld [vmem:[#allocation0] sm:%s18]
    %s21 = sshll.u32 1, 1
    %s22 = ssub.s32 %s21, 1
    %23 = vst [vmem:[%s1] sm:%s22] %v20

// kernel: tile.17
$region0: #{tile.17}
  %s0 = inlined_call_operand.vmem [shape: f32[4,6], index: 0, kind: input, shape index: {}]
  %s1 = inlined_call_operand.vmem [shape: f32[1,24], index: 1, kind: output, shape index: {}]
  $region1: #{tile.17} parent=0
    #allocation0 [shape = 'u8[4096]{0}', space=vmem, size = 0x1000, scoped, tag = 'scoped mem for output reshape']
    #allocation1 [shape = 'u8[4096]{0}', space=vmem, size = 0x1000, scoped, tag = 'scoped mem for input reshape']
    %s3 = sshll.u32 1, 4
    %s4 = ssub.s32 %s3, 1
    %v5 = vld [vmem:[%s0] sm:%s4]
    %6 = vst [vmem:[#allocation1] sm:%s4] %v5
    %v7 = vld [vmem:[#allocation1] sm:$0x1]
    %vm8 = vcmask 48128
    %9 = vst.msk [vmem:[#allocation0] sm:$0x1] %vm8, %v7
    %s10 = scalar_lea.vmem [#allocation1], 3
    %v11 = vld [vmem:[%s10] sm:$0x1]
    %12 = vrot.lane.b32.xlu0 %v11, 18
    %v13 = vpop.permute.xlu0 %12
    %vm14 = vcmask 195728
    %15 = vst.msk [vmem:[#allocation0] sm:$0x1] %vm14, %v13
    %s16 = scalar_lea.vmem [#allocation1], 2
    %v17 = vld [vmem:[%s16] sm:$0x1]
    %18 = vrot.lane.b32.xlu0 %v17, 12
    %v19 = vpop.permute.xlu0 %18
    %vm20 = vcmask 146528
    %21 = vst.msk [vmem:[#allocation0] sm:$0x1] %vm20, %v19
    %s22 = scalar_lea.vmem [#allocation1], 1
    %v23 = vld [vmem:[%s22] sm:$0x1]
    %24 = vrot.lane.b32.xlu0 %v23, 6
    %v25 = vpop.permute.xlu0 %24
    %vm26 = vcmask 97328
    %27 = vst.msk [vmem:[#allocation0] sm:$0x1] %vm26, %v25
    %s29 = sshll.u32 1, 1
    %s30 = ssub.s32 %s29, 1
    %v32 = vld [vmem:[#allocation0] sm:%s30]
    %s33 = sshll.u32 1, 1
    %s34 = ssub.s32 %s33, 1
    %35 = vst [vmem:[%s1] sm:%s34] %v32

// kernel: tile.15
$region0: #{tile.15}
  #allocation0 [shape = 's32[1]{0}', space=sflag, size = 0x4, scoped, tag = 'scoped memory for tile.15']
  %s0 = inlined_call_operand.vmem [shape: f32[12], index: 0, kind: input, shape index: {}]
  %s1 = inlined_call_operand.vmem [shape: f32[2,12], index: 1, kind: output, shape index: {}]
  // Predicated region
  $region2: #{tile.15} parent=0 // pred_check
    _
  $region3: #{tile.15} parent=0 // pred_check_branch
    %3 = sbr.rel (0) target = $region5
  $region4: #{tile.15} parent=0 // pred_region
    _
  $region5: #{tile.15} parent=0 // pred_fallthru
    _
  %v4 = vld [vmem:[%s0] ss:$0 sm:$0xff]
  %5 = vst [vmem:[%s1] sm:$0x3] %v4

// kernel: _lambda_.5
$region0: #{_lambda_.5}
  #allocation0 [shape = 'u32[]', space=smem, size = 0x4, offset = 0x4, fixed_abs, tag = 'smem constant byte address 0x4 - core index']
  #allocation1 [shape = 'u32[144,128]{1,0:T(1,128)}', space=vmem, size = 0x12000, scoped, tag = 'internal scratch']
  %s0 = inlined_call_operand.vmem [shape: bf16[128,128], index: 0, kind: input, shape index: {}]
  %s1 = inlined_call_operand.vmem [shape: bf16[128,128], index: 1, kind: input, shape index: {}]
  %s2 = inlined_call_operand.vmem [shape: f32[1,128], index: 2, kind: input, shape index: {}]
  %s3 = inlined_call_operand.vmem [shape: f32[128,128], index: 3, kind: output, shape index: {}]
  %s4 = sld [smem:[#allocation0]]
  $region45: #{_lambda_.5} parent=0
    _
  %s6 = ssub.s32 1, %s4
  %s7 = scalar_select 0, %s6, %s4
  loop: start=0, step=1, limit=4
  $region2: #{_lambda_.5} parent=0 // loop_pre_header
    _
  $region3: #{_lambda_.5} parent=0 // loop_header
    %s9 = sphi 0, %s13
    %p10 = scmp.ge.s32.totalorder %s9, 4
    %s19 = sphi 0, %s21
    %s22 = sphi 0, %s19
    %s23 = sphi 0, %s22
    %s39 = sphi 0, %s23
    %s43 = sphi 0, %s43
    %s45 = sphi 0, %s43
    %s46 = sphi 0, %s45
    %s60 = sphi 0, %s46
    %s64 = sphi 0, %s64
    %s66 = sphi 0, %s64
    %s67 = sphi 0, %s66
    %s81 = sphi 0, %s67
    %s87 = sphi 0, %s89
    %s90 = sphi 0, %s87
    %s91 = sphi 0, %s90
    %s107 = sphi 0, %s91
  $region4: #{_lambda_.5} parent=0 // loop_header_branch
    %12 = sbr.rel (%p10) target = $region8
  $region5: #{_lambda_.5} parent=0 // loop_body
    %s14 = ssub.s32 %s9, 1
    %s15 = ssub.s32 %s9, 2
    %s16 = sadd.s32 %s9, 1
    %s17 = ssub.s32 %s9, %s16
    %p18 = scmp.eq.s32.totalorder %s17, 0
    %s20 = sadd.s32 %s19, 1
    %s21 = scalar_select %p18, %s19, %s20
    %p24 = pneg %p18
    %p25 = scmp.eq.s32.totalorder %s9, 1
    %p26 = por %p24, %p25
    %p27 = scmp.ne.s32.totalorder %s19, %s22
    %p28 = scmp.eq.s32.totalorder %s9, 0
    %p29 = por %p27, %p28
    %p30 = scmp.ne.s32.totalorder %s19, %s22
    %p31 = scmp.eq.s32.totalorder %s14, 1
    %p32 = por %p30, %p31
    %p33 = scmp.ne.s32.totalorder %s22, %s23
    %p34 = scmp.eq.s32.totalorder %s14, 0
    %p35 = por %p33, %p34
    %p36 = scmp.ne.s32.totalorder %s22, %s23
    %p37 = scmp.eq.s32.totalorder %s15, 1
    %p38 = por %p36, %p37
    %p40 = scmp.ne.s32.totalorder %s23, %s39
    %p41 = scmp.eq.s32.totalorder %s15, 0
    %p42 = por %p40, %p41
    %s44 = sadd.s32 %s43, 1
    %p47 = scmp.eq.s32.totalorder %s9, 1
    %p48 = scmp.ne.s32.totalorder %s43, %s45
    %p49 = scmp.eq.s32.totalorder %s9, 0
    %p50 = por %p48, %p49
    %p51 = scmp.ne.s32.totalorder %s43, %s45
    %p52 = scmp.eq.s32.totalorder %s14, 1
    %p53 = por %p51, %p52
    %p54 = scmp.ne.s32.totalorder %s45, %s46
    %p55 = scmp.eq.s32.totalorder %s14, 0
    %p56 = por %p54, %p55
    %p57 = scmp.ne.s32.totalorder %s45, %s46
    %p58 = scmp.eq.s32.totalorder %s15, 1
    %p59 = por %p57, %p58
    %p61 = scmp.ne.s32.totalorder %s46, %s60
    %p62 = scmp.eq.s32.totalorder %s15, 0
    %p63 = por %p61, %p62
    %s65 = sadd.s32 %s64, 1
    %p68 = scmp.eq.s32.totalorder %s9, 1
    %p69 = scmp.ne.s32.totalorder %s64, %s66
    %p70 = scmp.eq.s32.totalorder %s9, 0
    %p71 = por %p69, %p70
    %p72 = scmp.ne.s32.totalorder %s64, %s66
    %p73 = scmp.eq.s32.totalorder %s14, 1
    %p74 = por %p72, %p73
    %p75 = scmp.ne.s32.totalorder %s66, %s67
    %p76 = scmp.eq.s32.totalorder %s14, 0
    %p77 = por %p75, %p76
    %p78 = scmp.ne.s32.totalorder %s66, %s67
    %p79 = scmp.eq.s32.totalorder %s15, 1
    %p80 = por %p78, %p79
    %p82 = scmp.ne.s32.totalorder %s67, %s81
    %p83 = scmp.eq.s32.totalorder %s15, 0
    %p84 = por %p82, %p83
    %s85 = ssub.s32 %s9, %s16
    %p86 = scmp.eq.s32.totalorder %s85, 0
    %s88 = sadd.s32 %s87, 1
    %s89 = scalar_select %p86, %s87, %s88
    %p92 = pneg %p86
    %p93 = scmp.eq.s32.totalorder %s9, 1
    %p94 = por %p92, %p93
    %p95 = scmp.ne.s32.totalorder %s87, %s90
    %p96 = scmp.eq.s32.totalorder %s9, 0
    %p97 = por %p95, %p96
    %p98 = scmp.ne.s32.totalorder %s87, %s90
    %p99 = scmp.eq.s32.totalorder %s14, 1
    %p100 = por %p98, %p99
    %p101 = scmp.ne.s32.totalorder %s90, %s91
    %p102 = scmp.eq.s32.totalorder %s14, 0
    %p103 = por %p101, %p102
    %p104 = scmp.ne.s32.totalorder %s90, %s91
    %p105 = scmp.eq.s32.totalorder %s15, 1
    %p106 = por %p104, %p105
    %p108 = scmp.ne.s32.totalorder %s91, %s107
    %p109 = scmp.eq.s32.totalorder %s15, 0
    %p110 = por %p108, %p109
    %p111 = scmp.le.s32.totalorder 1, %s9
    %p112 = scmp.lt.s32.totalorder %s9, 3
    %p113 = pnand %p111, %p112
    %p114 = pneg %p113
    // Predicated region
    $region9: #{_lambda_.5} parent=5 // pred_check
      _
    $region10: #{_lambda_.5} parent=5 // pred_check_branch
      %116 = sbr.rel (%p113) target = $region12
    $region11: #{_lambda_.5} parent=5 // pred_region
      %s117 = ssub.s32 %s9, 1
      // Predicated region
      $region13: #{_lambda_.5} parent=11 // pred_check
        %p118 = pneg %p56
      $region14: #{_lambda_.5} parent=11 // pred_check_branch
        %120 = sbr.rel (%p118) target = $region16
      $region15: #{_lambda_.5} parent=11 // pred_region
        _
      $region16: #{_lambda_.5} parent=11 // pred_fallthru
        _
      // Predicated region
      $region17: #{_lambda_.5} parent=11 // pred_check
        %p121 = pneg %p77
      $region18: #{_lambda_.5} parent=11 // pred_check_branch
        %123 = sbr.rel (%p121) target = $region20
      $region19: #{_lambda_.5} parent=11 // pred_region
        _
      $region20: #{_lambda_.5} parent=11 // pred_fallthru
        _
    $region12: #{_lambda_.5} parent=5 // pred_fallthru
      _
    %p124 = scmp.lt.s32.totalorder %s9, 2
    // Predicated region
    $region21: #{_lambda_.5} parent=5 // pred_check
      %p125 = pneg %p124
    $region22: #{_lambda_.5} parent=5 // pred_check_branch
      %127 = sbr.rel (%p125) target = $region24
    $region23: #{_lambda_.5} parent=5 // pred_region
      // Predicated region
      $region25: #{_lambda_.5} parent=23 // pred_check
        %p128 = pneg %p29
      $region26: #{_lambda_.5} parent=23 // pred_check_branch
        %130 = sbr.rel (%p128) target = $region28
      $region27: #{_lambda_.5} parent=23 // pred_region
        %s131 = smul.u32 8, %s9
        %p132 = scmp.lt.s32.totalorder %s131, 15
        %s133 = scalar_select %p132, %s131, 15
        %s134 = smul.addr %s133, 4
        %s135 = scalar_lea.vmem %s0, %s134
        %s136 = smul.u32 8, %s9
      $region28: #{_lambda_.5} parent=23 // pred_fallthru
        _
    $region24: #{_lambda_.5} parent=5 // pred_fallthru
      _
    %p137 = scmp.le.s32.totalorder 1, %s9
    %p138 = scmp.lt.s32.totalorder %s9, 3
    %p139 = pnand %p137, %p138
    %p140 = pneg %p139
    // Predicated region
    $region29: #{_lambda_.5} parent=5 // pred_check
      _
    $region30: #{_lambda_.5} parent=5 // pred_check_branch
      %142 = sbr.rel (%p139) target = $region32
    $region31: #{_lambda_.5} parent=5 // pred_region
      %s143 = ssub.s32 %s9, 1
      %s144 = smul.u32 8, %s14
      %p145 = scmp.lt.s32.totalorder %s144, 15
      %s146 = scalar_select %p145, %s144, 15
      %s147 = smul.addr %s146, 4
      %s148 = scalar_lea.vmem %s0, %s147
      %p149 = pneg %p35
      %p150 = pneg %p32
      %p151 = pneg %p56
      %p152 = pneg %p53
      %p153 = pneg %p77
      %p154 = pneg %p74
      %p155 = pneg %p103
      %p156 = pneg %p100
      %s157 = smul.u32 8, %s14
      %p158 = scmp.lt.s32.totalorder %s157, 15
      %s159 = scalar_select %p158, %s157, 15
      %s160 = smul.addr %s159, 8
      %s161 = scalar_lea.vmem %s3, %s160
      %s162 = smul.u32 8, %s14
      %p163 = scmp.lt.s32.totalorder %s162, 15
      %s164 = scalar_select %p163, %s162, 15
      %s165 = smul.addr %s164, 4
      %s166 = scalar_lea.vmem %s0, %s165
      %s167 = smul.u32 8, %s14
      %s168 = smul.u32 8, %s14
      %p169 = scmp.lt.s32.totalorder %s168, 15
      %s170 = scalar_select %p169, %s168, 15
      %s171 = smul.addr %s170, 8
      %s172 = scalar_lea.vmem %s3, %s171
      %s173 = smul.u32 8, %s14
      %v175 = vld [vmem:[%s166] sm:$0xf]
      %v176 = vld [vmem:[%s166 + $0x4] sm:$0xf]
      %v177 = vld [vmem:[%s166 + $0x8] sm:$0xf]
      %v178 = vld [vmem:[%s166 + $0xc] sm:$0xf]
      %v179 = vld [vmem:[%s166 + $0x10] sm:$0xf]
      %v180 = vld [vmem:[%s166 + $0x14] sm:$0xf]
      %v181 = vld [vmem:[%s166 + $0x18] sm:$0xf]
      %v182 = vld [vmem:[%s166 + $0x1c] sm:$0xf]
      %v183 = vld [vmem:[%s1] sm:$0xf]
      %v184 = vld [vmem:[%s1 + $0x4] sm:$0xf]
      %v185 = vld [vmem:[%s1 + $0x8] sm:$0xf]
      %v186 = vld [vmem:[%s1 + $0xc] sm:$0xf]
      %v187 = vld [vmem:[%s1 + $0x10] sm:$0xf]
      %v188 = vld [vmem:[%s1 + $0x14] sm:$0xf]
      %v189 = vld [vmem:[%s1 + $0x18] sm:$0xf]
      %v190 = vld [vmem:[%s1 + $0x1c] sm:$0xf]
      %v191 = vld [vmem:[%s1 + $0x20] sm:$0xf]
      %v192 = vld [vmem:[%s1 + $0x24] sm:$0xf]
      %v193 = vld [vmem:[%s1 + $0x28] sm:$0xf]
      %v194 = vld [vmem:[%s1 + $0x2c] sm:$0xf]
      %v195 = vld [vmem:[%s1 + $0x30] sm:$0xf]
      %v196 = vld [vmem:[%s1 + $0x34] sm:$0xf]
      %v197 = vld [vmem:[%s1 + $0x38] sm:$0xf]
      %v198 = vld [vmem:[%s1 + $0x3c] sm:$0xf]
      %v199 = vld [vmem:[%s2] sm:$0x1]
      %v201 = vlaneseq
      %v202 = vshrl.u32 %v201, 7
      %v203 = vsub.s32 0, %v202
      %v204 = vrot.slane %v199, %v203
      %v214 = vunpack.c.l.b16 %v175
      %v215 = vunpack.c.l.b16 %v176
      %v216 = vunpack.c.l.b16 %v177
      %v217 = vunpack.c.l.b16 %v178
      %v218 = vunpack.c.l.b16 %v179
      %v219 = vunpack.c.l.b16 %v180
      %v220 = vunpack.c.l.b16 %v181
      %v221 = vunpack.c.l.b16 %v182
      %v222 = vpack.c.b16 %v215, %v214
      %v223 = vpack.c.b16 %v217, %v216
      %v224 = vpack.c.b16 %v219, %v218
      %v225 = vpack.c.b16 %v221, %v220
      %v246 = vunpack.c.l.b16 %v183
      %v247 = vunpack.c.l.b16 %v184
      %v248 = vunpack.c.l.b16 %v185
      %v249 = vunpack.c.l.b16 %v186
      %v250 = vunpack.c.l.b16 %v187
      %v251 = vunpack.c.l.b16 %v188
      %v252 = vunpack.c.l.b16 %v189
      %v253 = vunpack.c.l.b16 %v190
      %v254 = vunpack.c.l.b16 %v191
      %v255 = vunpack.c.l.b16 %v192
      %v256 = vunpack.c.l.b16 %v193
      %v257 = vunpack.c.l.b16 %v194
      %v258 = vunpack.c.l.b16 %v195
      %v259 = vunpack.c.l.b16 %v196
      %v260 = vunpack.c.l.b16 %v197
      %v261 = vunpack.c.l.b16 %v198
      %v262 = vpack.c.b16 %v247, %v246
      %v263 = vpack.c.b16 %v249, %v248
      %v264 = vpack.c.b16 %v251, %v250
      %v265 = vpack.c.b16 %v253, %v252
      %v266 = vpack.c.b16 %v255, %v254
      %v267 = vpack.c.b16 %v257, %v256
      %v268 = vpack.c.b16 %v259, %v258
      %v269 = vpack.c.b16 %v261, %v260
      %278 = vmatprep.subr.bf16.mxu0 0
      %279 = vmatpush1.bf16.msra.mxu0 %v269
      %280 = vmatprep.subr.bf16.mxu0 0
      %281 = vmatpush1.bf16.msra.mxu0 %v268
      %282 = vmatprep.subr.bf16.mxu0 0
      %283 = vmatpush1.bf16.msra.mxu0 %v267
      %284 = vmatprep.subr.bf16.mxu0 0
      %285 = vmatpush1.bf16.msra.mxu0 %v266
      %286 = vmatprep.subr.bf16.mxu0 0
      %287 = vmatpush1.bf16.msra.mxu0 %v265
      %288 = vmatprep.subr.bf16.mxu0 0
      %289 = vmatpush1.bf16.msra.mxu0 %v264
      %290 = vmatprep.subr.bf16.mxu0 0
      %291 = vmatpush1.bf16.msra.mxu0 %v263
      %292 = vmatprep.subr.bf16.mxu0 0
      %293 = vmatpush1.bf16.msra.mxu0 %v262
      %294 = vmatprep.subr.bf16.mxu0 0
      %295 = vmatpush2.bf16.msra.mxu0 0
      %296 = vmatprep.subr.bf16.mxu0 0
      %297 = vmatpush2.bf16.msra.mxu0 0
      %298 = vmatprep.subr.bf16.mxu0 0
      %299 = vmatpush2.bf16.msra.mxu0 0
      %300 = vmatprep.subr.bf16.mxu0 0
      %301 = vmatpush2.bf16.msra.mxu0 0
      %302 = vmatprep.subr.bf16.mxu0 0
      %303 = vmatpush2.bf16.msra.mxu0 0
      %304 = vmatprep.subr.bf16.mxu0 0
      %305 = vmatpush2.bf16.msra.mxu0 0
      %306 = vmatprep.subr.bf16.mxu0 0
      %307 = vmatpush2.bf16.msra.mxu0 0
      %308 = vmatprep.subr.bf16.mxu0 0
      %309 = vmatpush2.bf16.msra.mxu0 0
      %310 = vmatprep.mubr.bf16.mxu0 0
      %311 = vmatmul.mubr.bf16.gmra.mxu0 %v222
      %v312 = vpop.f32.mrf.mxu0
      %v313 = vadd.f32 %v204, %v312
      %v314 = vpop.f32.mrf.mxu0
      %v315 = vpop.f32.mrf.mxu0
      %v316 = vadd.f32 %v204, %v315
      %v317 = vpop.f32.mrf.mxu0
      %318 = vmatprep.mubr.bf16.mxu0 0
      %319 = vmatmul.mubr.bf16.gmra.mxu0 %v223
      %v320 = vpop.f32.mrf.mxu0
      %v321 = vadd.f32 %v204, %v320
      %v322 = vpop.f32.mrf.mxu0
      %v323 = vpop.f32.mrf.mxu0
      %v324 = vadd.f32 %v204, %v323
      %v325 = vpop.f32.mrf.mxu0
      %326 = vmatprep.mubr.bf16.mxu0 0
      %327 = vmatmul.mubr.bf16.gmra.mxu0 %v224
      %v328 = vpop.f32.mrf.mxu0
      %v329 = vadd.f32 %v204, %v328
      %v330 = vpop.f32.mrf.mxu0
      %v331 = vpop.f32.mrf.mxu0
      %v332 = vadd.f32 %v204, %v331
      %v333 = vpop.f32.mrf.mxu0
      %334 = vmatprep.mubr.bf16.mxu0 0
      %335 = vmatmul.mubr.bf16.gmra.mxu0 %v225
      %v336 = vpop.f32.mrf.mxu0
      %v337 = vadd.f32 %v204, %v336
      %v338 = vpop.f32.mrf.mxu0
      %v339 = vpop.f32.mrf.mxu0
      %v340 = vadd.f32 %v204, %v339
      %v341 = vpop.f32.mrf.mxu0
      %342 = vdwg.mxu0
      %343 = vst [vmem:[%s172] sm:$0xff] %v313
      %344 = vst [vmem:[%s172 + $0x8] sm:$0xff] %v316
      %345 = vst [vmem:[%s172 + $0x10] sm:$0xff] %v321
      %346 = vst [vmem:[%s172 + $0x18] sm:$0xff] %v324
      %347 = vst [vmem:[%s172 + $0x20] sm:$0xff] %v329
      %348 = vst [vmem:[%s172 + $0x28] sm:$0xff] %v332
      %349 = vst [vmem:[%s172 + $0x30] sm:$0xff] %v337
      %350 = vst [vmem:[%s172 + $0x38] sm:$0xff] %v340
      %s351 = smul.u32 8, %s14
      %p352 = scmp.lt.s32.totalorder %s351, 15
      %s353 = scalar_select %p352, %s351, 15
      %s354 = smul.addr %s353, 8
      %s355 = scalar_lea.vmem %s3, %s354
      // Predicated region
      $region33: #{_lambda_.5} parent=31 // pred_check
        %p356 = pneg %p100
      $region34: #{_lambda_.5} parent=31 // pred_check_branch
        %358 = sbr.rel (%p356) target = $region36
      $region35: #{_lambda_.5} parent=31 // pred_region
        %s359 = smul.u32 8, %s14
      $region36: #{_lambda_.5} parent=31 // pred_fallthru
        _
    $region32: #{_lambda_.5} parent=5 // pred_fallthru
      _
    %p360 = scmp.le.s32.totalorder 2, %s9
    // Predicated region
    $region37: #{_lambda_.5} parent=5 // pred_check
      %p361 = pneg %p360
    $region38: #{_lambda_.5} parent=5 // pred_check_branch
      %363 = sbr.rel (%p361) target = $region40
    $region39: #{_lambda_.5} parent=5 // pred_region
      %s364 = ssub.s32 %s9, 2
      // Predicated region
      $region41: #{_lambda_.5} parent=39 // pred_check
        %p365 = pneg %p106
      $region42: #{_lambda_.5} parent=39 // pred_check_branch
        %367 = sbr.rel (%p365) target = $region44
      $region43: #{_lambda_.5} parent=39 // pred_region
        %s368 = smul.u32 8, %s15
        %p369 = scmp.lt.s32.totalorder %s368, 15
        %s370 = scalar_select %p369, %s368, 15
        %s371 = smul.addr %s370, 8
        %s372 = scalar_lea.vmem %s3, %s371
      $region44: #{_lambda_.5} parent=39 // pred_fallthru
        _
    $region40: #{_lambda_.5} parent=5 // pred_fallthru
      _
  $region6: #{_lambda_.5} parent=0 // loop_footer
    %s13 = sadd.s32 1, %s9
  $region7: #{_lambda_.5} parent=0 // loop_footer_branch
    %8 = sbr.rel target = $region3
  $region8: #{_lambda_.5} parent=0 // loop_exit
    _

// kernel: _lambda_.3
$region0: #{_lambda_.3}
  #allocation0 [shape = 'u32[]', space=smem, size = 0x4, offset = 0x4, fixed_abs, tag = 'smem constant byte address 0x4 - core index']
  #allocation1 [shape = 'u32[144,128]{1,0:T(1,128)}', space=vmem, size = 0x12000, scoped, tag = 'internal scratch']
  %s0 = inlined_call_operand.vmem [shape: bf16[2,10,16,10], index: 0, kind: input, shape index: {}]
  %s1 = inlined_call_operand.vmem [shape: f32[128,24], index: 1, kind: input, shape index: {}]
  %s2 = inlined_call_operand.vmem [shape: bf16[9,10,128], index: 2, kind: input, shape index: {}]
  %s3 = inlined_call_operand.vmem [shape: f32[1,128], index: 3, kind: input, shape index: {}]
  %s4 = inlined_call_operand.vmem [shape: f32[1,128], index: 4, kind: input, shape index: {}]
  %s5 = inlined_call_operand.vmem [shape: f32[1,24], index: 5, kind: input, shape index: {}]
  %s6 = inlined_call_operand.vmem [shape: f32[1,24], index: 6, kind: input, shape index: {}]
  %s7 = inlined_call_operand.vmem [shape: bf16[24,128], index: 7, kind: input, shape index: {}]
  %s8 = inlined_call_operand.vmem [shape: f32[1,128], index: 8, kind: input, shape index: {}]
  %s9 = inlined_call_operand.vmem [shape: bf16[128,128], index: 9, kind: input, shape index: {}]
  %s10 = inlined_call_operand.vmem [shape: f32[1,128], index: 10, kind: input, shape index: {}]
  %s11 = inlined_call_operand.vmem [shape: bf16[10,128], index: 11, kind: input, shape index: {}]
  %s12 = inlined_call_operand.vmem [shape: f32[1,128], index: 12, kind: input, shape index: {}]
  %s13 = inlined_call_operand.vmem [shape: bf16[128,128], index: 13, kind: output, shape index: {}]
  %s14 = sld [smem:[#allocation0]]
  $region85: #{_lambda_.3} parent=0
    _
  %s16 = ssub.s32 1, %s14
  %s17 = scalar_select 0, %s16, %s14
  loop: start=0, step=1, limit=4
  $region2: #{_lambda_.3} parent=0 // loop_pre_header
    _
  $region3: #{_lambda_.3} parent=0 // loop_header
    %s19 = sphi 0, %s23
    %p20 = scmp.ge.s32.totalorder %s19, 4
    %s29 = sphi 0, %s31
    %s32 = sphi 0, %s29
    %s33 = sphi 0, %s32
    %s49 = sphi 0, %s33
    %s55 = sphi 0, %s57
    %s58 = sphi 0, %s55
    %s59 = sphi 0, %s58
    %s75 = sphi 0, %s59
    %s79 = sphi 0, %s79
    %s81 = sphi 0, %s79
    %s82 = sphi 0, %s81
    %s96 = sphi 0, %s82
    %s100 = sphi 0, %s100
    %s102 = sphi 0, %s100
    %s103 = sphi 0, %s102
    %s117 = sphi 0, %s103
    %s121 = sphi 0, %s121
    %s123 = sphi 0, %s121
    %s124 = sphi 0, %s123
    %s138 = sphi 0, %s124
    %s142 = sphi 0, %s142
    %s144 = sphi 0, %s142
    %s145 = sphi 0, %s144
    %s159 = sphi 0, %s145
    %s163 = sphi 0, %s163
    %s165 = sphi 0, %s163
    %s166 = sphi 0, %s165
    %s180 = sphi 0, %s166
    %s184 = sphi 0, %s184
    %s186 = sphi 0, %s184
    %s187 = sphi 0, %s186
    %s201 = sphi 0, %s187
    %s205 = sphi 0, %s205
    %s207 = sphi 0, %s205
    %s208 = sphi 0, %s207
    %s222 = sphi 0, %s208
    %s226 = sphi 0, %s226
    %s228 = sphi 0, %s226
    %s229 = sphi 0, %s228
    %s243 = sphi 0, %s229
    %s247 = sphi 0, %s247
    %s249 = sphi 0, %s247
    %s250 = sphi 0, %s249
    %s264 = sphi 0, %s250
    %s268 = sphi 0, %s268
    %s270 = sphi 0, %s268
    %s271 = sphi 0, %s270
    %s285 = sphi 0, %s271
    %s289 = sphi 0, %s289
    %s291 = sphi 0, %s289
    %s292 = sphi 0, %s291
    %s306 = sphi 0, %s292
    %s312 = sphi 0, %s314
    %s315 = sphi 0, %s312
    %s316 = sphi 0, %s315
    %s332 = sphi 0, %s316
  $region4: #{_lambda_.3} parent=0 // loop_header_branch
    %22 = sbr.rel (%p20) target = $region8
  $region5: #{_lambda_.3} parent=0 // loop_body
    %s24 = ssub.s32 %s19, 1
    %s25 = ssub.s32 %s19, 2
    %s26 = sadd.s32 %s19, 1
    %s27 = ssub.s32 %s19, %s26
    %p28 = scmp.eq.s32.totalorder %s27, 0
    %s30 = sadd.s32 %s29, 1
    %s31 = scalar_select %p28, %s29, %s30
    %p34 = pneg %p28
    %p35 = scmp.eq.s32.totalorder %s19, 1
    %p36 = por %p34, %p35
    %p37 = scmp.ne.s32.totalorder %s29, %s32
    %p38 = scmp.eq.s32.totalorder %s19, 0
    %p39 = por %p37, %p38
    %p40 = scmp.ne.s32.totalorder %s29, %s32
    %p41 = scmp.eq.s32.totalorder %s24, 1
    %p42 = por %p40, %p41
    %p43 = scmp.ne.s32.totalorder %s32, %s33
    %p44 = scmp.eq.s32.totalorder %s24, 0
    %p45 = por %p43, %p44
    %p46 = scmp.ne.s32.totalorder %s32, %s33
    %p47 = scmp.eq.s32.totalorder %s25, 1
    %p48 = por %p46, %p47
    %p50 = scmp.ne.s32.totalorder %s33, %s49
    %p51 = scmp.eq.s32.totalorder %s25, 0
    %p52 = por %p50, %p51
    %s53 = ssub.s32 %s19, %s26
    %p54 = scmp.eq.s32.totalorder %s53, 0
    %s56 = sadd.s32 %s55, 1
    %s57 = scalar_select %p54, %s55, %s56
    %p60 = pneg %p54
    %p61 = scmp.eq.s32.totalorder %s19, 1
    %p62 = por %p60, %p61
    %p63 = scmp.ne.s32.totalorder %s55, %s58
    %p64 = scmp.eq.s32.totalorder %s19, 0
    %p65 = por %p63, %p64
    %p66 = scmp.ne.s32.totalorder %s55, %s58
    %p67 = scmp.eq.s32.totalorder %s24, 1
    %p68 = por %p66, %p67
    %p69 = scmp.ne.s32.totalorder %s58, %s59
    %p70 = scmp.eq.s32.totalorder %s24, 0
    %p71 = por %p69, %p70
    %p72 = scmp.ne.s32.totalorder %s58, %s59
    %p73 = scmp.eq.s32.totalorder %s25, 1
    %p74 = por %p72, %p73
    %p76 = scmp.ne.s32.totalorder %s59, %s75
    %p77 = scmp.eq.s32.totalorder %s25, 0
    %p78 = por %p76, %p77
    %s80 = sadd.s32 %s79, 1
    %p83 = scmp.eq.s32.totalorder %s19, 1
    %p84 = scmp.ne.s32.totalorder %s79, %s81
    %p85 = scmp.eq.s32.totalorder %s19, 0
    %p86 = por %p84, %p85
    %p87 = scmp.ne.s32.totalorder %s79, %s81
    %p88 = scmp.eq.s32.totalorder %s24, 1
    %p89 = por %p87, %p88
    %p90 = scmp.ne.s32.totalorder %s81, %s82
    %p91 = scmp.eq.s32.totalorder %s24, 0
    %p92 = por %p90, %p91
    %p93 = scmp.ne.s32.totalorder %s81, %s82
    %p94 = scmp.eq.s32.totalorder %s25, 1
    %p95 = por %p93, %p94
    %p97 = scmp.ne.s32.totalorder %s82, %s96
    %p98 = scmp.eq.s32.totalorder %s25, 0
    %p99 = por %p97, %p98
    %s101 = sadd.s32 %s100, 1
    %p104 = scmp.eq.s32.totalorder %s19, 1
    %p105 = scmp.ne.s32.totalorder %s100, %s102
    %p106 = scmp.eq.s32.totalorder %s19, 0
    %p107 = por %p105, %p106
    %p108 = scmp.ne.s32.totalorder %s100, %s102
    %p109 = scmp.eq.s32.totalorder %s24, 1
    %p110 = por %p108, %p109
    %p111 = scmp.ne.s32.totalorder %s102, %s103
    %p112 = scmp.eq.s32.totalorder %s24, 0
    %p113 = por %p111, %p112
    %p114 = scmp.ne.s32.totalorder %s102, %s103
    %p115 = scmp.eq.s32.totalorder %s25, 1
    %p116 = por %p114, %p115
    %p118 = scmp.ne.s32.totalorder %s103, %s117
    %p119 = scmp.eq.s32.totalorder %s25, 0
    %p120 = por %p118, %p119
    %s122 = sadd.s32 %s121, 1
    %p125 = scmp.eq.s32.totalorder %s19, 1
    %p126 = scmp.ne.s32.totalorder %s121, %s123
    %p127 = scmp.eq.s32.totalorder %s19, 0
    %p128 = por %p126, %p127
    %p129 = scmp.ne.s32.totalorder %s121, %s123
    %p130 = scmp.eq.s32.totalorder %s24, 1
    %p131 = por %p129, %p130
    %p132 = scmp.ne.s32.totalorder %s123, %s124
    %p133 = scmp.eq.s32.totalorder %s24, 0
    %p134 = por %p132, %p133
    %p135 = scmp.ne.s32.totalorder %s123, %s124
    %p136 = scmp.eq.s32.totalorder %s25, 1
    %p137 = por %p135, %p136
    %p139 = scmp.ne.s32.totalorder %s124, %s138
    %p140 = scmp.eq.s32.totalorder %s25, 0
    %p141 = por %p139, %p140
    %s143 = sadd.s32 %s142, 1
    %p146 = scmp.eq.s32.totalorder %s19, 1
    %p147 = scmp.ne.s32.totalorder %s142, %s144
    %p148 = scmp.eq.s32.totalorder %s19, 0
    %p149 = por %p147, %p148
    %p150 = scmp.ne.s32.totalorder %s142, %s144
    %p151 = scmp.eq.s32.totalorder %s24, 1
    %p152 = por %p150, %p151
    %p153 = scmp.ne.s32.totalorder %s144, %s145
    %p154 = scmp.eq.s32.totalorder %s24, 0
    %p155 = por %p153, %p154
    %p156 = scmp.ne.s32.totalorder %s144, %s145
    %p157 = scmp.eq.s32.totalorder %s25, 1
    %p158 = por %p156, %p157
    %p160 = scmp.ne.s32.totalorder %s145, %s159
    %p161 = scmp.eq.s32.totalorder %s25, 0
    %p162 = por %p160, %p161
    %s164 = sadd.s32 %s163, 1
    %p167 = scmp.eq.s32.totalorder %s19, 1
    %p168 = scmp.ne.s32.totalorder %s163, %s165
    %p169 = scmp.eq.s32.totalorder %s19, 0
    %p170 = por %p168, %p169
    %p171 = scmp.ne.s32.totalorder %s163, %s165
    %p172 = scmp.eq.s32.totalorder %s24, 1
    %p173 = por %p171, %p172
    %p174 = scmp.ne.s32.totalorder %s165, %s166
    %p175 = scmp.eq.s32.totalorder %s24, 0
    %p176 = por %p174, %p175
    %p177 = scmp.ne.s32.totalorder %s165, %s166
    %p178 = scmp.eq.s32.totalorder %s25, 1
    %p179 = por %p177, %p178
    %p181 = scmp.ne.s32.totalorder %s166, %s180
    %p182 = scmp.eq.s32.totalorder %s25, 0
    %p183 = por %p181, %p182
    %s185 = sadd.s32 %s184, 1
    %p188 = scmp.eq.s32.totalorder %s19, 1
    %p189 = scmp.ne.s32.totalorder %s184, %s186
    %p190 = scmp.eq.s32.totalorder %s19, 0
    %p191 = por %p189, %p190
    %p192 = scmp.ne.s32.totalorder %s184, %s186
    %p193 = scmp.eq.s32.totalorder %s24, 1
    %p194 = por %p192, %p193
    %p195 = scmp.ne.s32.totalorder %s186, %s187
    %p196 = scmp.eq.s32.totalorder %s24, 0
    %p197 = por %p195, %p196
    %p198 = scmp.ne.s32.totalorder %s186, %s187
    %p199 = scmp.eq.s32.totalorder %s25, 1
    %p200 = por %p198, %p199
    %p202 = scmp.ne.s32.totalorder %s187, %s201
    %p203 = scmp.eq.s32.totalorder %s25, 0
    %p204 = por %p202, %p203
    %s206 = sadd.s32 %s205, 1
    %p209 = scmp.eq.s32.totalorder %s19, 1
    %p210 = scmp.ne.s32.totalorder %s205, %s207
    %p211 = scmp.eq.s32.totalorder %s19, 0
    %p212 = por %p210, %p211
    %p213 = scmp.ne.s32.totalorder %s205, %s207
    %p214 = scmp.eq.s32.totalorder %s24, 1
    %p215 = por %p213, %p214
    %p216 = scmp.ne.s32.totalorder %s207, %s208
    %p217 = scmp.eq.s32.totalorder %s24, 0
    %p218 = por %p216, %p217
    %p219 = scmp.ne.s32.totalorder %s207, %s208
    %p220 = scmp.eq.s32.totalorder %s25, 1
    %p221 = por %p219, %p220
    %p223 = scmp.ne.s32.totalorder %s208, %s222
    %p224 = scmp.eq.s32.totalorder %s25, 0
    %p225 = por %p223, %p224
    %s227 = sadd.s32 %s226, 1
    %p230 = scmp.eq.s32.totalorder %s19, 1
    %p231 = scmp.ne.s32.totalorder %s226, %s228
    %p232 = scmp.eq.s32.totalorder %s19, 0
    %p233 = por %p231, %p232
    %p234 = scmp.ne.s32.totalorder %s226, %s228
    %p235 = scmp.eq.s32.totalorder %s24, 1
    %p236 = por %p234, %p235
    %p237 = scmp.ne.s32.totalorder %s228, %s229
    %p238 = scmp.eq.s32.totalorder %s24, 0
    %p239 = por %p237, %p238
    %p240 = scmp.ne.s32.totalorder %s228, %s229
    %p241 = scmp.eq.s32.totalorder %s25, 1
    %p242 = por %p240, %p241
    %p244 = scmp.ne.s32.totalorder %s229, %s243
    %p245 = scmp.eq.s32.totalorder %s25, 0
    %p246 = por %p244, %p245
    %s248 = sadd.s32 %s247, 1
    %p251 = scmp.eq.s32.totalorder %s19, 1
    %p252 = scmp.ne.s32.totalorder %s247, %s249
    %p253 = scmp.eq.s32.totalorder %s19, 0
    %p254 = por %p252, %p253
    %p255 = scmp.ne.s32.totalorder %s247, %s249
    %p256 = scmp.eq.s32.totalorder %s24, 1
    %p257 = por %p255, %p256
    %p258 = scmp.ne.s32.totalorder %s249, %s250
    %p259 = scmp.eq.s32.totalorder %s24, 0
    %p260 = por %p258, %p259
    %p261 = scmp.ne.s32.totalorder %s249, %s250
    %p262 = scmp.eq.s32.totalorder %s25, 1
    %p263 = por %p261, %p262
    %p265 = scmp.ne.s32.totalorder %s250, %s264
    %p266 = scmp.eq.s32.totalorder %s25, 0
    %p267 = por %p265, %p266
    %s269 = sadd.s32 %s268, 1
    %p272 = scmp.eq.s32.totalorder %s19, 1
    %p273 = scmp.ne.s32.totalorder %s268, %s270
    %p274 = scmp.eq.s32.totalorder %s19, 0
    %p275 = por %p273, %p274
    %p276 = scmp.ne.s32.totalorder %s268, %s270
    %p277 = scmp.eq.s32.totalorder %s24, 1
    %p278 = por %p276, %p277
    %p279 = scmp.ne.s32.totalorder %s270, %s271
    %p280 = scmp.eq.s32.totalorder %s24, 0
    %p281 = por %p279, %p280
    %p282 = scmp.ne.s32.totalorder %s270, %s271
    %p283 = scmp.eq.s32.totalorder %s25, 1
    %p284 = por %p282, %p283
    %p286 = scmp.ne.s32.totalorder %s271, %s285
    %p287 = scmp.eq.s32.totalorder %s25, 0
    %p288 = por %p286, %p287
    %s290 = sadd.s32 %s289, 1
    %p293 = scmp.eq.s32.totalorder %s19, 1
    %p294 = scmp.ne.s32.totalorder %s289, %s291
    %p295 = scmp.eq.s32.totalorder %s19, 0
    %p296 = por %p294, %p295
    %p297 = scmp.ne.s32.totalorder %s289, %s291
    %p298 = scmp.eq.s32.totalorder %s24, 1
    %p299 = por %p297, %p298
    %p300 = scmp.ne.s32.totalorder %s291, %s292
    %p301 = scmp.eq.s32.totalorder %s24, 0
    %p302 = por %p300, %p301
    %p303 = scmp.ne.s32.totalorder %s291, %s292
    %p304 = scmp.eq.s32.totalorder %s25, 1
    %p305 = por %p303, %p304
    %p307 = scmp.ne.s32.totalorder %s292, %s306
    %p308 = scmp.eq.s32.totalorder %s25, 0
    %p309 = por %p307, %p308
    %s310 = ssub.s32 %s19, %s26
    %p311 = scmp.eq.s32.totalorder %s310, 0
    %s313 = sadd.s32 %s312, 1
    %s314 = scalar_select %p311, %s312, %s313
    %p317 = pneg %p311
    %p318 = scmp.eq.s32.totalorder %s19, 1
    %p319 = por %p317, %p318
    %p320 = scmp.ne.s32.totalorder %s312, %s315
    %p321 = scmp.eq.s32.totalorder %s19, 0
    %p322 = por %p320, %p321
    %p323 = scmp.ne.s32.totalorder %s312, %s315
    %p324 = scmp.eq.s32.totalorder %s24, 1
    %p325 = por %p323, %p324
    %p326 = scmp.ne.s32.totalorder %s315, %s316
    %p327 = scmp.eq.s32.totalorder %s24, 0
    %p328 = por %p326, %p327
    %p329 = scmp.ne.s32.totalorder %s315, %s316
    %p330 = scmp.eq.s32.totalorder %s25, 1
    %p331 = por %p329, %p330
    %p333 = scmp.ne.s32.totalorder %s316, %s332
    %p334 = scmp.eq.s32.totalorder %s25, 0
    %p335 = por %p333, %p334
    %p336 = scmp.le.s32.totalorder 1, %s19
    %p337 = scmp.lt.s32.totalorder %s19, 3
    %p338 = pnand %p336, %p337
    %p339 = pneg %p338
    // Predicated region
    $region9: #{_lambda_.3} parent=5 // pred_check
      _
    $region10: #{_lambda_.3} parent=5 // pred_check_branch
      %341 = sbr.rel (%p338) target = $region12
    $region11: #{_lambda_.3} parent=5 // pred_region
      %s342 = ssub.s32 %s19, 1
      // Predicated region
      $region13: #{_lambda_.3} parent=11 // pred_check
        %p343 = pneg %p92
      $region14: #{_lambda_.3} parent=11 // pred_check_branch
        %345 = sbr.rel (%p343) target = $region16
      $region15: #{_lambda_.3} parent=11 // pred_region
        _
      $region16: #{_lambda_.3} parent=11 // pred_fallthru
        _
      // Predicated region
      $region17: #{_lambda_.3} parent=11 // pred_check
        %p346 = pneg %p113
      $region18: #{_lambda_.3} parent=11 // pred_check_branch
        %348 = sbr.rel (%p346) target = $region20
      $region19: #{_lambda_.3} parent=11 // pred_region
        _
      $region20: #{_lambda_.3} parent=11 // pred_fallthru
        _
      // Predicated region
      $region21: #{_lambda_.3} parent=11 // pred_check
        %p349 = pneg %p134
      $region22: #{_lambda_.3} parent=11 // pred_check_branch
        %351 = sbr.rel (%p349) target = $region24
      $region23: #{_lambda_.3} parent=11 // pred_region
        _
      $region24: #{_lambda_.3} parent=11 // pred_fallthru
        _
      // Predicated region
      $region25: #{_lambda_.3} parent=11 // pred_check
        %p352 = pneg %p155
      $region26: #{_lambda_.3} parent=11 // pred_check_branch
        %354 = sbr.rel (%p352) target = $region28
      $region27: #{_lambda_.3} parent=11 // pred_region
        _
      $region28: #{_lambda_.3} parent=11 // pred_fallthru
        _
      // Predicated region
      $region29: #{_lambda_.3} parent=11 // pred_check
        %p355 = pneg %p176
      $region30: #{_lambda_.3} parent=11 // pred_check_branch
        %357 = sbr.rel (%p355) target = $region32
      $region31: #{_lambda_.3} parent=11 // pred_region
        _
      $region32: #{_lambda_.3} parent=11 // pred_fallthru
        _
      // Predicated region
      $region33: #{_lambda_.3} parent=11 // pred_check
        %p358 = pneg %p197
      $region34: #{_lambda_.3} parent=11 // pred_check_branch
        %360 = sbr.rel (%p358) target = $region36
      $region35: #{_lambda_.3} parent=11 // pred_region
        _
      $region36: #{_lambda_.3} parent=11 // pred_fallthru
        _
      // Predicated region
      $region37: #{_lambda_.3} parent=11 // pred_check
        %p361 = pneg %p218
      $region38: #{_lambda_.3} parent=11 // pred_check_branch
        %363 = sbr.rel (%p361) target = $region40
      $region39: #{_lambda_.3} parent=11 // pred_region
        _
      $region40: #{_lambda_.3} parent=11 // pred_fallthru
        _
      // Predicated region
      $region41: #{_lambda_.3} parent=11 // pred_check
        %p364 = pneg %p239
      $region42: #{_lambda_.3} parent=11 // pred_check_branch
        %366 = sbr.rel (%p364) target = $region44
      $region43: #{_lambda_.3} parent=11 // pred_region
        _
      $region44: #{_lambda_.3} parent=11 // pred_fallthru
        _
      // Predicated region
      $region45: #{_lambda_.3} parent=11 // pred_check
        %p367 = pneg %p260
      $region46: #{_lambda_.3} parent=11 // pred_check_branch
        %369 = sbr.rel (%p367) target = $region48
      $region47: #{_lambda_.3} parent=11 // pred_region
        _
      $region48: #{_lambda_.3} parent=11 // pred_fallthru
        _
      // Predicated region
      $region49: #{_lambda_.3} parent=11 // pred_check
        %p370 = pneg %p281
      $region50: #{_lambda_.3} parent=11 // pred_check_branch
        %372 = sbr.rel (%p370) target = $region52
      $region51: #{_lambda_.3} parent=11 // pred_region
        _
      $region52: #{_lambda_.3} parent=11 // pred_fallthru
        _
      // Predicated region
      $region53: #{_lambda_.3} parent=11 // pred_check
        %p373 = pneg %p302
      $region54: #{_lambda_.3} parent=11 // pred_check_branch
        %375 = sbr.rel (%p373) target = $region56
      $region55: #{_lambda_.3} parent=11 // pred_region
        _
      $region56: #{_lambda_.3} parent=11 // pred_fallthru
        _
    $region12: #{_lambda_.3} parent=5 // pred_fallthru
      _
    %p376 = scmp.lt.s32.totalorder %s19, 2
    // Predicated region
    $region57: #{_lambda_.3} parent=5 // pred_check
      %p377 = pneg %p376
    $region58: #{_lambda_.3} parent=5 // pred_check_branch
      %379 = sbr.rel (%p377) target = $region60
    $region59: #{_lambda_.3} parent=5 // pred_region
      // Predicated region
      $region61: #{_lambda_.3} parent=59 // pred_check
        %p380 = pneg %p39
      $region62: #{_lambda_.3} parent=59 // pred_check_branch
        %382 = sbr.rel (%p380) target = $region64
      $region63: #{_lambda_.3} parent=59 // pred_region
        %p383 = scmp.lt.s32.totalorder %s19, 1
        %s384 = scalar_select %p383, %s19, 1
        %s385 = smul.addr %s384, 20
        %s386 = smul.addr %s385, 4
        %s387 = scalar_lea.vmem %s0, %s386
      $region64: #{_lambda_.3} parent=59 // pred_fallthru
        _
      // Predicated region
      $region65: #{_lambda_.3} parent=59 // pred_check
        %p388 = pneg %p65
      $region66: #{_lambda_.3} parent=59 // pred_check_branch
        %390 = sbr.rel (%p388) target = $region68
      $region67: #{_lambda_.3} parent=59 // pred_region
        %s391 = smul.u32 8, %s19
        %p392 = scmp.lt.s32.totalorder %s391, 15
        %s393 = scalar_select %p392, %s391, 15
        %s394 = smul.addr %s393, 8
        %s395 = scalar_lea.vmem %s1, %s394
        %s396 = smul.u32 8, %s19
      $region68: #{_lambda_.3} parent=59 // pred_fallthru
        _
    $region60: #{_lambda_.3} parent=5 // pred_fallthru
      _
    %p397 = scmp.le.s32.totalorder 1, %s19
    %p398 = scmp.lt.s32.totalorder %s19, 3
    %p399 = pnand %p397, %p398
    %p400 = pneg %p399
    // Predicated region
    $region69: #{_lambda_.3} parent=5 // pred_check
      _
    $region70: #{_lambda_.3} parent=5 // pred_check_branch
      %402 = sbr.rel (%p399) target = $region72
    $region71: #{_lambda_.3} parent=5 // pred_region
      %s403 = ssub.s32 %s19, 1
      %p404 = scmp.lt.s32.totalorder %s24, 1
      %s405 = scalar_select %p404, %s24, 1
      %s406 = smul.addr %s405, 20
      %s407 = smul.addr %s406, 4
      %s408 = scalar_lea.vmem %s0, %s407
      %p409 = pneg %p45
      %p410 = pneg %p42
      %s411 = smul.u32 8, %s24
      %p412 = scmp.lt.s32.totalorder %s411, 15
      %s413 = scalar_select %p412, %s411, 15
      %s414 = smul.addr %s413, 8
      %s415 = scalar_lea.vmem %s1, %s414
      %p416 = pneg %p71
      %p417 = pneg %p68
      %p418 = pneg %p92
      %p419 = pneg %p89
      %p420 = pneg %p113
      %p421 = pneg %p110
      %p422 = pneg %p134
      %p423 = pneg %p131
      %p424 = pneg %p155
      %p425 = pneg %p152
      %p426 = pneg %p176
      %p427 = pneg %p173
      %p428 = pneg %p197
      %p429 = pneg %p194
      %p430 = pneg %p218
      %p431 = pneg %p215
      %p432 = pneg %p239
      %p433 = pneg %p236
      %p434 = pneg %p260
      %p435 = pneg %p257
      %p436 = pneg %p281
      %p437 = pneg %p278
      %p438 = pneg %p302
      %p439 = pneg %p299
      %p440 = pneg %p328
      %p441 = pneg %p325
      %s442 = smul.u32 8, %s24
      %p443 = scmp.lt.s32.totalorder %s442, 15
      %s444 = scalar_select %p443, %s442, 15
      %s445 = smul.addr %s444, 4
      %s446 = scalar_lea.vmem %s13, %s445
      %p447 = scmp.lt.s32.totalorder %s24, 1
      %s448 = scalar_select %p447, %s24, 1
      %s449 = smul.addr %s448, 20
      %s450 = smul.addr %s449, 4
      %s451 = scalar_lea.vmem %s0, %s450
      %s452 = smul.u32 8, %s24
      %p453 = scmp.lt.s32.totalorder %s452, 15
      %s454 = scalar_select %p453, %s452, 15
      %s455 = smul.addr %s454, 8
      %s456 = scalar_lea.vmem %s1, %s455
      %s457 = smul.u32 8, %s24
      %s458 = smul.u32 8, %s24
      %p459 = scmp.lt.s32.totalorder %s458, 15
      %s460 = scalar_select %p459, %s458, 15
      %s461 = smul.addr %s460, 4
      %s462 = scalar_lea.vmem %s13, %s461
      %s463 = smul.u32 8, %s24
      %v465 = vld [vmem:[%s451] sm:$0xf]
      %v466 = vld [vmem:[%s451 + $0x4] sm:$0xf]
      %v467 = vld [vmem:[%s451 + $0x8] sm:$0xf]
      %v468 = vld [vmem:[%s451 + $0xc] sm:$0xf]
      %v469 = vld [vmem:[%s451 + $0x10] sm:$0xf]
      %v470 = vld [vmem:[%s451 + $0x14] sm:$0xf]
      %v471 = vld [vmem:[%s451 + $0x18] sm:$0xf]
      %v472 = vld [vmem:[%s451 + $0x1c] sm:$0xf]
      %v473 = vld [vmem:[%s451 + $0x20] sm:$0xf]
      %v474 = vld [vmem:[%s451 + $0x24] sm:$0xf]
      %v475 = vld [vmem:[%s451 + $0x28] sm:$0xf]
      %v476 = vld [vmem:[%s451 + $0x2c] sm:$0xf]
      %v477 = vld [vmem:[%s451 + $0x30] sm:$0xf]
      %v478 = vld [vmem:[%s451 + $0x34] sm:$0xf]
      %v479 = vld [vmem:[%s451 + $0x38] sm:$0xf]
      %v480 = vld [vmem:[%s451 + $0x3c] sm:$0xf]
      %v481 = vld [vmem:[%s451 + $0x40] sm:$0xf]
      %v482 = vld [vmem:[%s451 + $0x44] sm:$0xf]
      %v483 = vld [vmem:[%s451 + $0x48] sm:$0xf]
      %v484 = vld [vmem:[%s451 + $0x4c] sm:$0xf]
      %v485 = vunpack.c.l.bf16 %v465
      %v486 = vunpack.c.l.bf16 %v466
      %v487 = vunpack.c.l.bf16 %v467
      %v488 = vunpack.c.l.bf16 %v468
      %v489 = vunpack.c.l.bf16 %v469
      %v490 = vunpack.c.l.bf16 %v470
      %v491 = vunpack.c.l.bf16 %v471
      %v492 = vunpack.c.l.bf16 %v472
      %v493 = vunpack.c.l.bf16 %v473
      %v494 = vunpack.c.l.bf16 %v474
      %v495 = vunpack.c.l.bf16 %v475
      %v496 = vunpack.c.l.bf16 %v476
      %v497 = vunpack.c.l.bf16 %v477
      %v498 = vunpack.c.l.bf16 %v478
      %v499 = vunpack.c.l.bf16 %v479
      %v500 = vunpack.c.l.bf16 %v480
      %v501 = vunpack.c.l.bf16 %v481
      %v502 = vunpack.c.l.bf16 %v482
      %v503 = vunpack.c.l.bf16 %v483
      %v504 = vunpack.c.l.bf16 %v484
      %v505 = vpack.c.bf16 %v487, %v485
      %v506 = vpack.c.bf16 %v491, %v489
      %v507 = vpack.c.bf16 %v495, %v493
      %v508 = vpack.c.bf16 %v499, %v497
      %v509 = vld [vmem:[%s2] sm:$0xf]
      %v510 = vld [vmem:[%s2 + $0x4] sm:$0x1]
      %vm527 = vcmask 1046528
      %v528 = vrot.slane %v485, 1
      %v529 = vrot.slane %v486, 1
      %v530 = vsel %vm527, %v528, %v529
      %v531 = vrot.slane %v487, 1
      %v532 = vrot.slane %v488, 1
      %v533 = vsel %vm527, %v531, %v532
      %v534 = vrot.slane %v489, 1
      %v535 = vrot.slane %v490, 1
      %v536 = vsel %vm527, %v534, %v535
      %v537 = vrot.slane %v491, 1
      %v538 = vrot.slane %v492, 1
      %v539 = vsel %vm527, %v537, %v538
      %v540 = vrot.slane %v493, 1
      %v541 = vrot.slane %v494, 1
      %v542 = vsel %vm527, %v540, %v541
      %v543 = vrot.slane %v495, 1
      %v544 = vrot.slane %v496, 1
      %v545 = vsel %vm527, %v543, %v544
      %v546 = vrot.slane %v497, 1
      %v547 = vrot.slane %v498, 1
      %v548 = vsel %vm527, %v546, %v547
      %v549 = vrot.slane %v499, 1
      %v550 = vrot.slane %v500, 1
      %v551 = vsel %vm527, %v549, %v550
      %v560 = vpack.c.bf16 %v533, %v530
      %v561 = vpack.c.bf16 %v539, %v536
      %v562 = vpack.c.bf16 %v545, %v542
      %v563 = vpack.c.bf16 %v551, %v548
      %s564 = scalar_lea.vmem %s2, 8
      %v565 = vld [vmem:[%s564] sm:$0xf]
      %v566 = vld [vmem:[%s564 + $0x4] sm:$0x1]
      %v569 = vunpack.c.l.b16 %v565
      %v570 = vunpack.c.l.b16 %v566
      %v571 = vpack.c.b16 %v570, %v569
      %vm572 = vcmask 80896
      %v574 = vsel %vm572, %v560, 0
      %v577 = vsel %vm572, %v561, 0
      %v580 = vsel %vm572, %v562, 0
      %v583 = vsel %vm572, %v563, 0
      %vm585 = vcmask 1044480
      %v587 = vsel %vm585, %v571, 0
      %589 = vmatprep.subr.bf16.mxu0 0
      %590 = vmatpush1.bf16.msra.mxu0 0
      %591 = vmatprep.subr.bf16.mxu0 0
      %592 = vmatpush1.bf16.msra.mxu0 0
      %593 = vmatprep.subr.bf16.mxu0 0
      %594 = vmatpush1.bf16.msra.mxu0 0
      %595 = vmatprep.subr.bf16.mxu0 0
      %596 = vmatpush1.bf16.msra.mxu0 0
      %597 = vmatprep.subr.bf16.mxu0 0
      %598 = vmatpush1.bf16.msra.mxu0 0
      %599 = vmatprep.subr.bf16.mxu0 0
      %600 = vmatpush1.bf16.msra.mxu0 0
      %601 = vmatprep.subr.bf16.mxu0 0
      %602 = vmatpush1.bf16.msra.mxu0 0
      %603 = vmatprep.subr.bf16.mxu0 0
      %604 = vmatpush1.bf16.msra.mxu0 %v587
      %605 = vmatprep.subr.bf16.mxu0 0
      %606 = vmatpush2.bf16.msra.mxu0 0
      %607 = vmatprep.subr.bf16.mxu0 0
      %608 = vmatpush2.bf16.msra.mxu0 0
      %609 = vmatprep.subr.bf16.mxu0 0
      %610 = vmatpush2.bf16.msra.mxu0 0
      %611 = vmatprep.subr.bf16.mxu0 0
      %612 = vmatpush2.bf16.msra.mxu0 0
      %613 = vmatprep.subr.bf16.mxu0 0
      %614 = vmatpush2.bf16.msra.mxu0 0
      %615 = vmatprep.subr.bf16.mxu0 0
      %616 = vmatpush2.bf16.msra.mxu0 0
      %617 = vmatprep.subr.bf16.mxu0 0
      %618 = vmatpush2.bf16.msra.mxu0 0
      %619 = vmatprep.subr.bf16.mxu0 0
      %620 = vmatpush2.bf16.msra.mxu0 0
      %621 = vmatprep.mubr.bf16.mxu0 0
      %622 = vmatmul.mubr.bf16.gmra.mxu0 %v574
      %v623 = vpop.f32.mrf.mxu0
      %v624 = vadd.f32 0.0, %v623
      %v625 = vpop.f32.mrf.mxu0
      %v626 = vpop.f32.mrf.mxu0
      %v627 = vadd.f32 0.0, %v626
      %v628 = vpop.f32.mrf.mxu0
      %629 = vmatprep.mubr.bf16.mxu0 0
      %630 = vmatmul.mubr.bf16.gmra.mxu0 %v577
      %v631 = vpop.f32.mrf.mxu0
      %v632 = vadd.f32 0.0, %v631
      %v633 = vpop.f32.mrf.mxu0
      %v634 = vpop.f32.mrf.mxu0
      %v635 = vadd.f32 0.0, %v634
      %v636 = vpop.f32.mrf.mxu0
      %637 = vmatprep.mubr.bf16.mxu0 0
      %638 = vmatmul.mubr.bf16.gmra.mxu0 %v580
      %v639 = vpop.f32.mrf.mxu0
      %v640 = vadd.f32 0.0, %v639
      %v641 = vpop.f32.mrf.mxu0
      %v642 = vpop.f32.mrf.mxu0
      %v643 = vadd.f32 0.0, %v642
      %v644 = vpop.f32.mrf.mxu0
      %645 = vmatprep.mubr.bf16.mxu0 0
      %646 = vmatmul.mubr.bf16.gmra.mxu0 %v583
      %v647 = vpop.f32.mrf.mxu0
      %v648 = vadd.f32 0.0, %v647
      %v649 = vpop.f32.mrf.mxu0
      %v650 = vpop.f32.mrf.mxu0
      %v651 = vadd.f32 0.0, %v650
      %v652 = vpop.f32.mrf.mxu0
      %653 = vdwg.mxu0
      %v656 = vunpack.c.l.b16 %v509
      %v657 = vunpack.c.l.b16 %v510
      %v658 = vpack.c.b16 %v657, %v656
      %v660 = vsel %vm572, %v505, 0
      %v663 = vsel %vm572, %v506, 0
      %v666 = vsel %vm572, %v507, 0
      %v669 = vsel %vm572, %v508, 0
      %v672 = vsel %vm585, %v658, 0
      %674 = vmatprep.subr.bf16.mxu0 0
      %675 = vmatpush1.bf16.msra.mxu0 0
      %676 = vmatprep.subr.bf16.mxu0 0
      %677 = vmatpush1.bf16.msra.mxu0 0
      %678 = vmatprep.subr.bf16.mxu0 0
      %679 = vmatpush1.bf16.msra.mxu0 0
      %680 = vmatprep.subr.bf16.mxu0 0
      %681 = vmatpush1.bf16.msra.mxu0 0
      %682 = vmatprep.subr.bf16.mxu0 0
      %683 = vmatpush1.bf16.msra.mxu0 0
      %684 = vmatprep.subr.bf16.mxu0 0
      %685 = vmatpush1.bf16.msra.mxu0 0
      %686 = vmatprep.subr.bf16.mxu0 0
      %687 = vmatpush1.bf16.msra.mxu0 0
      %688 = vmatprep.subr.bf16.mxu0 0
      %689 = vmatpush1.bf16.msra.mxu0 %v672
      %690 = vmatprep.subr.bf16.mxu0 0
      %691 = vmatpush2.bf16.msra.mxu0 0
      %692 = vmatprep.subr.bf16.mxu0 0
      %693 = vmatpush2.bf16.msra.mxu0 0
      %694 = vmatprep.subr.bf16.mxu0 0
      %695 = vmatpush2.bf16.msra.mxu0 0
      %696 = vmatprep.subr.bf16.mxu0 0
      %697 = vmatpush2.bf16.msra.mxu0 0
      %698 = vmatprep.subr.bf16.mxu0 0
      %699 = vmatpush2.bf16.msra.mxu0 0
      %700 = vmatprep.subr.bf16.mxu0 0
      %701 = vmatpush2.bf16.msra.mxu0 0
      %702 = vmatprep.subr.bf16.mxu0 0
      %703 = vmatpush2.bf16.msra.mxu0 0
      %704 = vmatprep.subr.bf16.mxu0 0
      %705 = vmatpush2.bf16.msra.mxu0 0
      %706 = vmatprep.mubr.bf16.mxu0 0
      %707 = vmatmul.mubr.bf16.gmra.mxu0 %v660
      %v708 = vpop.f32.mrf.mxu0
      %v709 = vadd.f32 %v624, %v708
      %v710 = vpop.f32.mrf.mxu0
      %v711 = vpop.f32.mrf.mxu0
      %v712 = vadd.f32 %v627, %v711
      %v713 = vpop.f32.mrf.mxu0
      %714 = vmatprep.mubr.bf16.mxu0 0
      %715 = vmatmul.mubr.bf16.gmra.mxu0 %v663
      %v716 = vpop.f32.mrf.mxu0
      %v717 = vadd.f32 %v632, %v716
      %v718 = vpop.f32.mrf.mxu0
      %v719 = vpop.f32.mrf.mxu0
      %v720 = vadd.f32 %v635, %v719
      %v721 = vpop.f32.mrf.mxu0
      %722 = vmatprep.mubr.bf16.mxu0 0
      %723 = vmatmul.mubr.bf16.gmra.mxu0 %v666
      %v724 = vpop.f32.mrf.mxu0
      %v725 = vadd.f32 %v640, %v724
      %v726 = vpop.f32.mrf.mxu0
      %v727 = vpop.f32.mrf.mxu0
      %v728 = vadd.f32 %v643, %v727
      %v729 = vpop.f32.mrf.mxu0
      %730 = vmatprep.mubr.bf16.mxu0 0
      %731 = vmatmul.mubr.bf16.gmra.mxu0 %v669
      %v732 = vpop.f32.mrf.mxu0
      %v733 = vadd.f32 %v648, %v732
      %v734 = vpop.f32.mrf.mxu0
      %v735 = vpop.f32.mrf.mxu0
      %v736 = vadd.f32 %v651, %v735
      %v737 = vpop.f32.mrf.mxu0
      %738 = vdwg.mxu0
      %vm739 = vcmask 1045504
      %v740 = vrot.slane %v485, 2
      %v741 = vrot.slane %v486, 2
      %v742 = vsel %vm739, %v740, %v741
      %v743 = vrot.slane %v487, 2
      %v744 = vrot.slane %v488, 2
      %v745 = vsel %vm739, %v743, %v744
      %v746 = vrot.slane %v489, 2
      %v747 = vrot.slane %v490, 2
      %v748 = vsel %vm739, %v746, %v747
      %v749 = vrot.slane %v491, 2
      %v750 = vrot.slane %v492, 2
      %v751 = vsel %vm739, %v749, %v750
      %v752 = vrot.slane %v493, 2
      %v753 = vrot.slane %v494, 2
      %v754 = vsel %vm739, %v752, %v753
      %v755 = vrot.slane %v495, 2
      %v756 = vrot.slane %v496, 2
      %v757 = vsel %vm739, %v755, %v756
      %v758 = vrot.slane %v497, 2
      %v759 = vrot.slane %v498, 2
      %v760 = vsel %vm739, %v758, %v759
      %v761 = vrot.slane %v499, 2
      %v762 = vrot.slane %v500, 2
      %v763 = vsel %vm739, %v761, %v762
      %v772 = vpack.c.bf16 %v745, %v742
      %v773 = vpack.c.bf16 %v751, %v748
      %v774 = vpack.c.bf16 %v757, %v754
      %v775 = vpack.c.bf16 %v763, %v760
      %s776 = scalar_lea.vmem %s2, 16
      %v777 = vld [vmem:[%s776] sm:$0xf]
      %v778 = vld [vmem:[%s776 + $0x4] sm:$0x1]
      %v781 = vunpack.c.l.b16 %v777
      %v782 = vunpack.c.l.b16 %v778
      %v783 = vpack.c.b16 %v782, %v781
      %v785 = vsel %vm572, %v772, 0
      %v788 = vsel %vm572, %v773, 0
      %v791 = vsel %vm572, %v774, 0
      %v794 = vsel %vm572, %v775, 0
      %v797 = vsel %vm585, %v783, 0
      %799 = vmatprep.subr.bf16.mxu0 0
      %800 = vmatpush1.bf16.msra.mxu0 0
      %801 = vmatprep.subr.bf16.mxu0 0
      %802 = vmatpush1.bf16.msra.mxu0 0
      %803 = vmatprep.subr.bf16.mxu0 0
      %804 = vmatpush1.bf16.msra.mxu0 0
      %805 = vmatprep.subr.bf16.mxu0 0
      %806 = vmatpush1.bf16.msra.mxu0 0
      %807 = vmatprep.subr.bf16.mxu0 0
      %808 = vmatpush1.bf16.msra.mxu0 0
      %809 = vmatprep.subr.bf16.mxu0 0
      %810 = vmatpush1.bf16.msra.mxu0 0
      %811 = vmatprep.subr.bf16.mxu0 0
      %812 = vmatpush1.bf16.msra.mxu0 0
      %813 = vmatprep.subr.bf16.mxu0 0
      %814 = vmatpush1.bf16.msra.mxu0 %v797
      %815 = vmatprep.subr.bf16.mxu0 0
      %816 = vmatpush2.bf16.msra.mxu0 0
      %817 = vmatprep.subr.bf16.mxu0 0
      %818 = vmatpush2.bf16.msra.mxu0 0
      %819 = vmatprep.subr.bf16.mxu0 0
      %820 = vmatpush2.bf16.msra.mxu0 0
      %821 = vmatprep.subr.bf16.mxu0 0
      %822 = vmatpush2.bf16.msra.mxu0 0
      %823 = vmatprep.subr.bf16.mxu0 0
      %824 = vmatpush2.bf16.msra.mxu0 0
      %825 = vmatprep.subr.bf16.mxu0 0
      %826 = vmatpush2.bf16.msra.mxu0 0
      %827 = vmatprep.subr.bf16.mxu0 0
      %828 = vmatpush2.bf16.msra.mxu0 0
      %829 = vmatprep.subr.bf16.mxu0 0
      %830 = vmatpush2.bf16.msra.mxu0 0
      %831 = vmatprep.mubr.bf16.mxu0 0
      %832 = vmatmul.mubr.bf16.gmra.mxu0 %v785
      %v833 = vpop.f32.mrf.mxu0
      %v834 = vadd.f32 0.0, %v833
      %v835 = vpop.f32.mrf.mxu0
      %v836 = vpop.f32.mrf.mxu0
      %v837 = vadd.f32 0.0, %v836
      %v838 = vpop.f32.mrf.mxu0
      %839 = vmatprep.mubr.bf16.mxu0 0
      %840 = vmatmul.mubr.bf16.gmra.mxu0 %v788
      %v841 = vpop.f32.mrf.mxu0
      %v842 = vadd.f32 0.0, %v841
      %v843 = vpop.f32.mrf.mxu0
      %v844 = vpop.f32.mrf.mxu0
      %v845 = vadd.f32 0.0, %v844
      %v846 = vpop.f32.mrf.mxu0
      %847 = vmatprep.mubr.bf16.mxu0 0
      %848 = vmatmul.mubr.bf16.gmra.mxu0 %v791
      %v849 = vpop.f32.mrf.mxu0
      %v850 = vadd.f32 0.0, %v849
      %v851 = vpop.f32.mrf.mxu0
      %v852 = vpop.f32.mrf.mxu0
      %v853 = vadd.f32 0.0, %v852
      %v854 = vpop.f32.mrf.mxu0
      %855 = vmatprep.mubr.bf16.mxu0 0
      %856 = vmatmul.mubr.bf16.gmra.mxu0 %v794
      %v857 = vpop.f32.mrf.mxu0
      %v858 = vadd.f32 0.0, %v857
      %v859 = vpop.f32.mrf.mxu0
      %v860 = vpop.f32.mrf.mxu0
      %v861 = vadd.f32 0.0, %v860
      %v862 = vpop.f32.mrf.mxu0
      %863 = vdwg.mxu0
      %v864 = vadd.f32 %v709, %v834
      %v865 = vadd.f32 %v712, %v837
      %v866 = vadd.f32 %v717, %v842
      %v867 = vadd.f32 %v720, %v845
      %v868 = vadd.f32 %v725, %v850
      %v869 = vadd.f32 %v728, %v853
      %v870 = vadd.f32 %v733, %v858
      %v871 = vadd.f32 %v736, %v861
      %v872 = vpack.c.bf16 %v489, %v487
      %v873 = vpack.c.bf16 %v493, %v491
      %v874 = vpack.c.bf16 %v497, %v495
      %v875 = vpack.c.bf16 %v501, %v499
      %s876 = scalar_lea.vmem %s2, 24
      %v877 = vld [vmem:[%s876] sm:$0xf]
      %v878 = vld [vmem:[%s876 + $0x4] sm:$0x1]
      %v881 = vunpack.c.l.b16 %v877
      %v882 = vunpack.c.l.b16 %v878
      %v883 = vpack.c.b16 %v882, %v881
      %v885 = vsel %vm572, %v872, 0
      %v888 = vsel %vm572, %v873, 0
      %v891 = vsel %vm572, %v874, 0
      %v894 = vsel %vm572, %v875, 0
      %v897 = vsel %vm585, %v883, 0
      %899 = vmatprep.subr.bf16.mxu0 0
      %900 = vmatpush1.bf16.msra.mxu0 0
      %901 = vmatprep.subr.bf16.mxu0 0
      %902 = vmatpush1.bf16.msra.mxu0 0
      %903 = vmatprep.subr.bf16.mxu0 0
      %904 = vmatpush1.bf16.msra.mxu0 0
      %905 = vmatprep.subr.bf16.mxu0 0
      %906 = vmatpush1.bf16.msra.mxu0 0
      %907 = vmatprep.subr.bf16.mxu0 0
      %908 = vmatpush1.bf16.msra.mxu0 0
      %909 = vmatprep.subr.bf16.mxu0 0
      %910 = vmatpush1.bf16.msra.mxu0 0
      %911 = vmatprep.subr.bf16.mxu0 0
      %912 = vmatpush1.bf16.msra.mxu0 0
      %913 = vmatprep.subr.bf16.mxu0 0
      %914 = vmatpush1.bf16.msra.mxu0 %v897
      %915 = vmatprep.subr.bf16.mxu0 0
      %916 = vmatpush2.bf16.msra.mxu0 0
      %917 = vmatprep.subr.bf16.mxu0 0
      %918 = vmatpush2.bf16.msra.mxu0 0
      %919 = vmatprep.subr.bf16.mxu0 0
      %920 = vmatpush2.bf16.msra.mxu0 0
      %921 = vmatprep.subr.bf16.mxu0 0
      %922 = vmatpush2.bf16.msra.mxu0 0
      %923 = vmatprep.subr.bf16.mxu0 0
      %924 = vmatpush2.bf16.msra.mxu0 0
      %925 = vmatprep.subr.bf16.mxu0 0
      %926 = vmatpush2.bf16.msra.mxu0 0
      %927 = vmatprep.subr.bf16.mxu0 0
      %928 = vmatpush2.bf16.msra.mxu0 0
      %929 = vmatprep.subr.bf16.mxu0 0
      %930 = vmatpush2.bf16.msra.mxu0 0
      %931 = vmatprep.mubr.bf16.mxu0 0
      %932 = vmatmul.mubr.bf16.gmra.mxu0 %v885
      %v933 = vpop.f32.mrf.mxu0
      %v934 = vadd.f32 0.0, %v933
      %v935 = vpop.f32.mrf.mxu0
      %v936 = vpop.f32.mrf.mxu0
      %v937 = vadd.f32 0.0, %v936
      %v938 = vpop.f32.mrf.mxu0
      %939 = vmatprep.mubr.bf16.mxu0 0
      %940 = vmatmul.mubr.bf16.gmra.mxu0 %v888
      %v941 = vpop.f32.mrf.mxu0
      %v942 = vadd.f32 0.0, %v941
      %v943 = vpop.f32.mrf.mxu0
      %v944 = vpop.f32.mrf.mxu0
      %v945 = vadd.f32 0.0, %v944
      %v946 = vpop.f32.mrf.mxu0
      %947 = vmatprep.mubr.bf16.mxu0 0
      %948 = vmatmul.mubr.bf16.gmra.mxu0 %v891
      %v949 = vpop.f32.mrf.mxu0
      %v950 = vadd.f32 0.0, %v949
      %v951 = vpop.f32.mrf.mxu0
      %v952 = vpop.f32.mrf.mxu0
      %v953 = vadd.f32 0.0, %v952
      %v954 = vpop.f32.mrf.mxu0
      %955 = vmatprep.mubr.bf16.mxu0 0
      %956 = vmatmul.mubr.bf16.gmra.mxu0 %v894
      %v957 = vpop.f32.mrf.mxu0
      %v958 = vadd.f32 0.0, %v957
      %v959 = vpop.f32.mrf.mxu0
      %v960 = vpop.f32.mrf.mxu0
      %v961 = vadd.f32 0.0, %v960
      %v962 = vpop.f32.mrf.mxu0
      %963 = vdwg.mxu0
      %v964 = vadd.f32 %v864, %v934
      %v965 = vadd.f32 %v865, %v937
      %v966 = vadd.f32 %v866, %v942
      %v967 = vadd.f32 %v867, %v945
      %v968 = vadd.f32 %v868, %v950
      %v969 = vadd.f32 %v869, %v953
      %v970 = vadd.f32 %v870, %v958
      %v971 = vadd.f32 %v871, %v961
      %v974 = vrot.slane %v501, 1
      %v975 = vrot.slane %v502, 1
      %v976 = vsel %vm527, %v974, %v975
      %v978 = vpack.c.bf16 %v536, %v533
      %v979 = vpack.c.bf16 %v542, %v539
      %v980 = vpack.c.bf16 %v548, %v545
      %v981 = vpack.c.bf16 %v976, %v551
      %s982 = scalar_lea.vmem %s2, 32
      %v983 = vld [vmem:[%s982] sm:$0xf]
      %v984 = vld [vmem:[%s982 + $0x4] sm:$0x1]
      %v987 = vunpack.c.l.b16 %v983
      %v988 = vunpack.c.l.b16 %v984
      %v989 = vpack.c.b16 %v988, %v987
      %v991 = vsel %vm572, %v978, 0
      %v994 = vsel %vm572, %v979, 0
      %v997 = vsel %vm572, %v980, 0
      %v1000 = vsel %vm572, %v981, 0
      %v1003 = vsel %vm585, %v989, 0
      %1005 = vmatprep.subr.bf16.mxu0 0
      %1006 = vmatpush1.bf16.msra.mxu0 0
      %1007 = vmatprep.subr.bf16.mxu0 0
      %1008 = vmatpush1.bf16.msra.mxu0 0
      %1009 = vmatprep.subr.bf16.mxu0 0
      %1010 = vmatpush1.bf16.msra.mxu0 0
      %1011 = vmatprep.subr.bf16.mxu0 0
      %1012 = vmatpush1.bf16.msra.mxu0 0
      %1013 = vmatprep.subr.bf16.mxu0 0
      %1014 = vmatpush1.bf16.msra.mxu0 0
      %1015 = vmatprep.subr.bf16.mxu0 0
      %1016 = vmatpush1.bf16.msra.mxu0 0
      %1017 = vmatprep.subr.bf16.mxu0 0
      %1018 = vmatpush1.bf16.msra.mxu0 0
      %1019 = vmatprep.subr.bf16.mxu0 0
      %1020 = vmatpush1.bf16.msra.mxu0 %v1003
      %1021 = vmatprep.subr.bf16.mxu0 0
      %1022 = vmatpush2.bf16.msra.mxu0 0
      %1023 = vmatprep.subr.bf16.mxu0 0
      %1024 = vmatpush2.bf16.msra.mxu0 0
      %1025 = vmatprep.subr.bf16.mxu0 0
      %1026 = vmatpush2.bf16.msra.mxu0 0
      %1027 = vmatprep.subr.bf16.mxu0 0
      %1028 = vmatpush2.bf16.msra.mxu0 0
      %1029 = vmatprep.subr.bf16.mxu0 0
      %1030 = vmatpush2.bf16.msra.mxu0 0
      %1031 = vmatprep.subr.bf16.mxu0 0
      %1032 = vmatpush2.bf16.msra.mxu0 0
      %1033 = vmatprep.subr.bf16.mxu0 0
      %1034 = vmatpush2.bf16.msra.mxu0 0
      %1035 = vmatprep.subr.bf16.mxu0 0
      %1036 = vmatpush2.bf16.msra.mxu0 0
      %1037 = vmatprep.mubr.bf16.mxu0 0
      %1038 = vmatmul.mubr.bf16.gmra.mxu0 %v991
      %v1039 = vpop.f32.mrf.mxu0
      %v1040 = vadd.f32 0.0, %v1039
      %v1041 = vpop.f32.mrf.mxu0
      %v1042 = vpop.f32.mrf.mxu0
      %v1043 = vadd.f32 0.0, %v1042
      %v1044 = vpop.f32.mrf.mxu0
      %1045 = vmatprep.mubr.bf16.mxu0 0
      %1046 = vmatmul.mubr.bf16.gmra.mxu0 %v994
      %v1047 = vpop.f32.mrf.mxu0
      %v1048 = vadd.f32 0.0, %v1047
      %v1049 = vpop.f32.mrf.mxu0
      %v1050 = vpop.f32.mrf.mxu0
      %v1051 = vadd.f32 0.0, %v1050
      %v1052 = vpop.f32.mrf.mxu0
      %1053 = vmatprep.mubr.bf16.mxu0 0
      %1054 = vmatmul.mubr.bf16.gmra.mxu0 %v997
      %v1055 = vpop.f32.mrf.mxu0
      %v1056 = vadd.f32 0.0, %v1055
      %v1057 = vpop.f32.mrf.mxu0
      %v1058 = vpop.f32.mrf.mxu0
      %v1059 = vadd.f32 0.0, %v1058
      %v1060 = vpop.f32.mrf.mxu0
      %1061 = vmatprep.mubr.bf16.mxu0 0
      %1062 = vmatmul.mubr.bf16.gmra.mxu0 %v1000
      %v1063 = vpop.f32.mrf.mxu0
      %v1064 = vadd.f32 0.0, %v1063
      %v1065 = vpop.f32.mrf.mxu0
      %v1066 = vpop.f32.mrf.mxu0
      %v1067 = vadd.f32 0.0, %v1066
      %v1068 = vpop.f32.mrf.mxu0
      %1069 = vdwg.mxu0
      %v1070 = vadd.f32 %v964, %v1040
      %v1071 = vadd.f32 %v965, %v1043
      %v1072 = vadd.f32 %v966, %v1048
      %v1073 = vadd.f32 %v967, %v1051
      %v1074 = vadd.f32 %v968, %v1056
      %v1075 = vadd.f32 %v969, %v1059
      %v1076 = vadd.f32 %v970, %v1064
      %v1077 = vadd.f32 %v971, %v1067
      %v1078 = vrot.slane %v501, 2
      %v1079 = vrot.slane %v502, 2
      %v1080 = vsel %vm739, %v1078, %v1079
      %v1082 = vpack.c.bf16 %v748, %v745
      %v1083 = vpack.c.bf16 %v754, %v751
      %v1084 = vpack.c.bf16 %v760, %v757
      %v1085 = vpack.c.bf16 %v1080, %v763
      %s1086 = scalar_lea.vmem %s2, 40
      %v1087 = vld [vmem:[%s1086] sm:$0xf]
      %v1088 = vld [vmem:[%s1086 + $0x4] sm:$0x1]
      %v1091 = vunpack.c.l.b16 %v1087
      %v1092 = vunpack.c.l.b16 %v1088
      %v1093 = vpack.c.b16 %v1092, %v1091
      %v1095 = vsel %vm572, %v1082, 0
      %v1098 = vsel %vm572, %v1083, 0
      %v1101 = vsel %vm572, %v1084, 0
      %v1104 = vsel %vm572, %v1085, 0
      %v1107 = vsel %vm585, %v1093, 0
      %1109 = vmatprep.subr.bf16.mxu0 0
      %1110 = vmatpush1.bf16.msra.mxu0 0
      %1111 = vmatprep.subr.bf16.mxu0 0
      %1112 = vmatpush1.bf16.msra.mxu0 0
      %1113 = vmatprep.subr.bf16.mxu0 0
      %1114 = vmatpush1.bf16.msra.mxu0 0
      %1115 = vmatprep.subr.bf16.mxu0 0
      %1116 = vmatpush1.bf16.msra.mxu0 0
      %1117 = vmatprep.subr.bf16.mxu0 0
      %1118 = vmatpush1.bf16.msra.mxu0 0
      %1119 = vmatprep.subr.bf16.mxu0 0
      %1120 = vmatpush1.bf16.msra.mxu0 0
      %1121 = vmatprep.subr.bf16.mxu0 0
      %1122 = vmatpush1.bf16.msra.mxu0 0
      %1123 = vmatprep.subr.bf16.mxu0 0
      %1124 = vmatpush1.bf16.msra.mxu0 %v1107
      %1125 = vmatprep.subr.bf16.mxu0 0
      %1126 = vmatpush2.bf16.msra.mxu0 0
      %1127 = vmatprep.subr.bf16.mxu0 0
      %1128 = vmatpush2.bf16.msra.mxu0 0
      %1129 = vmatprep.subr.bf16.mxu0 0
      %1130 = vmatpush2.bf16.msra.mxu0 0
      %1131 = vmatprep.subr.bf16.mxu0 0
      %1132 = vmatpush2.bf16.msra.mxu0 0
      %1133 = vmatprep.subr.bf16.mxu0 0
      %1134 = vmatpush2.bf16.msra.mxu0 0
      %1135 = vmatprep.subr.bf16.mxu0 0
      %1136 = vmatpush2.bf16.msra.mxu0 0
      %1137 = vmatprep.subr.bf16.mxu0 0
      %1138 = vmatpush2.bf16.msra.mxu0 0
      %1139 = vmatprep.subr.bf16.mxu0 0
      %1140 = vmatpush2.bf16.msra.mxu0 0
      %1141 = vmatprep.mubr.bf16.mxu0 0
      %1142 = vmatmul.mubr.bf16.gmra.mxu0 %v1095
      %v1143 = vpop.f32.mrf.mxu0
      %v1144 = vadd.f32 0.0, %v1143
      %v1145 = vpop.f32.mrf.mxu0
      %v1146 = vpop.f32.mrf.mxu0
      %v1147 = vadd.f32 0.0, %v1146
      %v1148 = vpop.f32.mrf.mxu0
      %1149 = vmatprep.mubr.bf16.mxu0 0
      %1150 = vmatmul.mubr.bf16.gmra.mxu0 %v1098
      %v1151 = vpop.f32.mrf.mxu0
      %v1152 = vadd.f32 0.0, %v1151
      %v1153 = vpop.f32.mrf.mxu0
      %v1154 = vpop.f32.mrf.mxu0
      %v1155 = vadd.f32 0.0, %v1154
      %v1156 = vpop.f32.mrf.mxu0
      %1157 = vmatprep.mubr.bf16.mxu0 0
      %1158 = vmatmul.mubr.bf16.gmra.mxu0 %v1101
      %v1159 = vpop.f32.mrf.mxu0
      %v1160 = vadd.f32 0.0, %v1159
      %v1161 = vpop.f32.mrf.mxu0
      %v1162 = vpop.f32.mrf.mxu0
      %v1163 = vadd.f32 0.0, %v1162
      %v1164 = vpop.f32.mrf.mxu0
      %1165 = vmatprep.mubr.bf16.mxu0 0
      %1166 = vmatmul.mubr.bf16.gmra.mxu0 %v1104
      %v1167 = vpop.f32.mrf.mxu0
      %v1168 = vadd.f32 0.0, %v1167
      %v1169 = vpop.f32.mrf.mxu0
      %v1170 = vpop.f32.mrf.mxu0
      %v1171 = vadd.f32 0.0, %v1170
      %v1172 = vpop.f32.mrf.mxu0
      %1173 = vdwg.mxu0
      %v1174 = vadd.f32 %v1070, %v1144
      %v1175 = vadd.f32 %v1071, %v1147
      %v1176 = vadd.f32 %v1072, %v1152
      %v1177 = vadd.f32 %v1073, %v1155
      %v1178 = vadd.f32 %v1074, %v1160
      %v1179 = vadd.f32 %v1075, %v1163
      %v1180 = vadd.f32 %v1076, %v1168
      %v1181 = vadd.f32 %v1077, %v1171
      %v1182 = vpack.c.bf16 %v503, %v501
      %s1183 = scalar_lea.vmem %s2, 48
      %v1184 = vld [vmem:[%s1183] sm:$0xf]
      %v1185 = vld [vmem:[%s1183 + $0x4] sm:$0x1]
      %v1188 = vunpack.c.l.b16 %v1184
      %v1189 = vunpack.c.l.b16 %v1185
      %v1190 = vpack.c.b16 %v1189, %v1188
      %v1192 = vsel %vm572, %v1182, 0
      %v1195 = vsel %vm585, %v1190, 0
      %1197 = vmatprep.subr.bf16.mxu0 0
      %1198 = vmatpush1.bf16.msra.mxu0 0
      %1199 = vmatprep.subr.bf16.mxu0 0
      %1200 = vmatpush1.bf16.msra.mxu0 0
      %1201 = vmatprep.subr.bf16.mxu0 0
      %1202 = vmatpush1.bf16.msra.mxu0 0
      %1203 = vmatprep.subr.bf16.mxu0 0
      %1204 = vmatpush1.bf16.msra.mxu0 0
      %1205 = vmatprep.subr.bf16.mxu0 0
      %1206 = vmatpush1.bf16.msra.mxu0 0
      %1207 = vmatprep.subr.bf16.mxu0 0
      %1208 = vmatpush1.bf16.msra.mxu0 0
      %1209 = vmatprep.subr.bf16.mxu0 0
      %1210 = vmatpush1.bf16.msra.mxu0 0
      %1211 = vmatprep.subr.bf16.mxu0 0
      %1212 = vmatpush1.bf16.msra.mxu0 %v1195
      %1213 = vmatprep.subr.bf16.mxu0 0
      %1214 = vmatpush2.bf16.msra.mxu0 0
      %1215 = vmatprep.subr.bf16.mxu0 0
      %1216 = vmatpush2.bf16.msra.mxu0 0
      %1217 = vmatprep.subr.bf16.mxu0 0
      %1218 = vmatpush2.bf16.msra.mxu0 0
      %1219 = vmatprep.subr.bf16.mxu0 0
      %1220 = vmatpush2.bf16.msra.mxu0 0
      %1221 = vmatprep.subr.bf16.mxu0 0
      %1222 = vmatpush2.bf16.msra.mxu0 0
      %1223 = vmatprep.subr.bf16.mxu0 0
      %1224 = vmatpush2.bf16.msra.mxu0 0
      %1225 = vmatprep.subr.bf16.mxu0 0
      %1226 = vmatpush2.bf16.msra.mxu0 0
      %1227 = vmatprep.subr.bf16.mxu0 0
      %1228 = vmatpush2.bf16.msra.mxu0 0
      %1229 = vmatprep.mubr.bf16.mxu0 0
      %1230 = vmatmul.mubr.bf16.gmra.mxu0 %v663
      %v1231 = vpop.f32.mrf.mxu0
      %v1232 = vadd.f32 0.0, %v1231
      %v1233 = vpop.f32.mrf.mxu0
      %v1234 = vpop.f32.mrf.mxu0
      %v1235 = vadd.f32 0.0, %v1234
      %v1236 = vpop.f32.mrf.mxu0
      %1237 = vmatprep.mubr.bf16.mxu0 0
      %1238 = vmatmul.mubr.bf16.gmra.mxu0 %v666
      %v1239 = vpop.f32.mrf.mxu0
      %v1240 = vadd.f32 0.0, %v1239
      %v1241 = vpop.f32.mrf.mxu0
      %v1242 = vpop.f32.mrf.mxu0
      %v1243 = vadd.f32 0.0, %v1242
      %v1244 = vpop.f32.mrf.mxu0
      %1245 = vmatprep.mubr.bf16.mxu0 0
      %1246 = vmatmul.mubr.bf16.gmra.mxu0 %v669
      %v1247 = vpop.f32.mrf.mxu0
      %v1248 = vadd.f32 0.0, %v1247
      %v1249 = vpop.f32.mrf.mxu0
      %v1250 = vpop.f32.mrf.mxu0
      %v1251 = vadd.f32 0.0, %v1250
      %v1252 = vpop.f32.mrf.mxu0
      %1253 = vmatprep.mubr.bf16.mxu0 0
      %1254 = vmatmul.mubr.bf16.gmra.mxu0 %v1192
      %v1255 = vpop.f32.mrf.mxu0
      %v1256 = vadd.f32 0.0, %v1255
      %v1257 = vpop.f32.mrf.mxu0
      %v1258 = vpop.f32.mrf.mxu0
      %v1259 = vadd.f32 0.0, %v1258
      %v1260 = vpop.f32.mrf.mxu0
      %1261 = vdwg.mxu0
      %v1262 = vadd.f32 %v1174, %v1232
      %v1263 = vadd.f32 %v1175, %v1235
      %v1264 = vadd.f32 %v1176, %v1240
      %v1265 = vadd.f32 %v1177, %v1243
      %v1266 = vadd.f32 %v1178, %v1248
      %v1267 = vadd.f32 %v1179, %v1251
      %v1268 = vadd.f32 %v1180, %v1256
      %v1269 = vadd.f32 %v1181, %v1259
      %v1272 = vrot.slane %v503, 1
      %v1273 = vrot.slane %v504, 1
      %v1274 = vsel %vm527, %v1272, %v1273
      %v1276 = vpack.c.bf16 %v1274, %v976
      %s1277 = scalar_lea.vmem %s2, 56
      %v1278 = vld [vmem:[%s1277] sm:$0xf]
      %v1279 = vld [vmem:[%s1277 + $0x4] sm:$0x1]
      %v1282 = vunpack.c.l.b16 %v1278
      %v1283 = vunpack.c.l.b16 %v1279
      %v1284 = vpack.c.b16 %v1283, %v1282
      %v1286 = vsel %vm572, %v1276, 0
      %v1289 = vsel %vm585, %v1284, 0
      %1291 = vmatprep.subr.bf16.mxu0 0
      %1292 = vmatpush1.bf16.msra.mxu0 0
      %1293 = vmatprep.subr.bf16.mxu0 0
      %1294 = vmatpush1.bf16.msra.mxu0 0
      %1295 = vmatprep.subr.bf16.mxu0 0
      %1296 = vmatpush1.bf16.msra.mxu0 0
      %1297 = vmatprep.subr.bf16.mxu0 0
      %1298 = vmatpush1.bf16.msra.mxu0 0
      %1299 = vmatprep.subr.bf16.mxu0 0
      %1300 = vmatpush1.bf16.msra.mxu0 0
      %1301 = vmatprep.subr.bf16.mxu0 0
      %1302 = vmatpush1.bf16.msra.mxu0 0
      %1303 = vmatprep.subr.bf16.mxu0 0
      %1304 = vmatpush1.bf16.msra.mxu0 0
      %1305 = vmatprep.subr.bf16.mxu0 0
      %1306 = vmatpush1.bf16.msra.mxu0 %v1289
      %1307 = vmatprep.subr.bf16.mxu0 0
      %1308 = vmatpush2.bf16.msra.mxu0 0
      %1309 = vmatprep.subr.bf16.mxu0 0
      %1310 = vmatpush2.bf16.msra.mxu0 0
      %1311 = vmatprep.subr.bf16.mxu0 0
      %1312 = vmatpush2.bf16.msra.mxu0 0
      %1313 = vmatprep.subr.bf16.mxu0 0
      %1314 = vmatpush2.bf16.msra.mxu0 0
      %1315 = vmatprep.subr.bf16.mxu0 0
      %1316 = vmatpush2.bf16.msra.mxu0 0
      %1317 = vmatprep.subr.bf16.mxu0 0
      %1318 = vmatpush2.bf16.msra.mxu0 0
      %1319 = vmatprep.subr.bf16.mxu0 0
      %1320 = vmatpush2.bf16.msra.mxu0 0
      %1321 = vmatprep.subr.bf16.mxu0 0
      %1322 = vmatpush2.bf16.msra.mxu0 0
      %1323 = vmatprep.mubr.bf16.mxu0 0
      %1324 = vmatmul.mubr.bf16.gmra.mxu0 %v577
      %v1325 = vpop.f32.mrf.mxu0
      %v1326 = vadd.f32 0.0, %v1325
      %v1327 = vpop.f32.mrf.mxu0
      %v1328 = vpop.f32.mrf.mxu0
      %v1329 = vadd.f32 0.0, %v1328
      %v1330 = vpop.f32.mrf.mxu0
      %1331 = vmatprep.mubr.bf16.mxu0 0
      %1332 = vmatmul.mubr.bf16.gmra.mxu0 %v580
      %v1333 = vpop.f32.mrf.mxu0
      %v1334 = vadd.f32 0.0, %v1333
      %v1335 = vpop.f32.mrf.mxu0
      %v1336 = vpop.f32.mrf.mxu0
      %v1337 = vadd.f32 0.0, %v1336
      %v1338 = vpop.f32.mrf.mxu0
      %1339 = vmatprep.mubr.bf16.mxu0 0
      %1340 = vmatmul.mubr.bf16.gmra.mxu0 %v583
      %v1341 = vpop.f32.mrf.mxu0
      %v1342 = vadd.f32 0.0, %v1341
      %v1343 = vpop.f32.mrf.mxu0
      %v1344 = vpop.f32.mrf.mxu0
      %v1345 = vadd.f32 0.0, %v1344
      %v1346 = vpop.f32.mrf.mxu0
      %1347 = vmatprep.mubr.bf16.mxu0 0
      %1348 = vmatmul.mubr.bf16.gmra.mxu0 %v1286
      %v1349 = vpop.f32.mrf.mxu0
      %v1350 = vadd.f32 0.0, %v1349
      %v1351 = vpop.f32.mrf.mxu0
      %v1352 = vpop.f32.mrf.mxu0
      %v1353 = vadd.f32 0.0, %v1352
      %v1354 = vpop.f32.mrf.mxu0
      %1355 = vdwg.mxu0
      %v1356 = vadd.f32 %v1262, %v1326
      %v1357 = vadd.f32 %v1263, %v1329
      %v1358 = vadd.f32 %v1264, %v1334
      %v1359 = vadd.f32 %v1265, %v1337
      %v1360 = vadd.f32 %v1266, %v1342
      %v1361 = vadd.f32 %v1267, %v1345
      %v1362 = vadd.f32 %v1268, %v1350
      %v1363 = vadd.f32 %v1269, %v1353
      %v1364 = vrot.slane %v503, 2
      %v1365 = vrot.slane %v504, 2
      %v1366 = vsel %vm739, %v1364, %v1365
      %v1368 = vpack.c.bf16 %v1366, %v1080
      %s1369 = scalar_lea.vmem %s2, 64
      %v1370 = vld [vmem:[%s1369] sm:$0xf]
      %v1371 = vld [vmem:[%s1369 + $0x4] sm:$0x1]
      %v1374 = vunpack.c.l.b16 %v1370
      %v1375 = vunpack.c.l.b16 %v1371
      %v1376 = vpack.c.b16 %v1375, %v1374
      %v1378 = vsel %vm572, %v1368, 0
      %v1381 = vsel %vm585, %v1376, 0
      %1383 = vmatprep.subr.bf16.mxu0 0
      %1384 = vmatpush1.bf16.msra.mxu0 0
      %1385 = vmatprep.subr.bf16.mxu0 0
      %1386 = vmatpush1.bf16.msra.mxu0 0
      %1387 = vmatprep.subr.bf16.mxu0 0
      %1388 = vmatpush1.bf16.msra.mxu0 0
      %1389 = vmatprep.subr.bf16.mxu0 0
      %1390 = vmatpush1.bf16.msra.mxu0 0
      %1391 = vmatprep.subr.bf16.mxu0 0
      %1392 = vmatpush1.bf16.msra.mxu0 0
      %1393 = vmatprep.subr.bf16.mxu0 0
      %1394 = vmatpush1.bf16.msra.mxu0 0
      %1395 = vmatprep.subr.bf16.mxu0 0
      %1396 = vmatpush1.bf16.msra.mxu0 0
      %1397 = vmatprep.subr.bf16.mxu0 0
      %1398 = vmatpush1.bf16.msra.mxu0 %v1381
      %1399 = vmatprep.subr.bf16.mxu0 0
      %1400 = vmatpush2.bf16.msra.mxu0 0
      %1401 = vmatprep.subr.bf16.mxu0 0
      %1402 = vmatpush2.bf16.msra.mxu0 0
      %1403 = vmatprep.subr.bf16.mxu0 0
      %1404 = vmatpush2.bf16.msra.mxu0 0
      %1405 = vmatprep.subr.bf16.mxu0 0
      %1406 = vmatpush2.bf16.msra.mxu0 0
      %1407 = vmatprep.subr.bf16.mxu0 0
      %1408 = vmatpush2.bf16.msra.mxu0 0
      %1409 = vmatprep.subr.bf16.mxu0 0
      %1410 = vmatpush2.bf16.msra.mxu0 0
      %1411 = vmatprep.subr.bf16.mxu0 0
      %1412 = vmatpush2.bf16.msra.mxu0 0
      %1413 = vmatprep.subr.bf16.mxu0 0
      %1414 = vmatpush2.bf16.msra.mxu0 0
      %1415 = vmatprep.mubr.bf16.mxu0 0
      %1416 = vmatmul.mubr.bf16.gmra.mxu0 %v788
      %v1417 = vpop.f32.mrf.mxu0
      %v1418 = vadd.f32 0.0, %v1417
      %v1419 = vpop.f32.mrf.mxu0
      %v1420 = vpop.f32.mrf.mxu0
      %v1421 = vadd.f32 0.0, %v1420
      %v1422 = vpop.f32.mrf.mxu0
      %1423 = vmatprep.mubr.bf16.mxu0 0
      %1424 = vmatmul.mubr.bf16.gmra.mxu0 %v791
      %v1425 = vpop.f32.mrf.mxu0
      %v1426 = vadd.f32 0.0, %v1425
      %v1427 = vpop.f32.mrf.mxu0
      %v1428 = vpop.f32.mrf.mxu0
      %v1429 = vadd.f32 0.0, %v1428
      %v1430 = vpop.f32.mrf.mxu0
      %1431 = vmatprep.mubr.bf16.mxu0 0
      %1432 = vmatmul.mubr.bf16.gmra.mxu0 %v794
      %v1433 = vpop.f32.mrf.mxu0
      %v1434 = vadd.f32 0.0, %v1433
      %v1435 = vpop.f32.mrf.mxu0
      %v1436 = vpop.f32.mrf.mxu0
      %v1437 = vadd.f32 0.0, %v1436
      %v1438 = vpop.f32.mrf.mxu0
      %1439 = vmatprep.mubr.bf16.mxu0 0
      %1440 = vmatmul.mubr.bf16.gmra.mxu0 %v1378
      %v1441 = vpop.f32.mrf.mxu0
      %v1442 = vadd.f32 0.0, %v1441
      %v1443 = vpop.f32.mrf.mxu0
      %v1444 = vpop.f32.mrf.mxu0
      %v1445 = vadd.f32 0.0, %v1444
      %v1446 = vpop.f32.mrf.mxu0
      %1447 = vdwg.mxu0
      %v1448 = vadd.f32 %v1356, %v1418
      %v1449 = vadd.f32 %v1357, %v1421
      %v1450 = vadd.f32 %v1358, %v1426
      %v1451 = vadd.f32 %v1359, %v1429
      %v1452 = vadd.f32 %v1360, %v1434
      %v1453 = vadd.f32 %v1361, %v1437
      %v1454 = vadd.f32 %v1362, %v1442
      %v1455 = vadd.f32 %v1363, %v1445
      %1456 = vadd.xlane.f32.xlu0 %v1448
      %v1457 = vpop.xlane.xlu0 %1456
      %1458 = vadd.xlane.f32.xlu0 %v1449
      %v1459 = vpop.xlane.xlu0 %1458
      %1460 = vadd.xlane.f32.xlu0 %v1450
      %v1461 = vpop.xlane.xlu0 %1460
      %1462 = vadd.xlane.f32.xlu0 %v1451
      %v1463 = vpop.xlane.xlu0 %1462
      %1464 = vadd.xlane.f32.xlu0 %v1452
      %v1465 = vpop.xlane.xlu0 %1464
      %1466 = vadd.xlane.f32.xlu0 %v1453
      %v1467 = vpop.xlane.xlu0 %1466
      %1468 = vadd.xlane.f32.xlu0 %v1454
      %v1469 = vpop.xlane.xlu0 %1468
      %1470 = vadd.xlane.f32.xlu0 %v1455
      %v1471 = vpop.xlane.xlu0 %1470
      %v1472 = vmul.f32 %v1457, 0.015625
      %v1473 = vmul.f32 %v1459, 0.015625
      %v1474 = vmul.f32 %v1461, 0.015625
      %v1475 = vmul.f32 %v1463, 0.015625
      %v1476 = vmul.f32 %v1465, 0.015625
      %v1477 = vmul.f32 %v1467, 0.015625
      %v1478 = vmul.f32 %v1469, 0.015625
      %v1479 = vmul.f32 %v1471, 0.015625
      %v1480 = vmul.f32 %v1448, %v1448
      %v1481 = vmul.f32 %v1449, %v1449
      %v1482 = vmul.f32 %v1450, %v1450
      %v1483 = vmul.f32 %v1451, %v1451
      %v1484 = vmul.f32 %v1452, %v1452
      %v1485 = vmul.f32 %v1453, %v1453
      %v1486 = vmul.f32 %v1454, %v1454
      %v1487 = vmul.f32 %v1455, %v1455
      %1488 = vadd.xlane.f32.xlu0 %v1480
      %v1489 = vpop.xlane.xlu0 %1488
      %1490 = vadd.xlane.f32.xlu0 %v1481
      %v1491 = vpop.xlane.xlu0 %1490
      %1492 = vadd.xlane.f32.xlu0 %v1482
      %v1493 = vpop.xlane.xlu0 %1492
      %1494 = vadd.xlane.f32.xlu0 %v1483
      %v1495 = vpop.xlane.xlu0 %1494
      %1496 = vadd.xlane.f32.xlu0 %v1484
      %v1497 = vpop.xlane.xlu0 %1496
      %1498 = vadd.xlane.f32.xlu0 %v1485
      %v1499 = vpop.xlane.xlu0 %1498
      %1500 = vadd.xlane.f32.xlu0 %v1486
      %v1501 = vpop.xlane.xlu0 %1500
      %1502 = vadd.xlane.f32.xlu0 %v1487
      %v1503 = vpop.xlane.xlu0 %1502
      %v1504 = vmul.f32 %v1489, 0.015625
      %v1505 = vmul.f32 %v1491, 0.015625
      %v1506 = vmul.f32 %v1493, 0.015625
      %v1507 = vmul.f32 %v1495, 0.015625
      %v1508 = vmul.f32 %v1497, 0.015625
      %v1509 = vmul.f32 %v1499, 0.015625
      %v1510 = vmul.f32 %v1501, 0.015625
      %v1511 = vmul.f32 %v1503, 0.015625
      %v1512 = vmul.f32 %v1472, %v1472
      %v1513 = vmul.f32 %v1473, %v1473
      %v1514 = vmul.f32 %v1474, %v1474
      %v1515 = vmul.f32 %v1475, %v1475
      %v1516 = vmul.f32 %v1476, %v1476
      %v1517 = vmul.f32 %v1477, %v1477
      %v1518 = vmul.f32 %v1478, %v1478
      %v1519 = vmul.f32 %v1479, %v1479
      %v1520 = vsub.f32 %v1504, %v1512
      %v1521 = vsub.f32 %v1505, %v1513
      %v1522 = vsub.f32 %v1506, %v1514
      %v1523 = vsub.f32 %v1507, %v1515
      %v1524 = vsub.f32 %v1508, %v1516
      %v1525 = vsub.f32 %v1509, %v1517
      %v1526 = vsub.f32 %v1510, %v1518
      %v1527 = vsub.f32 %v1511, %v1519
      %v1528 = vsub.f32 %v1448, %v1472
      %v1529 = vsub.f32 %v1449, %v1473
      %v1530 = vsub.f32 %v1450, %v1474
      %v1531 = vsub.f32 %v1451, %v1475
      %v1532 = vsub.f32 %v1452, %v1476
      %v1533 = vsub.f32 %v1453, %v1477
      %v1534 = vsub.f32 %v1454, %v1478
      %v1535 = vsub.f32 %v1455, %v1479
      %v1536 = vadd.f32 %v1520, 1e-05
      %v1537 = vadd.f32 %v1521, 1e-05
      %v1538 = vadd.f32 %v1522, 1e-05
      %v1539 = vadd.f32 %v1523, 1e-05
      %v1540 = vadd.f32 %v1524, 1e-05
      %v1541 = vadd.f32 %v1525, 1e-05
      %v1542 = vadd.f32 %v1526, 1e-05
      %v1543 = vadd.f32 %v1527, 1e-05
      %v1544 = vrsqrt.pop %v1536
      %v1545 = vrsqrt.pop %v1537
      %v1546 = vrsqrt.pop %v1538
      %v1547 = vrsqrt.pop %v1539
      %v1548 = vrsqrt.pop %v1540
      %v1549 = vrsqrt.pop %v1541
      %v1550 = vrsqrt.pop %v1542
      %v1551 = vrsqrt.pop %v1543
      %v1552 = vmul.f32 %v1528, %v1544
      %v1553 = vmul.f32 %v1529, %v1545
      %v1554 = vmul.f32 %v1530, %v1546
      %v1555 = vmul.f32 %v1531, %v1547
      %v1556 = vmul.f32 %v1532, %v1548
      %v1557 = vmul.f32 %v1533, %v1549
      %v1558 = vmul.f32 %v1534, %v1550
      %v1559 = vmul.f32 %v1535, %v1551
      %v1560 = vld [vmem:[%s3] sm:$0x1]
      %v1562 = vlaneseq
      %v1563 = vshrl.u32 %v1562, 7
      %v1564 = vsub.s32 0, %v1563
      %v1565 = vrot.slane %v1560, %v1564
      %v1567 = vmul.f32 %v1552, %v1565
      %v1568 = vmul.f32 %v1553, %v1565
      %v1569 = vmul.f32 %v1554, %v1565
      %v1570 = vmul.f32 %v1555, %v1565
      %v1571 = vmul.f32 %v1556, %v1565
      %v1572 = vmul.f32 %v1557, %v1565
      %v1573 = vmul.f32 %v1558, %v1565
      %v1574 = vmul.f32 %v1559, %v1565
      %v1575 = vld [vmem:[%s4] sm:$0x1]
      %v1577 = vlaneseq
      %v1578 = vshrl.u32 %v1577, 7
      %v1579 = vsub.s32 0, %v1578
      %v1580 = vrot.slane %v1575, %v1579
      %v1582 = vadd.f32 %v1567, %v1580
      %v1583 = vadd.f32 %v1568, %v1580
      %v1584 = vadd.f32 %v1569, %v1580
      %v1585 = vadd.f32 %v1570, %v1580
      %v1586 = vadd.f32 %v1571, %v1580
      %v1587 = vadd.f32 %v1572, %v1580
      %v1588 = vadd.f32 %v1573, %v1580
      %v1589 = vadd.f32 %v1574, %v1580
      %v1590 = vld [vmem:[%s456] sm:$0xff]
      %v1591 = vld [vmem:[%s456 + $0x8] sm:$0xff]
      %v1592 = vld [vmem:[%s456 + $0x10] sm:$0xff]
      %v1593 = vld [vmem:[%s456 + $0x18] sm:$0xff]
      %v1594 = vld [vmem:[%s456 + $0x20] sm:$0xff]
      %v1595 = vld [vmem:[%s456 + $0x28] sm:$0xff]
      %v1596 = vld [vmem:[%s456 + $0x30] sm:$0xff]
      %v1597 = vld [vmem:[%s456 + $0x38] sm:$0xff]
      %v1598 = vld [vmem:[%s5] sm:$0x1]
      %v1600 = vlaneseq
      %v1601 = vshrl.u32 %v1600, 7
      %v1602 = vsub.s32 0, %v1601
      %v1603 = vrot.slane %v1598, %v1602
      %v1605 = vmul.f32 %v1590, %v1603
      %v1606 = vmul.f32 %v1591, %v1603
      %v1607 = vmul.f32 %v1592, %v1603
      %v1608 = vmul.f32 %v1593, %v1603
      %v1609 = vmul.f32 %v1594, %v1603
      %v1610 = vmul.f32 %v1595, %v1603
      %v1611 = vmul.f32 %v1596, %v1603
      %v1612 = vmul.f32 %v1597, %v1603
      %v1613 = vld [vmem:[%s6] sm:$0x1]
      %v1615 = vlaneseq
      %v1616 = vshrl.u32 %v1615, 7
      %v1617 = vsub.s32 0, %v1616
      %v1618 = vrot.slane %v1613, %v1617
      %v1620 = vadd.f32 %v1605, %v1618
      %v1621 = vadd.f32 %v1606, %v1618
      %v1622 = vadd.f32 %v1607, %v1618
      %v1623 = vadd.f32 %v1608, %v1618
      %v1624 = vadd.f32 %v1609, %v1618
      %v1625 = vadd.f32 %v1610, %v1618
      %v1626 = vadd.f32 %v1611, %v1618
      %v1627 = vadd.f32 %v1612, %v1618
      %v1628 = vand.u32 2147483647, %v1620
      %vm1629 = vcmp.le.f32.partialorder %v1628, 0.7853982
      %vm1630 = vcmp.lt.s32.totalorder %v1620, 0
      %v1631 = vand.u32 %v1620, 2139095040
      %v1632 = vshrl.u32 %v1631, 23
      %v1633 = vsub.s32 %v1632, 127
      %v1634 = vand.u32 2147483647, %v1620
      %v1635 = vand.u32 %v1634, 8388607
      %v1636 = vor.u32 %v1635, 8388608
      %v1637 = vsub.s32 0, %v1636
      %v1638 = vadd.s32 %v1633, 1
      %vm1639 = vcmp.gt.s32.totalorder %v1638, 0
      %v1640 = vsel %vm1639, %v1638, 0
      %v1641 = vshrl.u32 %v1640, 5
      %v1642 = vand.u32 %v1640, 31
      %v1643 = vsub.s32 32, %v1642
      %v1644 = vshrl.u32 683565275, %v1643
      %v1645 = vshll.u32 683565275, %v1642
      %v1646 = vshrl.u32 2475754826, %v1643
      %v1647 = vor.u32 %v1645, %v1646
      %v1648 = vshll.u32 2475754826, %v1642
      %v1649 = vshrl.u32 2131351028, %v1643
      %v1650 = vor.u32 %v1648, %v1649
      %v1651 = vshll.u32 2131351028, %v1642
      %v1652 = vshrl.u32 2102212464, %v1643
      %v1653 = vor.u32 %v1651, %v1652
      %v1654 = vshll.u32 2102212464, %v1642
      %v1655 = vshrl.u32 920167782, %v1643
      %v1656 = vor.u32 %v1654, %v1655
      %v1657 = vshll.u32 920167782, %v1642
      %v1658 = vshrl.u32 1326507024, %v1643
      %v1659 = vor.u32 %v1657, %v1658
      %vm1660 = vcmp.lt.s32.totalorder %v1641, 1
      %vm1661 = vcmp.lt.s32.totalorder %v1641, 2
      %vm1662 = vcmp.lt.s32.totalorder %v1641, 3
      %vm1663 = vcmp.lt.s32.totalorder %v1641, 4
      %v1664 = vsel %vm1660, %v1644, %v1647
      %v1665 = vsel %vm1663, %v1653, 2102212464
      %v1666 = vsel %vm1662, %v1650, %v1665
      %v1667 = vsel %vm1661, %v1664, %v1666
      %v1668 = vsel %vm1660, %v1647, %v1650
      %v1669 = vsel %vm1663, %v1656, 920167782
      %v1670 = vsel %vm1662, %v1653, %v1669
      %v1671 = vsel %vm1661, %v1668, %v1670
      %v1672 = vsel %vm1660, %v1650, %v1653
      %v1673 = vsel %vm1663, %v1659, 1326507024
      %v1674 = vsel %vm1662, %v1656, %v1673
      %v1675 = vsel %vm1661, %v1672, %v1674
      %v1676 = vshll.u32 %v1636, 8
      %v1677 = vmul.u32.u64.compose %v1676, %v1675
      %v1678 = vextract.low.u32 %v1677
      %v1679 = vextract.high.u32 %v1677
      %v1680 = vmul.u32.u64.compose %v1676, %v1671
      %v1681 = vextract.low.u32 %v1680
      %v1682 = vextract.high.u32 %v1680
      %v1683 = vmul.u32 %v1676, %v1667
      %v1684 = vadd.s32 %v1679, %v1681
      %vm1685 = vc.u32 %v1679, %v1681
      %v1686 = vadd.s32 %v1682, 1
      %v1687 = vsel %vm1685, %v1686, %v1682
      %v1688 = vadd.s32 %v1683, %v1687
      %v1689 = vadd.s32 %v1688, 536870912
      %v1690 = vshrl.u32 %v1689, 30
      %v1691 = vshll.u32 %v1690, 30
      %v1692 = vsub.s32 %v1688, %v1691
      %vm1693 = vcmp.lt.s32.totalorder %v1692, 0
      %v1694 = vsub.s32 0, %v1692
      %v1695 = vsel %vm1693, %v1694, %v1692
      %v1696 = vclz %v1695
      %v1697 = vsub.s32 %v1696, 2
      %vm1698 = vcmp.gt.s32.totalorder 0, %v1697
      %v1699 = vsel %vm1698, 0, %v1697
      %v1700 = vsub.s32 32, %v1699
      %v1701 = vshll.u32 %v1692, %v1699
      %v1702 = vshrl.u32 %v1684, %v1700
      %v1703 = vor.u32 %v1701, %v1702
      %v1704 = vsub.s32 4294967266, %v1699
      %v1705 = vadd.s32 %v1704, 127
      %v1706 = vshll.u32 %v1705, 23
      %v1707 = vor.u32 4788187, %v1706
      %v1708 = vand.u32 2147483647, %v1707
      %v1710 = vcvt.s32.f32 %v1703
      %v1711 = vmul.f32 %v1710, %v1708
      %v1712 = vxor.u32 %v1711, 2147483648
      %v1713 = vsel %vm1630, %v1712, %v1711
      %v1714 = vsub.s32 4, %v1690
      %v1715 = vsel %vm1630, %v1714, %v1690
      %v1716 = vsel %vm1629, %v1620, %v1713
      %v1717 = vsel %vm1629, 0, %v1715
      %v1718 = vcosq.f32.pop %v1716
      %v1719 = vsinq.f32.pop %v1716
      %vm1720 = vweird.f32 %v1620
      %v1721 = vadd.s32 %v1717, 3
      %v1722 = vand.u32 %v1721, 3
      %vm1723 = vcmp.lt.s32.totalorder %v1722, 2
      %vm1724 = vcmp.eq.s32.totalorder %v1722, 0
      %v1725 = vxor.u32 %v1719, 2147483648
      %v1726 = vsel %vm1724, %v1718, %v1725
      %vm1727 = vcmp.eq.s32.totalorder %v1722, 2
      %v1728 = vxor.u32 %v1718, 2147483648
      %v1729 = vsel %vm1727, %v1728, %v1719
      %v1730 = vsel %vm1723, %v1726, %v1729
      %v1731 = vsel %vm1720, nan, %v1730
      %v1732 = vand.u32 2147483647, %v1621
      %vm1733 = vcmp.le.f32.partialorder %v1732, 0.7853982
      %vm1734 = vcmp.lt.s32.totalorder %v1621, 0
      %v1735 = vand.u32 %v1621, 2139095040
      %v1736 = vshrl.u32 %v1735, 23
      %v1737 = vsub.s32 %v1736, 127
      %v1738 = vand.u32 2147483647, %v1621
      %v1739 = vand.u32 %v1738, 8388607
      %v1740 = vor.u32 %v1739, 8388608
      %v1741 = vsub.s32 0, %v1740
      %v1742 = vadd.s32 %v1737, 1
      %vm1743 = vcmp.gt.s32.totalorder %v1742, 0
      %v1744 = vsel %vm1743, %v1742, 0
      %v1745 = vshrl.u32 %v1744, 5
      %v1746 = vand.u32 %v1744, 31
      %v1747 = vsub.s32 32, %v1746
      %v1748 = vshrl.u32 683565275, %v1747
      %v1749 = vshll.u32 683565275, %v1746
      %v1750 = vshrl.u32 2475754826, %v1747
      %v1751 = vor.u32 %v1749, %v1750
      %v1752 = vshll.u32 2475754826, %v1746
      %v1753 = vshrl.u32 2131351028, %v1747
      %v1754 = vor.u32 %v1752, %v1753
      %v1755 = vshll.u32 2131351028, %v1746
      %v1756 = vshrl.u32 2102212464, %v1747
      %v1757 = vor.u32 %v1755, %v1756
      %v1758 = vshll.u32 2102212464, %v1746
      %v1759 = vshrl.u32 920167782, %v1747
      %v1760 = vor.u32 %v1758, %v1759
      %v1761 = vshll.u32 920167782, %v1746
      %v1762 = vshrl.u32 1326507024, %v1747
      %v1763 = vor.u32 %v1761, %v1762
      %vm1764 = vcmp.lt.s32.totalorder %v1745, 1
      %vm1765 = vcmp.lt.s32.totalorder %v1745, 2
      %vm1766 = vcmp.lt.s32.totalorder %v1745, 3
      %vm1767 = vcmp.lt.s32.totalorder %v1745, 4
      %v1768 = vsel %vm1764, %v1748, %v1751
      %v1769 = vsel %vm1767, %v1757, 2102212464
      %v1770 = vsel %vm1766, %v1754, %v1769
      %v1771 = vsel %vm1765, %v1768, %v1770
      %v1772 = vsel %vm1764, %v1751, %v1754
      %v1773 = vsel %vm1767, %v1760, 920167782
      %v1774 = vsel %vm1766, %v1757, %v1773
      %v1775 = vsel %vm1765, %v1772, %v1774
      %v1776 = vsel %vm1764, %v1754, %v1757
      %v1777 = vsel %vm1767, %v1763, 1326507024
      %v1778 = vsel %vm1766, %v1760, %v1777
      %v1779 = vsel %vm1765, %v1776, %v1778
      %v1780 = vshll.u32 %v1740, 8
      %v1781 = vmul.u32.u64.compose %v1780, %v1779
      %v1782 = vextract.low.u32 %v1781
      %v1783 = vextract.high.u32 %v1781
      %v1784 = vmul.u32.u64.compose %v1780, %v1775
      %v1785 = vextract.low.u32 %v1784
      %v1786 = vextract.high.u32 %v1784
      %v1787 = vmul.u32 %v1780, %v1771
      %v1788 = vadd.s32 %v1783, %v1785
      %vm1789 = vc.u32 %v1783, %v1785
      %v1790 = vadd.s32 %v1786, 1
      %v1791 = vsel %vm1789, %v1790, %v1786
      %v1792 = vadd.s32 %v1787, %v1791
      %v1793 = vadd.s32 %v1792, 536870912
      %v1794 = vshrl.u32 %v1793, 30
      %v1795 = vshll.u32 %v1794, 30
      %v1796 = vsub.s32 %v1792, %v1795
      %vm1797 = vcmp.lt.s32.totalorder %v1796, 0
      %v1798 = vsub.s32 0, %v1796
      %v1799 = vsel %vm1797, %v1798, %v1796
      %v1800 = vclz %v1799
      %v1801 = vsub.s32 %v1800, 2
      %vm1802 = vcmp.gt.s32.totalorder 0, %v1801
      %v1803 = vsel %vm1802, 0, %v1801
      %v1804 = vsub.s32 32, %v1803
      %v1805 = vshll.u32 %v1796, %v1803
      %v1806 = vshrl.u32 %v1788, %v1804
      %v1807 = vor.u32 %v1805, %v1806
      %v1808 = vsub.s32 4294967266, %v1803
      %v1809 = vadd.s32 %v1808, 127
      %v1810 = vshll.u32 %v1809, 23
      %v1811 = vor.u32 4788187, %v1810
      %v1812 = vand.u32 2147483647, %v1811
      %v1814 = vcvt.s32.f32 %v1807
      %v1815 = vmul.f32 %v1814, %v1812
      %v1816 = vxor.u32 %v1815, 2147483648
      %v1817 = vsel %vm1734, %v1816, %v1815
      %v1818 = vsub.s32 4, %v1794
      %v1819 = vsel %vm1734, %v1818, %v1794
      %v1820 = vsel %vm1733, %v1621, %v1817
      %v1821 = vsel %vm1733, 0, %v1819
      %v1822 = vcosq.f32.pop %v1820
      %v1823 = vsinq.f32.pop %v1820
      %vm1824 = vweird.f32 %v1621
      %v1825 = vadd.s32 %v1821, 3
      %v1826 = vand.u32 %v1825, 3
      %vm1827 = vcmp.lt.s32.totalorder %v1826, 2
      %vm1828 = vcmp.eq.s32.totalorder %v1826, 0
      %v1829 = vxor.u32 %v1823, 2147483648
      %v1830 = vsel %vm1828, %v1822, %v1829
      %vm1831 = vcmp.eq.s32.totalorder %v1826, 2
      %v1832 = vxor.u32 %v1822, 2147483648
      %v1833 = vsel %vm1831, %v1832, %v1823
      %v1834 = vsel %vm1827, %v1830, %v1833
      %v1835 = vsel %vm1824, nan, %v1834
      %v1836 = vand.u32 2147483647, %v1622
      %vm1837 = vcmp.le.f32.partialorder %v1836, 0.7853982
      %vm1838 = vcmp.lt.s32.totalorder %v1622, 0
      %v1839 = vand.u32 %v1622, 2139095040
      %v1840 = vshrl.u32 %v1839, 23
      %v1841 = vsub.s32 %v1840, 127
      %v1842 = vand.u32 2147483647, %v1622
      %v1843 = vand.u32 %v1842, 8388607
      %v1844 = vor.u32 %v1843, 8388608
      %v1845 = vsub.s32 0, %v1844
      %v1846 = vadd.s32 %v1841, 1
      %vm1847 = vcmp.gt.s32.totalorder %v1846, 0
      %v1848 = vsel %vm1847, %v1846, 0
      %v1849 = vshrl.u32 %v1848, 5
      %v1850 = vand.u32 %v1848, 31
      %v1851 = vsub.s32 32, %v1850
      %v1852 = vshrl.u32 683565275, %v1851
      %v1853 = vshll.u32 683565275, %v1850
      %v1854 = vshrl.u32 2475754826, %v1851
      %v1855 = vor.u32 %v1853, %v1854
      %v1856 = vshll.u32 2475754826, %v1850
      %v1857 = vshrl.u32 2131351028, %v1851
      %v1858 = vor.u32 %v1856, %v1857
      %v1859 = vshll.u32 2131351028, %v1850
      %v1860 = vshrl.u32 2102212464, %v1851
      %v1861 = vor.u32 %v1859, %v1860
      %v1862 = vshll.u32 2102212464, %v1850
      %v1863 = vshrl.u32 920167782, %v1851
      %v1864 = vor.u32 %v1862, %v1863
      %v1865 = vshll.u32 920167782, %v1850
      %v1866 = vshrl.u32 1326507024, %v1851
      %v1867 = vor.u32 %v1865, %v1866
      %vm1868 = vcmp.lt.s32.totalorder %v1849, 1
      %vm1869 = vcmp.lt.s32.totalorder %v1849, 2
      %vm1870 = vcmp.lt.s32.totalorder %v1849, 3
      %vm1871 = vcmp.lt.s32.totalorder %v1849, 4
      %v1872 = vsel %vm1868, %v1852, %v1855
      %v1873 = vsel %vm1871, %v1861, 2102212464
      %v1874 = vsel %vm1870, %v1858, %v1873
      %v1875 = vsel %vm1869, %v1872, %v1874
      %v1876 = vsel %vm1868, %v1855, %v1858
      %v1877 = vsel %vm1871, %v1864, 920167782
      %v1878 = vsel %vm1870, %v1861, %v1877
      %v1879 = vsel %vm1869, %v1876, %v1878
      %v1880 = vsel %vm1868, %v1858, %v1861
      %v1881 = vsel %vm1871, %v1867, 1326507024
      %v1882 = vsel %vm1870, %v1864, %v1881
      %v1883 = vsel %vm1869, %v1880, %v1882
      %v1884 = vshll.u32 %v1844, 8
      %v1885 = vmul.u32.u64.compose %v1884, %v1883
      %v1886 = vextract.low.u32 %v1885
      %v1887 = vextract.high.u32 %v1885
      %v1888 = vmul.u32.u64.compose %v1884, %v1879
      %v1889 = vextract.low.u32 %v1888
      %v1890 = vextract.high.u32 %v1888
      %v1891 = vmul.u32 %v1884, %v1875
      %v1892 = vadd.s32 %v1887, %v1889
      %vm1893 = vc.u32 %v1887, %v1889
      %v1894 = vadd.s32 %v1890, 1
      %v1895 = vsel %vm1893, %v1894, %v1890
      %v1896 = vadd.s32 %v1891, %v1895
      %v1897 = vadd.s32 %v1896, 536870912
      %v1898 = vshrl.u32 %v1897, 30
      %v1899 = vshll.u32 %v1898, 30
      %v1900 = vsub.s32 %v1896, %v1899
      %vm1901 = vcmp.lt.s32.totalorder %v1900, 0
      %v1902 = vsub.s32 0, %v1900
      %v1903 = vsel %vm1901, %v1902, %v1900
      %v1904 = vclz %v1903
      %v1905 = vsub.s32 %v1904, 2
      %vm1906 = vcmp.gt.s32.totalorder 0, %v1905
      %v1907 = vsel %vm1906, 0, %v1905
      %v1908 = vsub.s32 32, %v1907
      %v1909 = vshll.u32 %v1900, %v1907
      %v1910 = vshrl.u32 %v1892, %v1908
      %v1911 = vor.u32 %v1909, %v1910
      %v1912 = vsub.s32 4294967266, %v1907
      %v1913 = vadd.s32 %v1912, 127
      %v1914 = vshll.u32 %v1913, 23
      %v1915 = vor.u32 4788187, %v1914
      %v1916 = vand.u32 2147483647, %v1915
      %v1918 = vcvt.s32.f32 %v1911
      %v1919 = vmul.f32 %v1918, %v1916
      %v1920 = vxor.u32 %v1919, 2147483648
      %v1921 = vsel %vm1838, %v1920, %v1919
      %v1922 = vsub.s32 4, %v1898
      %v1923 = vsel %vm1838, %v1922, %v1898
      %v1924 = vsel %vm1837, %v1622, %v1921
      %v1925 = vsel %vm1837, 0, %v1923
      %v1926 = vcosq.f32.pop %v1924
      %v1927 = vsinq.f32.pop %v1924
      %vm1928 = vweird.f32 %v1622
      %v1929 = vadd.s32 %v1925, 3
      %v1930 = vand.u32 %v1929, 3
      %vm1931 = vcmp.lt.s32.totalorder %v1930, 2
      %vm1932 = vcmp.eq.s32.totalorder %v1930, 0
      %v1933 = vxor.u32 %v1927, 2147483648
      %v1934 = vsel %vm1932, %v1926, %v1933
      %vm1935 = vcmp.eq.s32.totalorder %v1930, 2
      %v1936 = vxor.u32 %v1926, 2147483648
      %v1937 = vsel %vm1935, %v1936, %v1927
      %v1938 = vsel %vm1931, %v1934, %v1937
      %v1939 = vsel %vm1928, nan, %v1938
      %v1940 = vand.u32 2147483647, %v1623
      %vm1941 = vcmp.le.f32.partialorder %v1940, 0.7853982
      %vm1942 = vcmp.lt.s32.totalorder %v1623, 0
      %v1943 = vand.u32 %v1623, 2139095040
      %v1944 = vshrl.u32 %v1943, 23
      %v1945 = vsub.s32 %v1944, 127
      %v1946 = vand.u32 2147483647, %v1623
      %v1947 = vand.u32 %v1946, 8388607
      %v1948 = vor.u32 %v1947, 8388608
      %v1949 = vsub.s32 0, %v1948
      %v1950 = vadd.s32 %v1945, 1
      %vm1951 = vcmp.gt.s32.totalorder %v1950, 0
      %v1952 = vsel %vm1951, %v1950, 0
      %v1953 = vshrl.u32 %v1952, 5
      %v1954 = vand.u32 %v1952, 31
      %v1955 = vsub.s32 32, %v1954
      %v1956 = vshrl.u32 683565275, %v1955
      %v1957 = vshll.u32 683565275, %v1954
      %v1958 = vshrl.u32 2475754826, %v1955
      %v1959 = vor.u32 %v1957, %v1958
      %v1960 = vshll.u32 2475754826, %v1954
      %v1961 = vshrl.u32 2131351028, %v1955
      %v1962 = vor.u32 %v1960, %v1961
      %v1963 = vshll.u32 2131351028, %v1954
      %v1964 = vshrl.u32 2102212464, %v1955
      %v1965 = vor.u32 %v1963, %v1964
      %v1966 = vshll.u32 2102212464, %v1954
      %v1967 = vshrl.u32 920167782, %v1955
      %v1968 = vor.u32 %v1966, %v1967
      %v1969 = vshll.u32 920167782, %v1954
      %v1970 = vshrl.u32 1326507024, %v1955
      %v1971 = vor.u32 %v1969, %v1970
      %vm1972 = vcmp.lt.s32.totalorder %v1953, 1
      %vm1973 = vcmp.lt.s32.totalorder %v1953, 2
      %vm1974 = vcmp.lt.s32.totalorder %v1953, 3
      %vm1975 = vcmp.lt.s32.totalorder %v1953, 4
      %v1976 = vsel %vm1972, %v1956, %v1959
      %v1977 = vsel %vm1975, %v1965, 2102212464
      %v1978 = vsel %vm1974, %v1962, %v1977
      %v1979 = vsel %vm1973, %v1976, %v1978
      %v1980 = vsel %vm1972, %v1959, %v1962
      %v1981 = vsel %vm1975, %v1968, 920167782
      %v1982 = vsel %vm1974, %v1965, %v1981
      %v1983 = vsel %vm1973, %v1980, %v1982
      %v1984 = vsel %vm1972, %v1962, %v1965
      %v1985 = vsel %vm1975, %v1971, 1326507024
      %v1986 = vsel %vm1974, %v1968, %v1985
      %v1987 = vsel %vm1973, %v1984, %v1986
      %v1988 = vshll.u32 %v1948, 8
      %v1989 = vmul.u32.u64.compose %v1988, %v1987
      %v1990 = vextract.low.u32 %v1989
      %v1991 = vextract.high.u32 %v1989
      %v1992 = vmul.u32.u64.compose %v1988, %v1983
      %v1993 = vextract.low.u32 %v1992
      %v1994 = vextract.high.u32 %v1992
      %v1995 = vmul.u32 %v1988, %v1979
      %v1996 = vadd.s32 %v1991, %v1993
      %vm1997 = vc.u32 %v1991, %v1993
      %v1998 = vadd.s32 %v1994, 1
      %v1999 = vsel %vm1997, %v1998, %v1994
      %v2000 = vadd.s32 %v1995, %v1999
      %v2001 = vadd.s32 %v2000, 536870912
      %v2002 = vshrl.u32 %v2001, 30
      %v2003 = vshll.u32 %v2002, 30
      %v2004 = vsub.s32 %v2000, %v2003
      %vm2005 = vcmp.lt.s32.totalorder %v2004, 0
      %v2006 = vsub.s32 0, %v2004
      %v2007 = vsel %vm2005, %v2006, %v2004
      %v2008 = vclz %v2007
      %v2009 = vsub.s32 %v2008, 2
      %vm2010 = vcmp.gt.s32.totalorder 0, %v2009
      %v2011 = vsel %vm2010, 0, %v2009
      %v2012 = vsub.s32 32, %v2011
      %v2013 = vshll.u32 %v2004, %v2011
      %v2014 = vshrl.u32 %v1996, %v2012
      %v2015 = vor.u32 %v2013, %v2014
      %v2016 = vsub.s32 4294967266, %v2011
      %v2017 = vadd.s32 %v2016, 127
      %v2018 = vshll.u32 %v2017, 23
      %v2019 = vor.u32 4788187, %v2018
      %v2020 = vand.u32 2147483647, %v2019
      %v2022 = vcvt.s32.f32 %v2015
      %v2023 = vmul.f32 %v2022, %v2020
      %v2024 = vxor.u32 %v2023, 2147483648
      %v2025 = vsel %vm1942, %v2024, %v2023
      %v2026 = vsub.s32 4, %v2002
      %v2027 = vsel %vm1942, %v2026, %v2002
      %v2028 = vsel %vm1941, %v1623, %v2025
      %v2029 = vsel %vm1941, 0, %v2027
      %v2030 = vcosq.f32.pop %v2028
      %v2031 = vsinq.f32.pop %v2028
      %vm2032 = vweird.f32 %v1623
      %v2033 = vadd.s32 %v2029, 3
      %v2034 = vand.u32 %v2033, 3
      %vm2035 = vcmp.lt.s32.totalorder %v2034, 2
      %vm2036 = vcmp.eq.s32.totalorder %v2034, 0
      %v2037 = vxor.u32 %v2031, 2147483648
      %v2038 = vsel %vm2036, %v2030, %v2037
      %vm2039 = vcmp.eq.s32.totalorder %v2034, 2
      %v2040 = vxor.u32 %v2030, 2147483648
      %v2041 = vsel %vm2039, %v2040, %v2031
      %v2042 = vsel %vm2035, %v2038, %v2041
      %v2043 = vsel %vm2032, nan, %v2042
      %v2044 = vand.u32 2147483647, %v1624
      %vm2045 = vcmp.le.f32.partialorder %v2044, 0.7853982
      %vm2046 = vcmp.lt.s32.totalorder %v1624, 0
      %v2047 = vand.u32 %v1624, 2139095040
      %v2048 = vshrl.u32 %v2047, 23
      %v2049 = vsub.s32 %v2048, 127
      %v2050 = vand.u32 2147483647, %v1624
      %v2051 = vand.u32 %v2050, 8388607
      %v2052 = vor.u32 %v2051, 8388608
      %v2053 = vsub.s32 0, %v2052
      %v2054 = vadd.s32 %v2049, 1
      %vm2055 = vcmp.gt.s32.totalorder %v2054, 0
      %v2056 = vsel %vm2055, %v2054, 0
      %v2057 = vshrl.u32 %v2056, 5
      %v2058 = vand.u32 %v2056, 31
      %v2059 = vsub.s32 32, %v2058
      %v2060 = vshrl.u32 683565275, %v2059
      %v2061 = vshll.u32 683565275, %v2058
      %v2062 = vshrl.u32 2475754826, %v2059
      %v2063 = vor.u32 %v2061, %v2062
      %v2064 = vshll.u32 2475754826, %v2058
      %v2065 = vshrl.u32 2131351028, %v2059
      %v2066 = vor.u32 %v2064, %v2065
      %v2067 = vshll.u32 2131351028, %v2058
      %v2068 = vshrl.u32 2102212464, %v2059
      %v2069 = vor.u32 %v2067, %v2068
      %v2070 = vshll.u32 2102212464, %v2058
      %v2071 = vshrl.u32 920167782, %v2059
      %v2072 = vor.u32 %v2070, %v2071
      %v2073 = vshll.u32 920167782, %v2058
      %v2074 = vshrl.u32 1326507024, %v2059
      %v2075 = vor.u32 %v2073, %v2074
      %vm2076 = vcmp.lt.s32.totalorder %v2057, 1
      %vm2077 = vcmp.lt.s32.totalorder %v2057, 2
      %vm2078 = vcmp.lt.s32.totalorder %v2057, 3
      %vm2079 = vcmp.lt.s32.totalorder %v2057, 4
      %v2080 = vsel %vm2076, %v2060, %v2063
      %v2081 = vsel %vm2079, %v2069, 2102212464
      %v2082 = vsel %vm2078, %v2066, %v2081
      %v2083 = vsel %vm2077, %v2080, %v2082
      %v2084 = vsel %vm2076, %v2063, %v2066
      %v2085 = vsel %vm2079, %v2072, 920167782
      %v2086 = vsel %vm2078, %v2069, %v2085
      %v2087 = vsel %vm2077, %v2084, %v2086
      %v2088 = vsel %vm2076, %v2066, %v2069
      %v2089 = vsel %vm2079, %v2075, 1326507024
      %v2090 = vsel %vm2078, %v2072, %v2089
      %v2091 = vsel %vm2077, %v2088, %v2090
      %v2092 = vshll.u32 %v2052, 8
      %v2093 = vmul.u32.u64.compose %v2092, %v2091
      %v2094 = vextract.low.u32 %v2093
      %v2095 = vextract.high.u32 %v2093
      %v2096 = vmul.u32.u64.compose %v2092, %v2087
      %v2097 = vextract.low.u32 %v2096
      %v2098 = vextract.high.u32 %v2096
      %v2099 = vmul.u32 %v2092, %v2083
      %v2100 = vadd.s32 %v2095, %v2097
      %vm2101 = vc.u32 %v2095, %v2097
      %v2102 = vadd.s32 %v2098, 1
      %v2103 = vsel %vm2101, %v2102, %v2098
      %v2104 = vadd.s32 %v2099, %v2103
      %v2105 = vadd.s32 %v2104, 536870912
      %v2106 = vshrl.u32 %v2105, 30
      %v2107 = vshll.u32 %v2106, 30
      %v2108 = vsub.s32 %v2104, %v2107
      %vm2109 = vcmp.lt.s32.totalorder %v2108, 0
      %v2110 = vsub.s32 0, %v2108
      %v2111 = vsel %vm2109, %v2110, %v2108
      %v2112 = vclz %v2111
      %v2113 = vsub.s32 %v2112, 2
      %vm2114 = vcmp.gt.s32.totalorder 0, %v2113
      %v2115 = vsel %vm2114, 0, %v2113
      %v2116 = vsub.s32 32, %v2115
      %v2117 = vshll.u32 %v2108, %v2115
      %v2118 = vshrl.u32 %v2100, %v2116
      %v2119 = vor.u32 %v2117, %v2118
      %v2120 = vsub.s32 4294967266, %v2115
      %v2121 = vadd.s32 %v2120, 127
      %v2122 = vshll.u32 %v2121, 23
      %v2123 = vor.u32 4788187, %v2122
      %v2124 = vand.u32 2147483647, %v2123
      %v2126 = vcvt.s32.f32 %v2119
      %v2127 = vmul.f32 %v2126, %v2124
      %v2128 = vxor.u32 %v2127, 2147483648
      %v2129 = vsel %vm2046, %v2128, %v2127
      %v2130 = vsub.s32 4, %v2106
      %v2131 = vsel %vm2046, %v2130, %v2106
      %v2132 = vsel %vm2045, %v1624, %v2129
      %v2133 = vsel %vm2045, 0, %v2131
      %v2134 = vcosq.f32.pop %v2132
      %v2135 = vsinq.f32.pop %v2132
      %vm2136 = vweird.f32 %v1624
      %v2137 = vadd.s32 %v2133, 3
      %v2138 = vand.u32 %v2137, 3
      %vm2139 = vcmp.lt.s32.totalorder %v2138, 2
      %vm2140 = vcmp.eq.s32.totalorder %v2138, 0
      %v2141 = vxor.u32 %v2135, 2147483648
      %v2142 = vsel %vm2140, %v2134, %v2141
      %vm2143 = vcmp.eq.s32.totalorder %v2138, 2
      %v2144 = vxor.u32 %v2134, 2147483648
      %v2145 = vsel %vm2143, %v2144, %v2135
      %v2146 = vsel %vm2139, %v2142, %v2145
      %v2147 = vsel %vm2136, nan, %v2146
      %v2148 = vand.u32 2147483647, %v1625
      %vm2149 = vcmp.le.f32.partialorder %v2148, 0.7853982
      %vm2150 = vcmp.lt.s32.totalorder %v1625, 0
      %v2151 = vand.u32 %v1625, 2139095040
      %v2152 = vshrl.u32 %v2151, 23
      %v2153 = vsub.s32 %v2152, 127
      %v2154 = vand.u32 2147483647, %v1625
      %v2155 = vand.u32 %v2154, 8388607
      %v2156 = vor.u32 %v2155, 8388608
      %v2157 = vsub.s32 0, %v2156
      %v2158 = vadd.s32 %v2153, 1
      %vm2159 = vcmp.gt.s32.totalorder %v2158, 0
      %v2160 = vsel %vm2159, %v2158, 0
      %v2161 = vshrl.u32 %v2160, 5
      %v2162 = vand.u32 %v2160, 31
      %v2163 = vsub.s32 32, %v2162
      %v2164 = vshrl.u32 683565275, %v2163
      %v2165 = vshll.u32 683565275, %v2162
      %v2166 = vshrl.u32 2475754826, %v2163
      %v2167 = vor.u32 %v2165, %v2166
      %v2168 = vshll.u32 2475754826, %v2162
      %v2169 = vshrl.u32 2131351028, %v2163
      %v2170 = vor.u32 %v2168, %v2169
      %v2171 = vshll.u32 2131351028, %v2162
      %v2172 = vshrl.u32 2102212464, %v2163
      %v2173 = vor.u32 %v2171, %v2172
      %v2174 = vshll.u32 2102212464, %v2162
      %v2175 = vshrl.u32 920167782, %v2163
      %v2176 = vor.u32 %v2174, %v2175
      %v2177 = vshll.u32 920167782, %v2162
      %v2178 = vshrl.u32 1326507024, %v2163
      %v2179 = vor.u32 %v2177, %v2178
      %vm2180 = vcmp.lt.s32.totalorder %v2161, 1
      %vm2181 = vcmp.lt.s32.totalorder %v2161, 2
      %vm2182 = vcmp.lt.s32.totalorder %v2161, 3
      %vm2183 = vcmp.lt.s32.totalorder %v2161, 4
      %v2184 = vsel %vm2180, %v2164, %v2167
      %v2185 = vsel %vm2183, %v2173, 2102212464
      %v2186 = vsel %vm2182, %v2170, %v2185
      %v2187 = vsel %vm2181, %v2184, %v2186
      %v2188 = vsel %vm2180, %v2167, %v2170
      %v2189 = vsel %vm2183, %v2176, 920167782
      %v2190 = vsel %vm2182, %v2173, %v2189
      %v2191 = vsel %vm2181, %v2188, %v2190
      %v2192 = vsel %vm2180, %v2170, %v2173
      %v2193 = vsel %vm2183, %v2179, 1326507024
      %v2194 = vsel %vm2182, %v2176, %v2193
      %v2195 = vsel %vm2181, %v2192, %v2194
      %v2196 = vshll.u32 %v2156, 8
      %v2197 = vmul.u32.u64.compose %v2196, %v2195
      %v2198 = vextract.low.u32 %v2197
      %v2199 = vextract.high.u32 %v2197
      %v2200 = vmul.u32.u64.compose %v2196, %v2191
      %v2201 = vextract.low.u32 %v2200
      %v2202 = vextract.high.u32 %v2200
      %v2203 = vmul.u32 %v2196, %v2187
      %v2204 = vadd.s32 %v2199, %v2201
      %vm2205 = vc.u32 %v2199, %v2201
      %v2206 = vadd.s32 %v2202, 1
      %v2207 = vsel %vm2205, %v2206, %v2202
      %v2208 = vadd.s32 %v2203, %v2207
      %v2209 = vadd.s32 %v2208, 536870912
      %v2210 = vshrl.u32 %v2209, 30
      %v2211 = vshll.u32 %v2210, 30
      %v2212 = vsub.s32 %v2208, %v2211
      %vm2213 = vcmp.lt.s32.totalorder %v2212, 0
      %v2214 = vsub.s32 0, %v2212
      %v2215 = vsel %vm2213, %v2214, %v2212
      %v2216 = vclz %v2215
      %v2217 = vsub.s32 %v2216, 2
      %vm2218 = vcmp.gt.s32.totalorder 0, %v2217
      %v2219 = vsel %vm2218, 0, %v2217
      %v2220 = vsub.s32 32, %v2219
      %v2221 = vshll.u32 %v2212, %v2219
      %v2222 = vshrl.u32 %v2204, %v2220
      %v2223 = vor.u32 %v2221, %v2222
      %v2224 = vsub.s32 4294967266, %v2219
      %v2225 = vadd.s32 %v2224, 127
      %v2226 = vshll.u32 %v2225, 23
      %v2227 = vor.u32 4788187, %v2226
      %v2228 = vand.u32 2147483647, %v2227
      %v2230 = vcvt.s32.f32 %v2223
      %v2231 = vmul.f32 %v2230, %v2228
      %v2232 = vxor.u32 %v2231, 2147483648
      %v2233 = vsel %vm2150, %v2232, %v2231
      %v2234 = vsub.s32 4, %v2210
      %v2235 = vsel %vm2150, %v2234, %v2210
      %v2236 = vsel %vm2149, %v1625, %v2233
      %v2237 = vsel %vm2149, 0, %v2235
      %v2238 = vcosq.f32.pop %v2236
      %v2239 = vsinq.f32.pop %v2236
      %vm2240 = vweird.f32 %v1625
      %v2241 = vadd.s32 %v2237, 3
      %v2242 = vand.u32 %v2241, 3
      %vm2243 = vcmp.lt.s32.totalorder %v2242, 2
      %vm2244 = vcmp.eq.s32.totalorder %v2242, 0
      %v2245 = vxor.u32 %v2239, 2147483648
      %v2246 = vsel %vm2244, %v2238, %v2245
      %vm2247 = vcmp.eq.s32.totalorder %v2242, 2
      %v2248 = vxor.u32 %v2238, 2147483648
      %v2249 = vsel %vm2247, %v2248, %v2239
      %v2250 = vsel %vm2243, %v2246, %v2249
      %v2251 = vsel %vm2240, nan, %v2250
      %v2252 = vand.u32 2147483647, %v1626
      %vm2253 = vcmp.le.f32.partialorder %v2252, 0.7853982
      %vm2254 = vcmp.lt.s32.totalorder %v1626, 0
      %v2255 = vand.u32 %v1626, 2139095040
      %v2256 = vshrl.u32 %v2255, 23
      %v2257 = vsub.s32 %v2256, 127
      %v2258 = vand.u32 2147483647, %v1626
      %v2259 = vand.u32 %v2258, 8388607
      %v2260 = vor.u32 %v2259, 8388608
      %v2261 = vsub.s32 0, %v2260
      %v2262 = vadd.s32 %v2257, 1
      %vm2263 = vcmp.gt.s32.totalorder %v2262, 0
      %v2264 = vsel %vm2263, %v2262, 0
      %v2265 = vshrl.u32 %v2264, 5
      %v2266 = vand.u32 %v2264, 31
      %v2267 = vsub.s32 32, %v2266
      %v2268 = vshrl.u32 683565275, %v2267
      %v2269 = vshll.u32 683565275, %v2266
      %v2270 = vshrl.u32 2475754826, %v2267
      %v2271 = vor.u32 %v2269, %v2270
      %v2272 = vshll.u32 2475754826, %v2266
      %v2273 = vshrl.u32 2131351028, %v2267
      %v2274 = vor.u32 %v2272, %v2273
      %v2275 = vshll.u32 2131351028, %v2266
      %v2276 = vshrl.u32 2102212464, %v2267
      %v2277 = vor.u32 %v2275, %v2276
      %v2278 = vshll.u32 2102212464, %v2266
      %v2279 = vshrl.u32 920167782, %v2267
      %v2280 = vor.u32 %v2278, %v2279
      %v2281 = vshll.u32 920167782, %v2266
      %v2282 = vshrl.u32 1326507024, %v2267
      %v2283 = vor.u32 %v2281, %v2282
      %vm2284 = vcmp.lt.s32.totalorder %v2265, 1
      %vm2285 = vcmp.lt.s32.totalorder %v2265, 2
      %vm2286 = vcmp.lt.s32.totalorder %v2265, 3
      %vm2287 = vcmp.lt.s32.totalorder %v2265, 4
      %v2288 = vsel %vm2284, %v2268, %v2271
      %v2289 = vsel %vm2287, %v2277, 2102212464
      %v2290 = vsel %vm2286, %v2274, %v2289
      %v2291 = vsel %vm2285, %v2288, %v2290
      %v2292 = vsel %vm2284, %v2271, %v2274
      %v2293 = vsel %vm2287, %v2280, 920167782
      %v2294 = vsel %vm2286, %v2277, %v2293
      %v2295 = vsel %vm2285, %v2292, %v2294
      %v2296 = vsel %vm2284, %v2274, %v2277
      %v2297 = vsel %vm2287, %v2283, 1326507024
      %v2298 = vsel %vm2286, %v2280, %v2297
      %v2299 = vsel %vm2285, %v2296, %v2298
      %v2300 = vshll.u32 %v2260, 8
      %v2301 = vmul.u32.u64.compose %v2300, %v2299
      %v2302 = vextract.low.u32 %v2301
      %v2303 = vextract.high.u32 %v2301
      %v2304 = vmul.u32.u64.compose %v2300, %v2295
      %v2305 = vextract.low.u32 %v2304
      %v2306 = vextract.high.u32 %v2304
      %v2307 = vmul.u32 %v2300, %v2291
      %v2308 = vadd.s32 %v2303, %v2305
      %vm2309 = vc.u32 %v2303, %v2305
      %v2310 = vadd.s32 %v2306, 1
      %v2311 = vsel %vm2309, %v2310, %v2306
      %v2312 = vadd.s32 %v2307, %v2311
      %v2313 = vadd.s32 %v2312, 536870912
      %v2314 = vshrl.u32 %v2313, 30
      %v2315 = vshll.u32 %v2314, 30
      %v2316 = vsub.s32 %v2312, %v2315
      %vm2317 = vcmp.lt.s32.totalorder %v2316, 0
      %v2318 = vsub.s32 0, %v2316
      %v2319 = vsel %vm2317, %v2318, %v2316
      %v2320 = vclz %v2319
      %v2321 = vsub.s32 %v2320, 2
      %vm2322 = vcmp.gt.s32.totalorder 0, %v2321
      %v2323 = vsel %vm2322, 0, %v2321
      %v2324 = vsub.s32 32, %v2323
      %v2325 = vshll.u32 %v2316, %v2323
      %v2326 = vshrl.u32 %v2308, %v2324
      %v2327 = vor.u32 %v2325, %v2326
      %v2328 = vsub.s32 4294967266, %v2323
      %v2329 = vadd.s32 %v2328, 127
      %v2330 = vshll.u32 %v2329, 23
      %v2331 = vor.u32 4788187, %v2330
      %v2332 = vand.u32 2147483647, %v2331
      %v2334 = vcvt.s32.f32 %v2327
      %v2335 = vmul.f32 %v2334, %v2332
      %v2336 = vxor.u32 %v2335, 2147483648
      %v2337 = vsel %vm2254, %v2336, %v2335
      %v2338 = vsub.s32 4, %v2314
      %v2339 = vsel %vm2254, %v2338, %v2314
      %v2340 = vsel %vm2253, %v1626, %v2337
      %v2341 = vsel %vm2253, 0, %v2339
      %v2342 = vcosq.f32.pop %v2340
      %v2343 = vsinq.f32.pop %v2340
      %vm2344 = vweird.f32 %v1626
      %v2345 = vadd.s32 %v2341, 3
      %v2346 = vand.u32 %v2345, 3
      %vm2347 = vcmp.lt.s32.totalorder %v2346, 2
      %vm2348 = vcmp.eq.s32.totalorder %v2346, 0
      %v2349 = vxor.u32 %v2343, 2147483648
      %v2350 = vsel %vm2348, %v2342, %v2349
      %vm2351 = vcmp.eq.s32.totalorder %v2346, 2
      %v2352 = vxor.u32 %v2342, 2147483648
      %v2353 = vsel %vm2351, %v2352, %v2343
      %v2354 = vsel %vm2347, %v2350, %v2353
      %v2355 = vsel %vm2344, nan, %v2354
      %v2356 = vand.u32 2147483647, %v1627
      %vm2357 = vcmp.le.f32.partialorder %v2356, 0.7853982
      %vm2358 = vcmp.lt.s32.totalorder %v1627, 0
      %v2359 = vand.u32 %v1627, 2139095040
      %v2360 = vshrl.u32 %v2359, 23
      %v2361 = vsub.s32 %v2360, 127
      %v2362 = vand.u32 2147483647, %v1627
      %v2363 = vand.u32 %v2362, 8388607
      %v2364 = vor.u32 %v2363, 8388608
      %v2365 = vsub.s32 0, %v2364
      %v2366 = vadd.s32 %v2361, 1
      %vm2367 = vcmp.gt.s32.totalorder %v2366, 0
      %v2368 = vsel %vm2367, %v2366, 0
      %v2369 = vshrl.u32 %v2368, 5
      %v2370 = vand.u32 %v2368, 31
      %v2371 = vsub.s32 32, %v2370
      %v2372 = vshrl.u32 683565275, %v2371
      %v2373 = vshll.u32 683565275, %v2370
      %v2374 = vshrl.u32 2475754826, %v2371
      %v2375 = vor.u32 %v2373, %v2374
      %v2376 = vshll.u32 2475754826, %v2370
      %v2377 = vshrl.u32 2131351028, %v2371
      %v2378 = vor.u32 %v2376, %v2377
      %v2379 = vshll.u32 2131351028, %v2370
      %v2380 = vshrl.u32 2102212464, %v2371
      %v2381 = vor.u32 %v2379, %v2380
      %v2382 = vshll.u32 2102212464, %v2370
      %v2383 = vshrl.u32 920167782, %v2371
      %v2384 = vor.u32 %v2382, %v2383
      %v2385 = vshll.u32 920167782, %v2370
      %v2386 = vshrl.u32 1326507024, %v2371
      %v2387 = vor.u32 %v2385, %v2386
      %vm2388 = vcmp.lt.s32.totalorder %v2369, 1
      %vm2389 = vcmp.lt.s32.totalorder %v2369, 2
      %vm2390 = vcmp.lt.s32.totalorder %v2369, 3
      %vm2391 = vcmp.lt.s32.totalorder %v2369, 4
      %v2392 = vsel %vm2388, %v2372, %v2375
      %v2393 = vsel %vm2391, %v2381, 2102212464
      %v2394 = vsel %vm2390, %v2378, %v2393
      %v2395 = vsel %vm2389, %v2392, %v2394
      %v2396 = vsel %vm2388, %v2375, %v2378
      %v2397 = vsel %vm2391, %v2384, 920167782
      %v2398 = vsel %vm2390, %v2381, %v2397
      %v2399 = vsel %vm2389, %v2396, %v2398
      %v2400 = vsel %vm2388, %v2378, %v2381
      %v2401 = vsel %vm2391, %v2387, 1326507024
      %v2402 = vsel %vm2390, %v2384, %v2401
      %v2403 = vsel %vm2389, %v2400, %v2402
      %v2404 = vshll.u32 %v2364, 8
      %v2405 = vmul.u32.u64.compose %v2404, %v2403
      %v2406 = vextract.low.u32 %v2405
      %v2407 = vextract.high.u32 %v2405
      %v2408 = vmul.u32.u64.compose %v2404, %v2399
      %v2409 = vextract.low.u32 %v2408
      %v2410 = vextract.high.u32 %v2408
      %v2411 = vmul.u32 %v2404, %v2395
      %v2412 = vadd.s32 %v2407, %v2409
      %vm2413 = vc.u32 %v2407, %v2409
      %v2414 = vadd.s32 %v2410, 1
      %v2415 = vsel %vm2413, %v2414, %v2410
      %v2416 = vadd.s32 %v2411, %v2415
      %v2417 = vadd.s32 %v2416, 536870912
      %v2418 = vshrl.u32 %v2417, 30
      %v2419 = vshll.u32 %v2418, 30
      %v2420 = vsub.s32 %v2416, %v2419
      %vm2421 = vcmp.lt.s32.totalorder %v2420, 0
      %v2422 = vsub.s32 0, %v2420
      %v2423 = vsel %vm2421, %v2422, %v2420
      %v2424 = vclz %v2423
      %v2425 = vsub.s32 %v2424, 2
      %vm2426 = vcmp.gt.s32.totalorder 0, %v2425
      %v2427 = vsel %vm2426, 0, %v2425
      %v2428 = vsub.s32 32, %v2427
      %v2429 = vshll.u32 %v2420, %v2427
      %v2430 = vshrl.u32 %v2412, %v2428
      %v2431 = vor.u32 %v2429, %v2430
      %v2432 = vsub.s32 4294967266, %v2427
      %v2433 = vadd.s32 %v2432, 127
      %v2434 = vshll.u32 %v2433, 23
      %v2435 = vor.u32 4788187, %v2434
      %v2436 = vand.u32 2147483647, %v2435
      %v2438 = vcvt.s32.f32 %v2431
      %v2439 = vmul.f32 %v2438, %v2436
      %v2440 = vxor.u32 %v2439, 2147483648
      %v2441 = vsel %vm2358, %v2440, %v2439
      %v2442 = vsub.s32 4, %v2418
      %v2443 = vsel %vm2358, %v2442, %v2418
      %v2444 = vsel %vm2357, %v1627, %v2441
      %v2445 = vsel %vm2357, 0, %v2443
      %v2446 = vcosq.f32.pop %v2444
      %v2447 = vsinq.f32.pop %v2444
      %vm2448 = vweird.f32 %v1627
      %v2449 = vadd.s32 %v2445, 3
      %v2450 = vand.u32 %v2449, 3
      %vm2451 = vcmp.lt.s32.totalorder %v2450, 2
      %vm2452 = vcmp.eq.s32.totalorder %v2450, 0
      %v2453 = vxor.u32 %v2447, 2147483648
      %v2454 = vsel %vm2452, %v2446, %v2453
      %vm2455 = vcmp.eq.s32.totalorder %v2450, 2
      %v2456 = vxor.u32 %v2446, 2147483648
      %v2457 = vsel %vm2455, %v2456, %v2447
      %v2458 = vsel %vm2451, %v2454, %v2457
      %v2459 = vsel %vm2448, nan, %v2458
      %v2460 = vpack.c.bf16 %v1835, %v1731
      %v2461 = vpack.c.bf16 %v2043, %v1939
      %v2462 = vpack.c.bf16 %v2251, %v2147
      %v2463 = vpack.c.bf16 %v2459, %v2355
      %v2464 = vld [vmem:[%s7] sm:$0xf]
      %v2465 = vld [vmem:[%s7 + $0x4] sm:$0xf]
      %v2466 = vld [vmem:[%s7 + $0x8] sm:$0xf]
      %v2467 = vld [vmem:[%s8] sm:$0x1]
      %v2469 = vlaneseq
      %v2470 = vshrl.u32 %v2469, 7
      %v2471 = vsub.s32 0, %v2470
      %v2472 = vrot.slane %v2467, %v2471
      %v2477 = vunpack.c.l.b16 %v2464
      %v2478 = vunpack.c.l.b16 %v2465
      %v2479 = vunpack.c.l.b16 %v2466
      %v2480 = vpack.c.b16 %v2478, %v2477
      %v2481 = vpack.c.b16 %v2479, %v2479
      %vm2483 = vcmask 195584
      %v2485 = vsel %vm2483, %v2460, 0
      %v2488 = vsel %vm2483, %v2461, 0
      %v2491 = vsel %vm2483, %v2462, 0
      %v2494 = vsel %vm2483, %v2463, 0
      %vm2496 = vcmask 1043456
      %v2498 = vsel %vm2496, %v2481, 0
      %2500 = vmatprep.subr.bf16.mxu0 0
      %2501 = vmatpush1.bf16.msra.mxu0 0
      %2502 = vmatprep.subr.bf16.mxu0 0
      %2503 = vmatpush1.bf16.msra.mxu0 0
      %2504 = vmatprep.subr.bf16.mxu0 0
      %2505 = vmatpush1.bf16.msra.mxu0 0
      %2506 = vmatprep.subr.bf16.mxu0 0
      %2507 = vmatpush1.bf16.msra.mxu0 0
      %2508 = vmatprep.subr.bf16.mxu0 0
      %2509 = vmatpush1.bf16.msra.mxu0 0
      %2510 = vmatprep.subr.bf16.mxu0 0
      %2511 = vmatpush1.bf16.msra.mxu0 0
      %2512 = vmatprep.subr.bf16.mxu0 0
      %2513 = vmatpush1.bf16.msra.mxu0 %v2498
      %2514 = vmatprep.subr.bf16.mxu0 0
      %2515 = vmatpush1.bf16.msra.mxu0 %v2480
      %2516 = vmatprep.subr.bf16.mxu0 0
      %2517 = vmatpush2.bf16.msra.mxu0 0
      %2518 = vmatprep.subr.bf16.mxu0 0
      %2519 = vmatpush2.bf16.msra.mxu0 0
      %2520 = vmatprep.subr.bf16.mxu0 0
      %2521 = vmatpush2.bf16.msra.mxu0 0
      %2522 = vmatprep.subr.bf16.mxu0 0
      %2523 = vmatpush2.bf16.msra.mxu0 0
      %2524 = vmatprep.subr.bf16.mxu0 0
      %2525 = vmatpush2.bf16.msra.mxu0 0
      %2526 = vmatprep.subr.bf16.mxu0 0
      %2527 = vmatpush2.bf16.msra.mxu0 0
      %2528 = vmatprep.subr.bf16.mxu0 0
      %2529 = vmatpush2.bf16.msra.mxu0 0
      %2530 = vmatprep.subr.bf16.mxu0 0
      %2531 = vmatpush2.bf16.msra.mxu0 0
      %2532 = vmatprep.mubr.bf16.mxu0 0
      %2533 = vmatmul.mubr.bf16.gmra.mxu0 %v2485
      %v2534 = vpop.f32.mrf.mxu0
      %v2535 = vadd.f32 %v2472, %v2534
      %v2536 = vpop.f32.mrf.mxu0
      %v2537 = vpop.f32.mrf.mxu0
      %v2538 = vadd.f32 %v2472, %v2537
      %v2539 = vpop.f32.mrf.mxu0
      %2540 = vmatprep.mubr.bf16.mxu0 0
      %2541 = vmatmul.mubr.bf16.gmra.mxu0 %v2488
      %v2542 = vpop.f32.mrf.mxu0
      %v2543 = vadd.f32 %v2472, %v2542
      %v2544 = vpop.f32.mrf.mxu0
      %v2545 = vpop.f32.mrf.mxu0
      %v2546 = vadd.f32 %v2472, %v2545
      %v2547 = vpop.f32.mrf.mxu0
      %2548 = vmatprep.mubr.bf16.mxu0 0
      %2549 = vmatmul.mubr.bf16.gmra.mxu0 %v2491
      %v2550 = vpop.f32.mrf.mxu0
      %v2551 = vadd.f32 %v2472, %v2550
      %v2552 = vpop.f32.mrf.mxu0
      %v2553 = vpop.f32.mrf.mxu0
      %v2554 = vadd.f32 %v2472, %v2553
      %v2555 = vpop.f32.mrf.mxu0
      %2556 = vmatprep.mubr.bf16.mxu0 0
      %2557 = vmatmul.mubr.bf16.gmra.mxu0 %v2494
      %v2558 = vpop.f32.mrf.mxu0
      %v2559 = vadd.f32 %v2472, %v2558
      %v2560 = vpop.f32.mrf.mxu0
      %v2561 = vpop.f32.mrf.mxu0
      %v2562 = vadd.f32 %v2472, %v2561
      %v2563 = vpop.f32.mrf.mxu0
      %2564 = vdwg.mxu0
      %v2565 = vmul.f32 %v2535, 0.5
      %v2566 = vmul.f32 %v2538, 0.5
      %v2567 = vmul.f32 %v2543, 0.5
      %v2568 = vmul.f32 %v2546, 0.5
      %v2569 = vmul.f32 %v2551, 0.5
      %v2570 = vmul.f32 %v2554, 0.5
      %v2571 = vmul.f32 %v2559, 0.5
      %v2572 = vmul.f32 %v2562, 0.5
      %v2573 = vmul.f32 %v2535, 0.70710677
      %v2574 = vmul.f32 %v2538, 0.70710677
      %v2575 = vmul.f32 %v2543, 0.70710677
      %v2576 = vmul.f32 %v2546, 0.70710677
      %v2577 = vmul.f32 %v2551, 0.70710677
      %v2578 = vmul.f32 %v2554, 0.70710677
      %v2579 = vmul.f32 %v2559, 0.70710677
      %v2580 = vmul.f32 %v2562, 0.70710677
      %v2581 = vand.u32 2147483647, %v2573
      %v2582 = vand.u32 2147483647, %v2574
      %v2583 = vand.u32 2147483647, %v2575
      %v2584 = vand.u32 2147483647, %v2576
      %v2585 = vand.u32 2147483647, %v2577
      %v2586 = vand.u32 2147483647, %v2578
      %v2587 = vand.u32 2147483647, %v2579
      %v2588 = vand.u32 2147483647, %v2580
      %v2589 = vmul.f32 %v2581, 0.3275911
      %v2590 = vmul.f32 %v2582, 0.3275911
      %v2591 = vmul.f32 %v2583, 0.3275911
      %v2592 = vmul.f32 %v2584, 0.3275911
      %v2593 = vmul.f32 %v2585, 0.3275911
      %v2594 = vmul.f32 %v2586, 0.3275911
      %v2595 = vmul.f32 %v2587, 0.3275911
      %v2596 = vmul.f32 %v2588, 0.3275911
      %v2597 = vadd.f32 %v2589, 1.0
      %v2598 = vadd.f32 %v2590, 1.0
      %v2599 = vadd.f32 %v2591, 1.0
      %v2600 = vadd.f32 %v2592, 1.0
      %v2601 = vadd.f32 %v2593, 1.0
      %v2602 = vadd.f32 %v2594, 1.0
      %v2603 = vadd.f32 %v2595, 1.0
      %v2604 = vadd.f32 %v2596, 1.0
      %v2605 = vrcp.pop %v2597
      %v2606 = vrcp.pop %v2598
      %v2607 = vrcp.pop %v2599
      %v2608 = vrcp.pop %v2600
      %v2609 = vrcp.pop %v2601
      %v2610 = vrcp.pop %v2602
      %v2611 = vrcp.pop %v2603
      %v2612 = vrcp.pop %v2604
      %v2613 = vmul.f32 %v2605, 1.0614054
      %v2614 = vmul.f32 %v2606, 1.0614054
      %v2615 = vmul.f32 %v2607, 1.0614054
      %v2616 = vmul.f32 %v2608, 1.0614054
      %v2617 = vmul.f32 %v2609, 1.0614054
      %v2618 = vmul.f32 %v2610, 1.0614054
      %v2619 = vmul.f32 %v2611, 1.0614054
      %v2620 = vmul.f32 %v2612, 1.0614054
      %v2621 = vadd.f32 %v2613, -1.4531521
      %v2622 = vadd.f32 %v2614, -1.4531521
      %v2623 = vadd.f32 %v2615, -1.4531521
      %v2624 = vadd.f32 %v2616, -1.4531521
      %v2625 = vadd.f32 %v2617, -1.4531521
      %v2626 = vadd.f32 %v2618, -1.4531521
      %v2627 = vadd.f32 %v2619, -1.4531521
      %v2628 = vadd.f32 %v2620, -1.4531521
      %v2629 = vmul.f32 %v2621, %v2605
      %v2630 = vmul.f32 %v2622, %v2606
      %v2631 = vmul.f32 %v2623, %v2607
      %v2632 = vmul.f32 %v2624, %v2608
      %v2633 = vmul.f32 %v2625, %v2609
      %v2634 = vmul.f32 %v2626, %v2610
      %v2635 = vmul.f32 %v2627, %v2611
      %v2636 = vmul.f32 %v2628, %v2612
      %v2637 = vadd.f32 %v2629, 1.4214138
      %v2638 = vadd.f32 %v2630, 1.4214138
      %v2639 = vadd.f32 %v2631, 1.4214138
      %v2640 = vadd.f32 %v2632, 1.4214138
      %v2641 = vadd.f32 %v2633, 1.4214138
      %v2642 = vadd.f32 %v2634, 1.4214138
      %v2643 = vadd.f32 %v2635, 1.4214138
      %v2644 = vadd.f32 %v2636, 1.4214138
      %v2645 = vmul.f32 %v2637, %v2605
      %v2646 = vmul.f32 %v2638, %v2606
      %v2647 = vmul.f32 %v2639, %v2607
      %v2648 = vmul.f32 %v2640, %v2608
      %v2649 = vmul.f32 %v2641, %v2609
      %v2650 = vmul.f32 %v2642, %v2610
      %v2651 = vmul.f32 %v2643, %v2611
      %v2652 = vmul.f32 %v2644, %v2612
      %v2653 = vadd.f32 %v2645, -0.28449672
      %v2654 = vadd.f32 %v2646, -0.28449672
      %v2655 = vadd.f32 %v2647, -0.28449672
      %v2656 = vadd.f32 %v2648, -0.28449672
      %v2657 = vadd.f32 %v2649, -0.28449672
      %v2658 = vadd.f32 %v2650, -0.28449672
      %v2659 = vadd.f32 %v2651, -0.28449672
      %v2660 = vadd.f32 %v2652, -0.28449672
      %v2661 = vmul.f32 %v2653, %v2605
      %v2662 = vmul.f32 %v2654, %v2606
      %v2663 = vmul.f32 %v2655, %v2607
      %v2664 = vmul.f32 %v2656, %v2608
      %v2665 = vmul.f32 %v2657, %v2609
      %v2666 = vmul.f32 %v2658, %v2610
      %v2667 = vmul.f32 %v2659, %v2611
      %v2668 = vmul.f32 %v2660, %v2612
      %v2669 = vadd.f32 %v2661, 0.2548296
      %v2670 = vadd.f32 %v2662, 0.2548296
      %v2671 = vadd.f32 %v2663, 0.2548296
      %v2672 = vadd.f32 %v2664, 0.2548296
      %v2673 = vadd.f32 %v2665, 0.2548296
      %v2674 = vadd.f32 %v2666, 0.2548296
      %v2675 = vadd.f32 %v2667, 0.2548296
      %v2676 = vadd.f32 %v2668, 0.2548296
      %v2677 = vmul.f32 %v2669, %v2605
      %v2678 = vmul.f32 %v2670, %v2606
      %v2679 = vmul.f32 %v2671, %v2607
      %v2680 = vmul.f32 %v2672, %v2608
      %v2681 = vmul.f32 %v2673, %v2609
      %v2682 = vmul.f32 %v2674, %v2610
      %v2683 = vmul.f32 %v2675, %v2611
      %v2684 = vmul.f32 %v2676, %v2612
      %v2685 = vsub.f32 0.0, %v2581
      %v2686 = vsub.f32 0.0, %v2582
      %v2687 = vsub.f32 0.0, %v2583
      %v2688 = vsub.f32 0.0, %v2584
      %v2689 = vsub.f32 0.0, %v2585
      %v2690 = vsub.f32 0.0, %v2586
      %v2691 = vsub.f32 0.0, %v2587
      %v2692 = vsub.f32 0.0, %v2588
      %v2693 = vmul.f32 %v2685, %v2581
      %v2694 = vmul.f32 %v2686, %v2582
      %v2695 = vmul.f32 %v2687, %v2583
      %v2696 = vmul.f32 %v2688, %v2584
      %v2697 = vmul.f32 %v2689, %v2585
      %v2698 = vmul.f32 %v2690, %v2586
      %v2699 = vmul.f32 %v2691, %v2587
      %v2700 = vmul.f32 %v2692, %v2588
      %v2701 = vmul.f32 %v2693, 1.442695
      %v2702 = vpow.pop %v2701
      %v2703 = vmul.f32 %v2694, 1.442695
      %v2704 = vpow.pop %v2703
      %v2705 = vmul.f32 %v2695, 1.442695
      %v2706 = vpow.pop %v2705
      %v2707 = vmul.f32 %v2696, 1.442695
      %v2708 = vpow.pop %v2707
      %v2709 = vmul.f32 %v2697, 1.442695
      %v2710 = vpow.pop %v2709
      %v2711 = vmul.f32 %v2698, 1.442695
      %v2712 = vpow.pop %v2711
      %v2713 = vmul.f32 %v2699, 1.442695
      %v2714 = vpow.pop %v2713
      %v2715 = vmul.f32 %v2700, 1.442695
      %v2716 = vpow.pop %v2715
      %v2717 = vmul.f32 %v2677, %v2702
      %v2718 = vmul.f32 %v2678, %v2704
      %v2719 = vmul.f32 %v2679, %v2706
      %v2720 = vmul.f32 %v2680, %v2708
      %v2721 = vmul.f32 %v2681, %v2710
      %v2722 = vmul.f32 %v2682, %v2712
      %v2723 = vmul.f32 %v2683, %v2714
      %v2724 = vmul.f32 %v2684, %v2716
      %v2725 = vsub.f32 1.0, %v2717
      %v2726 = vsub.f32 1.0, %v2718
      %v2727 = vsub.f32 1.0, %v2719
      %v2728 = vsub.f32 1.0, %v2720
      %v2729 = vsub.f32 1.0, %v2721
      %v2730 = vsub.f32 1.0, %v2722
      %v2731 = vsub.f32 1.0, %v2723
      %v2732 = vsub.f32 1.0, %v2724
      %vm2733 = vcmp.lt.f32.partialorder %v2573, 0.0
      %vm2734 = vcmp.lt.f32.partialorder %v2574, 0.0
      %vm2735 = vcmp.lt.f32.partialorder %v2575, 0.0
      %vm2736 = vcmp.lt.f32.partialorder %v2576, 0.0
      %vm2737 = vcmp.lt.f32.partialorder %v2577, 0.0
      %vm2738 = vcmp.lt.f32.partialorder %v2578, 0.0
      %vm2739 = vcmp.lt.f32.partialorder %v2579, 0.0
      %vm2740 = vcmp.lt.f32.partialorder %v2580, 0.0
      %v2741 = vsub.f32 0.0, %v2725
      %v2742 = vsub.f32 0.0, %v2726
      %v2743 = vsub.f32 0.0, %v2727
      %v2744 = vsub.f32 0.0, %v2728
      %v2745 = vsub.f32 0.0, %v2729
      %v2746 = vsub.f32 0.0, %v2730
      %v2747 = vsub.f32 0.0, %v2731
      %v2748 = vsub.f32 0.0, %v2732
      %v2749 = vsel %vm2733, %v2741, %v2725
      %v2750 = vsel %vm2734, %v2742, %v2726
      %v2751 = vsel %vm2735, %v2743, %v2727
      %v2752 = vsel %vm2736, %v2744, %v2728
      %v2753 = vsel %vm2737, %v2745, %v2729
      %v2754 = vsel %vm2738, %v2746, %v2730
      %v2755 = vsel %vm2739, %v2747, %v2731
      %v2756 = vsel %vm2740, %v2748, %v2732
      %v2757 = vadd.f32 %v2749, 1.0
      %v2758 = vadd.f32 %v2750, 1.0
      %v2759 = vadd.f32 %v2751, 1.0
      %v2760 = vadd.f32 %v2752, 1.0
      %v2761 = vadd.f32 %v2753, 1.0
      %v2762 = vadd.f32 %v2754, 1.0
      %v2763 = vadd.f32 %v2755, 1.0
      %v2764 = vadd.f32 %v2756, 1.0
      %v2765 = vmul.f32 %v2565, %v2757
      %v2766 = vmul.f32 %v2566, %v2758
      %v2767 = vmul.f32 %v2567, %v2759
      %v2768 = vmul.f32 %v2568, %v2760
      %v2769 = vmul.f32 %v2569, %v2761
      %v2770 = vmul.f32 %v2570, %v2762
      %v2771 = vmul.f32 %v2571, %v2763
      %v2772 = vmul.f32 %v2572, %v2764
      %v2773 = vpack.c.bf16 %v2766, %v2765
      %v2774 = vpack.c.bf16 %v2768, %v2767
      %v2775 = vpack.c.bf16 %v2770, %v2769
      %v2776 = vpack.c.bf16 %v2772, %v2771
      %v2777 = vld [vmem:[%s9] sm:$0xf]
      %v2778 = vld [vmem:[%s9 + $0x4] sm:$0xf]
      %v2779 = vld [vmem:[%s9 + $0x8] sm:$0xf]
      %v2780 = vld [vmem:[%s9 + $0xc] sm:$0xf]
      %v2781 = vld [vmem:[%s9 + $0x10] sm:$0xf]
      %v2782 = vld [vmem:[%s9 + $0x14] sm:$0xf]
      %v2783 = vld [vmem:[%s9 + $0x18] sm:$0xf]
      %v2784 = vld [vmem:[%s9 + $0x1c] sm:$0xf]
      %v2785 = vld [vmem:[%s9 + $0x20] sm:$0xf]
      %v2786 = vld [vmem:[%s9 + $0x24] sm:$0xf]
      %v2787 = vld [vmem:[%s9 + $0x28] sm:$0xf]
      %v2788 = vld [vmem:[%s9 + $0x2c] sm:$0xf]
      %v2789 = vld [vmem:[%s9 + $0x30] sm:$0xf]
      %v2790 = vld [vmem:[%s9 + $0x34] sm:$0xf]
      %v2791 = vld [vmem:[%s9 + $0x38] sm:$0xf]
      %v2792 = vld [vmem:[%s9 + $0x3c] sm:$0xf]
      %v2793 = vld [vmem:[%s10] sm:$0x1]
      %v2795 = vlaneseq
      %v2796 = vshrl.u32 %v2795, 7
      %v2797 = vsub.s32 0, %v2796
      %v2798 = vrot.slane %v2793, %v2797
      %v2816 = vunpack.c.l.b16 %v2777
      %v2817 = vunpack.c.l.b16 %v2778
      %v2818 = vunpack.c.l.b16 %v2779
      %v2819 = vunpack.c.l.b16 %v2780
      %v2820 = vunpack.c.l.b16 %v2781
      %v2821 = vunpack.c.l.b16 %v2782
      %v2822 = vunpack.c.l.b16 %v2783
      %v2823 = vunpack.c.l.b16 %v2784
      %v2824 = vunpack.c.l.b16 %v2785
      %v2825 = vunpack.c.l.b16 %v2786
      %v2826 = vunpack.c.l.b16 %v2787
      %v2827 = vunpack.c.l.b16 %v2788
      %v2828 = vunpack.c.l.b16 %v2789
      %v2829 = vunpack.c.l.b16 %v2790
      %v2830 = vunpack.c.l.b16 %v2791
      %v2831 = vunpack.c.l.b16 %v2792
      %v2832 = vpack.c.b16 %v2817, %v2816
      %v2833 = vpack.c.b16 %v2819, %v2818
      %v2834 = vpack.c.b16 %v2821, %v2820
      %v2835 = vpack.c.b16 %v2823, %v2822
      %v2836 = vpack.c.b16 %v2825, %v2824
      %v2837 = vpack.c.b16 %v2827, %v2826
      %v2838 = vpack.c.b16 %v2829, %v2828
      %v2839 = vpack.c.b16 %v2831, %v2830
      %2848 = vmatprep.subr.bf16.mxu0 0
      %2849 = vmatpush1.bf16.msra.mxu0 %v2839
      %2850 = vmatprep.subr.bf16.mxu0 0
      %2851 = vmatpush1.bf16.msra.mxu0 %v2838
      %2852 = vmatprep.subr.bf16.mxu0 0
      %2853 = vmatpush1.bf16.msra.mxu0 %v2837
      %2854 = vmatprep.subr.bf16.mxu0 0
      %2855 = vmatpush1.bf16.msra.mxu0 %v2836
      %2856 = vmatprep.subr.bf16.mxu0 0
      %2857 = vmatpush1.bf16.msra.mxu0 %v2835
      %2858 = vmatprep.subr.bf16.mxu0 0
      %2859 = vmatpush1.bf16.msra.mxu0 %v2834
      %2860 = vmatprep.subr.bf16.mxu0 0
      %2861 = vmatpush1.bf16.msra.mxu0 %v2833
      %2862 = vmatprep.subr.bf16.mxu0 0
      %2863 = vmatpush1.bf16.msra.mxu0 %v2832
      %2864 = vmatprep.subr.bf16.mxu0 0
      %2865 = vmatpush2.bf16.msra.mxu0 0
      %2866 = vmatprep.subr.bf16.mxu0 0
      %2867 = vmatpush2.bf16.msra.mxu0 0
      %2868 = vmatprep.subr.bf16.mxu0 0
      %2869 = vmatpush2.bf16.msra.mxu0 0
      %2870 = vmatprep.subr.bf16.mxu0 0
      %2871 = vmatpush2.bf16.msra.mxu0 0
      %2872 = vmatprep.subr.bf16.mxu0 0
      %2873 = vmatpush2.bf16.msra.mxu0 0
      %2874 = vmatprep.subr.bf16.mxu0 0
      %2875 = vmatpush2.bf16.msra.mxu0 0
      %2876 = vmatprep.subr.bf16.mxu0 0
      %2877 = vmatpush2.bf16.msra.mxu0 0
      %2878 = vmatprep.subr.bf16.mxu0 0
      %2879 = vmatpush2.bf16.msra.mxu0 0
      %2880 = vmatprep.mubr.bf16.mxu0 0
      %2881 = vmatmul.mubr.bf16.gmra.mxu0 %v2773
      %v2882 = vpop.f32.mrf.mxu0
      %v2883 = vadd.f32 %v2798, %v2882
      %v2884 = vpop.f32.mrf.mxu0
      %v2885 = vpop.f32.mrf.mxu0
      %v2886 = vadd.f32 %v2798, %v2885
      %v2887 = vpop.f32.mrf.mxu0
      %2888 = vmatprep.mubr.bf16.mxu0 0
      %2889 = vmatmul.mubr.bf16.gmra.mxu0 %v2774
      %v2890 = vpop.f32.mrf.mxu0
      %v2891 = vadd.f32 %v2798, %v2890
      %v2892 = vpop.f32.mrf.mxu0
      %v2893 = vpop.f32.mrf.mxu0
      %v2894 = vadd.f32 %v2798, %v2893
      %v2895 = vpop.f32.mrf.mxu0
      %2896 = vmatprep.mubr.bf16.mxu0 0
      %2897 = vmatmul.mubr.bf16.gmra.mxu0 %v2775
      %v2898 = vpop.f32.mrf.mxu0
      %v2899 = vadd.f32 %v2798, %v2898
      %v2900 = vpop.f32.mrf.mxu0
      %v2901 = vpop.f32.mrf.mxu0
      %v2902 = vadd.f32 %v2798, %v2901
      %v2903 = vpop.f32.mrf.mxu0
      %2904 = vmatprep.mubr.bf16.mxu0 0
      %2905 = vmatmul.mubr.bf16.gmra.mxu0 %v2776
      %v2906 = vpop.f32.mrf.mxu0
      %v2907 = vadd.f32 %v2798, %v2906
      %v2908 = vpop.f32.mrf.mxu0
      %v2909 = vpop.f32.mrf.mxu0
      %v2910 = vadd.f32 %v2798, %v2909
      %v2911 = vpop.f32.mrf.mxu0
      %2912 = vdwg.mxu0
      %v2913 = vadd.f32 %v1582, %v2883
      %v2914 = vadd.f32 %v1583, %v2886
      %v2915 = vadd.f32 %v1584, %v2891
      %v2916 = vadd.f32 %v1585, %v2894
      %v2917 = vadd.f32 %v1586, %v2899
      %v2918 = vadd.f32 %v1587, %v2902
      %v2919 = vadd.f32 %v1588, %v2907
      %v2920 = vadd.f32 %v1589, %v2910
      %v2921 = vmul.f32 %v2913, 0.5
      %v2922 = vmul.f32 %v2914, 0.5
      %v2923 = vmul.f32 %v2915, 0.5
      %v2924 = vmul.f32 %v2916, 0.5
      %v2925 = vmul.f32 %v2917, 0.5
      %v2926 = vmul.f32 %v2918, 0.5
      %v2927 = vmul.f32 %v2919, 0.5
      %v2928 = vmul.f32 %v2920, 0.5
      %v2929 = vmul.f32 %v2913, 0.70710677
      %v2930 = vmul.f32 %v2914, 0.70710677
      %v2931 = vmul.f32 %v2915, 0.70710677
      %v2932 = vmul.f32 %v2916, 0.70710677
      %v2933 = vmul.f32 %v2917, 0.70710677
      %v2934 = vmul.f32 %v2918, 0.70710677
      %v2935 = vmul.f32 %v2919, 0.70710677
      %v2936 = vmul.f32 %v2920, 0.70710677
      %v2937 = vand.u32 2147483647, %v2929
      %v2938 = vand.u32 2147483647, %v2930
      %v2939 = vand.u32 2147483647, %v2931
      %v2940 = vand.u32 2147483647, %v2932
      %v2941 = vand.u32 2147483647, %v2933
      %v2942 = vand.u32 2147483647, %v2934
      %v2943 = vand.u32 2147483647, %v2935
      %v2944 = vand.u32 2147483647, %v2936
      %v2945 = vmul.f32 %v2937, 0.3275911
      %v2946 = vmul.f32 %v2938, 0.3275911
      %v2947 = vmul.f32 %v2939, 0.3275911
      %v2948 = vmul.f32 %v2940, 0.3275911
      %v2949 = vmul.f32 %v2941, 0.3275911
      %v2950 = vmul.f32 %v2942, 0.3275911
      %v2951 = vmul.f32 %v2943, 0.3275911
      %v2952 = vmul.f32 %v2944, 0.3275911
      %v2953 = vadd.f32 %v2945, 1.0
      %v2954 = vadd.f32 %v2946, 1.0
      %v2955 = vadd.f32 %v2947, 1.0
      %v2956 = vadd.f32 %v2948, 1.0
      %v2957 = vadd.f32 %v2949, 1.0
      %v2958 = vadd.f32 %v2950, 1.0
      %v2959 = vadd.f32 %v2951, 1.0
      %v2960 = vadd.f32 %v2952, 1.0
      %v2961 = vrcp.pop %v2953
      %v2962 = vrcp.pop %v2954
      %v2963 = vrcp.pop %v2955
      %v2964 = vrcp.pop %v2956
      %v2965 = vrcp.pop %v2957
      %v2966 = vrcp.pop %v2958
      %v2967 = vrcp.pop %v2959
      %v2968 = vrcp.pop %v2960
      %v2969 = vmul.f32 %v2961, 1.0614054
      %v2970 = vmul.f32 %v2962, 1.0614054
      %v2971 = vmul.f32 %v2963, 1.0614054
      %v2972 = vmul.f32 %v2964, 1.0614054
      %v2973 = vmul.f32 %v2965, 1.0614054
      %v2974 = vmul.f32 %v2966, 1.0614054
      %v2975 = vmul.f32 %v2967, 1.0614054
      %v2976 = vmul.f32 %v2968, 1.0614054
      %v2977 = vadd.f32 %v2969, -1.4531521
      %v2978 = vadd.f32 %v2970, -1.4531521
      %v2979 = vadd.f32 %v2971, -1.4531521
      %v2980 = vadd.f32 %v2972, -1.4531521
      %v2981 = vadd.f32 %v2973, -1.4531521
      %v2982 = vadd.f32 %v2974, -1.4531521
      %v2983 = vadd.f32 %v2975, -1.4531521
      %v2984 = vadd.f32 %v2976, -1.4531521
      %v2985 = vmul.f32 %v2977, %v2961
      %v2986 = vmul.f32 %v2978, %v2962
      %v2987 = vmul.f32 %v2979, %v2963
      %v2988 = vmul.f32 %v2980, %v2964
      %v2989 = vmul.f32 %v2981, %v2965
      %v2990 = vmul.f32 %v2982, %v2966
      %v2991 = vmul.f32 %v2983, %v2967
      %v2992 = vmul.f32 %v2984, %v2968
      %v2993 = vadd.f32 %v2985, 1.4214138
      %v2994 = vadd.f32 %v2986, 1.4214138
      %v2995 = vadd.f32 %v2987, 1.4214138
      %v2996 = vadd.f32 %v2988, 1.4214138
      %v2997 = vadd.f32 %v2989, 1.4214138
      %v2998 = vadd.f32 %v2990, 1.4214138
      %v2999 = vadd.f32 %v2991, 1.4214138
      %v3000 = vadd.f32 %v2992, 1.4214138
      %v3001 = vmul.f32 %v2993, %v2961
      %v3002 = vmul.f32 %v2994, %v2962
      %v3003 = vmul.f32 %v2995, %v2963
      %v3004 = vmul.f32 %v2996, %v2964
      %v3005 = vmul.f32 %v2997, %v2965
      %v3006 = vmul.f32 %v2998, %v2966
      %v3007 = vmul.f32 %v2999, %v2967
      %v3008 = vmul.f32 %v3000, %v2968
      %v3009 = vadd.f32 %v3001, -0.28449672
      %v3010 = vadd.f32 %v3002, -0.28449672
      %v3011 = vadd.f32 %v3003, -0.28449672
      %v3012 = vadd.f32 %v3004, -0.28449672
      %v3013 = vadd.f32 %v3005, -0.28449672
      %v3014 = vadd.f32 %v3006, -0.28449672
      %v3015 = vadd.f32 %v3007, -0.28449672
      %v3016 = vadd.f32 %v3008, -0.28449672
      %v3017 = vmul.f32 %v3009, %v2961
      %v3018 = vmul.f32 %v3010, %v2962
      %v3019 = vmul.f32 %v3011, %v2963
      %v3020 = vmul.f32 %v3012, %v2964
      %v3021 = vmul.f32 %v3013, %v2965
      %v3022 = vmul.f32 %v3014, %v2966
      %v3023 = vmul.f32 %v3015, %v2967
      %v3024 = vmul.f32 %v3016, %v2968
      %v3025 = vadd.f32 %v3017, 0.2548296
      %v3026 = vadd.f32 %v3018, 0.2548296
      %v3027 = vadd.f32 %v3019, 0.2548296
      %v3028 = vadd.f32 %v3020, 0.2548296
      %v3029 = vadd.f32 %v3021, 0.2548296
      %v3030 = vadd.f32 %v3022, 0.2548296
      %v3031 = vadd.f32 %v3023, 0.2548296
      %v3032 = vadd.f32 %v3024, 0.2548296
      %v3033 = vmul.f32 %v3025, %v2961
      %v3034 = vmul.f32 %v3026, %v2962
      %v3035 = vmul.f32 %v3027, %v2963
      %v3036 = vmul.f32 %v3028, %v2964
      %v3037 = vmul.f32 %v3029, %v2965
      %v3038 = vmul.f32 %v3030, %v2966
      %v3039 = vmul.f32 %v3031, %v2967
      %v3040 = vmul.f32 %v3032, %v2968
      %v3041 = vsub.f32 0.0, %v2937
      %v3042 = vsub.f32 0.0, %v2938
      %v3043 = vsub.f32 0.0, %v2939
      %v3044 = vsub.f32 0.0, %v2940
      %v3045 = vsub.f32 0.0, %v2941
      %v3046 = vsub.f32 0.0, %v2942
      %v3047 = vsub.f32 0.0, %v2943
      %v3048 = vsub.f32 0.0, %v2944
      %v3049 = vmul.f32 %v3041, %v2937
      %v3050 = vmul.f32 %v3042, %v2938
      %v3051 = vmul.f32 %v3043, %v2939
      %v3052 = vmul.f32 %v3044, %v2940
      %v3053 = vmul.f32 %v3045, %v2941
      %v3054 = vmul.f32 %v3046, %v2942
      %v3055 = vmul.f32 %v3047, %v2943
      %v3056 = vmul.f32 %v3048, %v2944
      %v3057 = vmul.f32 %v3049, 1.442695
      %v3058 = vpow.pop %v3057
      %v3059 = vmul.f32 %v3050, 1.442695
      %v3060 = vpow.pop %v3059
      %v3061 = vmul.f32 %v3051, 1.442695
      %v3062 = vpow.pop %v3061
      %v3063 = vmul.f32 %v3052, 1.442695
      %v3064 = vpow.pop %v3063
      %v3065 = vmul.f32 %v3053, 1.442695
      %v3066 = vpow.pop %v3065
      %v3067 = vmul.f32 %v3054, 1.442695
      %v3068 = vpow.pop %v3067
      %v3069 = vmul.f32 %v3055, 1.442695
      %v3070 = vpow.pop %v3069
      %v3071 = vmul.f32 %v3056, 1.442695
      %v3072 = vpow.pop %v3071
      %v3073 = vmul.f32 %v3033, %v3058
      %v3074 = vmul.f32 %v3034, %v3060
      %v3075 = vmul.f32 %v3035, %v3062
      %v3076 = vmul.f32 %v3036, %v3064
      %v3077 = vmul.f32 %v3037, %v3066
      %v3078 = vmul.f32 %v3038, %v3068
      %v3079 = vmul.f32 %v3039, %v3070
      %v3080 = vmul.f32 %v3040, %v3072
      %v3081 = vsub.f32 1.0, %v3073
      %v3082 = vsub.f32 1.0, %v3074
      %v3083 = vsub.f32 1.0, %v3075
      %v3084 = vsub.f32 1.0, %v3076
      %v3085 = vsub.f32 1.0, %v3077
      %v3086 = vsub.f32 1.0, %v3078
      %v3087 = vsub.f32 1.0, %v3079
      %v3088 = vsub.f32 1.0, %v3080
      %vm3089 = vcmp.lt.f32.partialorder %v2929, 0.0
      %vm3090 = vcmp.lt.f32.partialorder %v2930, 0.0
      %vm3091 = vcmp.lt.f32.partialorder %v2931, 0.0
      %vm3092 = vcmp.lt.f32.partialorder %v2932, 0.0
      %vm3093 = vcmp.lt.f32.partialorder %v2933, 0.0
      %vm3094 = vcmp.lt.f32.partialorder %v2934, 0.0
      %vm3095 = vcmp.lt.f32.partialorder %v2935, 0.0
      %vm3096 = vcmp.lt.f32.partialorder %v2936, 0.0
      %v3097 = vsub.f32 0.0, %v3081
      %v3098 = vsub.f32 0.0, %v3082
      %v3099 = vsub.f32 0.0, %v3083
      %v3100 = vsub.f32 0.0, %v3084
      %v3101 = vsub.f32 0.0, %v3085
      %v3102 = vsub.f32 0.0, %v3086
      %v3103 = vsub.f32 0.0, %v3087
      %v3104 = vsub.f32 0.0, %v3088
      %v3105 = vsel %vm3089, %v3097, %v3081
      %v3106 = vsel %vm3090, %v3098, %v3082
      %v3107 = vsel %vm3091, %v3099, %v3083
      %v3108 = vsel %vm3092, %v3100, %v3084
      %v3109 = vsel %vm3093, %v3101, %v3085
      %v3110 = vsel %vm3094, %v3102, %v3086
      %v3111 = vsel %vm3095, %v3103, %v3087
      %v3112 = vsel %vm3096, %v3104, %v3088
      %v3113 = vadd.f32 %v3105, 1.0
      %v3114 = vadd.f32 %v3106, 1.0
      %v3115 = vadd.f32 %v3107, 1.0
      %v3116 = vadd.f32 %v3108, 1.0
      %v3117 = vadd.f32 %v3109, 1.0
      %v3118 = vadd.f32 %v3110, 1.0
      %v3119 = vadd.f32 %v3111, 1.0
      %v3120 = vadd.f32 %v3112, 1.0
      %v3121 = vmul.f32 %v2921, %v3113
      %v3122 = vmul.f32 %v2922, %v3114
      %v3123 = vmul.f32 %v2923, %v3115
      %v3124 = vmul.f32 %v2924, %v3116
      %v3125 = vmul.f32 %v2925, %v3117
      %v3126 = vmul.f32 %v2926, %v3118
      %v3127 = vmul.f32 %v2927, %v3119
      %v3128 = vmul.f32 %v2928, %v3120
      %v3129 = vld [vmem:[%s11] sm:$0xf]
      %v3130 = vld [vmem:[%s11 + $0x4] sm:$0x1]
      %v3131 = vld [vmem:[%s12] sm:$0x1]
      %v3133 = vlaneseq
      %v3134 = vshrl.u32 %v3133, 7
      %v3135 = vsub.s32 0, %v3134
      %v3136 = vrot.slane %v3131, %v3135
      %v3140 = vunpack.c.l.b16 %v3129
      %v3141 = vunpack.c.l.b16 %v3130
      %v3142 = vpack.c.b16 %v3141, %v3140
      %v3144 = vsel %vm585, %v3142, 0
      %3146 = vmatprep.subr.bf16.mxu0 0
      %3147 = vmatpush1.bf16.msra.mxu0 0
      %3148 = vmatprep.subr.bf16.mxu0 0
      %3149 = vmatpush1.bf16.msra.mxu0 0
      %3150 = vmatprep.subr.bf16.mxu0 0
      %3151 = vmatpush1.bf16.msra.mxu0 0
      %3152 = vmatprep.subr.bf16.mxu0 0
      %3153 = vmatpush1.bf16.msra.mxu0 0
      %3154 = vmatprep.subr.bf16.mxu0 0
      %3155 = vmatpush1.bf16.msra.mxu0 0
      %3156 = vmatprep.subr.bf16.mxu0 0
      %3157 = vmatpush1.bf16.msra.mxu0 0
      %3158 = vmatprep.subr.bf16.mxu0 0
      %3159 = vmatpush1.bf16.msra.mxu0 0
      %3160 = vmatprep.subr.bf16.mxu0 0
      %3161 = vmatpush1.bf16.msra.mxu0 %v3144
      %3162 = vmatprep.subr.bf16.mxu0 0
      %3163 = vmatpush2.bf16.msra.mxu0 0
      %3164 = vmatprep.subr.bf16.mxu0 0
      %3165 = vmatpush2.bf16.msra.mxu0 0
      %3166 = vmatprep.subr.bf16.mxu0 0
      %3167 = vmatpush2.bf16.msra.mxu0 0
      %3168 = vmatprep.subr.bf16.mxu0 0
      %3169 = vmatpush2.bf16.msra.mxu0 0
      %3170 = vmatprep.subr.bf16.mxu0 0
      %3171 = vmatpush2.bf16.msra.mxu0 0
      %3172 = vmatprep.subr.bf16.mxu0 0
      %3173 = vmatpush2.bf16.msra.mxu0 0
      %3174 = vmatprep.subr.bf16.mxu0 0
      %3175 = vmatpush2.bf16.msra.mxu0 0
      %3176 = vmatprep.subr.bf16.mxu0 0
      %3177 = vmatpush2.bf16.msra.mxu0 0
      %3178 = vmatprep.mubr.bf16.mxu0 0
      %3179 = vmatmul.mubr.bf16.gmra.mxu0 %v991
      %v3180 = vpop.f32.mrf.mxu0
      %v3181 = vadd.f32 %v3136, %v3180
      %v3182 = vpop.f32.mrf.mxu0
      %v3183 = vpop.f32.mrf.mxu0
      %v3184 = vadd.f32 %v3136, %v3183
      %v3185 = vpop.f32.mrf.mxu0
      %3186 = vmatprep.mubr.bf16.mxu0 0
      %3187 = vmatmul.mubr.bf16.gmra.mxu0 %v994
      %v3188 = vpop.f32.mrf.mxu0
      %v3189 = vadd.f32 %v3136, %v3188
      %v3190 = vpop.f32.mrf.mxu0
      %v3191 = vpop.f32.mrf.mxu0
      %v3192 = vadd.f32 %v3136, %v3191
      %v3193 = vpop.f32.mrf.mxu0
      %3194 = vmatprep.mubr.bf16.mxu0 0
      %3195 = vmatmul.mubr.bf16.gmra.mxu0 %v997
      %v3196 = vpop.f32.mrf.mxu0
      %v3197 = vadd.f32 %v3136, %v3196
      %v3198 = vpop.f32.mrf.mxu0
      %v3199 = vpop.f32.mrf.mxu0
      %v3200 = vadd.f32 %v3136, %v3199
      %v3201 = vpop.f32.mrf.mxu0
      %3202 = vmatprep.mubr.bf16.mxu0 0
      %3203 = vmatmul.mubr.bf16.gmra.mxu0 %v1000
      %v3204 = vpop.f32.mrf.mxu0
      %v3205 = vadd.f32 %v3136, %v3204
      %v3206 = vpop.f32.mrf.mxu0
      %v3207 = vpop.f32.mrf.mxu0
      %v3208 = vadd.f32 %v3136, %v3207
      %v3209 = vpop.f32.mrf.mxu0
      %3210 = vdwg.mxu0
      %v3211 = vadd.f32 %v3121, %v3181
      %v3212 = vadd.f32 %v3122, %v3184
      %v3213 = vadd.f32 %v3123, %v3189
      %v3214 = vadd.f32 %v3124, %v3192
      %v3215 = vadd.f32 %v3125, %v3197
      %v3216 = vadd.f32 %v3126, %v3200
      %v3217 = vadd.f32 %v3127, %v3205
      %v3218 = vadd.f32 %v3128, %v3208
      %v3219 = vpack.c.bf16 %v3212, %v3211
      %v3220 = vpack.c.bf16 %v3214, %v3213
      %v3221 = vpack.c.bf16 %v3216, %v3215
      %v3222 = vpack.c.bf16 %v3218, %v3217
      %v3227 = vunpack.c.l.b16 %v3219
      %v3228 = vunpack.c.h.b16 %v3219
      %v3229 = vunpack.c.l.b16 %v3220
      %v3230 = vunpack.c.h.b16 %v3220
      %v3231 = vunpack.c.l.b16 %v3221
      %v3232 = vunpack.c.h.b16 %v3221
      %v3233 = vunpack.c.l.b16 %v3222
      %v3234 = vunpack.c.h.b16 %v3222
      %v3235 = vpack.c.b16 %v3227, %v3227
      %v3236 = vpack.c.b16 %v3228, %v3228
      %v3237 = vpack.c.b16 %v3229, %v3229
      %v3238 = vpack.c.b16 %v3230, %v3230
      %v3239 = vpack.c.b16 %v3231, %v3231
      %v3240 = vpack.c.b16 %v3232, %v3232
      %v3241 = vpack.c.b16 %v3233, %v3233
      %v3242 = vpack.c.b16 %v3234, %v3234
      %3251 = vst [vmem:[%s462] sm:$0xf] %v3235
      %3252 = vst [vmem:[%s462 + $0x4] sm:$0xf] %v3236
      %3253 = vst [vmem:[%s462 + $0x8] sm:$0xf] %v3237
      %3254 = vst [vmem:[%s462 + $0xc] sm:$0xf] %v3238
      %3255 = vst [vmem:[%s462 + $0x10] sm:$0xf] %v3239
      %3256 = vst [vmem:[%s462 + $0x14] sm:$0xf] %v3240
      %3257 = vst [vmem:[%s462 + $0x18] sm:$0xf] %v3241
      %3258 = vst [vmem:[%s462 + $0x1c] sm:$0xf] %v3242
      %s3259 = smul.u32 8, %s24
      %p3260 = scmp.lt.s32.totalorder %s3259, 15
      %s3261 = scalar_select %p3260, %s3259, 15
      %s3262 = smul.addr %s3261, 4
      %s3263 = scalar_lea.vmem %s13, %s3262
      // Predicated region
      $region73: #{_lambda_.3} parent=71 // pred_check
        %p3264 = pneg %p325
      $region74: #{_lambda_.3} parent=71 // pred_check_branch
        %3266 = sbr.rel (%p3264) target = $region76
      $region75: #{_lambda_.3} parent=71 // pred_region
        %s3267 = smul.u32 8, %s24
      $region76: #{_lambda_.3} parent=71 // pred_fallthru
        _
    $region72: #{_lambda_.3} parent=5 // pred_fallthru
      _
    %p3268 = scmp.le.s32.totalorder 2, %s19
    // Predicated region
    $region77: #{_lambda_.3} parent=5 // pred_check
      %p3269 = pneg %p3268
    $region78: #{_lambda_.3} parent=5 // pred_check_branch
      %3271 = sbr.rel (%p3269) target = $region80
    $region79: #{_lambda_.3} parent=5 // pred_region
      %s3272 = ssub.s32 %s19, 2
      // Predicated region
      $region81: #{_lambda_.3} parent=79 // pred_check
        %p3273 = pneg %p331
      $region82: #{_lambda_.3} parent=79 // pred_check_branch
        %3275 = sbr.rel (%p3273) target = $region84
      $region83: #{_lambda_.3} parent=79 // pred_region
        %s3276 = smul.u32 8, %s25
        %p3277 = scmp.lt.s32.totalorder %s3276, 15
        %s3278 = scalar_select %p3277, %s3276, 15
        %s3279 = smul.addr %s3278, 4
        %s3280 = scalar_lea.vmem %s13, %s3279
      $region84: #{_lambda_.3} parent=79 // pred_fallthru
        _
    $region80: #{_lambda_.3} parent=5 // pred_fallthru
      _
  $region6: #{_lambda_.3} parent=0 // loop_footer
    %s23 = sadd.s32 1, %s19
  $region7: #{_lambda_.3} parent=0 // loop_footer_branch
    %18 = sbr.rel target = $region3
  $region8: #{_lambda_.3} parent=0 // loop_exit
    _

// kernel: _lambda_.4
$region0: #{_lambda_.4}
  #allocation0 [shape = 'u32[]', space=smem, size = 0x4, offset = 0x4, fixed_abs, tag = 'smem constant byte address 0x4 - core index']
  #allocation1 [shape = 'u32[144,128]{1,0:T(1,128)}', space=vmem, size = 0x12000, scoped, tag = 'internal scratch']
  %s0 = inlined_call_operand.vmem [shape: bf16[2,10,16,128], index: 0, kind: input, shape index: {}]
  %s1 = inlined_call_operand.vmem [shape: f32[128,24], index: 1, kind: input, shape index: {}]
  %s2 = inlined_call_operand.vmem [shape: bf16[9,128,128], index: 2, kind: input, shape index: {}]
  %s3 = inlined_call_operand.vmem [shape: f32[1,128], index: 3, kind: input, shape index: {}]
  %s4 = inlined_call_operand.vmem [shape: f32[1,128], index: 4, kind: input, shape index: {}]
  %s5 = inlined_call_operand.vmem [shape: f32[1,24], index: 5, kind: input, shape index: {}]
  %s6 = inlined_call_operand.vmem [shape: f32[1,24], index: 6, kind: input, shape index: {}]
  %s7 = inlined_call_operand.vmem [shape: bf16[24,128], index: 7, kind: input, shape index: {}]
  %s8 = inlined_call_operand.vmem [shape: f32[1,128], index: 8, kind: input, shape index: {}]
  %s9 = inlined_call_operand.vmem [shape: bf16[128,128], index: 9, kind: input, shape index: {}]
  %s10 = inlined_call_operand.vmem [shape: f32[1,128], index: 10, kind: input, shape index: {}]
  %s11 = inlined_call_operand.vmem [shape: bf16[128,128], index: 11, kind: input, shape index: {}]
  %s12 = inlined_call_operand.vmem [shape: f32[1,128], index: 12, kind: input, shape index: {}]
  %s13 = inlined_call_operand.vmem [shape: bf16[128,128], index: 13, kind: output, shape index: {}]
  %s14 = sld [smem:[#allocation0]]
  $region85: #{_lambda_.4} parent=0
    _
  %s16 = ssub.s32 1, %s14
  %s17 = scalar_select 0, %s16, %s14
  loop: start=0, step=1, limit=4
  $region2: #{_lambda_.4} parent=0 // loop_pre_header
    _
  $region3: #{_lambda_.4} parent=0 // loop_header
    %s19 = sphi 0, %s23
    %p20 = scmp.ge.s32.totalorder %s19, 4
    %s29 = sphi 0, %s31
    %s32 = sphi 0, %s29
    %s33 = sphi 0, %s32
    %s49 = sphi 0, %s33
    %s55 = sphi 0, %s57
    %s58 = sphi 0, %s55
    %s59 = sphi 0, %s58
    %s75 = sphi 0, %s59
    %s79 = sphi 0, %s79
    %s81 = sphi 0, %s79
    %s82 = sphi 0, %s81
    %s96 = sphi 0, %s82
    %s100 = sphi 0, %s100
    %s102 = sphi 0, %s100
    %s103 = sphi 0, %s102
    %s117 = sphi 0, %s103
    %s121 = sphi 0, %s121
    %s123 = sphi 0, %s121
    %s124 = sphi 0, %s123
    %s138 = sphi 0, %s124
    %s142 = sphi 0, %s142
    %s144 = sphi 0, %s142
    %s145 = sphi 0, %s144
    %s159 = sphi 0, %s145
    %s163 = sphi 0, %s163
    %s165 = sphi 0, %s163
    %s166 = sphi 0, %s165
    %s180 = sphi 0, %s166
    %s184 = sphi 0, %s184
    %s186 = sphi 0, %s184
    %s187 = sphi 0, %s186
    %s201 = sphi 0, %s187
    %s205 = sphi 0, %s205
    %s207 = sphi 0, %s205
    %s208 = sphi 0, %s207
    %s222 = sphi 0, %s208
    %s226 = sphi 0, %s226
    %s228 = sphi 0, %s226
    %s229 = sphi 0, %s228
    %s243 = sphi 0, %s229
    %s247 = sphi 0, %s247
    %s249 = sphi 0, %s247
    %s250 = sphi 0, %s249
    %s264 = sphi 0, %s250
    %s268 = sphi 0, %s268
    %s270 = sphi 0, %s268
    %s271 = sphi 0, %s270
    %s285 = sphi 0, %s271
    %s289 = sphi 0, %s289
    %s291 = sphi 0, %s289
    %s292 = sphi 0, %s291
    %s306 = sphi 0, %s292
    %s312 = sphi 0, %s314
    %s315 = sphi 0, %s312
    %s316 = sphi 0, %s315
    %s332 = sphi 0, %s316
  $region4: #{_lambda_.4} parent=0 // loop_header_branch
    %22 = sbr.rel (%p20) target = $region8
  $region5: #{_lambda_.4} parent=0 // loop_body
    %s24 = ssub.s32 %s19, 1
    %s25 = ssub.s32 %s19, 2
    %s26 = sadd.s32 %s19, 1
    %s27 = ssub.s32 %s19, %s26
    %p28 = scmp.eq.s32.totalorder %s27, 0
    %s30 = sadd.s32 %s29, 1
    %s31 = scalar_select %p28, %s29, %s30
    %p34 = pneg %p28
    %p35 = scmp.eq.s32.totalorder %s19, 1
    %p36 = por %p34, %p35
    %p37 = scmp.ne.s32.totalorder %s29, %s32
    %p38 = scmp.eq.s32.totalorder %s19, 0
    %p39 = por %p37, %p38
    %p40 = scmp.ne.s32.totalorder %s29, %s32
    %p41 = scmp.eq.s32.totalorder %s24, 1
    %p42 = por %p40, %p41
    %p43 = scmp.ne.s32.totalorder %s32, %s33
    %p44 = scmp.eq.s32.totalorder %s24, 0
    %p45 = por %p43, %p44
    %p46 = scmp.ne.s32.totalorder %s32, %s33
    %p47 = scmp.eq.s32.totalorder %s25, 1
    %p48 = por %p46, %p47
    %p50 = scmp.ne.s32.totalorder %s33, %s49
    %p51 = scmp.eq.s32.totalorder %s25, 0
    %p52 = por %p50, %p51
    %s53 = ssub.s32 %s19, %s26
    %p54 = scmp.eq.s32.totalorder %s53, 0
    %s56 = sadd.s32 %s55, 1
    %s57 = scalar_select %p54, %s55, %s56
    %p60 = pneg %p54
    %p61 = scmp.eq.s32.totalorder %s19, 1
    %p62 = por %p60, %p61
    %p63 = scmp.ne.s32.totalorder %s55, %s58
    %p64 = scmp.eq.s32.totalorder %s19, 0
    %p65 = por %p63, %p64
    %p66 = scmp.ne.s32.totalorder %s55, %s58
    %p67 = scmp.eq.s32.totalorder %s24, 1
    %p68 = por %p66, %p67
    %p69 = scmp.ne.s32.totalorder %s58, %s59
    %p70 = scmp.eq.s32.totalorder %s24, 0
    %p71 = por %p69, %p70
    %p72 = scmp.ne.s32.totalorder %s58, %s59
    %p73 = scmp.eq.s32.totalorder %s25, 1
    %p74 = por %p72, %p73
    %p76 = scmp.ne.s32.totalorder %s59, %s75
    %p77 = scmp.eq.s32.totalorder %s25, 0
    %p78 = por %p76, %p77
    %s80 = sadd.s32 %s79, 1
    %p83 = scmp.eq.s32.totalorder %s19, 1
    %p84 = scmp.ne.s32.totalorder %s79, %s81
    %p85 = scmp.eq.s32.totalorder %s19, 0
    %p86 = por %p84, %p85
    %p87 = scmp.ne.s32.totalorder %s79, %s81
    %p88 = scmp.eq.s32.totalorder %s24, 1
    %p89 = por %p87, %p88
    %p90 = scmp.ne.s32.totalorder %s81, %s82
    %p91 = scmp.eq.s32.totalorder %s24, 0
    %p92 = por %p90, %p91
    %p93 = scmp.ne.s32.totalorder %s81, %s82
    %p94 = scmp.eq.s32.totalorder %s25, 1
    %p95 = por %p93, %p94
    %p97 = scmp.ne.s32.totalorder %s82, %s96
    %p98 = scmp.eq.s32.totalorder %s25, 0
    %p99 = por %p97, %p98
    %s101 = sadd.s32 %s100, 1
    %p104 = scmp.eq.s32.totalorder %s19, 1
    %p105 = scmp.ne.s32.totalorder %s100, %s102
    %p106 = scmp.eq.s32.totalorder %s19, 0
    %p107 = por %p105, %p106
    %p108 = scmp.ne.s32.totalorder %s100, %s102
    %p109 = scmp.eq.s32.totalorder %s24, 1
    %p110 = por %p108, %p109
    %p111 = scmp.ne.s32.totalorder %s102, %s103
    %p112 = scmp.eq.s32.totalorder %s24, 0
    %p113 = por %p111, %p112
    %p114 = scmp.ne.s32.totalorder %s102, %s103
    %p115 = scmp.eq.s32.totalorder %s25, 1
    %p116 = por %p114, %p115
    %p118 = scmp.ne.s32.totalorder %s103, %s117
    %p119 = scmp.eq.s32.totalorder %s25, 0
    %p120 = por %p118, %p119
    %s122 = sadd.s32 %s121, 1
    %p125 = scmp.eq.s32.totalorder %s19, 1
    %p126 = scmp.ne.s32.totalorder %s121, %s123
    %p127 = scmp.eq.s32.totalorder %s19, 0
    %p128 = por %p126, %p127
    %p129 = scmp.ne.s32.totalorder %s121, %s123
    %p130 = scmp.eq.s32.totalorder %s24, 1
    %p131 = por %p129, %p130
    %p132 = scmp.ne.s32.totalorder %s123, %s124
    %p133 = scmp.eq.s32.totalorder %s24, 0
    %p134 = por %p132, %p133
    %p135 = scmp.ne.s32.totalorder %s123, %s124
    %p136 = scmp.eq.s32.totalorder %s25, 1
    %p137 = por %p135, %p136
    %p139 = scmp.ne.s32.totalorder %s124, %s138
    %p140 = scmp.eq.s32.totalorder %s25, 0
    %p141 = por %p139, %p140
    %s143 = sadd.s32 %s142, 1
    %p146 = scmp.eq.s32.totalorder %s19, 1
    %p147 = scmp.ne.s32.totalorder %s142, %s144
    %p148 = scmp.eq.s32.totalorder %s19, 0
    %p149 = por %p147, %p148
    %p150 = scmp.ne.s32.totalorder %s142, %s144
    %p151 = scmp.eq.s32.totalorder %s24, 1
    %p152 = por %p150, %p151
    %p153 = scmp.ne.s32.totalorder %s144, %s145
    %p154 = scmp.eq.s32.totalorder %s24, 0
    %p155 = por %p153, %p154
    %p156 = scmp.ne.s32.totalorder %s144, %s145
    %p157 = scmp.eq.s32.totalorder %s25, 1
    %p158 = por %p156, %p157
    %p160 = scmp.ne.s32.totalorder %s145, %s159
    %p161 = scmp.eq.s32.totalorder %s25, 0
    %p162 = por %p160, %p161
    %s164 = sadd.s32 %s163, 1
    %p167 = scmp.eq.s32.totalorder %s19, 1
    %p168 = scmp.ne.s32.totalorder %s163, %s165
    %p169 = scmp.eq.s32.totalorder %s19, 0
    %p170 = por %p168, %p169
    %p171 = scmp.ne.s32.totalorder %s163, %s165
    %p172 = scmp.eq.s32.totalorder %s24, 1
    %p173 = por %p171, %p172
    %p174 = scmp.ne.s32.totalorder %s165, %s166
    %p175 = scmp.eq.s32.totalorder %s24, 0
    %p176 = por %p174, %p175
    %p177 = scmp.ne.s32.totalorder %s165, %s166
    %p178 = scmp.eq.s32.totalorder %s25, 1
    %p179 = por %p177, %p178
    %p181 = scmp.ne.s32.totalorder %s166, %s180
    %p182 = scmp.eq.s32.totalorder %s25, 0
    %p183 = por %p181, %p182
    %s185 = sadd.s32 %s184, 1
    %p188 = scmp.eq.s32.totalorder %s19, 1
    %p189 = scmp.ne.s32.totalorder %s184, %s186
    %p190 = scmp.eq.s32.totalorder %s19, 0
    %p191 = por %p189, %p190
    %p192 = scmp.ne.s32.totalorder %s184, %s186
    %p193 = scmp.eq.s32.totalorder %s24, 1
    %p194 = por %p192, %p193
    %p195 = scmp.ne.s32.totalorder %s186, %s187
    %p196 = scmp.eq.s32.totalorder %s24, 0
    %p197 = por %p195, %p196
    %p198 = scmp.ne.s32.totalorder %s186, %s187
    %p199 = scmp.eq.s32.totalorder %s25, 1
    %p200 = por %p198, %p199
    %p202 = scmp.ne.s32.totalorder %s187, %s201
    %p203 = scmp.eq.s32.totalorder %s25, 0
    %p204 = por %p202, %p203
    %s206 = sadd.s32 %s205, 1
    %p209 = scmp.eq.s32.totalorder %s19, 1
    %p210 = scmp.ne.s32.totalorder %s205, %s207
    %p211 = scmp.eq.s32.totalorder %s19, 0
    %p212 = por %p210, %p211
    %p213 = scmp.ne.s32.totalorder %s205, %s207
    %p214 = scmp.eq.s32.totalorder %s24, 1
    %p215 = por %p213, %p214
    %p216 = scmp.ne.s32.totalorder %s207, %s208
    %p217 = scmp.eq.s32.totalorder %s24, 0
    %p218 = por %p216, %p217
    %p219 = scmp.ne.s32.totalorder %s207, %s208
    %p220 = scmp.eq.s32.totalorder %s25, 1
    %p221 = por %p219, %p220
    %p223 = scmp.ne.s32.totalorder %s208, %s222
    %p224 = scmp.eq.s32.totalorder %s25, 0
    %p225 = por %p223, %p224
    %s227 = sadd.s32 %s226, 1
    %p230 = scmp.eq.s32.totalorder %s19, 1
    %p231 = scmp.ne.s32.totalorder %s226, %s228
    %p232 = scmp.eq.s32.totalorder %s19, 0
    %p233 = por %p231, %p232
    %p234 = scmp.ne.s32.totalorder %s226, %s228
    %p235 = scmp.eq.s32.totalorder %s24, 1
    %p236 = por %p234, %p235
    %p237 = scmp.ne.s32.totalorder %s228, %s229
    %p238 = scmp.eq.s32.totalorder %s24, 0
    %p239 = por %p237, %p238
    %p240 = scmp.ne.s32.totalorder %s228, %s229
    %p241 = scmp.eq.s32.totalorder %s25, 1
    %p242 = por %p240, %p241
    %p244 = scmp.ne.s32.totalorder %s229, %s243
    %p245 = scmp.eq.s32.totalorder %s25, 0
    %p246 = por %p244, %p245
    %s248 = sadd.s32 %s247, 1
    %p251 = scmp.eq.s32.totalorder %s19, 1
    %p252 = scmp.ne.s32.totalorder %s247, %s249
    %p253 = scmp.eq.s32.totalorder %s19, 0
    %p254 = por %p252, %p253
    %p255 = scmp.ne.s32.totalorder %s247, %s249
    %p256 = scmp.eq.s32.totalorder %s24, 1
    %p257 = por %p255, %p256
    %p258 = scmp.ne.s32.totalorder %s249, %s250
    %p259 = scmp.eq.s32.totalorder %s24, 0
    %p260 = por %p258, %p259
    %p261 = scmp.ne.s32.totalorder %s249, %s250
    %p262 = scmp.eq.s32.totalorder %s25, 1
    %p263 = por %p261, %p262
    %p265 = scmp.ne.s32.totalorder %s250, %s264
    %p266 = scmp.eq.s32.totalorder %s25, 0
    %p267 = por %p265, %p266
    %s269 = sadd.s32 %s268, 1
    %p272 = scmp.eq.s32.totalorder %s19, 1
    %p273 = scmp.ne.s32.totalorder %s268, %s270
    %p274 = scmp.eq.s32.totalorder %s19, 0
    %p275 = por %p273, %p274
    %p276 = scmp.ne.s32.totalorder %s268, %s270
    %p277 = scmp.eq.s32.totalorder %s24, 1
    %p278 = por %p276, %p277
    %p279 = scmp.ne.s32.totalorder %s270, %s271
    %p280 = scmp.eq.s32.totalorder %s24, 0
    %p281 = por %p279, %p280
    %p282 = scmp.ne.s32.totalorder %s270, %s271
    %p283 = scmp.eq.s32.totalorder %s25, 1
    %p284 = por %p282, %p283
    %p286 = scmp.ne.s32.totalorder %s271, %s285
    %p287 = scmp.eq.s32.totalorder %s25, 0
    %p288 = por %p286, %p287
    %s290 = sadd.s32 %s289, 1
    %p293 = scmp.eq.s32.totalorder %s19, 1
    %p294 = scmp.ne.s32.totalorder %s289, %s291
    %p295 = scmp.eq.s32.totalorder %s19, 0
    %p296 = por %p294, %p295
    %p297 = scmp.ne.s32.totalorder %s289, %s291
    %p298 = scmp.eq.s32.totalorder %s24, 1
    %p299 = por %p297, %p298
    %p300 = scmp.ne.s32.totalorder %s291, %s292
    %p301 = scmp.eq.s32.totalorder %s24, 0
    %p302 = por %p300, %p301
    %p303 = scmp.ne.s32.totalorder %s291, %s292
    %p304 = scmp.eq.s32.totalorder %s25, 1
    %p305 = por %p303, %p304
    %p307 = scmp.ne.s32.totalorder %s292, %s306
    %p308 = scmp.eq.s32.totalorder %s25, 0
    %p309 = por %p307, %p308
    %s310 = ssub.s32 %s19, %s26
    %p311 = scmp.eq.s32.totalorder %s310, 0
    %s313 = sadd.s32 %s312, 1
    %s314 = scalar_select %p311, %s312, %s313
    %p317 = pneg %p311
    %p318 = scmp.eq.s32.totalorder %s19, 1
    %p319 = por %p317, %p318
    %p320 = scmp.ne.s32.totalorder %s312, %s315
    %p321 = scmp.eq.s32.totalorder %s19, 0
    %p322 = por %p320, %p321
    %p323 = scmp.ne.s32.totalorder %s312, %s315
    %p324 = scmp.eq.s32.totalorder %s24, 1
    %p325 = por %p323, %p324
    %p326 = scmp.ne.s32.totalorder %s315, %s316
    %p327 = scmp.eq.s32.totalorder %s24, 0
    %p328 = por %p326, %p327
    %p329 = scmp.ne.s32.totalorder %s315, %s316
    %p330 = scmp.eq.s32.totalorder %s25, 1
    %p331 = por %p329, %p330
    %p333 = scmp.ne.s32.totalorder %s316, %s332
    %p334 = scmp.eq.s32.totalorder %s25, 0
    %p335 = por %p333, %p334
    %p336 = scmp.le.s32.totalorder 1, %s19
    %p337 = scmp.lt.s32.totalorder %s19, 3
    %p338 = pnand %p336, %p337
    %p339 = pneg %p338
    // Predicated region
    $region9: #{_lambda_.4} parent=5 // pred_check
      _
    $region10: #{_lambda_.4} parent=5 // pred_check_branch
      %341 = sbr.rel (%p338) target = $region12
    $region11: #{_lambda_.4} parent=5 // pred_region
      %s342 = ssub.s32 %s19, 1
      // Predicated region
      $region13: #{_lambda_.4} parent=11 // pred_check
        %p343 = pneg %p92
      $region14: #{_lambda_.4} parent=11 // pred_check_branch
        %345 = sbr.rel (%p343) target = $region16
      $region15: #{_lambda_.4} parent=11 // pred_region
        _
      $region16: #{_lambda_.4} parent=11 // pred_fallthru
        _
      // Predicated region
      $region17: #{_lambda_.4} parent=11 // pred_check
        %p346 = pneg %p113
      $region18: #{_lambda_.4} parent=11 // pred_check_branch
        %348 = sbr.rel (%p346) target = $region20
      $region19: #{_lambda_.4} parent=11 // pred_region
        _
      $region20: #{_lambda_.4} parent=11 // pred_fallthru
        _
      // Predicated region
      $region21: #{_lambda_.4} parent=11 // pred_check
        %p349 = pneg %p134
      $region22: #{_lambda_.4} parent=11 // pred_check_branch
        %351 = sbr.rel (%p349) target = $region24
      $region23: #{_lambda_.4} parent=11 // pred_region
        _
      $region24: #{_lambda_.4} parent=11 // pred_fallthru
        _
      // Predicated region
      $region25: #{_lambda_.4} parent=11 // pred_check
        %p352 = pneg %p155
      $region26: #{_lambda_.4} parent=11 // pred_check_branch
        %354 = sbr.rel (%p352) target = $region28
      $region27: #{_lambda_.4} parent=11 // pred_region
        _
      $region28: #{_lambda_.4} parent=11 // pred_fallthru
        _
      // Predicated region
      $region29: #{_lambda_.4} parent=11 // pred_check
        %p355 = pneg %p176
      $region30: #{_lambda_.4} parent=11 // pred_check_branch
        %357 = sbr.rel (%p355) target = $region32
      $region31: #{_lambda_.4} parent=11 // pred_region
        _
      $region32: #{_lambda_.4} parent=11 // pred_fallthru
        _
      // Predicated region
      $region33: #{_lambda_.4} parent=11 // pred_check
        %p358 = pneg %p197
      $region34: #{_lambda_.4} parent=11 // pred_check_branch
        %360 = sbr.rel (%p358) target = $region36
      $region35: #{_lambda_.4} parent=11 // pred_region
        _
      $region36: #{_lambda_.4} parent=11 // pred_fallthru
        _
      // Predicated region
      $region37: #{_lambda_.4} parent=11 // pred_check
        %p361 = pneg %p218
      $region38: #{_lambda_.4} parent=11 // pred_check_branch
        %363 = sbr.rel (%p361) target = $region40
      $region39: #{_lambda_.4} parent=11 // pred_region
        _
      $region40: #{_lambda_.4} parent=11 // pred_fallthru
        _
      // Predicated region
      $region41: #{_lambda_.4} parent=11 // pred_check
        %p364 = pneg %p239
      $region42: #{_lambda_.4} parent=11 // pred_check_branch
        %366 = sbr.rel (%p364) target = $region44
      $region43: #{_lambda_.4} parent=11 // pred_region
        _
      $region44: #{_lambda_.4} parent=11 // pred_fallthru
        _
      // Predicated region
      $region45: #{_lambda_.4} parent=11 // pred_check
        %p367 = pneg %p260
      $region46: #{_lambda_.4} parent=11 // pred_check_branch
        %369 = sbr.rel (%p367) target = $region48
      $region47: #{_lambda_.4} parent=11 // pred_region
        _
      $region48: #{_lambda_.4} parent=11 // pred_fallthru
        _
      // Predicated region
      $region49: #{_lambda_.4} parent=11 // pred_check
        %p370 = pneg %p281
      $region50: #{_lambda_.4} parent=11 // pred_check_branch
        %372 = sbr.rel (%p370) target = $region52
      $region51: #{_lambda_.4} parent=11 // pred_region
        _
      $region52: #{_lambda_.4} parent=11 // pred_fallthru
        _
      // Predicated region
      $region53: #{_lambda_.4} parent=11 // pred_check
        %p373 = pneg %p302
      $region54: #{_lambda_.4} parent=11 // pred_check_branch
        %375 = sbr.rel (%p373) target = $region56
      $region55: #{_lambda_.4} parent=11 // pred_region
        _
      $region56: #{_lambda_.4} parent=11 // pred_fallthru
        _
    $region12: #{_lambda_.4} parent=5 // pred_fallthru
      _
    %p376 = scmp.lt.s32.totalorder %s19, 2
    // Predicated region
    $region57: #{_lambda_.4} parent=5 // pred_check
      %p377 = pneg %p376
    $region58: #{_lambda_.4} parent=5 // pred_check_branch
      %379 = sbr.rel (%p377) target = $region60
    $region59: #{_lambda_.4} parent=5 // pred_region
      // Predicated region
      $region61: #{_lambda_.4} parent=59 // pred_check
        %p380 = pneg %p39
      $region62: #{_lambda_.4} parent=59 // pred_check_branch
        %382 = sbr.rel (%p380) target = $region64
      $region63: #{_lambda_.4} parent=59 // pred_region
        %p383 = scmp.lt.s32.totalorder %s19, 1
        %s384 = scalar_select %p383, %s19, 1
        %s385 = smul.addr %s384, 20
        %s386 = smul.addr %s385, 4
        %s387 = scalar_lea.vmem %s0, %s386
      $region64: #{_lambda_.4} parent=59 // pred_fallthru
        _
      // Predicated region
      $region65: #{_lambda_.4} parent=59 // pred_check
        %p388 = pneg %p65
      $region66: #{_lambda_.4} parent=59 // pred_check_branch
        %390 = sbr.rel (%p388) target = $region68
      $region67: #{_lambda_.4} parent=59 // pred_region
        %s391 = smul.u32 8, %s19
        %p392 = scmp.lt.s32.totalorder %s391, 15
        %s393 = scalar_select %p392, %s391, 15
        %s394 = smul.addr %s393, 8
        %s395 = scalar_lea.vmem %s1, %s394
        %s396 = smul.u32 8, %s19
      $region68: #{_lambda_.4} parent=59 // pred_fallthru
        _
    $region60: #{_lambda_.4} parent=5 // pred_fallthru
      _
    %p397 = scmp.le.s32.totalorder 1, %s19
    %p398 = scmp.lt.s32.totalorder %s19, 3
    %p399 = pnand %p397, %p398
    %p400 = pneg %p399
    // Predicated region
    $region69: #{_lambda_.4} parent=5 // pred_check
      _
    $region70: #{_lambda_.4} parent=5 // pred_check_branch
      %402 = sbr.rel (%p399) target = $region72
    $region71: #{_lambda_.4} parent=5 // pred_region
      %s403 = ssub.s32 %s19, 1
      %p404 = scmp.lt.s32.totalorder %s24, 1
      %s405 = scalar_select %p404, %s24, 1
      %s406 = smul.addr %s405, 20
      %s407 = smul.addr %s406, 4
      %s408 = scalar_lea.vmem %s0, %s407
      %p409 = pneg %p45
      %p410 = pneg %p42
      %s411 = smul.u32 8, %s24
      %p412 = scmp.lt.s32.totalorder %s411, 15
      %s413 = scalar_select %p412, %s411, 15
      %s414 = smul.addr %s413, 8
      %s415 = scalar_lea.vmem %s1, %s414
      %p416 = pneg %p71
      %p417 = pneg %p68
      %p418 = pneg %p92
      %p419 = pneg %p89
      %p420 = pneg %p113
      %p421 = pneg %p110
      %p422 = pneg %p134
      %p423 = pneg %p131
      %p424 = pneg %p155
      %p425 = pneg %p152
      %p426 = pneg %p176
      %p427 = pneg %p173
      %p428 = pneg %p197
      %p429 = pneg %p194
      %p430 = pneg %p218
      %p431 = pneg %p215
      %p432 = pneg %p239
      %p433 = pneg %p236
      %p434 = pneg %p260
      %p435 = pneg %p257
      %p436 = pneg %p281
      %p437 = pneg %p278
      %p438 = pneg %p302
      %p439 = pneg %p299
      %p440 = pneg %p328
      %p441 = pneg %p325
      %s442 = smul.u32 8, %s24
      %p443 = scmp.lt.s32.totalorder %s442, 15
      %s444 = scalar_select %p443, %s442, 15
      %s445 = smul.addr %s444, 4
      %s446 = scalar_lea.vmem %s13, %s445
      %p447 = scmp.lt.s32.totalorder %s24, 1
      %s448 = scalar_select %p447, %s24, 1
      %s449 = smul.addr %s448, 20
      %s450 = smul.addr %s449, 4
      %s451 = scalar_lea.vmem %s0, %s450
      %s452 = smul.u32 8, %s24
      %p453 = scmp.lt.s32.totalorder %s452, 15
      %s454 = scalar_select %p453, %s452, 15
      %s455 = smul.addr %s454, 8
      %s456 = scalar_lea.vmem %s1, %s455
      %s457 = smul.u32 8, %s24
      %s458 = smul.u32 8, %s24
      %p459 = scmp.lt.s32.totalorder %s458, 15
      %s460 = scalar_select %p459, %s458, 15
      %s461 = smul.addr %s460, 4
      %s462 = scalar_lea.vmem %s13, %s461
      %s463 = smul.u32 8, %s24
      %v465 = vld [vmem:[%s451] sm:$0xf]
      %v466 = vld [vmem:[%s451 + $0x4] sm:$0xf]
      %v467 = vld [vmem:[%s451 + $0x8] sm:$0xf]
      %v468 = vld [vmem:[%s451 + $0xc] sm:$0xf]
      %v469 = vld [vmem:[%s451 + $0x10] sm:$0xf]
      %v470 = vld [vmem:[%s451 + $0x14] sm:$0xf]
      %v471 = vld [vmem:[%s451 + $0x18] sm:$0xf]
      %v472 = vld [vmem:[%s451 + $0x1c] sm:$0xf]
      %v473 = vld [vmem:[%s451 + $0x20] sm:$0xf]
      %v474 = vld [vmem:[%s451 + $0x24] sm:$0xf]
      %v475 = vld [vmem:[%s451 + $0x28] sm:$0xf]
      %v476 = vld [vmem:[%s451 + $0x2c] sm:$0xf]
      %v477 = vld [vmem:[%s451 + $0x30] sm:$0xf]
      %v478 = vld [vmem:[%s451 + $0x34] sm:$0xf]
      %v479 = vld [vmem:[%s451 + $0x38] sm:$0xf]
      %v480 = vld [vmem:[%s451 + $0x3c] sm:$0xf]
      %v481 = vld [vmem:[%s451 + $0x40] sm:$0xf]
      %v482 = vld [vmem:[%s451 + $0x44] sm:$0xf]
      %v483 = vld [vmem:[%s451 + $0x48] sm:$0xf]
      %v484 = vld [vmem:[%s451 + $0x4c] sm:$0xf]
      %v485 = vunpack.c.l.bf16 %v465
      %v486 = vunpack.c.l.bf16 %v466
      %v487 = vunpack.c.l.bf16 %v467
      %v488 = vunpack.c.l.bf16 %v468
      %v489 = vunpack.c.l.bf16 %v469
      %v490 = vunpack.c.l.bf16 %v470
      %v491 = vunpack.c.l.bf16 %v471
      %v492 = vunpack.c.l.bf16 %v472
      %v493 = vunpack.c.l.bf16 %v473
      %v494 = vunpack.c.l.bf16 %v474
      %v495 = vunpack.c.l.bf16 %v475
      %v496 = vunpack.c.l.bf16 %v476
      %v497 = vunpack.c.l.bf16 %v477
      %v498 = vunpack.c.l.bf16 %v478
      %v499 = vunpack.c.l.bf16 %v479
      %v500 = vunpack.c.l.bf16 %v480
      %v501 = vunpack.c.l.bf16 %v481
      %v502 = vunpack.c.l.bf16 %v482
      %v503 = vunpack.c.l.bf16 %v483
      %v504 = vunpack.c.l.bf16 %v484
      %v505 = vpack.c.bf16 %v487, %v485
      %v506 = vpack.c.bf16 %v491, %v489
      %v507 = vpack.c.bf16 %v495, %v493
      %v508 = vpack.c.bf16 %v499, %v497
      %v509 = vld [vmem:[%s2] sm:$0xf]
      %v510 = vld [vmem:[%s2 + $0x4] sm:$0xf]
      %v511 = vld [vmem:[%s2 + $0x8] sm:$0xf]
      %v512 = vld [vmem:[%s2 + $0xc] sm:$0xf]
      %v513 = vld [vmem:[%s2 + $0x10] sm:$0xf]
      %v514 = vld [vmem:[%s2 + $0x14] sm:$0xf]
      %v515 = vld [vmem:[%s2 + $0x18] sm:$0xf]
      %v516 = vld [vmem:[%s2 + $0x1c] sm:$0xf]
      %v517 = vld [vmem:[%s2 + $0x20] sm:$0xf]
      %v518 = vld [vmem:[%s2 + $0x24] sm:$0xf]
      %v519 = vld [vmem:[%s2 + $0x28] sm:$0xf]
      %v520 = vld [vmem:[%s2 + $0x2c] sm:$0xf]
      %v521 = vld [vmem:[%s2 + $0x30] sm:$0xf]
      %v522 = vld [vmem:[%s2 + $0x34] sm:$0xf]
      %v523 = vld [vmem:[%s2 + $0x38] sm:$0xf]
      %v524 = vld [vmem:[%s2 + $0x3c] sm:$0xf]
      %vm541 = vcmask 1046528
      %v542 = vrot.slane %v485, 1
      %v543 = vrot.slane %v486, 1
      %v544 = vsel %vm541, %v542, %v543
      %v545 = vrot.slane %v487, 1
      %v546 = vrot.slane %v488, 1
      %v547 = vsel %vm541, %v545, %v546
      %v548 = vrot.slane %v489, 1
      %v549 = vrot.slane %v490, 1
      %v550 = vsel %vm541, %v548, %v549
      %v551 = vrot.slane %v491, 1
      %v552 = vrot.slane %v492, 1
      %v553 = vsel %vm541, %v551, %v552
      %v554 = vrot.slane %v493, 1
      %v555 = vrot.slane %v494, 1
      %v556 = vsel %vm541, %v554, %v555
      %v557 = vrot.slane %v495, 1
      %v558 = vrot.slane %v496, 1
      %v559 = vsel %vm541, %v557, %v558
      %v560 = vrot.slane %v497, 1
      %v561 = vrot.slane %v498, 1
      %v562 = vsel %vm541, %v560, %v561
      %v563 = vrot.slane %v499, 1
      %v564 = vrot.slane %v500, 1
      %v565 = vsel %vm541, %v563, %v564
      %v574 = vpack.c.bf16 %v547, %v544
      %v575 = vpack.c.bf16 %v553, %v550
      %v576 = vpack.c.bf16 %v559, %v556
      %v577 = vpack.c.bf16 %v565, %v562
      %s578 = scalar_lea.vmem %s2, 64
      %v579 = vld [vmem:[%s578] sm:$0xf]
      %v580 = vld [vmem:[%s578 + $0x4] sm:$0xf]
      %v581 = vld [vmem:[%s578 + $0x8] sm:$0xf]
      %v582 = vld [vmem:[%s578 + $0xc] sm:$0xf]
      %v583 = vld [vmem:[%s578 + $0x10] sm:$0xf]
      %v584 = vld [vmem:[%s578 + $0x14] sm:$0xf]
      %v585 = vld [vmem:[%s578 + $0x18] sm:$0xf]
      %v586 = vld [vmem:[%s578 + $0x1c] sm:$0xf]
      %v587 = vld [vmem:[%s578 + $0x20] sm:$0xf]
      %v588 = vld [vmem:[%s578 + $0x24] sm:$0xf]
      %v589 = vld [vmem:[%s578 + $0x28] sm:$0xf]
      %v590 = vld [vmem:[%s578 + $0x2c] sm:$0xf]
      %v591 = vld [vmem:[%s578 + $0x30] sm:$0xf]
      %v592 = vld [vmem:[%s578 + $0x34] sm:$0xf]
      %v593 = vld [vmem:[%s578 + $0x38] sm:$0xf]
      %v594 = vld [vmem:[%s578 + $0x3c] sm:$0xf]
      %v611 = vunpack.c.l.b16 %v579
      %v612 = vunpack.c.l.b16 %v580
      %v613 = vunpack.c.l.b16 %v581
      %v614 = vunpack.c.l.b16 %v582
      %v615 = vunpack.c.l.b16 %v583
      %v616 = vunpack.c.l.b16 %v584
      %v617 = vunpack.c.l.b16 %v585
      %v618 = vunpack.c.l.b16 %v586
      %v619 = vunpack.c.l.b16 %v587
      %v620 = vunpack.c.l.b16 %v588
      %v621 = vunpack.c.l.b16 %v589
      %v622 = vunpack.c.l.b16 %v590
      %v623 = vunpack.c.l.b16 %v591
      %v624 = vunpack.c.l.b16 %v592
      %v625 = vunpack.c.l.b16 %v593
      %v626 = vunpack.c.l.b16 %v594
      %v627 = vpack.c.b16 %v612, %v611
      %v628 = vpack.c.b16 %v614, %v613
      %v629 = vpack.c.b16 %v616, %v615
      %v630 = vpack.c.b16 %v618, %v617
      %v631 = vpack.c.b16 %v620, %v619
      %v632 = vpack.c.b16 %v622, %v621
      %v633 = vpack.c.b16 %v624, %v623
      %v634 = vpack.c.b16 %v626, %v625
      %643 = vmatprep.subr.bf16.mxu0 0
      %644 = vmatpush1.bf16.msra.mxu0 %v634
      %645 = vmatprep.subr.bf16.mxu0 0
      %646 = vmatpush1.bf16.msra.mxu0 %v633
      %647 = vmatprep.subr.bf16.mxu0 0
      %648 = vmatpush1.bf16.msra.mxu0 %v632
      %649 = vmatprep.subr.bf16.mxu0 0
      %650 = vmatpush1.bf16.msra.mxu0 %v631
      %651 = vmatprep.subr.bf16.mxu0 0
      %652 = vmatpush1.bf16.msra.mxu0 %v630
      %653 = vmatprep.subr.bf16.mxu0 0
      %654 = vmatpush1.bf16.msra.mxu0 %v629
      %655 = vmatprep.subr.bf16.mxu0 0
      %656 = vmatpush1.bf16.msra.mxu0 %v628
      %657 = vmatprep.subr.bf16.mxu0 0
      %658 = vmatpush1.bf16.msra.mxu0 %v627
      %659 = vmatprep.subr.bf16.mxu0 0
      %660 = vmatpush2.bf16.msra.mxu0 0
      %661 = vmatprep.subr.bf16.mxu0 0
      %662 = vmatpush2.bf16.msra.mxu0 0
      %663 = vmatprep.subr.bf16.mxu0 0
      %664 = vmatpush2.bf16.msra.mxu0 0
      %665 = vmatprep.subr.bf16.mxu0 0
      %666 = vmatpush2.bf16.msra.mxu0 0
      %667 = vmatprep.subr.bf16.mxu0 0
      %668 = vmatpush2.bf16.msra.mxu0 0
      %669 = vmatprep.subr.bf16.mxu0 0
      %670 = vmatpush2.bf16.msra.mxu0 0
      %671 = vmatprep.subr.bf16.mxu0 0
      %672 = vmatpush2.bf16.msra.mxu0 0
      %673 = vmatprep.subr.bf16.mxu0 0
      %674 = vmatpush2.bf16.msra.mxu0 0
      %675 = vmatprep.mubr.bf16.mxu0 0
      %676 = vmatmul.mubr.bf16.gmra.mxu0 %v574
      %v677 = vpop.f32.mrf.mxu0
      %v678 = vadd.f32 0.0, %v677
      %v679 = vpop.f32.mrf.mxu0
      %v680 = vpop.f32.mrf.mxu0
      %v681 = vadd.f32 0.0, %v680
      %v682 = vpop.f32.mrf.mxu0
      %683 = vmatprep.mubr.bf16.mxu0 0
      %684 = vmatmul.mubr.bf16.gmra.mxu0 %v575
      %v685 = vpop.f32.mrf.mxu0
      %v686 = vadd.f32 0.0, %v685
      %v687 = vpop.f32.mrf.mxu0
      %v688 = vpop.f32.mrf.mxu0
      %v689 = vadd.f32 0.0, %v688
      %v690 = vpop.f32.mrf.mxu0
      %691 = vmatprep.mubr.bf16.mxu0 0
      %692 = vmatmul.mubr.bf16.gmra.mxu0 %v576
      %v693 = vpop.f32.mrf.mxu0
      %v694 = vadd.f32 0.0, %v693
      %v695 = vpop.f32.mrf.mxu0
      %v696 = vpop.f32.mrf.mxu0
      %v697 = vadd.f32 0.0, %v696
      %v698 = vpop.f32.mrf.mxu0
      %699 = vmatprep.mubr.bf16.mxu0 0
      %700 = vmatmul.mubr.bf16.gmra.mxu0 %v577
      %v701 = vpop.f32.mrf.mxu0
      %v702 = vadd.f32 0.0, %v701
      %v703 = vpop.f32.mrf.mxu0
      %v704 = vpop.f32.mrf.mxu0
      %v705 = vadd.f32 0.0, %v704
      %v706 = vpop.f32.mrf.mxu0
      %707 = vdwg.mxu0
      %v724 = vunpack.c.l.b16 %v509
      %v725 = vunpack.c.l.b16 %v510
      %v726 = vunpack.c.l.b16 %v511
      %v727 = vunpack.c.l.b16 %v512
      %v728 = vunpack.c.l.b16 %v513
      %v729 = vunpack.c.l.b16 %v514
      %v730 = vunpack.c.l.b16 %v515
      %v731 = vunpack.c.l.b16 %v516
      %v732 = vunpack.c.l.b16 %v517
      %v733 = vunpack.c.l.b16 %v518
      %v734 = vunpack.c.l.b16 %v519
      %v735 = vunpack.c.l.b16 %v520
      %v736 = vunpack.c.l.b16 %v521
      %v737 = vunpack.c.l.b16 %v522
      %v738 = vunpack.c.l.b16 %v523
      %v739 = vunpack.c.l.b16 %v524
      %v740 = vpack.c.b16 %v725, %v724
      %v741 = vpack.c.b16 %v727, %v726
      %v742 = vpack.c.b16 %v729, %v728
      %v743 = vpack.c.b16 %v731, %v730
      %v744 = vpack.c.b16 %v733, %v732
      %v745 = vpack.c.b16 %v735, %v734
      %v746 = vpack.c.b16 %v737, %v736
      %v747 = vpack.c.b16 %v739, %v738
      %756 = vmatprep.subr.bf16.mxu0 0
      %757 = vmatpush1.bf16.msra.mxu0 %v747
      %758 = vmatprep.subr.bf16.mxu0 0
      %759 = vmatpush1.bf16.msra.mxu0 %v746
      %760 = vmatprep.subr.bf16.mxu0 0
      %761 = vmatpush1.bf16.msra.mxu0 %v745
      %762 = vmatprep.subr.bf16.mxu0 0
      %763 = vmatpush1.bf16.msra.mxu0 %v744
      %764 = vmatprep.subr.bf16.mxu0 0
      %765 = vmatpush1.bf16.msra.mxu0 %v743
      %766 = vmatprep.subr.bf16.mxu0 0
      %767 = vmatpush1.bf16.msra.mxu0 %v742
      %768 = vmatprep.subr.bf16.mxu0 0
      %769 = vmatpush1.bf16.msra.mxu0 %v741
      %770 = vmatprep.subr.bf16.mxu0 0
      %771 = vmatpush1.bf16.msra.mxu0 %v740
      %772 = vmatprep.subr.bf16.mxu0 0
      %773 = vmatpush2.bf16.msra.mxu0 0
      %774 = vmatprep.subr.bf16.mxu0 0
      %775 = vmatpush2.bf16.msra.mxu0 0
      %776 = vmatprep.subr.bf16.mxu0 0
      %777 = vmatpush2.bf16.msra.mxu0 0
      %778 = vmatprep.subr.bf16.mxu0 0
      %779 = vmatpush2.bf16.msra.mxu0 0
      %780 = vmatprep.subr.bf16.mxu0 0
      %781 = vmatpush2.bf16.msra.mxu0 0
      %782 = vmatprep.subr.bf16.mxu0 0
      %783 = vmatpush2.bf16.msra.mxu0 0
      %784 = vmatprep.subr.bf16.mxu0 0
      %785 = vmatpush2.bf16.msra.mxu0 0
      %786 = vmatprep.subr.bf16.mxu0 0
      %787 = vmatpush2.bf16.msra.mxu0 0
      %788 = vmatprep.mubr.bf16.mxu0 0
      %789 = vmatmul.mubr.bf16.gmra.mxu0 %v505
      %v790 = vpop.f32.mrf.mxu0
      %v791 = vadd.f32 %v678, %v790
      %v792 = vpop.f32.mrf.mxu0
      %v793 = vpop.f32.mrf.mxu0
      %v794 = vadd.f32 %v681, %v793
      %v795 = vpop.f32.mrf.mxu0
      %796 = vmatprep.mubr.bf16.mxu0 0
      %797 = vmatmul.mubr.bf16.gmra.mxu0 %v506
      %v798 = vpop.f32.mrf.mxu0
      %v799 = vadd.f32 %v686, %v798
      %v800 = vpop.f32.mrf.mxu0
      %v801 = vpop.f32.mrf.mxu0
      %v802 = vadd.f32 %v689, %v801
      %v803 = vpop.f32.mrf.mxu0
      %804 = vmatprep.mubr.bf16.mxu0 0
      %805 = vmatmul.mubr.bf16.gmra.mxu0 %v507
      %v806 = vpop.f32.mrf.mxu0
      %v807 = vadd.f32 %v694, %v806
      %v808 = vpop.f32.mrf.mxu0
      %v809 = vpop.f32.mrf.mxu0
      %v810 = vadd.f32 %v697, %v809
      %v811 = vpop.f32.mrf.mxu0
      %812 = vmatprep.mubr.bf16.mxu0 0
      %813 = vmatmul.mubr.bf16.gmra.mxu0 %v508
      %v814 = vpop.f32.mrf.mxu0
      %v815 = vadd.f32 %v702, %v814
      %v816 = vpop.f32.mrf.mxu0
      %v817 = vpop.f32.mrf.mxu0
      %v818 = vadd.f32 %v705, %v817
      %v819 = vpop.f32.mrf.mxu0
      %820 = vdwg.mxu0
      %vm821 = vcmask 1045504
      %v822 = vrot.slane %v485, 2
      %v823 = vrot.slane %v486, 2
      %v824 = vsel %vm821, %v822, %v823
      %v825 = vrot.slane %v487, 2
      %v826 = vrot.slane %v488, 2
      %v827 = vsel %vm821, %v825, %v826
      %v828 = vrot.slane %v489, 2
      %v829 = vrot.slane %v490, 2
      %v830 = vsel %vm821, %v828, %v829
      %v831 = vrot.slane %v491, 2
      %v832 = vrot.slane %v492, 2
      %v833 = vsel %vm821, %v831, %v832
      %v834 = vrot.slane %v493, 2
      %v835 = vrot.slane %v494, 2
      %v836 = vsel %vm821, %v834, %v835
      %v837 = vrot.slane %v495, 2
      %v838 = vrot.slane %v496, 2
      %v839 = vsel %vm821, %v837, %v838
      %v840 = vrot.slane %v497, 2
      %v841 = vrot.slane %v498, 2
      %v842 = vsel %vm821, %v840, %v841
      %v843 = vrot.slane %v499, 2
      %v844 = vrot.slane %v500, 2
      %v845 = vsel %vm821, %v843, %v844
      %v854 = vpack.c.bf16 %v827, %v824
      %v855 = vpack.c.bf16 %v833, %v830
      %v856 = vpack.c.bf16 %v839, %v836
      %v857 = vpack.c.bf16 %v845, %v842
      %s858 = scalar_lea.vmem %s2, 128
      %v859 = vld [vmem:[%s858] sm:$0xf]
      %v860 = vld [vmem:[%s858 + $0x4] sm:$0xf]
      %v861 = vld [vmem:[%s858 + $0x8] sm:$0xf]
      %v862 = vld [vmem:[%s858 + $0xc] sm:$0xf]
      %v863 = vld [vmem:[%s858 + $0x10] sm:$0xf]
      %v864 = vld [vmem:[%s858 + $0x14] sm:$0xf]
      %v865 = vld [vmem:[%s858 + $0x18] sm:$0xf]
      %v866 = vld [vmem:[%s858 + $0x1c] sm:$0xf]
      %v867 = vld [vmem:[%s858 + $0x20] sm:$0xf]
      %v868 = vld [vmem:[%s858 + $0x24] sm:$0xf]
      %v869 = vld [vmem:[%s858 + $0x28] sm:$0xf]
      %v870 = vld [vmem:[%s858 + $0x2c] sm:$0xf]
      %v871 = vld [vmem:[%s858 + $0x30] sm:$0xf]
      %v872 = vld [vmem:[%s858 + $0x34] sm:$0xf]
      %v873 = vld [vmem:[%s858 + $0x38] sm:$0xf]
      %v874 = vld [vmem:[%s858 + $0x3c] sm:$0xf]
      %v891 = vunpack.c.l.b16 %v859
      %v892 = vunpack.c.l.b16 %v860
      %v893 = vunpack.c.l.b16 %v861
      %v894 = vunpack.c.l.b16 %v862
      %v895 = vunpack.c.l.b16 %v863
      %v896 = vunpack.c.l.b16 %v864
      %v897 = vunpack.c.l.b16 %v865
      %v898 = vunpack.c.l.b16 %v866
      %v899 = vunpack.c.l.b16 %v867
      %v900 = vunpack.c.l.b16 %v868
      %v901 = vunpack.c.l.b16 %v869
      %v902 = vunpack.c.l.b16 %v870
      %v903 = vunpack.c.l.b16 %v871
      %v904 = vunpack.c.l.b16 %v872
      %v905 = vunpack.c.l.b16 %v873
      %v906 = vunpack.c.l.b16 %v874
      %v907 = vpack.c.b16 %v892, %v891
      %v908 = vpack.c.b16 %v894, %v893
      %v909 = vpack.c.b16 %v896, %v895
      %v910 = vpack.c.b16 %v898, %v897
      %v911 = vpack.c.b16 %v900, %v899
      %v912 = vpack.c.b16 %v902, %v901
      %v913 = vpack.c.b16 %v904, %v903
      %v914 = vpack.c.b16 %v906, %v905
      %923 = vmatprep.subr.bf16.mxu0 0
      %924 = vmatpush1.bf16.msra.mxu0 %v914
      %925 = vmatprep.subr.bf16.mxu0 0
      %926 = vmatpush1.bf16.msra.mxu0 %v913
      %927 = vmatprep.subr.bf16.mxu0 0
      %928 = vmatpush1.bf16.msra.mxu0 %v912
      %929 = vmatprep.subr.bf16.mxu0 0
      %930 = vmatpush1.bf16.msra.mxu0 %v911
      %931 = vmatprep.subr.bf16.mxu0 0
      %932 = vmatpush1.bf16.msra.mxu0 %v910
      %933 = vmatprep.subr.bf16.mxu0 0
      %934 = vmatpush1.bf16.msra.mxu0 %v909
      %935 = vmatprep.subr.bf16.mxu0 0
      %936 = vmatpush1.bf16.msra.mxu0 %v908
      %937 = vmatprep.subr.bf16.mxu0 0
      %938 = vmatpush1.bf16.msra.mxu0 %v907
      %939 = vmatprep.subr.bf16.mxu0 0
      %940 = vmatpush2.bf16.msra.mxu0 0
      %941 = vmatprep.subr.bf16.mxu0 0
      %942 = vmatpush2.bf16.msra.mxu0 0
      %943 = vmatprep.subr.bf16.mxu0 0
      %944 = vmatpush2.bf16.msra.mxu0 0
      %945 = vmatprep.subr.bf16.mxu0 0
      %946 = vmatpush2.bf16.msra.mxu0 0
      %947 = vmatprep.subr.bf16.mxu0 0
      %948 = vmatpush2.bf16.msra.mxu0 0
      %949 = vmatprep.subr.bf16.mxu0 0
      %950 = vmatpush2.bf16.msra.mxu0 0
      %951 = vmatprep.subr.bf16.mxu0 0
      %952 = vmatpush2.bf16.msra.mxu0 0
      %953 = vmatprep.subr.bf16.mxu0 0
      %954 = vmatpush2.bf16.msra.mxu0 0
      %955 = vmatprep.mubr.bf16.mxu0 0
      %956 = vmatmul.mubr.bf16.gmra.mxu0 %v854
      %v957 = vpop.f32.mrf.mxu0
      %v958 = vadd.f32 0.0, %v957
      %v959 = vpop.f32.mrf.mxu0
      %v960 = vpop.f32.mrf.mxu0
      %v961 = vadd.f32 0.0, %v960
      %v962 = vpop.f32.mrf.mxu0
      %963 = vmatprep.mubr.bf16.mxu0 0
      %964 = vmatmul.mubr.bf16.gmra.mxu0 %v855
      %v965 = vpop.f32.mrf.mxu0
      %v966 = vadd.f32 0.0, %v965
      %v967 = vpop.f32.mrf.mxu0
      %v968 = vpop.f32.mrf.mxu0
      %v969 = vadd.f32 0.0, %v968
      %v970 = vpop.f32.mrf.mxu0
      %971 = vmatprep.mubr.bf16.mxu0 0
      %972 = vmatmul.mubr.bf16.gmra.mxu0 %v856
      %v973 = vpop.f32.mrf.mxu0
      %v974 = vadd.f32 0.0, %v973
      %v975 = vpop.f32.mrf.mxu0
      %v976 = vpop.f32.mrf.mxu0
      %v977 = vadd.f32 0.0, %v976
      %v978 = vpop.f32.mrf.mxu0
      %979 = vmatprep.mubr.bf16.mxu0 0
      %980 = vmatmul.mubr.bf16.gmra.mxu0 %v857
      %v981 = vpop.f32.mrf.mxu0
      %v982 = vadd.f32 0.0, %v981
      %v983 = vpop.f32.mrf.mxu0
      %v984 = vpop.f32.mrf.mxu0
      %v985 = vadd.f32 0.0, %v984
      %v986 = vpop.f32.mrf.mxu0
      %987 = vdwg.mxu0
      %v988 = vadd.f32 %v791, %v958
      %v989 = vadd.f32 %v794, %v961
      %v990 = vadd.f32 %v799, %v966
      %v991 = vadd.f32 %v802, %v969
      %v992 = vadd.f32 %v807, %v974
      %v993 = vadd.f32 %v810, %v977
      %v994 = vadd.f32 %v815, %v982
      %v995 = vadd.f32 %v818, %v985
      %v996 = vpack.c.bf16 %v489, %v487
      %v997 = vpack.c.bf16 %v493, %v491
      %v998 = vpack.c.bf16 %v497, %v495
      %v999 = vpack.c.bf16 %v501, %v499
      %s1000 = scalar_lea.vmem %s2, 192
      %v1001 = vld [vmem:[%s1000] sm:$0xf]
      %v1002 = vld [vmem:[%s1000 + $0x4] sm:$0xf]
      %v1003 = vld [vmem:[%s1000 + $0x8] sm:$0xf]
      %v1004 = vld [vmem:[%s1000 + $0xc] sm:$0xf]
      %v1005 = vld [vmem:[%s1000 + $0x10] sm:$0xf]
      %v1006 = vld [vmem:[%s1000 + $0x14] sm:$0xf]
      %v1007 = vld [vmem:[%s1000 + $0x18] sm:$0xf]
      %v1008 = vld [vmem:[%s1000 + $0x1c] sm:$0xf]
      %v1009 = vld [vmem:[%s1000 + $0x20] sm:$0xf]
      %v1010 = vld [vmem:[%s1000 + $0x24] sm:$0xf]
      %v1011 = vld [vmem:[%s1000 + $0x28] sm:$0xf]
      %v1012 = vld [vmem:[%s1000 + $0x2c] sm:$0xf]
      %v1013 = vld [vmem:[%s1000 + $0x30] sm:$0xf]
      %v1014 = vld [vmem:[%s1000 + $0x34] sm:$0xf]
      %v1015 = vld [vmem:[%s1000 + $0x38] sm:$0xf]
      %v1016 = vld [vmem:[%s1000 + $0x3c] sm:$0xf]
      %v1033 = vunpack.c.l.b16 %v1001
      %v1034 = vunpack.c.l.b16 %v1002
      %v1035 = vunpack.c.l.b16 %v1003
      %v1036 = vunpack.c.l.b16 %v1004
      %v1037 = vunpack.c.l.b16 %v1005
      %v1038 = vunpack.c.l.b16 %v1006
      %v1039 = vunpack.c.l.b16 %v1007
      %v1040 = vunpack.c.l.b16 %v1008
      %v1041 = vunpack.c.l.b16 %v1009
      %v1042 = vunpack.c.l.b16 %v1010
      %v1043 = vunpack.c.l.b16 %v1011
      %v1044 = vunpack.c.l.b16 %v1012
      %v1045 = vunpack.c.l.b16 %v1013
      %v1046 = vunpack.c.l.b16 %v1014
      %v1047 = vunpack.c.l.b16 %v1015
      %v1048 = vunpack.c.l.b16 %v1016
      %v1049 = vpack.c.b16 %v1034, %v1033
      %v1050 = vpack.c.b16 %v1036, %v1035
      %v1051 = vpack.c.b16 %v1038, %v1037
      %v1052 = vpack.c.b16 %v1040, %v1039
      %v1053 = vpack.c.b16 %v1042, %v1041
      %v1054 = vpack.c.b16 %v1044, %v1043
      %v1055 = vpack.c.b16 %v1046, %v1045
      %v1056 = vpack.c.b16 %v1048, %v1047
      %1065 = vmatprep.subr.bf16.mxu0 0
      %1066 = vmatpush1.bf16.msra.mxu0 %v1056
      %1067 = vmatprep.subr.bf16.mxu0 0
      %1068 = vmatpush1.bf16.msra.mxu0 %v1055
      %1069 = vmatprep.subr.bf16.mxu0 0
      %1070 = vmatpush1.bf16.msra.mxu0 %v1054
      %1071 = vmatprep.subr.bf16.mxu0 0
      %1072 = vmatpush1.bf16.msra.mxu0 %v1053
      %1073 = vmatprep.subr.bf16.mxu0 0
      %1074 = vmatpush1.bf16.msra.mxu0 %v1052
      %1075 = vmatprep.subr.bf16.mxu0 0
      %1076 = vmatpush1.bf16.msra.mxu0 %v1051
      %1077 = vmatprep.subr.bf16.mxu0 0
      %1078 = vmatpush1.bf16.msra.mxu0 %v1050
      %1079 = vmatprep.subr.bf16.mxu0 0
      %1080 = vmatpush1.bf16.msra.mxu0 %v1049
      %1081 = vmatprep.subr.bf16.mxu0 0
      %1082 = vmatpush2.bf16.msra.mxu0 0
      %1083 = vmatprep.subr.bf16.mxu0 0
      %1084 = vmatpush2.bf16.msra.mxu0 0
      %1085 = vmatprep.subr.bf16.mxu0 0
      %1086 = vmatpush2.bf16.msra.mxu0 0
      %1087 = vmatprep.subr.bf16.mxu0 0
      %1088 = vmatpush2.bf16.msra.mxu0 0
      %1089 = vmatprep.subr.bf16.mxu0 0
      %1090 = vmatpush2.bf16.msra.mxu0 0
      %1091 = vmatprep.subr.bf16.mxu0 0
      %1092 = vmatpush2.bf16.msra.mxu0 0
      %1093 = vmatprep.subr.bf16.mxu0 0
      %1094 = vmatpush2.bf16.msra.mxu0 0
      %1095 = vmatprep.subr.bf16.mxu0 0
      %1096 = vmatpush2.bf16.msra.mxu0 0
      %1097 = vmatprep.mubr.bf16.mxu0 0
      %1098 = vmatmul.mubr.bf16.gmra.mxu0 %v996
      %v1099 = vpop.f32.mrf.mxu0
      %v1100 = vadd.f32 0.0, %v1099
      %v1101 = vpop.f32.mrf.mxu0
      %v1102 = vpop.f32.mrf.mxu0
      %v1103 = vadd.f32 0.0, %v1102
      %v1104 = vpop.f32.mrf.mxu0
      %1105 = vmatprep.mubr.bf16.mxu0 0
      %1106 = vmatmul.mubr.bf16.gmra.mxu0 %v997
      %v1107 = vpop.f32.mrf.mxu0
      %v1108 = vadd.f32 0.0, %v1107
      %v1109 = vpop.f32.mrf.mxu0
      %v1110 = vpop.f32.mrf.mxu0
      %v1111 = vadd.f32 0.0, %v1110
      %v1112 = vpop.f32.mrf.mxu0
      %1113 = vmatprep.mubr.bf16.mxu0 0
      %1114 = vmatmul.mubr.bf16.gmra.mxu0 %v998
      %v1115 = vpop.f32.mrf.mxu0
      %v1116 = vadd.f32 0.0, %v1115
      %v1117 = vpop.f32.mrf.mxu0
      %v1118 = vpop.f32.mrf.mxu0
      %v1119 = vadd.f32 0.0, %v1118
      %v1120 = vpop.f32.mrf.mxu0
      %1121 = vmatprep.mubr.bf16.mxu0 0
      %1122 = vmatmul.mubr.bf16.gmra.mxu0 %v999
      %v1123 = vpop.f32.mrf.mxu0
      %v1124 = vadd.f32 0.0, %v1123
      %v1125 = vpop.f32.mrf.mxu0
      %v1126 = vpop.f32.mrf.mxu0
      %v1127 = vadd.f32 0.0, %v1126
      %v1128 = vpop.f32.mrf.mxu0
      %1129 = vdwg.mxu0
      %v1130 = vadd.f32 %v988, %v1100
      %v1131 = vadd.f32 %v989, %v1103
      %v1132 = vadd.f32 %v990, %v1108
      %v1133 = vadd.f32 %v991, %v1111
      %v1134 = vadd.f32 %v992, %v1116
      %v1135 = vadd.f32 %v993, %v1119
      %v1136 = vadd.f32 %v994, %v1124
      %v1137 = vadd.f32 %v995, %v1127
      %v1140 = vrot.slane %v501, 1
      %v1141 = vrot.slane %v502, 1
      %v1142 = vsel %vm541, %v1140, %v1141
      %v1144 = vpack.c.bf16 %v550, %v547
      %v1145 = vpack.c.bf16 %v556, %v553
      %v1146 = vpack.c.bf16 %v562, %v559
      %v1147 = vpack.c.bf16 %v1142, %v565
      %s1148 = scalar_lea.vmem %s2, 256
      %v1149 = vld [vmem:[%s1148] sm:$0xf]
      %v1150 = vld [vmem:[%s1148 + $0x4] sm:$0xf]
      %v1151 = vld [vmem:[%s1148 + $0x8] sm:$0xf]
      %v1152 = vld [vmem:[%s1148 + $0xc] sm:$0xf]
      %v1153 = vld [vmem:[%s1148 + $0x10] sm:$0xf]
      %v1154 = vld [vmem:[%s1148 + $0x14] sm:$0xf]
      %v1155 = vld [vmem:[%s1148 + $0x18] sm:$0xf]
      %v1156 = vld [vmem:[%s1148 + $0x1c] sm:$0xf]
      %v1157 = vld [vmem:[%s1148 + $0x20] sm:$0xf]
      %v1158 = vld [vmem:[%s1148 + $0x24] sm:$0xf]
      %v1159 = vld [vmem:[%s1148 + $0x28] sm:$0xf]
      %v1160 = vld [vmem:[%s1148 + $0x2c] sm:$0xf]
      %v1161 = vld [vmem:[%s1148 + $0x30] sm:$0xf]
      %v1162 = vld [vmem:[%s1148 + $0x34] sm:$0xf]
      %v1163 = vld [vmem:[%s1148 + $0x38] sm:$0xf]
      %v1164 = vld [vmem:[%s1148 + $0x3c] sm:$0xf]
      %v1181 = vunpack.c.l.b16 %v1149
      %v1182 = vunpack.c.l.b16 %v1150
      %v1183 = vunpack.c.l.b16 %v1151
      %v1184 = vunpack.c.l.b16 %v1152
      %v1185 = vunpack.c.l.b16 %v1153
      %v1186 = vunpack.c.l.b16 %v1154
      %v1187 = vunpack.c.l.b16 %v1155
      %v1188 = vunpack.c.l.b16 %v1156
      %v1189 = vunpack.c.l.b16 %v1157
      %v1190 = vunpack.c.l.b16 %v1158
      %v1191 = vunpack.c.l.b16 %v1159
      %v1192 = vunpack.c.l.b16 %v1160
      %v1193 = vunpack.c.l.b16 %v1161
      %v1194 = vunpack.c.l.b16 %v1162
      %v1195 = vunpack.c.l.b16 %v1163
      %v1196 = vunpack.c.l.b16 %v1164
      %v1197 = vpack.c.b16 %v1182, %v1181
      %v1198 = vpack.c.b16 %v1184, %v1183
      %v1199 = vpack.c.b16 %v1186, %v1185
      %v1200 = vpack.c.b16 %v1188, %v1187
      %v1201 = vpack.c.b16 %v1190, %v1189
      %v1202 = vpack.c.b16 %v1192, %v1191
      %v1203 = vpack.c.b16 %v1194, %v1193
      %v1204 = vpack.c.b16 %v1196, %v1195
      %1213 = vmatprep.subr.bf16.mxu0 0
      %1214 = vmatpush1.bf16.msra.mxu0 %v1204
      %1215 = vmatprep.subr.bf16.mxu0 0
      %1216 = vmatpush1.bf16.msra.mxu0 %v1203
      %1217 = vmatprep.subr.bf16.mxu0 0
      %1218 = vmatpush1.bf16.msra.mxu0 %v1202
      %1219 = vmatprep.subr.bf16.mxu0 0
      %1220 = vmatpush1.bf16.msra.mxu0 %v1201
      %1221 = vmatprep.subr.bf16.mxu0 0
      %1222 = vmatpush1.bf16.msra.mxu0 %v1200
      %1223 = vmatprep.subr.bf16.mxu0 0
      %1224 = vmatpush1.bf16.msra.mxu0 %v1199
      %1225 = vmatprep.subr.bf16.mxu0 0
      %1226 = vmatpush1.bf16.msra.mxu0 %v1198
      %1227 = vmatprep.subr.bf16.mxu0 0
      %1228 = vmatpush1.bf16.msra.mxu0 %v1197
      %1229 = vmatprep.subr.bf16.mxu0 0
      %1230 = vmatpush2.bf16.msra.mxu0 0
      %1231 = vmatprep.subr.bf16.mxu0 0
      %1232 = vmatpush2.bf16.msra.mxu0 0
      %1233 = vmatprep.subr.bf16.mxu0 0
      %1234 = vmatpush2.bf16.msra.mxu0 0
      %1235 = vmatprep.subr.bf16.mxu0 0
      %1236 = vmatpush2.bf16.msra.mxu0 0
      %1237 = vmatprep.subr.bf16.mxu0 0
      %1238 = vmatpush2.bf16.msra.mxu0 0
      %1239 = vmatprep.subr.bf16.mxu0 0
      %1240 = vmatpush2.bf16.msra.mxu0 0
      %1241 = vmatprep.subr.bf16.mxu0 0
      %1242 = vmatpush2.bf16.msra.mxu0 0
      %1243 = vmatprep.subr.bf16.mxu0 0
      %1244 = vmatpush2.bf16.msra.mxu0 0
      %1245 = vmatprep.mubr.bf16.mxu0 0
      %1246 = vmatmul.mubr.bf16.gmra.mxu0 %v1144
      %v1247 = vpop.f32.mrf.mxu0
      %v1248 = vadd.f32 0.0, %v1247
      %v1249 = vpop.f32.mrf.mxu0
      %v1250 = vpop.f32.mrf.mxu0
      %v1251 = vadd.f32 0.0, %v1250
      %v1252 = vpop.f32.mrf.mxu0
      %1253 = vmatprep.mubr.bf16.mxu0 0
      %1254 = vmatmul.mubr.bf16.gmra.mxu0 %v1145
      %v1255 = vpop.f32.mrf.mxu0
      %v1256 = vadd.f32 0.0, %v1255
      %v1257 = vpop.f32.mrf.mxu0
      %v1258 = vpop.f32.mrf.mxu0
      %v1259 = vadd.f32 0.0, %v1258
      %v1260 = vpop.f32.mrf.mxu0
      %1261 = vmatprep.mubr.bf16.mxu0 0
      %1262 = vmatmul.mubr.bf16.gmra.mxu0 %v1146
      %v1263 = vpop.f32.mrf.mxu0
      %v1264 = vadd.f32 0.0, %v1263
      %v1265 = vpop.f32.mrf.mxu0
      %v1266 = vpop.f32.mrf.mxu0
      %v1267 = vadd.f32 0.0, %v1266
      %v1268 = vpop.f32.mrf.mxu0
      %1269 = vmatprep.mubr.bf16.mxu0 0
      %1270 = vmatmul.mubr.bf16.gmra.mxu0 %v1147
      %v1271 = vpop.f32.mrf.mxu0
      %v1272 = vadd.f32 0.0, %v1271
      %v1273 = vpop.f32.mrf.mxu0
      %v1274 = vpop.f32.mrf.mxu0
      %v1275 = vadd.f32 0.0, %v1274
      %v1276 = vpop.f32.mrf.mxu0
      %1277 = vdwg.mxu0
      %v1278 = vadd.f32 %v1130, %v1248
      %v1279 = vadd.f32 %v1131, %v1251
      %v1280 = vadd.f32 %v1132, %v1256
      %v1281 = vadd.f32 %v1133, %v1259
      %v1282 = vadd.f32 %v1134, %v1264
      %v1283 = vadd.f32 %v1135, %v1267
      %v1284 = vadd.f32 %v1136, %v1272
      %v1285 = vadd.f32 %v1137, %v1275
      %v1286 = vrot.slane %v501, 2
      %v1287 = vrot.slane %v502, 2
      %v1288 = vsel %vm821, %v1286, %v1287
      %v1290 = vpack.c.bf16 %v830, %v827
      %v1291 = vpack.c.bf16 %v836, %v833
      %v1292 = vpack.c.bf16 %v842, %v839
      %v1293 = vpack.c.bf16 %v1288, %v845
      %s1294 = scalar_lea.vmem %s2, 320
      %v1295 = vld [vmem:[%s1294] sm:$0xf]
      %v1296 = vld [vmem:[%s1294 + $0x4] sm:$0xf]
      %v1297 = vld [vmem:[%s1294 + $0x8] sm:$0xf]
      %v1298 = vld [vmem:[%s1294 + $0xc] sm:$0xf]
      %v1299 = vld [vmem:[%s1294 + $0x10] sm:$0xf]
      %v1300 = vld [vmem:[%s1294 + $0x14] sm:$0xf]
      %v1301 = vld [vmem:[%s1294 + $0x18] sm:$0xf]
      %v1302 = vld [vmem:[%s1294 + $0x1c] sm:$0xf]
      %v1303 = vld [vmem:[%s1294 + $0x20] sm:$0xf]
      %v1304 = vld [vmem:[%s1294 + $0x24] sm:$0xf]
      %v1305 = vld [vmem:[%s1294 + $0x28] sm:$0xf]
      %v1306 = vld [vmem:[%s1294 + $0x2c] sm:$0xf]
      %v1307 = vld [vmem:[%s1294 + $0x30] sm:$0xf]
      %v1308 = vld [vmem:[%s1294 + $0x34] sm:$0xf]
      %v1309 = vld [vmem:[%s1294 + $0x38] sm:$0xf]
      %v1310 = vld [vmem:[%s1294 + $0x3c] sm:$0xf]
      %v1327 = vunpack.c.l.b16 %v1295
      %v1328 = vunpack.c.l.b16 %v1296
      %v1329 = vunpack.c.l.b16 %v1297
      %v1330 = vunpack.c.l.b16 %v1298
      %v1331 = vunpack.c.l.b16 %v1299
      %v1332 = vunpack.c.l.b16 %v1300
      %v1333 = vunpack.c.l.b16 %v1301
      %v1334 = vunpack.c.l.b16 %v1302
      %v1335 = vunpack.c.l.b16 %v1303
      %v1336 = vunpack.c.l.b16 %v1304
      %v1337 = vunpack.c.l.b16 %v1305
      %v1338 = vunpack.c.l.b16 %v1306
      %v1339 = vunpack.c.l.b16 %v1307
      %v1340 = vunpack.c.l.b16 %v1308
      %v1341 = vunpack.c.l.b16 %v1309
      %v1342 = vunpack.c.l.b16 %v1310
      %v1343 = vpack.c.b16 %v1328, %v1327
      %v1344 = vpack.c.b16 %v1330, %v1329
      %v1345 = vpack.c.b16 %v1332, %v1331
      %v1346 = vpack.c.b16 %v1334, %v1333
      %v1347 = vpack.c.b16 %v1336, %v1335
      %v1348 = vpack.c.b16 %v1338, %v1337
      %v1349 = vpack.c.b16 %v1340, %v1339
      %v1350 = vpack.c.b16 %v1342, %v1341
      %1359 = vmatprep.subr.bf16.mxu0 0
      %1360 = vmatpush1.bf16.msra.mxu0 %v1350
      %1361 = vmatprep.subr.bf16.mxu0 0
      %1362 = vmatpush1.bf16.msra.mxu0 %v1349
      %1363 = vmatprep.subr.bf16.mxu0 0
      %1364 = vmatpush1.bf16.msra.mxu0 %v1348
      %1365 = vmatprep.subr.bf16.mxu0 0
      %1366 = vmatpush1.bf16.msra.mxu0 %v1347
      %1367 = vmatprep.subr.bf16.mxu0 0
      %1368 = vmatpush1.bf16.msra.mxu0 %v1346
      %1369 = vmatprep.subr.bf16.mxu0 0
      %1370 = vmatpush1.bf16.msra.mxu0 %v1345
      %1371 = vmatprep.subr.bf16.mxu0 0
      %1372 = vmatpush1.bf16.msra.mxu0 %v1344
      %1373 = vmatprep.subr.bf16.mxu0 0
      %1374 = vmatpush1.bf16.msra.mxu0 %v1343
      %1375 = vmatprep.subr.bf16.mxu0 0
      %1376 = vmatpush2.bf16.msra.mxu0 0
      %1377 = vmatprep.subr.bf16.mxu0 0
      %1378 = vmatpush2.bf16.msra.mxu0 0
      %1379 = vmatprep.subr.bf16.mxu0 0
      %1380 = vmatpush2.bf16.msra.mxu0 0
      %1381 = vmatprep.subr.bf16.mxu0 0
      %1382 = vmatpush2.bf16.msra.mxu0 0
      %1383 = vmatprep.subr.bf16.mxu0 0
      %1384 = vmatpush2.bf16.msra.mxu0 0
      %1385 = vmatprep.subr.bf16.mxu0 0
      %1386 = vmatpush2.bf16.msra.mxu0 0
      %1387 = vmatprep.subr.bf16.mxu0 0
      %1388 = vmatpush2.bf16.msra.mxu0 0
      %1389 = vmatprep.subr.bf16.mxu0 0
      %1390 = vmatpush2.bf16.msra.mxu0 0
      %1391 = vmatprep.mubr.bf16.mxu0 0
      %1392 = vmatmul.mubr.bf16.gmra.mxu0 %v1290
      %v1393 = vpop.f32.mrf.mxu0
      %v1394 = vadd.f32 0.0, %v1393
      %v1395 = vpop.f32.mrf.mxu0
      %v1396 = vpop.f32.mrf.mxu0
      %v1397 = vadd.f32 0.0, %v1396
      %v1398 = vpop.f32.mrf.mxu0
      %1399 = vmatprep.mubr.bf16.mxu0 0
      %1400 = vmatmul.mubr.bf16.gmra.mxu0 %v1291
      %v1401 = vpop.f32.mrf.mxu0
      %v1402 = vadd.f32 0.0, %v1401
      %v1403 = vpop.f32.mrf.mxu0
      %v1404 = vpop.f32.mrf.mxu0
      %v1405 = vadd.f32 0.0, %v1404
      %v1406 = vpop.f32.mrf.mxu0
      %1407 = vmatprep.mubr.bf16.mxu0 0
      %1408 = vmatmul.mubr.bf16.gmra.mxu0 %v1292
      %v1409 = vpop.f32.mrf.mxu0
      %v1410 = vadd.f32 0.0, %v1409
      %v1411 = vpop.f32.mrf.mxu0
      %v1412 = vpop.f32.mrf.mxu0
      %v1413 = vadd.f32 0.0, %v1412
      %v1414 = vpop.f32.mrf.mxu0
      %1415 = vmatprep.mubr.bf16.mxu0 0
      %1416 = vmatmul.mubr.bf16.gmra.mxu0 %v1293
      %v1417 = vpop.f32.mrf.mxu0
      %v1418 = vadd.f32 0.0, %v1417
      %v1419 = vpop.f32.mrf.mxu0
      %v1420 = vpop.f32.mrf.mxu0
      %v1421 = vadd.f32 0.0, %v1420
      %v1422 = vpop.f32.mrf.mxu0
      %1423 = vdwg.mxu0
      %v1424 = vadd.f32 %v1278, %v1394
      %v1425 = vadd.f32 %v1279, %v1397
      %v1426 = vadd.f32 %v1280, %v1402
      %v1427 = vadd.f32 %v1281, %v1405
      %v1428 = vadd.f32 %v1282, %v1410
      %v1429 = vadd.f32 %v1283, %v1413
      %v1430 = vadd.f32 %v1284, %v1418
      %v1431 = vadd.f32 %v1285, %v1421
      %v1432 = vpack.c.bf16 %v503, %v501
      %s1433 = scalar_lea.vmem %s2, 384
      %v1434 = vld [vmem:[%s1433] sm:$0xf]
      %v1435 = vld [vmem:[%s1433 + $0x4] sm:$0xf]
      %v1436 = vld [vmem:[%s1433 + $0x8] sm:$0xf]
      %v1437 = vld [vmem:[%s1433 + $0xc] sm:$0xf]
      %v1438 = vld [vmem:[%s1433 + $0x10] sm:$0xf]
      %v1439 = vld [vmem:[%s1433 + $0x14] sm:$0xf]
      %v1440 = vld [vmem:[%s1433 + $0x18] sm:$0xf]
      %v1441 = vld [vmem:[%s1433 + $0x1c] sm:$0xf]
      %v1442 = vld [vmem:[%s1433 + $0x20] sm:$0xf]
      %v1443 = vld [vmem:[%s1433 + $0x24] sm:$0xf]
      %v1444 = vld [vmem:[%s1433 + $0x28] sm:$0xf]
      %v1445 = vld [vmem:[%s1433 + $0x2c] sm:$0xf]
      %v1446 = vld [vmem:[%s1433 + $0x30] sm:$0xf]
      %v1447 = vld [vmem:[%s1433 + $0x34] sm:$0xf]
      %v1448 = vld [vmem:[%s1433 + $0x38] sm:$0xf]
      %v1449 = vld [vmem:[%s1433 + $0x3c] sm:$0xf]
      %v1466 = vunpack.c.l.b16 %v1434
      %v1467 = vunpack.c.l.b16 %v1435
      %v1468 = vunpack.c.l.b16 %v1436
      %v1469 = vunpack.c.l.b16 %v1437
      %v1470 = vunpack.c.l.b16 %v1438
      %v1471 = vunpack.c.l.b16 %v1439
      %v1472 = vunpack.c.l.b16 %v1440
      %v1473 = vunpack.c.l.b16 %v1441
      %v1474 = vunpack.c.l.b16 %v1442
      %v1475 = vunpack.c.l.b16 %v1443
      %v1476 = vunpack.c.l.b16 %v1444
      %v1477 = vunpack.c.l.b16 %v1445
      %v1478 = vunpack.c.l.b16 %v1446
      %v1479 = vunpack.c.l.b16 %v1447
      %v1480 = vunpack.c.l.b16 %v1448
      %v1481 = vunpack.c.l.b16 %v1449
      %v1482 = vpack.c.b16 %v1467, %v1466
      %v1483 = vpack.c.b16 %v1469, %v1468
      %v1484 = vpack.c.b16 %v1471, %v1470
      %v1485 = vpack.c.b16 %v1473, %v1472
      %v1486 = vpack.c.b16 %v1475, %v1474
      %v1487 = vpack.c.b16 %v1477, %v1476
      %v1488 = vpack.c.b16 %v1479, %v1478
      %v1489 = vpack.c.b16 %v1481, %v1480
      %1498 = vmatprep.subr.bf16.mxu0 0
      %1499 = vmatpush1.bf16.msra.mxu0 %v1489
      %1500 = vmatprep.subr.bf16.mxu0 0
      %1501 = vmatpush1.bf16.msra.mxu0 %v1488
      %1502 = vmatprep.subr.bf16.mxu0 0
      %1503 = vmatpush1.bf16.msra.mxu0 %v1487
      %1504 = vmatprep.subr.bf16.mxu0 0
      %1505 = vmatpush1.bf16.msra.mxu0 %v1486
      %1506 = vmatprep.subr.bf16.mxu0 0
      %1507 = vmatpush1.bf16.msra.mxu0 %v1485
      %1508 = vmatprep.subr.bf16.mxu0 0
      %1509 = vmatpush1.bf16.msra.mxu0 %v1484
      %1510 = vmatprep.subr.bf16.mxu0 0
      %1511 = vmatpush1.bf16.msra.mxu0 %v1483
      %1512 = vmatprep.subr.bf16.mxu0 0
      %1513 = vmatpush1.bf16.msra.mxu0 %v1482
      %1514 = vmatprep.subr.bf16.mxu0 0
      %1515 = vmatpush2.bf16.msra.mxu0 0
      %1516 = vmatprep.subr.bf16.mxu0 0
      %1517 = vmatpush2.bf16.msra.mxu0 0
      %1518 = vmatprep.subr.bf16.mxu0 0
      %1519 = vmatpush2.bf16.msra.mxu0 0
      %1520 = vmatprep.subr.bf16.mxu0 0
      %1521 = vmatpush2.bf16.msra.mxu0 0
      %1522 = vmatprep.subr.bf16.mxu0 0
      %1523 = vmatpush2.bf16.msra.mxu0 0
      %1524 = vmatprep.subr.bf16.mxu0 0
      %1525 = vmatpush2.bf16.msra.mxu0 0
      %1526 = vmatprep.subr.bf16.mxu0 0
      %1527 = vmatpush2.bf16.msra.mxu0 0
      %1528 = vmatprep.subr.bf16.mxu0 0
      %1529 = vmatpush2.bf16.msra.mxu0 0
      %1530 = vmatprep.mubr.bf16.mxu0 0
      %1531 = vmatmul.mubr.bf16.gmra.mxu0 %v506
      %v1532 = vpop.f32.mrf.mxu0
      %v1533 = vadd.f32 0.0, %v1532
      %v1534 = vpop.f32.mrf.mxu0
      %v1535 = vpop.f32.mrf.mxu0
      %v1536 = vadd.f32 0.0, %v1535
      %v1537 = vpop.f32.mrf.mxu0
      %1538 = vmatprep.mubr.bf16.mxu0 0
      %1539 = vmatmul.mubr.bf16.gmra.mxu0 %v507
      %v1540 = vpop.f32.mrf.mxu0
      %v1541 = vadd.f32 0.0, %v1540
      %v1542 = vpop.f32.mrf.mxu0
      %v1543 = vpop.f32.mrf.mxu0
      %v1544 = vadd.f32 0.0, %v1543
      %v1545 = vpop.f32.mrf.mxu0
      %1546 = vmatprep.mubr.bf16.mxu0 0
      %1547 = vmatmul.mubr.bf16.gmra.mxu0 %v508
      %v1548 = vpop.f32.mrf.mxu0
      %v1549 = vadd.f32 0.0, %v1548
      %v1550 = vpop.f32.mrf.mxu0
      %v1551 = vpop.f32.mrf.mxu0
      %v1552 = vadd.f32 0.0, %v1551
      %v1553 = vpop.f32.mrf.mxu0
      %1554 = vmatprep.mubr.bf16.mxu0 0
      %1555 = vmatmul.mubr.bf16.gmra.mxu0 %v1432
      %v1556 = vpop.f32.mrf.mxu0
      %v1557 = vadd.f32 0.0, %v1556
      %v1558 = vpop.f32.mrf.mxu0
      %v1559 = vpop.f32.mrf.mxu0
      %v1560 = vadd.f32 0.0, %v1559
      %v1561 = vpop.f32.mrf.mxu0
      %1562 = vdwg.mxu0
      %v1563 = vadd.f32 %v1424, %v1533
      %v1564 = vadd.f32 %v1425, %v1536
      %v1565 = vadd.f32 %v1426, %v1541
      %v1566 = vadd.f32 %v1427, %v1544
      %v1567 = vadd.f32 %v1428, %v1549
      %v1568 = vadd.f32 %v1429, %v1552
      %v1569 = vadd.f32 %v1430, %v1557
      %v1570 = vadd.f32 %v1431, %v1560
      %v1573 = vrot.slane %v503, 1
      %v1574 = vrot.slane %v504, 1
      %v1575 = vsel %vm541, %v1573, %v1574
      %v1577 = vpack.c.bf16 %v1575, %v1142
      %s1578 = scalar_lea.vmem %s2, 448
      %v1579 = vld [vmem:[%s1578] sm:$0xf]
      %v1580 = vld [vmem:[%s1578 + $0x4] sm:$0xf]
      %v1581 = vld [vmem:[%s1578 + $0x8] sm:$0xf]
      %v1582 = vld [vmem:[%s1578 + $0xc] sm:$0xf]
      %v1583 = vld [vmem:[%s1578 + $0x10] sm:$0xf]
      %v1584 = vld [vmem:[%s1578 + $0x14] sm:$0xf]
      %v1585 = vld [vmem:[%s1578 + $0x18] sm:$0xf]
      %v1586 = vld [vmem:[%s1578 + $0x1c] sm:$0xf]
      %v1587 = vld [vmem:[%s1578 + $0x20] sm:$0xf]
      %v1588 = vld [vmem:[%s1578 + $0x24] sm:$0xf]
      %v1589 = vld [vmem:[%s1578 + $0x28] sm:$0xf]
      %v1590 = vld [vmem:[%s1578 + $0x2c] sm:$0xf]
      %v1591 = vld [vmem:[%s1578 + $0x30] sm:$0xf]
      %v1592 = vld [vmem:[%s1578 + $0x34] sm:$0xf]
      %v1593 = vld [vmem:[%s1578 + $0x38] sm:$0xf]
      %v1594 = vld [vmem:[%s1578 + $0x3c] sm:$0xf]
      %v1611 = vunpack.c.l.b16 %v1579
      %v1612 = vunpack.c.l.b16 %v1580
      %v1613 = vunpack.c.l.b16 %v1581
      %v1614 = vunpack.c.l.b16 %v1582
      %v1615 = vunpack.c.l.b16 %v1583
      %v1616 = vunpack.c.l.b16 %v1584
      %v1617 = vunpack.c.l.b16 %v1585
      %v1618 = vunpack.c.l.b16 %v1586
      %v1619 = vunpack.c.l.b16 %v1587
      %v1620 = vunpack.c.l.b16 %v1588
      %v1621 = vunpack.c.l.b16 %v1589
      %v1622 = vunpack.c.l.b16 %v1590
      %v1623 = vunpack.c.l.b16 %v1591
      %v1624 = vunpack.c.l.b16 %v1592
      %v1625 = vunpack.c.l.b16 %v1593
      %v1626 = vunpack.c.l.b16 %v1594
      %v1627 = vpack.c.b16 %v1612, %v1611
      %v1628 = vpack.c.b16 %v1614, %v1613
      %v1629 = vpack.c.b16 %v1616, %v1615
      %v1630 = vpack.c.b16 %v1618, %v1617
      %v1631 = vpack.c.b16 %v1620, %v1619
      %v1632 = vpack.c.b16 %v1622, %v1621
      %v1633 = vpack.c.b16 %v1624, %v1623
      %v1634 = vpack.c.b16 %v1626, %v1625
      %1643 = vmatprep.subr.bf16.mxu0 0
      %1644 = vmatpush1.bf16.msra.mxu0 %v1634
      %1645 = vmatprep.subr.bf16.mxu0 0
      %1646 = vmatpush1.bf16.msra.mxu0 %v1633
      %1647 = vmatprep.subr.bf16.mxu0 0
      %1648 = vmatpush1.bf16.msra.mxu0 %v1632
      %1649 = vmatprep.subr.bf16.mxu0 0
      %1650 = vmatpush1.bf16.msra.mxu0 %v1631
      %1651 = vmatprep.subr.bf16.mxu0 0
      %1652 = vmatpush1.bf16.msra.mxu0 %v1630
      %1653 = vmatprep.subr.bf16.mxu0 0
      %1654 = vmatpush1.bf16.msra.mxu0 %v1629
      %1655 = vmatprep.subr.bf16.mxu0 0
      %1656 = vmatpush1.bf16.msra.mxu0 %v1628
      %1657 = vmatprep.subr.bf16.mxu0 0
      %1658 = vmatpush1.bf16.msra.mxu0 %v1627
      %1659 = vmatprep.subr.bf16.mxu0 0
      %1660 = vmatpush2.bf16.msra.mxu0 0
      %1661 = vmatprep.subr.bf16.mxu0 0
      %1662 = vmatpush2.bf16.msra.mxu0 0
      %1663 = vmatprep.subr.bf16.mxu0 0
      %1664 = vmatpush2.bf16.msra.mxu0 0
      %1665 = vmatprep.subr.bf16.mxu0 0
      %1666 = vmatpush2.bf16.msra.mxu0 0
      %1667 = vmatprep.subr.bf16.mxu0 0
      %1668 = vmatpush2.bf16.msra.mxu0 0
      %1669 = vmatprep.subr.bf16.mxu0 0
      %1670 = vmatpush2.bf16.msra.mxu0 0
      %1671 = vmatprep.subr.bf16.mxu0 0
      %1672 = vmatpush2.bf16.msra.mxu0 0
      %1673 = vmatprep.subr.bf16.mxu0 0
      %1674 = vmatpush2.bf16.msra.mxu0 0
      %1675 = vmatprep.mubr.bf16.mxu0 0
      %1676 = vmatmul.mubr.bf16.gmra.mxu0 %v575
      %v1677 = vpop.f32.mrf.mxu0
      %v1678 = vadd.f32 0.0, %v1677
      %v1679 = vpop.f32.mrf.mxu0
      %v1680 = vpop.f32.mrf.mxu0
      %v1681 = vadd.f32 0.0, %v1680
      %v1682 = vpop.f32.mrf.mxu0
      %1683 = vmatprep.mubr.bf16.mxu0 0
      %1684 = vmatmul.mubr.bf16.gmra.mxu0 %v576
      %v1685 = vpop.f32.mrf.mxu0
      %v1686 = vadd.f32 0.0, %v1685
      %v1687 = vpop.f32.mrf.mxu0
      %v1688 = vpop.f32.mrf.mxu0
      %v1689 = vadd.f32 0.0, %v1688
      %v1690 = vpop.f32.mrf.mxu0
      %1691 = vmatprep.mubr.bf16.mxu0 0
      %1692 = vmatmul.mubr.bf16.gmra.mxu0 %v577
      %v1693 = vpop.f32.mrf.mxu0
      %v1694 = vadd.f32 0.0, %v1693
      %v1695 = vpop.f32.mrf.mxu0
      %v1696 = vpop.f32.mrf.mxu0
      %v1697 = vadd.f32 0.0, %v1696
      %v1698 = vpop.f32.mrf.mxu0
      %1699 = vmatprep.mubr.bf16.mxu0 0
      %1700 = vmatmul.mubr.bf16.gmra.mxu0 %v1577
      %v1701 = vpop.f32.mrf.mxu0
      %v1702 = vadd.f32 0.0, %v1701
      %v1703 = vpop.f32.mrf.mxu0
      %v1704 = vpop.f32.mrf.mxu0
      %v1705 = vadd.f32 0.0, %v1704
      %v1706 = vpop.f32.mrf.mxu0
      %1707 = vdwg.mxu0
      %v1708 = vadd.f32 %v1563, %v1678
      %v1709 = vadd.f32 %v1564, %v1681
      %v1710 = vadd.f32 %v1565, %v1686
      %v1711 = vadd.f32 %v1566, %v1689
      %v1712 = vadd.f32 %v1567, %v1694
      %v1713 = vadd.f32 %v1568, %v1697
      %v1714 = vadd.f32 %v1569, %v1702
      %v1715 = vadd.f32 %v1570, %v1705
      %v1716 = vrot.slane %v503, 2
      %v1717 = vrot.slane %v504, 2
      %v1718 = vsel %vm821, %v1716, %v1717
      %v1720 = vpack.c.bf16 %v1718, %v1288
      %s1721 = scalar_lea.vmem %s2, 512
      %v1722 = vld [vmem:[%s1721] sm:$0xf]
      %v1723 = vld [vmem:[%s1721 + $0x4] sm:$0xf]
      %v1724 = vld [vmem:[%s1721 + $0x8] sm:$0xf]
      %v1725 = vld [vmem:[%s1721 + $0xc] sm:$0xf]
      %v1726 = vld [vmem:[%s1721 + $0x10] sm:$0xf]
      %v1727 = vld [vmem:[%s1721 + $0x14] sm:$0xf]
      %v1728 = vld [vmem:[%s1721 + $0x18] sm:$0xf]
      %v1729 = vld [vmem:[%s1721 + $0x1c] sm:$0xf]
      %v1730 = vld [vmem:[%s1721 + $0x20] sm:$0xf]
      %v1731 = vld [vmem:[%s1721 + $0x24] sm:$0xf]
      %v1732 = vld [vmem:[%s1721 + $0x28] sm:$0xf]
      %v1733 = vld [vmem:[%s1721 + $0x2c] sm:$0xf]
      %v1734 = vld [vmem:[%s1721 + $0x30] sm:$0xf]
      %v1735 = vld [vmem:[%s1721 + $0x34] sm:$0xf]
      %v1736 = vld [vmem:[%s1721 + $0x38] sm:$0xf]
      %v1737 = vld [vmem:[%s1721 + $0x3c] sm:$0xf]
      %v1754 = vunpack.c.l.b16 %v1722
      %v1755 = vunpack.c.l.b16 %v1723
      %v1756 = vunpack.c.l.b16 %v1724
      %v1757 = vunpack.c.l.b16 %v1725
      %v1758 = vunpack.c.l.b16 %v1726
      %v1759 = vunpack.c.l.b16 %v1727
      %v1760 = vunpack.c.l.b16 %v1728
      %v1761 = vunpack.c.l.b16 %v1729
      %v1762 = vunpack.c.l.b16 %v1730
      %v1763 = vunpack.c.l.b16 %v1731
      %v1764 = vunpack.c.l.b16 %v1732
      %v1765 = vunpack.c.l.b16 %v1733
      %v1766 = vunpack.c.l.b16 %v1734
      %v1767 = vunpack.c.l.b16 %v1735
      %v1768 = vunpack.c.l.b16 %v1736
      %v1769 = vunpack.c.l.b16 %v1737
      %v1770 = vpack.c.b16 %v1755, %v1754
      %v1771 = vpack.c.b16 %v1757, %v1756
      %v1772 = vpack.c.b16 %v1759, %v1758
      %v1773 = vpack.c.b16 %v1761, %v1760
      %v1774 = vpack.c.b16 %v1763, %v1762
      %v1775 = vpack.c.b16 %v1765, %v1764
      %v1776 = vpack.c.b16 %v1767, %v1766
      %v1777 = vpack.c.b16 %v1769, %v1768
      %1786 = vmatprep.subr.bf16.mxu0 0
      %1787 = vmatpush1.bf16.msra.mxu0 %v1777
      %1788 = vmatprep.subr.bf16.mxu0 0
      %1789 = vmatpush1.bf16.msra.mxu0 %v1776
      %1790 = vmatprep.subr.bf16.mxu0 0
      %1791 = vmatpush1.bf16.msra.mxu0 %v1775
      %1792 = vmatprep.subr.bf16.mxu0 0
      %1793 = vmatpush1.bf16.msra.mxu0 %v1774
      %1794 = vmatprep.subr.bf16.mxu0 0
      %1795 = vmatpush1.bf16.msra.mxu0 %v1773
      %1796 = vmatprep.subr.bf16.mxu0 0
      %1797 = vmatpush1.bf16.msra.mxu0 %v1772
      %1798 = vmatprep.subr.bf16.mxu0 0
      %1799 = vmatpush1.bf16.msra.mxu0 %v1771
      %1800 = vmatprep.subr.bf16.mxu0 0
      %1801 = vmatpush1.bf16.msra.mxu0 %v1770
      %1802 = vmatprep.subr.bf16.mxu0 0
      %1803 = vmatpush2.bf16.msra.mxu0 0
      %1804 = vmatprep.subr.bf16.mxu0 0
      %1805 = vmatpush2.bf16.msra.mxu0 0
      %1806 = vmatprep.subr.bf16.mxu0 0
      %1807 = vmatpush2.bf16.msra.mxu0 0
      %1808 = vmatprep.subr.bf16.mxu0 0
      %1809 = vmatpush2.bf16.msra.mxu0 0
      %1810 = vmatprep.subr.bf16.mxu0 0
      %1811 = vmatpush2.bf16.msra.mxu0 0
      %1812 = vmatprep.subr.bf16.mxu0 0
      %1813 = vmatpush2.bf16.msra.mxu0 0
      %1814 = vmatprep.subr.bf16.mxu0 0
      %1815 = vmatpush2.bf16.msra.mxu0 0
      %1816 = vmatprep.subr.bf16.mxu0 0
      %1817 = vmatpush2.bf16.msra.mxu0 0
      %1818 = vmatprep.mubr.bf16.mxu0 0
      %1819 = vmatmul.mubr.bf16.gmra.mxu0 %v855
      %v1820 = vpop.f32.mrf.mxu0
      %v1821 = vadd.f32 0.0, %v1820
      %v1822 = vpop.f32.mrf.mxu0
      %v1823 = vpop.f32.mrf.mxu0
      %v1824 = vadd.f32 0.0, %v1823
      %v1825 = vpop.f32.mrf.mxu0
      %1826 = vmatprep.mubr.bf16.mxu0 0
      %1827 = vmatmul.mubr.bf16.gmra.mxu0 %v856
      %v1828 = vpop.f32.mrf.mxu0
      %v1829 = vadd.f32 0.0, %v1828
      %v1830 = vpop.f32.mrf.mxu0
      %v1831 = vpop.f32.mrf.mxu0
      %v1832 = vadd.f32 0.0, %v1831
      %v1833 = vpop.f32.mrf.mxu0
      %1834 = vmatprep.mubr.bf16.mxu0 0
      %1835 = vmatmul.mubr.bf16.gmra.mxu0 %v857
      %v1836 = vpop.f32.mrf.mxu0
      %v1837 = vadd.f32 0.0, %v1836
      %v1838 = vpop.f32.mrf.mxu0
      %v1839 = vpop.f32.mrf.mxu0
      %v1840 = vadd.f32 0.0, %v1839
      %v1841 = vpop.f32.mrf.mxu0
      %1842 = vmatprep.mubr.bf16.mxu0 0
      %1843 = vmatmul.mubr.bf16.gmra.mxu0 %v1720
      %v1844 = vpop.f32.mrf.mxu0
      %v1845 = vadd.f32 0.0, %v1844
      %v1846 = vpop.f32.mrf.mxu0
      %v1847 = vpop.f32.mrf.mxu0
      %v1848 = vadd.f32 0.0, %v1847
      %v1849 = vpop.f32.mrf.mxu0
      %1850 = vdwg.mxu0
      %v1851 = vadd.f32 %v1708, %v1821
      %v1852 = vadd.f32 %v1709, %v1824
      %v1853 = vadd.f32 %v1710, %v1829
      %v1854 = vadd.f32 %v1711, %v1832
      %v1855 = vadd.f32 %v1712, %v1837
      %v1856 = vadd.f32 %v1713, %v1840
      %v1857 = vadd.f32 %v1714, %v1845
      %v1858 = vadd.f32 %v1715, %v1848
      %1859 = vadd.xlane.f32.xlu0 %v1851
      %v1860 = vpop.xlane.xlu0 %1859
      %1861 = vadd.xlane.f32.xlu0 %v1852
      %v1862 = vpop.xlane.xlu0 %1861
      %1863 = vadd.xlane.f32.xlu0 %v1853
      %v1864 = vpop.xlane.xlu0 %1863
      %1865 = vadd.xlane.f32.xlu0 %v1854
      %v1866 = vpop.xlane.xlu0 %1865
      %1867 = vadd.xlane.f32.xlu0 %v1855
      %v1868 = vpop.xlane.xlu0 %1867
      %1869 = vadd.xlane.f32.xlu0 %v1856
      %v1870 = vpop.xlane.xlu0 %1869
      %1871 = vadd.xlane.f32.xlu0 %v1857
      %v1872 = vpop.xlane.xlu0 %1871
      %1873 = vadd.xlane.f32.xlu0 %v1858
      %v1874 = vpop.xlane.xlu0 %1873
      %v1875 = vmul.f32 %v1860, 0.0078125
      %v1876 = vmul.f32 %v1862, 0.0078125
      %v1877 = vmul.f32 %v1864, 0.0078125
      %v1878 = vmul.f32 %v1866, 0.0078125
      %v1879 = vmul.f32 %v1868, 0.0078125
      %v1880 = vmul.f32 %v1870, 0.0078125
      %v1881 = vmul.f32 %v1872, 0.0078125
      %v1882 = vmul.f32 %v1874, 0.0078125
      %v1883 = vmul.f32 %v1851, %v1851
      %v1884 = vmul.f32 %v1852, %v1852
      %v1885 = vmul.f32 %v1853, %v1853
      %v1886 = vmul.f32 %v1854, %v1854
      %v1887 = vmul.f32 %v1855, %v1855
      %v1888 = vmul.f32 %v1856, %v1856
      %v1889 = vmul.f32 %v1857, %v1857
      %v1890 = vmul.f32 %v1858, %v1858
      %1891 = vadd.xlane.f32.xlu0 %v1883
      %v1892 = vpop.xlane.xlu0 %1891
      %1893 = vadd.xlane.f32.xlu0 %v1884
      %v1894 = vpop.xlane.xlu0 %1893
      %1895 = vadd.xlane.f32.xlu0 %v1885
      %v1896 = vpop.xlane.xlu0 %1895
      %1897 = vadd.xlane.f32.xlu0 %v1886
      %v1898 = vpop.xlane.xlu0 %1897
      %1899 = vadd.xlane.f32.xlu0 %v1887
      %v1900 = vpop.xlane.xlu0 %1899
      %1901 = vadd.xlane.f32.xlu0 %v1888
      %v1902 = vpop.xlane.xlu0 %1901
      %1903 = vadd.xlane.f32.xlu0 %v1889
      %v1904 = vpop.xlane.xlu0 %1903
      %1905 = vadd.xlane.f32.xlu0 %v1890
      %v1906 = vpop.xlane.xlu0 %1905
      %v1907 = vmul.f32 %v1892, 0.0078125
      %v1908 = vmul.f32 %v1894, 0.0078125
      %v1909 = vmul.f32 %v1896, 0.0078125
      %v1910 = vmul.f32 %v1898, 0.0078125
      %v1911 = vmul.f32 %v1900, 0.0078125
      %v1912 = vmul.f32 %v1902, 0.0078125
      %v1913 = vmul.f32 %v1904, 0.0078125
      %v1914 = vmul.f32 %v1906, 0.0078125
      %v1915 = vmul.f32 %v1875, %v1875
      %v1916 = vmul.f32 %v1876, %v1876
      %v1917 = vmul.f32 %v1877, %v1877
      %v1918 = vmul.f32 %v1878, %v1878
      %v1919 = vmul.f32 %v1879, %v1879
      %v1920 = vmul.f32 %v1880, %v1880
      %v1921 = vmul.f32 %v1881, %v1881
      %v1922 = vmul.f32 %v1882, %v1882
      %v1923 = vsub.f32 %v1907, %v1915
      %v1924 = vsub.f32 %v1908, %v1916
      %v1925 = vsub.f32 %v1909, %v1917
      %v1926 = vsub.f32 %v1910, %v1918
      %v1927 = vsub.f32 %v1911, %v1919
      %v1928 = vsub.f32 %v1912, %v1920
      %v1929 = vsub.f32 %v1913, %v1921
      %v1930 = vsub.f32 %v1914, %v1922
      %v1931 = vsub.f32 %v1851, %v1875
      %v1932 = vsub.f32 %v1852, %v1876
      %v1933 = vsub.f32 %v1853, %v1877
      %v1934 = vsub.f32 %v1854, %v1878
      %v1935 = vsub.f32 %v1855, %v1879
      %v1936 = vsub.f32 %v1856, %v1880
      %v1937 = vsub.f32 %v1857, %v1881
      %v1938 = vsub.f32 %v1858, %v1882
      %v1939 = vadd.f32 %v1923, 1e-05
      %v1940 = vadd.f32 %v1924, 1e-05
      %v1941 = vadd.f32 %v1925, 1e-05
      %v1942 = vadd.f32 %v1926, 1e-05
      %v1943 = vadd.f32 %v1927, 1e-05
      %v1944 = vadd.f32 %v1928, 1e-05
      %v1945 = vadd.f32 %v1929, 1e-05
      %v1946 = vadd.f32 %v1930, 1e-05
      %v1947 = vrsqrt.pop %v1939
      %v1948 = vrsqrt.pop %v1940
      %v1949 = vrsqrt.pop %v1941
      %v1950 = vrsqrt.pop %v1942
      %v1951 = vrsqrt.pop %v1943
      %v1952 = vrsqrt.pop %v1944
      %v1953 = vrsqrt.pop %v1945
      %v1954 = vrsqrt.pop %v1946
      %v1955 = vmul.f32 %v1931, %v1947
      %v1956 = vmul.f32 %v1932, %v1948
      %v1957 = vmul.f32 %v1933, %v1949
      %v1958 = vmul.f32 %v1934, %v1950
      %v1959 = vmul.f32 %v1935, %v1951
      %v1960 = vmul.f32 %v1936, %v1952
      %v1961 = vmul.f32 %v1937, %v1953
      %v1962 = vmul.f32 %v1938, %v1954
      %v1963 = vld [vmem:[%s3] sm:$0x1]
      %v1965 = vlaneseq
      %v1966 = vshrl.u32 %v1965, 7
      %v1967 = vsub.s32 0, %v1966
      %v1968 = vrot.slane %v1963, %v1967
      %v1970 = vmul.f32 %v1955, %v1968
      %v1971 = vmul.f32 %v1956, %v1968
      %v1972 = vmul.f32 %v1957, %v1968
      %v1973 = vmul.f32 %v1958, %v1968
      %v1974 = vmul.f32 %v1959, %v1968
      %v1975 = vmul.f32 %v1960, %v1968
      %v1976 = vmul.f32 %v1961, %v1968
      %v1977 = vmul.f32 %v1962, %v1968
      %v1978 = vld [vmem:[%s4] sm:$0x1]
      %v1980 = vlaneseq
      %v1981 = vshrl.u32 %v1980, 7
      %v1982 = vsub.s32 0, %v1981
      %v1983 = vrot.slane %v1978, %v1982
      %v1985 = vadd.f32 %v1970, %v1983
      %v1986 = vadd.f32 %v1971, %v1983
      %v1987 = vadd.f32 %v1972, %v1983
      %v1988 = vadd.f32 %v1973, %v1983
      %v1989 = vadd.f32 %v1974, %v1983
      %v1990 = vadd.f32 %v1975, %v1983
      %v1991 = vadd.f32 %v1976, %v1983
      %v1992 = vadd.f32 %v1977, %v1983
      %v1993 = vld [vmem:[%s456] sm:$0xff]
      %v1994 = vld [vmem:[%s456 + $0x8] sm:$0xff]
      %v1995 = vld [vmem:[%s456 + $0x10] sm:$0xff]
      %v1996 = vld [vmem:[%s456 + $0x18] sm:$0xff]
      %v1997 = vld [vmem:[%s456 + $0x20] sm:$0xff]
      %v1998 = vld [vmem:[%s456 + $0x28] sm:$0xff]
      %v1999 = vld [vmem:[%s456 + $0x30] sm:$0xff]
      %v2000 = vld [vmem:[%s456 + $0x38] sm:$0xff]
      %v2001 = vld [vmem:[%s5] sm:$0x1]
      %v2003 = vlaneseq
      %v2004 = vshrl.u32 %v2003, 7
      %v2005 = vsub.s32 0, %v2004
      %v2006 = vrot.slane %v2001, %v2005
      %v2008 = vmul.f32 %v1993, %v2006
      %v2009 = vmul.f32 %v1994, %v2006
      %v2010 = vmul.f32 %v1995, %v2006
      %v2011 = vmul.f32 %v1996, %v2006
      %v2012 = vmul.f32 %v1997, %v2006
      %v2013 = vmul.f32 %v1998, %v2006
      %v2014 = vmul.f32 %v1999, %v2006
      %v2015 = vmul.f32 %v2000, %v2006
      %v2016 = vld [vmem:[%s6] sm:$0x1]
      %v2018 = vlaneseq
      %v2019 = vshrl.u32 %v2018, 7
      %v2020 = vsub.s32 0, %v2019
      %v2021 = vrot.slane %v2016, %v2020
      %v2023 = vadd.f32 %v2008, %v2021
      %v2024 = vadd.f32 %v2009, %v2021
      %v2025 = vadd.f32 %v2010, %v2021
      %v2026 = vadd.f32 %v2011, %v2021
      %v2027 = vadd.f32 %v2012, %v2021
      %v2028 = vadd.f32 %v2013, %v2021
      %v2029 = vadd.f32 %v2014, %v2021
      %v2030 = vadd.f32 %v2015, %v2021
      %v2031 = vand.u32 2147483647, %v2023
      %vm2032 = vcmp.le.f32.partialorder %v2031, 0.7853982
      %vm2033 = vcmp.lt.s32.totalorder %v2023, 0
      %v2034 = vand.u32 %v2023, 2139095040
      %v2035 = vshrl.u32 %v2034, 23
      %v2036 = vsub.s32 %v2035, 127
      %v2037 = vand.u32 2147483647, %v2023
      %v2038 = vand.u32 %v2037, 8388607
      %v2039 = vor.u32 %v2038, 8388608
      %v2040 = vsub.s32 0, %v2039
      %v2041 = vadd.s32 %v2036, 1
      %vm2042 = vcmp.gt.s32.totalorder %v2041, 0
      %v2043 = vsel %vm2042, %v2041, 0
      %v2044 = vshrl.u32 %v2043, 5
      %v2045 = vand.u32 %v2043, 31
      %v2046 = vsub.s32 32, %v2045
      %v2047 = vshrl.u32 683565275, %v2046
      %v2048 = vshll.u32 683565275, %v2045
      %v2049 = vshrl.u32 2475754826, %v2046
      %v2050 = vor.u32 %v2048, %v2049
      %v2051 = vshll.u32 2475754826, %v2045
      %v2052 = vshrl.u32 2131351028, %v2046
      %v2053 = vor.u32 %v2051, %v2052
      %v2054 = vshll.u32 2131351028, %v2045
      %v2055 = vshrl.u32 2102212464, %v2046
      %v2056 = vor.u32 %v2054, %v2055
      %v2057 = vshll.u32 2102212464, %v2045
      %v2058 = vshrl.u32 920167782, %v2046
      %v2059 = vor.u32 %v2057, %v2058
      %v2060 = vshll.u32 920167782, %v2045
      %v2061 = vshrl.u32 1326507024, %v2046
      %v2062 = vor.u32 %v2060, %v2061
      %vm2063 = vcmp.lt.s32.totalorder %v2044, 1
      %vm2064 = vcmp.lt.s32.totalorder %v2044, 2
      %vm2065 = vcmp.lt.s32.totalorder %v2044, 3
      %vm2066 = vcmp.lt.s32.totalorder %v2044, 4
      %v2067 = vsel %vm2063, %v2047, %v2050
      %v2068 = vsel %vm2066, %v2056, 2102212464
      %v2069 = vsel %vm2065, %v2053, %v2068
      %v2070 = vsel %vm2064, %v2067, %v2069
      %v2071 = vsel %vm2063, %v2050, %v2053
      %v2072 = vsel %vm2066, %v2059, 920167782
      %v2073 = vsel %vm2065, %v2056, %v2072
      %v2074 = vsel %vm2064, %v2071, %v2073
      %v2075 = vsel %vm2063, %v2053, %v2056
      %v2076 = vsel %vm2066, %v2062, 1326507024
      %v2077 = vsel %vm2065, %v2059, %v2076
      %v2078 = vsel %vm2064, %v2075, %v2077
      %v2079 = vshll.u32 %v2039, 8
      %v2080 = vmul.u32.u64.compose %v2079, %v2078
      %v2081 = vextract.low.u32 %v2080
      %v2082 = vextract.high.u32 %v2080
      %v2083 = vmul.u32.u64.compose %v2079, %v2074
      %v2084 = vextract.low.u32 %v2083
      %v2085 = vextract.high.u32 %v2083
      %v2086 = vmul.u32 %v2079, %v2070
      %v2087 = vadd.s32 %v2082, %v2084
      %vm2088 = vc.u32 %v2082, %v2084
      %v2089 = vadd.s32 %v2085, 1
      %v2090 = vsel %vm2088, %v2089, %v2085
      %v2091 = vadd.s32 %v2086, %v2090
      %v2092 = vadd.s32 %v2091, 536870912
      %v2093 = vshrl.u32 %v2092, 30
      %v2094 = vshll.u32 %v2093, 30
      %v2095 = vsub.s32 %v2091, %v2094
      %vm2096 = vcmp.lt.s32.totalorder %v2095, 0
      %v2097 = vsub.s32 0, %v2095
      %v2098 = vsel %vm2096, %v2097, %v2095
      %v2099 = vclz %v2098
      %v2100 = vsub.s32 %v2099, 2
      %vm2101 = vcmp.gt.s32.totalorder 0, %v2100
      %v2102 = vsel %vm2101, 0, %v2100
      %v2103 = vsub.s32 32, %v2102
      %v2104 = vshll.u32 %v2095, %v2102
      %v2105 = vshrl.u32 %v2087, %v2103
      %v2106 = vor.u32 %v2104, %v2105
      %v2107 = vsub.s32 4294967266, %v2102
      %v2108 = vadd.s32 %v2107, 127
      %v2109 = vshll.u32 %v2108, 23
      %v2110 = vor.u32 4788187, %v2109
      %v2111 = vand.u32 2147483647, %v2110
      %v2113 = vcvt.s32.f32 %v2106
      %v2114 = vmul.f32 %v2113, %v2111
      %v2115 = vxor.u32 %v2114, 2147483648
      %v2116 = vsel %vm2033, %v2115, %v2114
      %v2117 = vsub.s32 4, %v2093
      %v2118 = vsel %vm2033, %v2117, %v2093
      %v2119 = vsel %vm2032, %v2023, %v2116
      %v2120 = vsel %vm2032, 0, %v2118
      %v2121 = vcosq.f32.pop %v2119
      %v2122 = vsinq.f32.pop %v2119
      %vm2123 = vweird.f32 %v2023
      %v2124 = vadd.s32 %v2120, 3
      %v2125 = vand.u32 %v2124, 3
      %vm2126 = vcmp.lt.s32.totalorder %v2125, 2
      %vm2127 = vcmp.eq.s32.totalorder %v2125, 0
      %v2128 = vxor.u32 %v2122, 2147483648
      %v2129 = vsel %vm2127, %v2121, %v2128
      %vm2130 = vcmp.eq.s32.totalorder %v2125, 2
      %v2131 = vxor.u32 %v2121, 2147483648
      %v2132 = vsel %vm2130, %v2131, %v2122
      %v2133 = vsel %vm2126, %v2129, %v2132
      %v2134 = vsel %vm2123, nan, %v2133
      %v2135 = vand.u32 2147483647, %v2024
      %vm2136 = vcmp.le.f32.partialorder %v2135, 0.7853982
      %vm2137 = vcmp.lt.s32.totalorder %v2024, 0
      %v2138 = vand.u32 %v2024, 2139095040
      %v2139 = vshrl.u32 %v2138, 23
      %v2140 = vsub.s32 %v2139, 127
      %v2141 = vand.u32 2147483647, %v2024
      %v2142 = vand.u32 %v2141, 8388607
      %v2143 = vor.u32 %v2142, 8388608
      %v2144 = vsub.s32 0, %v2143
      %v2145 = vadd.s32 %v2140, 1
      %vm2146 = vcmp.gt.s32.totalorder %v2145, 0
      %v2147 = vsel %vm2146, %v2145, 0
      %v2148 = vshrl.u32 %v2147, 5
      %v2149 = vand.u32 %v2147, 31
      %v2150 = vsub.s32 32, %v2149
      %v2151 = vshrl.u32 683565275, %v2150
      %v2152 = vshll.u32 683565275, %v2149
      %v2153 = vshrl.u32 2475754826, %v2150
      %v2154 = vor.u32 %v2152, %v2153
      %v2155 = vshll.u32 2475754826, %v2149
      %v2156 = vshrl.u32 2131351028, %v2150
      %v2157 = vor.u32 %v2155, %v2156
      %v2158 = vshll.u32 2131351028, %v2149
      %v2159 = vshrl.u32 2102212464, %v2150
      %v2160 = vor.u32 %v2158, %v2159
      %v2161 = vshll.u32 2102212464, %v2149
      %v2162 = vshrl.u32 920167782, %v2150
      %v2163 = vor.u32 %v2161, %v2162
      %v2164 = vshll.u32 920167782, %v2149
      %v2165 = vshrl.u32 1326507024, %v2150
      %v2166 = vor.u32 %v2164, %v2165
      %vm2167 = vcmp.lt.s32.totalorder %v2148, 1
      %vm2168 = vcmp.lt.s32.totalorder %v2148, 2
      %vm2169 = vcmp.lt.s32.totalorder %v2148, 3
      %vm2170 = vcmp.lt.s32.totalorder %v2148, 4
      %v2171 = vsel %vm2167, %v2151, %v2154
      %v2172 = vsel %vm2170, %v2160, 2102212464
      %v2173 = vsel %vm2169, %v2157, %v2172
      %v2174 = vsel %vm2168, %v2171, %v2173
      %v2175 = vsel %vm2167, %v2154, %v2157
      %v2176 = vsel %vm2170, %v2163, 920167782
      %v2177 = vsel %vm2169, %v2160, %v2176
      %v2178 = vsel %vm2168, %v2175, %v2177
      %v2179 = vsel %vm2167, %v2157, %v2160
      %v2180 = vsel %vm2170, %v2166, 1326507024
      %v2181 = vsel %vm2169, %v2163, %v2180
      %v2182 = vsel %vm2168, %v2179, %v2181
      %v2183 = vshll.u32 %v2143, 8
      %v2184 = vmul.u32.u64.compose %v2183, %v2182
      %v2185 = vextract.low.u32 %v2184
      %v2186 = vextract.high.u32 %v2184
      %v2187 = vmul.u32.u64.compose %v2183, %v2178
      %v2188 = vextract.low.u32 %v2187
      %v2189 = vextract.high.u32 %v2187
      %v2190 = vmul.u32 %v2183, %v2174
      %v2191 = vadd.s32 %v2186, %v2188
      %vm2192 = vc.u32 %v2186, %v2188
      %v2193 = vadd.s32 %v2189, 1
      %v2194 = vsel %vm2192, %v2193, %v2189
      %v2195 = vadd.s32 %v2190, %v2194
      %v2196 = vadd.s32 %v2195, 536870912
      %v2197 = vshrl.u32 %v2196, 30
      %v2198 = vshll.u32 %v2197, 30
      %v2199 = vsub.s32 %v2195, %v2198
      %vm2200 = vcmp.lt.s32.totalorder %v2199, 0
      %v2201 = vsub.s32 0, %v2199
      %v2202 = vsel %vm2200, %v2201, %v2199
      %v2203 = vclz %v2202
      %v2204 = vsub.s32 %v2203, 2
      %vm2205 = vcmp.gt.s32.totalorder 0, %v2204
      %v2206 = vsel %vm2205, 0, %v2204
      %v2207 = vsub.s32 32, %v2206
      %v2208 = vshll.u32 %v2199, %v2206
      %v2209 = vshrl.u32 %v2191, %v2207
      %v2210 = vor.u32 %v2208, %v2209
      %v2211 = vsub.s32 4294967266, %v2206
      %v2212 = vadd.s32 %v2211, 127
      %v2213 = vshll.u32 %v2212, 23
      %v2214 = vor.u32 4788187, %v2213
      %v2215 = vand.u32 2147483647, %v2214
      %v2217 = vcvt.s32.f32 %v2210
      %v2218 = vmul.f32 %v2217, %v2215
      %v2219 = vxor.u32 %v2218, 2147483648
      %v2220 = vsel %vm2137, %v2219, %v2218
      %v2221 = vsub.s32 4, %v2197
      %v2222 = vsel %vm2137, %v2221, %v2197
      %v2223 = vsel %vm2136, %v2024, %v2220
      %v2224 = vsel %vm2136, 0, %v2222
      %v2225 = vcosq.f32.pop %v2223
      %v2226 = vsinq.f32.pop %v2223
      %vm2227 = vweird.f32 %v2024
      %v2228 = vadd.s32 %v2224, 3
      %v2229 = vand.u32 %v2228, 3
      %vm2230 = vcmp.lt.s32.totalorder %v2229, 2
      %vm2231 = vcmp.eq.s32.totalorder %v2229, 0
      %v2232 = vxor.u32 %v2226, 2147483648
      %v2233 = vsel %vm2231, %v2225, %v2232
      %vm2234 = vcmp.eq.s32.totalorder %v2229, 2
      %v2235 = vxor.u32 %v2225, 2147483648
      %v2236 = vsel %vm2234, %v2235, %v2226
      %v2237 = vsel %vm2230, %v2233, %v2236
      %v2238 = vsel %vm2227, nan, %v2237
      %v2239 = vand.u32 2147483647, %v2025
      %vm2240 = vcmp.le.f32.partialorder %v2239, 0.7853982
      %vm2241 = vcmp.lt.s32.totalorder %v2025, 0
      %v2242 = vand.u32 %v2025, 2139095040
      %v2243 = vshrl.u32 %v2242, 23
      %v2244 = vsub.s32 %v2243, 127
      %v2245 = vand.u32 2147483647, %v2025
      %v2246 = vand.u32 %v2245, 8388607
      %v2247 = vor.u32 %v2246, 8388608
      %v2248 = vsub.s32 0, %v2247
      %v2249 = vadd.s32 %v2244, 1
      %vm2250 = vcmp.gt.s32.totalorder %v2249, 0
      %v2251 = vsel %vm2250, %v2249, 0
      %v2252 = vshrl.u32 %v2251, 5
      %v2253 = vand.u32 %v2251, 31
      %v2254 = vsub.s32 32, %v2253
      %v2255 = vshrl.u32 683565275, %v2254
      %v2256 = vshll.u32 683565275, %v2253
      %v2257 = vshrl.u32 2475754826, %v2254
      %v2258 = vor.u32 %v2256, %v2257
      %v2259 = vshll.u32 2475754826, %v2253
      %v2260 = vshrl.u32 2131351028, %v2254
      %v2261 = vor.u32 %v2259, %v2260
      %v2262 = vshll.u32 2131351028, %v2253
      %v2263 = vshrl.u32 2102212464, %v2254
      %v2264 = vor.u32 %v2262, %v2263
      %v2265 = vshll.u32 2102212464, %v2253
      %v2266 = vshrl.u32 920167782, %v2254
      %v2267 = vor.u32 %v2265, %v2266
      %v2268 = vshll.u32 920167782, %v2253
      %v2269 = vshrl.u32 1326507024, %v2254
      %v2270 = vor.u32 %v2268, %v2269
      %vm2271 = vcmp.lt.s32.totalorder %v2252, 1
      %vm2272 = vcmp.lt.s32.totalorder %v2252, 2
      %vm2273 = vcmp.lt.s32.totalorder %v2252, 3
      %vm2274 = vcmp.lt.s32.totalorder %v2252, 4
      %v2275 = vsel %vm2271, %v2255, %v2258
      %v2276 = vsel %vm2274, %v2264, 2102212464
      %v2277 = vsel %vm2273, %v2261, %v2276
      %v2278 = vsel %vm2272, %v2275, %v2277
      %v2279 = vsel %vm2271, %v2258, %v2261
      %v2280 = vsel %vm2274, %v2267, 920167782
      %v2281 = vsel %vm2273, %v2264, %v2280
      %v2282 = vsel %vm2272, %v2279, %v2281
      %v2283 = vsel %vm2271, %v2261, %v2264
      %v2284 = vsel %vm2274, %v2270, 1326507024
      %v2285 = vsel %vm2273, %v2267, %v2284
      %v2286 = vsel %vm2272, %v2283, %v2285
      %v2287 = vshll.u32 %v2247, 8
      %v2288 = vmul.u32.u64.compose %v2287, %v2286
      %v2289 = vextract.low.u32 %v2288
      %v2290 = vextract.high.u32 %v2288
      %v2291 = vmul.u32.u64.compose %v2287, %v2282
      %v2292 = vextract.low.u32 %v2291
      %v2293 = vextract.high.u32 %v2291
      %v2294 = vmul.u32 %v2287, %v2278
      %v2295 = vadd.s32 %v2290, %v2292
      %vm2296 = vc.u32 %v2290, %v2292
      %v2297 = vadd.s32 %v2293, 1
      %v2298 = vsel %vm2296, %v2297, %v2293
      %v2299 = vadd.s32 %v2294, %v2298
      %v2300 = vadd.s32 %v2299, 536870912
      %v2301 = vshrl.u32 %v2300, 30
      %v2302 = vshll.u32 %v2301, 30
      %v2303 = vsub.s32 %v2299, %v2302
      %vm2304 = vcmp.lt.s32.totalorder %v2303, 0
      %v2305 = vsub.s32 0, %v2303
      %v2306 = vsel %vm2304, %v2305, %v2303
      %v2307 = vclz %v2306
      %v2308 = vsub.s32 %v2307, 2
      %vm2309 = vcmp.gt.s32.totalorder 0, %v2308
      %v2310 = vsel %vm2309, 0, %v2308
      %v2311 = vsub.s32 32, %v2310
      %v2312 = vshll.u32 %v2303, %v2310
      %v2313 = vshrl.u32 %v2295, %v2311
      %v2314 = vor.u32 %v2312, %v2313
      %v2315 = vsub.s32 4294967266, %v2310
      %v2316 = vadd.s32 %v2315, 127
      %v2317 = vshll.u32 %v2316, 23
      %v2318 = vor.u32 4788187, %v2317
      %v2319 = vand.u32 2147483647, %v2318
      %v2321 = vcvt.s32.f32 %v2314
      %v2322 = vmul.f32 %v2321, %v2319
      %v2323 = vxor.u32 %v2322, 2147483648
      %v2324 = vsel %vm2241, %v2323, %v2322
      %v2325 = vsub.s32 4, %v2301
      %v2326 = vsel %vm2241, %v2325, %v2301
      %v2327 = vsel %vm2240, %v2025, %v2324
      %v2328 = vsel %vm2240, 0, %v2326
      %v2329 = vcosq.f32.pop %v2327
      %v2330 = vsinq.f32.pop %v2327
      %vm2331 = vweird.f32 %v2025
      %v2332 = vadd.s32 %v2328, 3
      %v2333 = vand.u32 %v2332, 3
      %vm2334 = vcmp.lt.s32.totalorder %v2333, 2
      %vm2335 = vcmp.eq.s32.totalorder %v2333, 0
      %v2336 = vxor.u32 %v2330, 2147483648
      %v2337 = vsel %vm2335, %v2329, %v2336
      %vm2338 = vcmp.eq.s32.totalorder %v2333, 2
      %v2339 = vxor.u32 %v2329, 2147483648
      %v2340 = vsel %vm2338, %v2339, %v2330
      %v2341 = vsel %vm2334, %v2337, %v2340
      %v2342 = vsel %vm2331, nan, %v2341
      %v2343 = vand.u32 2147483647, %v2026
      %vm2344 = vcmp.le.f32.partialorder %v2343, 0.7853982
      %vm2345 = vcmp.lt.s32.totalorder %v2026, 0
      %v2346 = vand.u32 %v2026, 2139095040
      %v2347 = vshrl.u32 %v2346, 23
      %v2348 = vsub.s32 %v2347, 127
      %v2349 = vand.u32 2147483647, %v2026
      %v2350 = vand.u32 %v2349, 8388607
      %v2351 = vor.u32 %v2350, 8388608
      %v2352 = vsub.s32 0, %v2351
      %v2353 = vadd.s32 %v2348, 1
      %vm2354 = vcmp.gt.s32.totalorder %v2353, 0
      %v2355 = vsel %vm2354, %v2353, 0
      %v2356 = vshrl.u32 %v2355, 5
      %v2357 = vand.u32 %v2355, 31
      %v2358 = vsub.s32 32, %v2357
      %v2359 = vshrl.u32 683565275, %v2358
      %v2360 = vshll.u32 683565275, %v2357
      %v2361 = vshrl.u32 2475754826, %v2358
      %v2362 = vor.u32 %v2360, %v2361
      %v2363 = vshll.u32 2475754826, %v2357
      %v2364 = vshrl.u32 2131351028, %v2358
      %v2365 = vor.u32 %v2363, %v2364
      %v2366 = vshll.u32 2131351028, %v2357
      %v2367 = vshrl.u32 2102212464, %v2358
      %v2368 = vor.u32 %v2366, %v2367
      %v2369 = vshll.u32 2102212464, %v2357
      %v2370 = vshrl.u32 920167782, %v2358
      %v2371 = vor.u32 %v2369, %v2370
      %v2372 = vshll.u32 920167782, %v2357
      %v2373 = vshrl.u32 1326507024, %v2358
      %v2374 = vor.u32 %v2372, %v2373
      %vm2375 = vcmp.lt.s32.totalorder %v2356, 1
      %vm2376 = vcmp.lt.s32.totalorder %v2356, 2
      %vm2377 = vcmp.lt.s32.totalorder %v2356, 3
      %vm2378 = vcmp.lt.s32.totalorder %v2356, 4
      %v2379 = vsel %vm2375, %v2359, %v2362
      %v2380 = vsel %vm2378, %v2368, 2102212464
      %v2381 = vsel %vm2377, %v2365, %v2380
      %v2382 = vsel %vm2376, %v2379, %v2381
      %v2383 = vsel %vm2375, %v2362, %v2365
      %v2384 = vsel %vm2378, %v2371, 920167782
      %v2385 = vsel %vm2377, %v2368, %v2384
      %v2386 = vsel %vm2376, %v2383, %v2385
      %v2387 = vsel %vm2375, %v2365, %v2368
      %v2388 = vsel %vm2378, %v2374, 1326507024
      %v2389 = vsel %vm2377, %v2371, %v2388
      %v2390 = vsel %vm2376, %v2387, %v2389
      %v2391 = vshll.u32 %v2351, 8
      %v2392 = vmul.u32.u64.compose %v2391, %v2390
      %v2393 = vextract.low.u32 %v2392
      %v2394 = vextract.high.u32 %v2392
      %v2395 = vmul.u32.u64.compose %v2391, %v2386
      %v2396 = vextract.low.u32 %v2395
      %v2397 = vextract.high.u32 %v2395
      %v2398 = vmul.u32 %v2391, %v2382
      %v2399 = vadd.s32 %v2394, %v2396
      %vm2400 = vc.u32 %v2394, %v2396
      %v2401 = vadd.s32 %v2397, 1
      %v2402 = vsel %vm2400, %v2401, %v2397
      %v2403 = vadd.s32 %v2398, %v2402
      %v2404 = vadd.s32 %v2403, 536870912
      %v2405 = vshrl.u32 %v2404, 30
      %v2406 = vshll.u32 %v2405, 30
      %v2407 = vsub.s32 %v2403, %v2406
      %vm2408 = vcmp.lt.s32.totalorder %v2407, 0
      %v2409 = vsub.s32 0, %v2407
      %v2410 = vsel %vm2408, %v2409, %v2407
      %v2411 = vclz %v2410
      %v2412 = vsub.s32 %v2411, 2
      %vm2413 = vcmp.gt.s32.totalorder 0, %v2412
      %v2414 = vsel %vm2413, 0, %v2412
      %v2415 = vsub.s32 32, %v2414
      %v2416 = vshll.u32 %v2407, %v2414
      %v2417 = vshrl.u32 %v2399, %v2415
      %v2418 = vor.u32 %v2416, %v2417
      %v2419 = vsub.s32 4294967266, %v2414
      %v2420 = vadd.s32 %v2419, 127
      %v2421 = vshll.u32 %v2420, 23
      %v2422 = vor.u32 4788187, %v2421
      %v2423 = vand.u32 2147483647, %v2422
      %v2425 = vcvt.s32.f32 %v2418
      %v2426 = vmul.f32 %v2425, %v2423
      %v2427 = vxor.u32 %v2426, 2147483648
      %v2428 = vsel %vm2345, %v2427, %v2426
      %v2429 = vsub.s32 4, %v2405
      %v2430 = vsel %vm2345, %v2429, %v2405
      %v2431 = vsel %vm2344, %v2026, %v2428
      %v2432 = vsel %vm2344, 0, %v2430
      %v2433 = vcosq.f32.pop %v2431
      %v2434 = vsinq.f32.pop %v2431
      %vm2435 = vweird.f32 %v2026
      %v2436 = vadd.s32 %v2432, 3
      %v2437 = vand.u32 %v2436, 3
      %vm2438 = vcmp.lt.s32.totalorder %v2437, 2
      %vm2439 = vcmp.eq.s32.totalorder %v2437, 0
      %v2440 = vxor.u32 %v2434, 2147483648
      %v2441 = vsel %vm2439, %v2433, %v2440
      %vm2442 = vcmp.eq.s32.totalorder %v2437, 2
      %v2443 = vxor.u32 %v2433, 2147483648
      %v2444 = vsel %vm2442, %v2443, %v2434
      %v2445 = vsel %vm2438, %v2441, %v2444
      %v2446 = vsel %vm2435, nan, %v2445
      %v2447 = vand.u32 2147483647, %v2027
      %vm2448 = vcmp.le.f32.partialorder %v2447, 0.7853982
      %vm2449 = vcmp.lt.s32.totalorder %v2027, 0
      %v2450 = vand.u32 %v2027, 2139095040
      %v2451 = vshrl.u32 %v2450, 23
      %v2452 = vsub.s32 %v2451, 127
      %v2453 = vand.u32 2147483647, %v2027
      %v2454 = vand.u32 %v2453, 8388607
      %v2455 = vor.u32 %v2454, 8388608
      %v2456 = vsub.s32 0, %v2455
      %v2457 = vadd.s32 %v2452, 1
      %vm2458 = vcmp.gt.s32.totalorder %v2457, 0
      %v2459 = vsel %vm2458, %v2457, 0
      %v2460 = vshrl.u32 %v2459, 5
      %v2461 = vand.u32 %v2459, 31
      %v2462 = vsub.s32 32, %v2461
      %v2463 = vshrl.u32 683565275, %v2462
      %v2464 = vshll.u32 683565275, %v2461
      %v2465 = vshrl.u32 2475754826, %v2462
      %v2466 = vor.u32 %v2464, %v2465
      %v2467 = vshll.u32 2475754826, %v2461
      %v2468 = vshrl.u32 2131351028, %v2462
      %v2469 = vor.u32 %v2467, %v2468
      %v2470 = vshll.u32 2131351028, %v2461
      %v2471 = vshrl.u32 2102212464, %v2462
      %v2472 = vor.u32 %v2470, %v2471
      %v2473 = vshll.u32 2102212464, %v2461
      %v2474 = vshrl.u32 920167782, %v2462
      %v2475 = vor.u32 %v2473, %v2474
      %v2476 = vshll.u32 920167782, %v2461
      %v2477 = vshrl.u32 1326507024, %v2462
      %v2478 = vor.u32 %v2476, %v2477
      %vm2479 = vcmp.lt.s32.totalorder %v2460, 1
      %vm2480 = vcmp.lt.s32.totalorder %v2460, 2
      %vm2481 = vcmp.lt.s32.totalorder %v2460, 3
      %vm2482 = vcmp.lt.s32.totalorder %v2460, 4
      %v2483 = vsel %vm2479, %v2463, %v2466
      %v2484 = vsel %vm2482, %v2472, 2102212464
      %v2485 = vsel %vm2481, %v2469, %v2484
      %v2486 = vsel %vm2480, %v2483, %v2485
      %v2487 = vsel %vm2479, %v2466, %v2469
      %v2488 = vsel %vm2482, %v2475, 920167782
      %v2489 = vsel %vm2481, %v2472, %v2488
      %v2490 = vsel %vm2480, %v2487, %v2489
      %v2491 = vsel %vm2479, %v2469, %v2472
      %v2492 = vsel %vm2482, %v2478, 1326507024
      %v2493 = vsel %vm2481, %v2475, %v2492
      %v2494 = vsel %vm2480, %v2491, %v2493
      %v2495 = vshll.u32 %v2455, 8
      %v2496 = vmul.u32.u64.compose %v2495, %v2494
      %v2497 = vextract.low.u32 %v2496
      %v2498 = vextract.high.u32 %v2496
      %v2499 = vmul.u32.u64.compose %v2495, %v2490
      %v2500 = vextract.low.u32 %v2499
      %v2501 = vextract.high.u32 %v2499
      %v2502 = vmul.u32 %v2495, %v2486
      %v2503 = vadd.s32 %v2498, %v2500
      %vm2504 = vc.u32 %v2498, %v2500
      %v2505 = vadd.s32 %v2501, 1
      %v2506 = vsel %vm2504, %v2505, %v2501
      %v2507 = vadd.s32 %v2502, %v2506
      %v2508 = vadd.s32 %v2507, 536870912
      %v2509 = vshrl.u32 %v2508, 30
      %v2510 = vshll.u32 %v2509, 30
      %v2511 = vsub.s32 %v2507, %v2510
      %vm2512 = vcmp.lt.s32.totalorder %v2511, 0
      %v2513 = vsub.s32 0, %v2511
      %v2514 = vsel %vm2512, %v2513, %v2511
      %v2515 = vclz %v2514
      %v2516 = vsub.s32 %v2515, 2
      %vm2517 = vcmp.gt.s32.totalorder 0, %v2516
      %v2518 = vsel %vm2517, 0, %v2516
      %v2519 = vsub.s32 32, %v2518
      %v2520 = vshll.u32 %v2511, %v2518
      %v2521 = vshrl.u32 %v2503, %v2519
      %v2522 = vor.u32 %v2520, %v2521
      %v2523 = vsub.s32 4294967266, %v2518
      %v2524 = vadd.s32 %v2523, 127
      %v2525 = vshll.u32 %v2524, 23
      %v2526 = vor.u32 4788187, %v2525
      %v2527 = vand.u32 2147483647, %v2526
      %v2529 = vcvt.s32.f32 %v2522
      %v2530 = vmul.f32 %v2529, %v2527
      %v2531 = vxor.u32 %v2530, 2147483648
      %v2532 = vsel %vm2449, %v2531, %v2530
      %v2533 = vsub.s32 4, %v2509
      %v2534 = vsel %vm2449, %v2533, %v2509
      %v2535 = vsel %vm2448, %v2027, %v2532
      %v2536 = vsel %vm2448, 0, %v2534
      %v2537 = vcosq.f32.pop %v2535
      %v2538 = vsinq.f32.pop %v2535
      %vm2539 = vweird.f32 %v2027
      %v2540 = vadd.s32 %v2536, 3
      %v2541 = vand.u32 %v2540, 3
      %vm2542 = vcmp.lt.s32.totalorder %v2541, 2
      %vm2543 = vcmp.eq.s32.totalorder %v2541, 0
      %v2544 = vxor.u32 %v2538, 2147483648
      %v2545 = vsel %vm2543, %v2537, %v2544
      %vm2546 = vcmp.eq.s32.totalorder %v2541, 2
      %v2547 = vxor.u32 %v2537, 2147483648
      %v2548 = vsel %vm2546, %v2547, %v2538
      %v2549 = vsel %vm2542, %v2545, %v2548
      %v2550 = vsel %vm2539, nan, %v2549
      %v2551 = vand.u32 2147483647, %v2028
      %vm2552 = vcmp.le.f32.partialorder %v2551, 0.7853982
      %vm2553 = vcmp.lt.s32.totalorder %v2028, 0
      %v2554 = vand.u32 %v2028, 2139095040
      %v2555 = vshrl.u32 %v2554, 23
      %v2556 = vsub.s32 %v2555, 127
      %v2557 = vand.u32 2147483647, %v2028
      %v2558 = vand.u32 %v2557, 8388607
      %v2559 = vor.u32 %v2558, 8388608
      %v2560 = vsub.s32 0, %v2559
      %v2561 = vadd.s32 %v2556, 1
      %vm2562 = vcmp.gt.s32.totalorder %v2561, 0
      %v2563 = vsel %vm2562, %v2561, 0
      %v2564 = vshrl.u32 %v2563, 5
      %v2565 = vand.u32 %v2563, 31
      %v2566 = vsub.s32 32, %v2565
      %v2567 = vshrl.u32 683565275, %v2566
      %v2568 = vshll.u32 683565275, %v2565
      %v2569 = vshrl.u32 2475754826, %v2566
      %v2570 = vor.u32 %v2568, %v2569
      %v2571 = vshll.u32 2475754826, %v2565
      %v2572 = vshrl.u32 2131351028, %v2566
      %v2573 = vor.u32 %v2571, %v2572
      %v2574 = vshll.u32 2131351028, %v2565
      %v2575 = vshrl.u32 2102212464, %v2566
      %v2576 = vor.u32 %v2574, %v2575
      %v2577 = vshll.u32 2102212464, %v2565
      %v2578 = vshrl.u32 920167782, %v2566
      %v2579 = vor.u32 %v2577, %v2578
      %v2580 = vshll.u32 920167782, %v2565
      %v2581 = vshrl.u32 1326507024, %v2566
      %v2582 = vor.u32 %v2580, %v2581
      %vm2583 = vcmp.lt.s32.totalorder %v2564, 1
      %vm2584 = vcmp.lt.s32.totalorder %v2564, 2
      %vm2585 = vcmp.lt.s32.totalorder %v2564, 3
      %vm2586 = vcmp.lt.s32.totalorder %v2564, 4
      %v2587 = vsel %vm2583, %v2567, %v2570
      %v2588 = vsel %vm2586, %v2576, 2102212464
      %v2589 = vsel %vm2585, %v2573, %v2588
      %v2590 = vsel %vm2584, %v2587, %v2589
      %v2591 = vsel %vm2583, %v2570, %v2573
      %v2592 = vsel %vm2586, %v2579, 920167782
      %v2593 = vsel %vm2585, %v2576, %v2592
      %v2594 = vsel %vm2584, %v2591, %v2593
      %v2595 = vsel %vm2583, %v2573, %v2576
      %v2596 = vsel %vm2586, %v2582, 1326507024
      %v2597 = vsel %vm2585, %v2579, %v2596
      %v2598 = vsel %vm2584, %v2595, %v2597
      %v2599 = vshll.u32 %v2559, 8
      %v2600 = vmul.u32.u64.compose %v2599, %v2598
      %v2601 = vextract.low.u32 %v2600
      %v2602 = vextract.high.u32 %v2600
      %v2603 = vmul.u32.u64.compose %v2599, %v2594
      %v2604 = vextract.low.u32 %v2603
      %v2605 = vextract.high.u32 %v2603
      %v2606 = vmul.u32 %v2599, %v2590
      %v2607 = vadd.s32 %v2602, %v2604
      %vm2608 = vc.u32 %v2602, %v2604
      %v2609 = vadd.s32 %v2605, 1
      %v2610 = vsel %vm2608, %v2609, %v2605
      %v2611 = vadd.s32 %v2606, %v2610
      %v2612 = vadd.s32 %v2611, 536870912
      %v2613 = vshrl.u32 %v2612, 30
      %v2614 = vshll.u32 %v2613, 30
      %v2615 = vsub.s32 %v2611, %v2614
      %vm2616 = vcmp.lt.s32.totalorder %v2615, 0
      %v2617 = vsub.s32 0, %v2615
      %v2618 = vsel %vm2616, %v2617, %v2615
      %v2619 = vclz %v2618
      %v2620 = vsub.s32 %v2619, 2
      %vm2621 = vcmp.gt.s32.totalorder 0, %v2620
      %v2622 = vsel %vm2621, 0, %v2620
      %v2623 = vsub.s32 32, %v2622
      %v2624 = vshll.u32 %v2615, %v2622
      %v2625 = vshrl.u32 %v2607, %v2623
      %v2626 = vor.u32 %v2624, %v2625
      %v2627 = vsub.s32 4294967266, %v2622
      %v2628 = vadd.s32 %v2627, 127
      %v2629 = vshll.u32 %v2628, 23
      %v2630 = vor.u32 4788187, %v2629
      %v2631 = vand.u32 2147483647, %v2630
      %v2633 = vcvt.s32.f32 %v2626
      %v2634 = vmul.f32 %v2633, %v2631
      %v2635 = vxor.u32 %v2634, 2147483648
      %v2636 = vsel %vm2553, %v2635, %v2634
      %v2637 = vsub.s32 4, %v2613
      %v2638 = vsel %vm2553, %v2637, %v2613
      %v2639 = vsel %vm2552, %v2028, %v2636
      %v2640 = vsel %vm2552, 0, %v2638
      %v2641 = vcosq.f32.pop %v2639
      %v2642 = vsinq.f32.pop %v2639
      %vm2643 = vweird.f32 %v2028
      %v2644 = vadd.s32 %v2640, 3
      %v2645 = vand.u32 %v2644, 3
      %vm2646 = vcmp.lt.s32.totalorder %v2645, 2
      %vm2647 = vcmp.eq.s32.totalorder %v2645, 0
      %v2648 = vxor.u32 %v2642, 2147483648
      %v2649 = vsel %vm2647, %v2641, %v2648
      %vm2650 = vcmp.eq.s32.totalorder %v2645, 2
      %v2651 = vxor.u32 %v2641, 2147483648
      %v2652 = vsel %vm2650, %v2651, %v2642
      %v2653 = vsel %vm2646, %v2649, %v2652
      %v2654 = vsel %vm2643, nan, %v2653
      %v2655 = vand.u32 2147483647, %v2029
      %vm2656 = vcmp.le.f32.partialorder %v2655, 0.7853982
      %vm2657 = vcmp.lt.s32.totalorder %v2029, 0
      %v2658 = vand.u32 %v2029, 2139095040
      %v2659 = vshrl.u32 %v2658, 23
      %v2660 = vsub.s32 %v2659, 127
      %v2661 = vand.u32 2147483647, %v2029
      %v2662 = vand.u32 %v2661, 8388607
      %v2663 = vor.u32 %v2662, 8388608
      %v2664 = vsub.s32 0, %v2663
      %v2665 = vadd.s32 %v2660, 1
      %vm2666 = vcmp.gt.s32.totalorder %v2665, 0
      %v2667 = vsel %vm2666, %v2665, 0
      %v2668 = vshrl.u32 %v2667, 5
      %v2669 = vand.u32 %v2667, 31
      %v2670 = vsub.s32 32, %v2669
      %v2671 = vshrl.u32 683565275, %v2670
      %v2672 = vshll.u32 683565275, %v2669
      %v2673 = vshrl.u32 2475754826, %v2670
      %v2674 = vor.u32 %v2672, %v2673
      %v2675 = vshll.u32 2475754826, %v2669
      %v2676 = vshrl.u32 2131351028, %v2670
      %v2677 = vor.u32 %v2675, %v2676
      %v2678 = vshll.u32 2131351028, %v2669
      %v2679 = vshrl.u32 2102212464, %v2670
      %v2680 = vor.u32 %v2678, %v2679
      %v2681 = vshll.u32 2102212464, %v2669
      %v2682 = vshrl.u32 920167782, %v2670
      %v2683 = vor.u32 %v2681, %v2682
      %v2684 = vshll.u32 920167782, %v2669
      %v2685 = vshrl.u32 1326507024, %v2670
      %v2686 = vor.u32 %v2684, %v2685
      %vm2687 = vcmp.lt.s32.totalorder %v2668, 1
      %vm2688 = vcmp.lt.s32.totalorder %v2668, 2
      %vm2689 = vcmp.lt.s32.totalorder %v2668, 3
      %vm2690 = vcmp.lt.s32.totalorder %v2668, 4
      %v2691 = vsel %vm2687, %v2671, %v2674
      %v2692 = vsel %vm2690, %v2680, 2102212464
      %v2693 = vsel %vm2689, %v2677, %v2692
      %v2694 = vsel %vm2688, %v2691, %v2693
      %v2695 = vsel %vm2687, %v2674, %v2677
      %v2696 = vsel %vm2690, %v2683, 920167782
      %v2697 = vsel %vm2689, %v2680, %v2696
      %v2698 = vsel %vm2688, %v2695, %v2697
      %v2699 = vsel %vm2687, %v2677, %v2680
      %v2700 = vsel %vm2690, %v2686, 1326507024
      %v2701 = vsel %vm2689, %v2683, %v2700
      %v2702 = vsel %vm2688, %v2699, %v2701
      %v2703 = vshll.u32 %v2663, 8
      %v2704 = vmul.u32.u64.compose %v2703, %v2702
      %v2705 = vextract.low.u32 %v2704
      %v2706 = vextract.high.u32 %v2704
      %v2707 = vmul.u32.u64.compose %v2703, %v2698
      %v2708 = vextract.low.u32 %v2707
      %v2709 = vextract.high.u32 %v2707
      %v2710 = vmul.u32 %v2703, %v2694
      %v2711 = vadd.s32 %v2706, %v2708
      %vm2712 = vc.u32 %v2706, %v2708
      %v2713 = vadd.s32 %v2709, 1
      %v2714 = vsel %vm2712, %v2713, %v2709
      %v2715 = vadd.s32 %v2710, %v2714
      %v2716 = vadd.s32 %v2715, 536870912
      %v2717 = vshrl.u32 %v2716, 30
      %v2718 = vshll.u32 %v2717, 30
      %v2719 = vsub.s32 %v2715, %v2718
      %vm2720 = vcmp.lt.s32.totalorder %v2719, 0
      %v2721 = vsub.s32 0, %v2719
      %v2722 = vsel %vm2720, %v2721, %v2719
      %v2723 = vclz %v2722
      %v2724 = vsub.s32 %v2723, 2
      %vm2725 = vcmp.gt.s32.totalorder 0, %v2724
      %v2726 = vsel %vm2725, 0, %v2724
      %v2727 = vsub.s32 32, %v2726
      %v2728 = vshll.u32 %v2719, %v2726
      %v2729 = vshrl.u32 %v2711, %v2727
      %v2730 = vor.u32 %v2728, %v2729
      %v2731 = vsub.s32 4294967266, %v2726
      %v2732 = vadd.s32 %v2731, 127
      %v2733 = vshll.u32 %v2732, 23
      %v2734 = vor.u32 4788187, %v2733
      %v2735 = vand.u32 2147483647, %v2734
      %v2737 = vcvt.s32.f32 %v2730
      %v2738 = vmul.f32 %v2737, %v2735
      %v2739 = vxor.u32 %v2738, 2147483648
      %v2740 = vsel %vm2657, %v2739, %v2738
      %v2741 = vsub.s32 4, %v2717
      %v2742 = vsel %vm2657, %v2741, %v2717
      %v2743 = vsel %vm2656, %v2029, %v2740
      %v2744 = vsel %vm2656, 0, %v2742
      %v2745 = vcosq.f32.pop %v2743
      %v2746 = vsinq.f32.pop %v2743
      %vm2747 = vweird.f32 %v2029
      %v2748 = vadd.s32 %v2744, 3
      %v2749 = vand.u32 %v2748, 3
      %vm2750 = vcmp.lt.s32.totalorder %v2749, 2
      %vm2751 = vcmp.eq.s32.totalorder %v2749, 0
      %v2752 = vxor.u32 %v2746, 2147483648
      %v2753 = vsel %vm2751, %v2745, %v2752
      %vm2754 = vcmp.eq.s32.totalorder %v2749, 2
      %v2755 = vxor.u32 %v2745, 2147483648
      %v2756 = vsel %vm2754, %v2755, %v2746
      %v2757 = vsel %vm2750, %v2753, %v2756
      %v2758 = vsel %vm2747, nan, %v2757
      %v2759 = vand.u32 2147483647, %v2030
      %vm2760 = vcmp.le.f32.partialorder %v2759, 0.7853982
      %vm2761 = vcmp.lt.s32.totalorder %v2030, 0
      %v2762 = vand.u32 %v2030, 2139095040
      %v2763 = vshrl.u32 %v2762, 23
      %v2764 = vsub.s32 %v2763, 127
      %v2765 = vand.u32 2147483647, %v2030
      %v2766 = vand.u32 %v2765, 8388607
      %v2767 = vor.u32 %v2766, 8388608
      %v2768 = vsub.s32 0, %v2767
      %v2769 = vadd.s32 %v2764, 1
      %vm2770 = vcmp.gt.s32.totalorder %v2769, 0
      %v2771 = vsel %vm2770, %v2769, 0
      %v2772 = vshrl.u32 %v2771, 5
      %v2773 = vand.u32 %v2771, 31
      %v2774 = vsub.s32 32, %v2773
      %v2775 = vshrl.u32 683565275, %v2774
      %v2776 = vshll.u32 683565275, %v2773
      %v2777 = vshrl.u32 2475754826, %v2774
      %v2778 = vor.u32 %v2776, %v2777
      %v2779 = vshll.u32 2475754826, %v2773
      %v2780 = vshrl.u32 2131351028, %v2774
      %v2781 = vor.u32 %v2779, %v2780
      %v2782 = vshll.u32 2131351028, %v2773
      %v2783 = vshrl.u32 2102212464, %v2774
      %v2784 = vor.u32 %v2782, %v2783
      %v2785 = vshll.u32 2102212464, %v2773
      %v2786 = vshrl.u32 920167782, %v2774
      %v2787 = vor.u32 %v2785, %v2786
      %v2788 = vshll.u32 920167782, %v2773
      %v2789 = vshrl.u32 1326507024, %v2774
      %v2790 = vor.u32 %v2788, %v2789
      %vm2791 = vcmp.lt.s32.totalorder %v2772, 1
      %vm2792 = vcmp.lt.s32.totalorder %v2772, 2
      %vm2793 = vcmp.lt.s32.totalorder %v2772, 3
      %vm2794 = vcmp.lt.s32.totalorder %v2772, 4
      %v2795 = vsel %vm2791, %v2775, %v2778
      %v2796 = vsel %vm2794, %v2784, 2102212464
      %v2797 = vsel %vm2793, %v2781, %v2796
      %v2798 = vsel %vm2792, %v2795, %v2797
      %v2799 = vsel %vm2791, %v2778, %v2781
      %v2800 = vsel %vm2794, %v2787, 920167782
      %v2801 = vsel %vm2793, %v2784, %v2800
      %v2802 = vsel %vm2792, %v2799, %v2801
      %v2803 = vsel %vm2791, %v2781, %v2784
      %v2804 = vsel %vm2794, %v2790, 1326507024
      %v2805 = vsel %vm2793, %v2787, %v2804
      %v2806 = vsel %vm2792, %v2803, %v2805
      %v2807 = vshll.u32 %v2767, 8
      %v2808 = vmul.u32.u64.compose %v2807, %v2806
      %v2809 = vextract.low.u32 %v2808
      %v2810 = vextract.high.u32 %v2808
      %v2811 = vmul.u32.u64.compose %v2807, %v2802
      %v2812 = vextract.low.u32 %v2811
      %v2813 = vextract.high.u32 %v2811
      %v2814 = vmul.u32 %v2807, %v2798
      %v2815 = vadd.s32 %v2810, %v2812
      %vm2816 = vc.u32 %v2810, %v2812
      %v2817 = vadd.s32 %v2813, 1
      %v2818 = vsel %vm2816, %v2817, %v2813
      %v2819 = vadd.s32 %v2814, %v2818
      %v2820 = vadd.s32 %v2819, 536870912
      %v2821 = vshrl.u32 %v2820, 30
      %v2822 = vshll.u32 %v2821, 30
      %v2823 = vsub.s32 %v2819, %v2822
      %vm2824 = vcmp.lt.s32.totalorder %v2823, 0
      %v2825 = vsub.s32 0, %v2823
      %v2826 = vsel %vm2824, %v2825, %v2823
      %v2827 = vclz %v2826
      %v2828 = vsub.s32 %v2827, 2
      %vm2829 = vcmp.gt.s32.totalorder 0, %v2828
      %v2830 = vsel %vm2829, 0, %v2828
      %v2831 = vsub.s32 32, %v2830
      %v2832 = vshll.u32 %v2823, %v2830
      %v2833 = vshrl.u32 %v2815, %v2831
      %v2834 = vor.u32 %v2832, %v2833
      %v2835 = vsub.s32 4294967266, %v2830
      %v2836 = vadd.s32 %v2835, 127
      %v2837 = vshll.u32 %v2836, 23
      %v2838 = vor.u32 4788187, %v2837
      %v2839 = vand.u32 2147483647, %v2838
      %v2841 = vcvt.s32.f32 %v2834
      %v2842 = vmul.f32 %v2841, %v2839
      %v2843 = vxor.u32 %v2842, 2147483648
      %v2844 = vsel %vm2761, %v2843, %v2842
      %v2845 = vsub.s32 4, %v2821
      %v2846 = vsel %vm2761, %v2845, %v2821
      %v2847 = vsel %vm2760, %v2030, %v2844
      %v2848 = vsel %vm2760, 0, %v2846
      %v2849 = vcosq.f32.pop %v2847
      %v2850 = vsinq.f32.pop %v2847
      %vm2851 = vweird.f32 %v2030
      %v2852 = vadd.s32 %v2848, 3
      %v2853 = vand.u32 %v2852, 3
      %vm2854 = vcmp.lt.s32.totalorder %v2853, 2
      %vm2855 = vcmp.eq.s32.totalorder %v2853, 0
      %v2856 = vxor.u32 %v2850, 2147483648
      %v2857 = vsel %vm2855, %v2849, %v2856
      %vm2858 = vcmp.eq.s32.totalorder %v2853, 2
      %v2859 = vxor.u32 %v2849, 2147483648
      %v2860 = vsel %vm2858, %v2859, %v2850
      %v2861 = vsel %vm2854, %v2857, %v2860
      %v2862 = vsel %vm2851, nan, %v2861
      %v2863 = vpack.c.bf16 %v2238, %v2134
      %v2864 = vpack.c.bf16 %v2446, %v2342
      %v2865 = vpack.c.bf16 %v2654, %v2550
      %v2866 = vpack.c.bf16 %v2862, %v2758
      %v2867 = vld [vmem:[%s7] sm:$0xf]
      %v2868 = vld [vmem:[%s7 + $0x4] sm:$0xf]
      %v2869 = vld [vmem:[%s7 + $0x8] sm:$0xf]
      %v2870 = vld [vmem:[%s8] sm:$0x1]
      %v2872 = vlaneseq
      %v2873 = vshrl.u32 %v2872, 7
      %v2874 = vsub.s32 0, %v2873
      %v2875 = vrot.slane %v2870, %v2874
      %v2880 = vunpack.c.l.b16 %v2867
      %v2881 = vunpack.c.l.b16 %v2868
      %v2882 = vunpack.c.l.b16 %v2869
      %v2883 = vpack.c.b16 %v2881, %v2880
      %v2884 = vpack.c.b16 %v2882, %v2882
      %vm2886 = vcmask 195584
      %v2888 = vsel %vm2886, %v2863, 0
      %v2891 = vsel %vm2886, %v2864, 0
      %v2894 = vsel %vm2886, %v2865, 0
      %v2897 = vsel %vm2886, %v2866, 0
      %vm2899 = vcmask 1043456
      %v2901 = vsel %vm2899, %v2884, 0
      %2903 = vmatprep.subr.bf16.mxu0 0
      %2904 = vmatpush1.bf16.msra.mxu0 0
      %2905 = vmatprep.subr.bf16.mxu0 0
      %2906 = vmatpush1.bf16.msra.mxu0 0
      %2907 = vmatprep.subr.bf16.mxu0 0
      %2908 = vmatpush1.bf16.msra.mxu0 0
      %2909 = vmatprep.subr.bf16.mxu0 0
      %2910 = vmatpush1.bf16.msra.mxu0 0
      %2911 = vmatprep.subr.bf16.mxu0 0
      %2912 = vmatpush1.bf16.msra.mxu0 0
      %2913 = vmatprep.subr.bf16.mxu0 0
      %2914 = vmatpush1.bf16.msra.mxu0 0
      %2915 = vmatprep.subr.bf16.mxu0 0
      %2916 = vmatpush1.bf16.msra.mxu0 %v2901
      %2917 = vmatprep.subr.bf16.mxu0 0
      %2918 = vmatpush1.bf16.msra.mxu0 %v2883
      %2919 = vmatprep.subr.bf16.mxu0 0
      %2920 = vmatpush2.bf16.msra.mxu0 0
      %2921 = vmatprep.subr.bf16.mxu0 0
      %2922 = vmatpush2.bf16.msra.mxu0 0
      %2923 = vmatprep.subr.bf16.mxu0 0
      %2924 = vmatpush2.bf16.msra.mxu0 0
      %2925 = vmatprep.subr.bf16.mxu0 0
      %2926 = vmatpush2.bf16.msra.mxu0 0
      %2927 = vmatprep.subr.bf16.mxu0 0
      %2928 = vmatpush2.bf16.msra.mxu0 0
      %2929 = vmatprep.subr.bf16.mxu0 0
      %2930 = vmatpush2.bf16.msra.mxu0 0
      %2931 = vmatprep.subr.bf16.mxu0 0
      %2932 = vmatpush2.bf16.msra.mxu0 0
      %2933 = vmatprep.subr.bf16.mxu0 0
      %2934 = vmatpush2.bf16.msra.mxu0 0
      %2935 = vmatprep.mubr.bf16.mxu0 0
      %2936 = vmatmul.mubr.bf16.gmra.mxu0 %v2888
      %v2937 = vpop.f32.mrf.mxu0
      %v2938 = vadd.f32 %v2875, %v2937
      %v2939 = vpop.f32.mrf.mxu0
      %v2940 = vpop.f32.mrf.mxu0
      %v2941 = vadd.f32 %v2875, %v2940
      %v2942 = vpop.f32.mrf.mxu0
      %2943 = vmatprep.mubr.bf16.mxu0 0
      %2944 = vmatmul.mubr.bf16.gmra.mxu0 %v2891
      %v2945 = vpop.f32.mrf.mxu0
      %v2946 = vadd.f32 %v2875, %v2945
      %v2947 = vpop.f32.mrf.mxu0
      %v2948 = vpop.f32.mrf.mxu0
      %v2949 = vadd.f32 %v2875, %v2948
      %v2950 = vpop.f32.mrf.mxu0
      %2951 = vmatprep.mubr.bf16.mxu0 0
      %2952 = vmatmul.mubr.bf16.gmra.mxu0 %v2894
      %v2953 = vpop.f32.mrf.mxu0
      %v2954 = vadd.f32 %v2875, %v2953
      %v2955 = vpop.f32.mrf.mxu0
      %v2956 = vpop.f32.mrf.mxu0
      %v2957 = vadd.f32 %v2875, %v2956
      %v2958 = vpop.f32.mrf.mxu0
      %2959 = vmatprep.mubr.bf16.mxu0 0
      %2960 = vmatmul.mubr.bf16.gmra.mxu0 %v2897
      %v2961 = vpop.f32.mrf.mxu0
      %v2962 = vadd.f32 %v2875, %v2961
      %v2963 = vpop.f32.mrf.mxu0
      %v2964 = vpop.f32.mrf.mxu0
      %v2965 = vadd.f32 %v2875, %v2964
      %v2966 = vpop.f32.mrf.mxu0
      %2967 = vdwg.mxu0
      %v2968 = vmul.f32 %v2938, 0.5
      %v2969 = vmul.f32 %v2941, 0.5
      %v2970 = vmul.f32 %v2946, 0.5
      %v2971 = vmul.f32 %v2949, 0.5
      %v2972 = vmul.f32 %v2954, 0.5
      %v2973 = vmul.f32 %v2957, 0.5
      %v2974 = vmul.f32 %v2962, 0.5
      %v2975 = vmul.f32 %v2965, 0.5
      %v2976 = vmul.f32 %v2938, 0.70710677
      %v2977 = vmul.f32 %v2941, 0.70710677
      %v2978 = vmul.f32 %v2946, 0.70710677
      %v2979 = vmul.f32 %v2949, 0.70710677
      %v2980 = vmul.f32 %v2954, 0.70710677
      %v2981 = vmul.f32 %v2957, 0.70710677
      %v2982 = vmul.f32 %v2962, 0.70710677
      %v2983 = vmul.f32 %v2965, 0.70710677
      %v2984 = vand.u32 2147483647, %v2976
      %v2985 = vand.u32 2147483647, %v2977
      %v2986 = vand.u32 2147483647, %v2978
      %v2987 = vand.u32 2147483647, %v2979
      %v2988 = vand.u32 2147483647, %v2980
      %v2989 = vand.u32 2147483647, %v2981
      %v2990 = vand.u32 2147483647, %v2982
      %v2991 = vand.u32 2147483647, %v2983
      %v2992 = vmul.f32 %v2984, 0.3275911
      %v2993 = vmul.f32 %v2985, 0.3275911
      %v2994 = vmul.f32 %v2986, 0.3275911
      %v2995 = vmul.f32 %v2987, 0.3275911
      %v2996 = vmul.f32 %v2988, 0.3275911
      %v2997 = vmul.f32 %v2989, 0.3275911
      %v2998 = vmul.f32 %v2990, 0.3275911
      %v2999 = vmul.f32 %v2991, 0.3275911
      %v3000 = vadd.f32 %v2992, 1.0
      %v3001 = vadd.f32 %v2993, 1.0
      %v3002 = vadd.f32 %v2994, 1.0
      %v3003 = vadd.f32 %v2995, 1.0
      %v3004 = vadd.f32 %v2996, 1.0
      %v3005 = vadd.f32 %v2997, 1.0
      %v3006 = vadd.f32 %v2998, 1.0
      %v3007 = vadd.f32 %v2999, 1.0
      %v3008 = vrcp.pop %v3000
      %v3009 = vrcp.pop %v3001
      %v3010 = vrcp.pop %v3002
      %v3011 = vrcp.pop %v3003
      %v3012 = vrcp.pop %v3004
      %v3013 = vrcp.pop %v3005
      %v3014 = vrcp.pop %v3006
      %v3015 = vrcp.pop %v3007
      %v3016 = vmul.f32 %v3008, 1.0614054
      %v3017 = vmul.f32 %v3009, 1.0614054
      %v3018 = vmul.f32 %v3010, 1.0614054
      %v3019 = vmul.f32 %v3011, 1.0614054
      %v3020 = vmul.f32 %v3012, 1.0614054
      %v3021 = vmul.f32 %v3013, 1.0614054
      %v3022 = vmul.f32 %v3014, 1.0614054
      %v3023 = vmul.f32 %v3015, 1.0614054
      %v3024 = vadd.f32 %v3016, -1.4531521
      %v3025 = vadd.f32 %v3017, -1.4531521
      %v3026 = vadd.f32 %v3018, -1.4531521
      %v3027 = vadd.f32 %v3019, -1.4531521
      %v3028 = vadd.f32 %v3020, -1.4531521
      %v3029 = vadd.f32 %v3021, -1.4531521
      %v3030 = vadd.f32 %v3022, -1.4531521
      %v3031 = vadd.f32 %v3023, -1.4531521
      %v3032 = vmul.f32 %v3024, %v3008
      %v3033 = vmul.f32 %v3025, %v3009
      %v3034 = vmul.f32 %v3026, %v3010
      %v3035 = vmul.f32 %v3027, %v3011
      %v3036 = vmul.f32 %v3028, %v3012
      %v3037 = vmul.f32 %v3029, %v3013
      %v3038 = vmul.f32 %v3030, %v3014
      %v3039 = vmul.f32 %v3031, %v3015
      %v3040 = vadd.f32 %v3032, 1.4214138
      %v3041 = vadd.f32 %v3033, 1.4214138
      %v3042 = vadd.f32 %v3034, 1.4214138
      %v3043 = vadd.f32 %v3035, 1.4214138
      %v3044 = vadd.f32 %v3036, 1.4214138
      %v3045 = vadd.f32 %v3037, 1.4214138
      %v3046 = vadd.f32 %v3038, 1.4214138
      %v3047 = vadd.f32 %v3039, 1.4214138
      %v3048 = vmul.f32 %v3040, %v3008
      %v3049 = vmul.f32 %v3041, %v3009
      %v3050 = vmul.f32 %v3042, %v3010
      %v3051 = vmul.f32 %v3043, %v3011
      %v3052 = vmul.f32 %v3044, %v3012
      %v3053 = vmul.f32 %v3045, %v3013
      %v3054 = vmul.f32 %v3046, %v3014
      %v3055 = vmul.f32 %v3047, %v3015
      %v3056 = vadd.f32 %v3048, -0.28449672
      %v3057 = vadd.f32 %v3049, -0.28449672
      %v3058 = vadd.f32 %v3050, -0.28449672
      %v3059 = vadd.f32 %v3051, -0.28449672
      %v3060 = vadd.f32 %v3052, -0.28449672
      %v3061 = vadd.f32 %v3053, -0.28449672
      %v3062 = vadd.f32 %v3054, -0.28449672
      %v3063 = vadd.f32 %v3055, -0.28449672
      %v3064 = vmul.f32 %v3056, %v3008
      %v3065 = vmul.f32 %v3057, %v3009
      %v3066 = vmul.f32 %v3058, %v3010
      %v3067 = vmul.f32 %v3059, %v3011
      %v3068 = vmul.f32 %v3060, %v3012
      %v3069 = vmul.f32 %v3061, %v3013
      %v3070 = vmul.f32 %v3062, %v3014
      %v3071 = vmul.f32 %v3063, %v3015
      %v3072 = vadd.f32 %v3064, 0.2548296
      %v3073 = vadd.f32 %v3065, 0.2548296
      %v3074 = vadd.f32 %v3066, 0.2548296
      %v3075 = vadd.f32 %v3067, 0.2548296
      %v3076 = vadd.f32 %v3068, 0.2548296
      %v3077 = vadd.f32 %v3069, 0.2548296
      %v3078 = vadd.f32 %v3070, 0.2548296
      %v3079 = vadd.f32 %v3071, 0.2548296
      %v3080 = vmul.f32 %v3072, %v3008
      %v3081 = vmul.f32 %v3073, %v3009
      %v3082 = vmul.f32 %v3074, %v3010
      %v3083 = vmul.f32 %v3075, %v3011
      %v3084 = vmul.f32 %v3076, %v3012
      %v3085 = vmul.f32 %v3077, %v3013
      %v3086 = vmul.f32 %v3078, %v3014
      %v3087 = vmul.f32 %v3079, %v3015
      %v3088 = vsub.f32 0.0, %v2984
      %v3089 = vsub.f32 0.0, %v2985
      %v3090 = vsub.f32 0.0, %v2986
      %v3091 = vsub.f32 0.0, %v2987
      %v3092 = vsub.f32 0.0, %v2988
      %v3093 = vsub.f32 0.0, %v2989
      %v3094 = vsub.f32 0.0, %v2990
      %v3095 = vsub.f32 0.0, %v2991
      %v3096 = vmul.f32 %v3088, %v2984
      %v3097 = vmul.f32 %v3089, %v2985
      %v3098 = vmul.f32 %v3090, %v2986
      %v3099 = vmul.f32 %v3091, %v2987
      %v3100 = vmul.f32 %v3092, %v2988
      %v3101 = vmul.f32 %v3093, %v2989
      %v3102 = vmul.f32 %v3094, %v2990
      %v3103 = vmul.f32 %v3095, %v2991
      %v3104 = vmul.f32 %v3096, 1.442695
      %v3105 = vpow.pop %v3104
      %v3106 = vmul.f32 %v3097, 1.442695
      %v3107 = vpow.pop %v3106
      %v3108 = vmul.f32 %v3098, 1.442695
      %v3109 = vpow.pop %v3108
      %v3110 = vmul.f32 %v3099, 1.442695
      %v3111 = vpow.pop %v3110
      %v3112 = vmul.f32 %v3100, 1.442695
      %v3113 = vpow.pop %v3112
      %v3114 = vmul.f32 %v3101, 1.442695
      %v3115 = vpow.pop %v3114
      %v3116 = vmul.f32 %v3102, 1.442695
      %v3117 = vpow.pop %v3116
      %v3118 = vmul.f32 %v3103, 1.442695
      %v3119 = vpow.pop %v3118
      %v3120 = vmul.f32 %v3080, %v3105
      %v3121 = vmul.f32 %v3081, %v3107
      %v3122 = vmul.f32 %v3082, %v3109
      %v3123 = vmul.f32 %v3083, %v3111
      %v3124 = vmul.f32 %v3084, %v3113
      %v3125 = vmul.f32 %v3085, %v3115
      %v3126 = vmul.f32 %v3086, %v3117
      %v3127 = vmul.f32 %v3087, %v3119
      %v3128 = vsub.f32 1.0, %v3120
      %v3129 = vsub.f32 1.0, %v3121
      %v3130 = vsub.f32 1.0, %v3122
      %v3131 = vsub.f32 1.0, %v3123
      %v3132 = vsub.f32 1.0, %v3124
      %v3133 = vsub.f32 1.0, %v3125
      %v3134 = vsub.f32 1.0, %v3126
      %v3135 = vsub.f32 1.0, %v3127
      %vm3136 = vcmp.lt.f32.partialorder %v2976, 0.0
      %vm3137 = vcmp.lt.f32.partialorder %v2977, 0.0
      %vm3138 = vcmp.lt.f32.partialorder %v2978, 0.0
      %vm3139 = vcmp.lt.f32.partialorder %v2979, 0.0
      %vm3140 = vcmp.lt.f32.partialorder %v2980, 0.0
      %vm3141 = vcmp.lt.f32.partialorder %v2981, 0.0
      %vm3142 = vcmp.lt.f32.partialorder %v2982, 0.0
      %vm3143 = vcmp.lt.f32.partialorder %v2983, 0.0
      %v3144 = vsub.f32 0.0, %v3128
      %v3145 = vsub.f32 0.0, %v3129
      %v3146 = vsub.f32 0.0, %v3130
      %v3147 = vsub.f32 0.0, %v3131
      %v3148 = vsub.f32 0.0, %v3132
      %v3149 = vsub.f32 0.0, %v3133
      %v3150 = vsub.f32 0.0, %v3134
      %v3151 = vsub.f32 0.0, %v3135
      %v3152 = vsel %vm3136, %v3144, %v3128
      %v3153 = vsel %vm3137, %v3145, %v3129
      %v3154 = vsel %vm3138, %v3146, %v3130
      %v3155 = vsel %vm3139, %v3147, %v3131
      %v3156 = vsel %vm3140, %v3148, %v3132
      %v3157 = vsel %vm3141, %v3149, %v3133
      %v3158 = vsel %vm3142, %v3150, %v3134
      %v3159 = vsel %vm3143, %v3151, %v3135
      %v3160 = vadd.f32 %v3152, 1.0
      %v3161 = vadd.f32 %v3153, 1.0
      %v3162 = vadd.f32 %v3154, 1.0
      %v3163 = vadd.f32 %v3155, 1.0
      %v3164 = vadd.f32 %v3156, 1.0
      %v3165 = vadd.f32 %v3157, 1.0
      %v3166 = vadd.f32 %v3158, 1.0
      %v3167 = vadd.f32 %v3159, 1.0
      %v3168 = vmul.f32 %v2968, %v3160
      %v3169 = vmul.f32 %v2969, %v3161
      %v3170 = vmul.f32 %v2970, %v3162
      %v3171 = vmul.f32 %v2971, %v3163
      %v3172 = vmul.f32 %v2972, %v3164
      %v3173 = vmul.f32 %v2973, %v3165
      %v3174 = vmul.f32 %v2974, %v3166
      %v3175 = vmul.f32 %v2975, %v3167
      %v3176 = vpack.c.bf16 %v3169, %v3168
      %v3177 = vpack.c.bf16 %v3171, %v3170
      %v3178 = vpack.c.bf16 %v3173, %v3172
      %v3179 = vpack.c.bf16 %v3175, %v3174
      %v3180 = vld [vmem:[%s9] sm:$0xf]
      %v3181 = vld [vmem:[%s9 + $0x4] sm:$0xf]
      %v3182 = vld [vmem:[%s9 + $0x8] sm:$0xf]
      %v3183 = vld [vmem:[%s9 + $0xc] sm:$0xf]
      %v3184 = vld [vmem:[%s9 + $0x10] sm:$0xf]
      %v3185 = vld [vmem:[%s9 + $0x14] sm:$0xf]
      %v3186 = vld [vmem:[%s9 + $0x18] sm:$0xf]
      %v3187 = vld [vmem:[%s9 + $0x1c] sm:$0xf]
      %v3188 = vld [vmem:[%s9 + $0x20] sm:$0xf]
      %v3189 = vld [vmem:[%s9 + $0x24] sm:$0xf]
      %v3190 = vld [vmem:[%s9 + $0x28] sm:$0xf]
      %v3191 = vld [vmem:[%s9 + $0x2c] sm:$0xf]
      %v3192 = vld [vmem:[%s9 + $0x30] sm:$0xf]
      %v3193 = vld [vmem:[%s9 + $0x34] sm:$0xf]
      %v3194 = vld [vmem:[%s9 + $0x38] sm:$0xf]
      %v3195 = vld [vmem:[%s9 + $0x3c] sm:$0xf]
      %v3196 = vld [vmem:[%s10] sm:$0x1]
      %v3198 = vlaneseq
      %v3199 = vshrl.u32 %v3198, 7
      %v3200 = vsub.s32 0, %v3199
      %v3201 = vrot.slane %v3196, %v3200
      %v3219 = vunpack.c.l.b16 %v3180
      %v3220 = vunpack.c.l.b16 %v3181
      %v3221 = vunpack.c.l.b16 %v3182
      %v3222 = vunpack.c.l.b16 %v3183
      %v3223 = vunpack.c.l.b16 %v3184
      %v3224 = vunpack.c.l.b16 %v3185
      %v3225 = vunpack.c.l.b16 %v3186
      %v3226 = vunpack.c.l.b16 %v3187
      %v3227 = vunpack.c.l.b16 %v3188
      %v3228 = vunpack.c.l.b16 %v3189
      %v3229 = vunpack.c.l.b16 %v3190
      %v3230 = vunpack.c.l.b16 %v3191
      %v3231 = vunpack.c.l.b16 %v3192
      %v3232 = vunpack.c.l.b16 %v3193
      %v3233 = vunpack.c.l.b16 %v3194
      %v3234 = vunpack.c.l.b16 %v3195
      %v3235 = vpack.c.b16 %v3220, %v3219
      %v3236 = vpack.c.b16 %v3222, %v3221
      %v3237 = vpack.c.b16 %v3224, %v3223
      %v3238 = vpack.c.b16 %v3226, %v3225
      %v3239 = vpack.c.b16 %v3228, %v3227
      %v3240 = vpack.c.b16 %v3230, %v3229
      %v3241 = vpack.c.b16 %v3232, %v3231
      %v3242 = vpack.c.b16 %v3234, %v3233
      %3251 = vmatprep.subr.bf16.mxu0 0
      %3252 = vmatpush1.bf16.msra.mxu0 %v3242
      %3253 = vmatprep.subr.bf16.mxu0 0
      %3254 = vmatpush1.bf16.msra.mxu0 %v3241
      %3255 = vmatprep.subr.bf16.mxu0 0
      %3256 = vmatpush1.bf16.msra.mxu0 %v3240
      %3257 = vmatprep.subr.bf16.mxu0 0
      %3258 = vmatpush1.bf16.msra.mxu0 %v3239
      %3259 = vmatprep.subr.bf16.mxu0 0
      %3260 = vmatpush1.bf16.msra.mxu0 %v3238
      %3261 = vmatprep.subr.bf16.mxu0 0
      %3262 = vmatpush1.bf16.msra.mxu0 %v3237
      %3263 = vmatprep.subr.bf16.mxu0 0
      %3264 = vmatpush1.bf16.msra.mxu0 %v3236
      %3265 = vmatprep.subr.bf16.mxu0 0
      %3266 = vmatpush1.bf16.msra.mxu0 %v3235
      %3267 = vmatprep.subr.bf16.mxu0 0
      %3268 = vmatpush2.bf16.msra.mxu0 0
      %3269 = vmatprep.subr.bf16.mxu0 0
      %3270 = vmatpush2.bf16.msra.mxu0 0
      %3271 = vmatprep.subr.bf16.mxu0 0
      %3272 = vmatpush2.bf16.msra.mxu0 0
      %3273 = vmatprep.subr.bf16.mxu0 0
      %3274 = vmatpush2.bf16.msra.mxu0 0
      %3275 = vmatprep.subr.bf16.mxu0 0
      %3276 = vmatpush2.bf16.msra.mxu0 0
      %3277 = vmatprep.subr.bf16.mxu0 0
      %3278 = vmatpush2.bf16.msra.mxu0 0
      %3279 = vmatprep.subr.bf16.mxu0 0
      %3280 = vmatpush2.bf16.msra.mxu0 0
      %3281 = vmatprep.subr.bf16.mxu0 0
      %3282 = vmatpush2.bf16.msra.mxu0 0
      %3283 = vmatprep.mubr.bf16.mxu0 0
      %3284 = vmatmul.mubr.bf16.gmra.mxu0 %v3176
      %v3285 = vpop.f32.mrf.mxu0
      %v3286 = vadd.f32 %v3201, %v3285
      %v3287 = vpop.f32.mrf.mxu0
      %v3288 = vpop.f32.mrf.mxu0
      %v3289 = vadd.f32 %v3201, %v3288
      %v3290 = vpop.f32.mrf.mxu0
      %3291 = vmatprep.mubr.bf16.mxu0 0
      %3292 = vmatmul.mubr.bf16.gmra.mxu0 %v3177
      %v3293 = vpop.f32.mrf.mxu0
      %v3294 = vadd.f32 %v3201, %v3293
      %v3295 = vpop.f32.mrf.mxu0
      %v3296 = vpop.f32.mrf.mxu0
      %v3297 = vadd.f32 %v3201, %v3296
      %v3298 = vpop.f32.mrf.mxu0
      %3299 = vmatprep.mubr.bf16.mxu0 0
      %3300 = vmatmul.mubr.bf16.gmra.mxu0 %v3178
      %v3301 = vpop.f32.mrf.mxu0
      %v3302 = vadd.f32 %v3201, %v3301
      %v3303 = vpop.f32.mrf.mxu0
      %v3304 = vpop.f32.mrf.mxu0
      %v3305 = vadd.f32 %v3201, %v3304
      %v3306 = vpop.f32.mrf.mxu0
      %3307 = vmatprep.mubr.bf16.mxu0 0
      %3308 = vmatmul.mubr.bf16.gmra.mxu0 %v3179
      %v3309 = vpop.f32.mrf.mxu0
      %v3310 = vadd.f32 %v3201, %v3309
      %v3311 = vpop.f32.mrf.mxu0
      %v3312 = vpop.f32.mrf.mxu0
      %v3313 = vadd.f32 %v3201, %v3312
      %v3314 = vpop.f32.mrf.mxu0
      %3315 = vdwg.mxu0
      %v3316 = vadd.f32 %v1985, %v3286
      %v3317 = vadd.f32 %v1986, %v3289
      %v3318 = vadd.f32 %v1987, %v3294
      %v3319 = vadd.f32 %v1988, %v3297
      %v3320 = vadd.f32 %v1989, %v3302
      %v3321 = vadd.f32 %v1990, %v3305
      %v3322 = vadd.f32 %v1991, %v3310
      %v3323 = vadd.f32 %v1992, %v3313
      %v3324 = vmul.f32 %v3316, 0.5
      %v3325 = vmul.f32 %v3317, 0.5
      %v3326 = vmul.f32 %v3318, 0.5
      %v3327 = vmul.f32 %v3319, 0.5
      %v3328 = vmul.f32 %v3320, 0.5
      %v3329 = vmul.f32 %v3321, 0.5
      %v3330 = vmul.f32 %v3322, 0.5
      %v3331 = vmul.f32 %v3323, 0.5
      %v3332 = vmul.f32 %v3316, 0.70710677
      %v3333 = vmul.f32 %v3317, 0.70710677
      %v3334 = vmul.f32 %v3318, 0.70710677
      %v3335 = vmul.f32 %v3319, 0.70710677
      %v3336 = vmul.f32 %v3320, 0.70710677
      %v3337 = vmul.f32 %v3321, 0.70710677
      %v3338 = vmul.f32 %v3322, 0.70710677
      %v3339 = vmul.f32 %v3323, 0.70710677
      %v3340 = vand.u32 2147483647, %v3332
      %v3341 = vand.u32 2147483647, %v3333
      %v3342 = vand.u32 2147483647, %v3334
      %v3343 = vand.u32 2147483647, %v3335
      %v3344 = vand.u32 2147483647, %v3336
      %v3345 = vand.u32 2147483647, %v3337
      %v3346 = vand.u32 2147483647, %v3338
      %v3347 = vand.u32 2147483647, %v3339
      %v3348 = vmul.f32 %v3340, 0.3275911
      %v3349 = vmul.f32 %v3341, 0.3275911
      %v3350 = vmul.f32 %v3342, 0.3275911
      %v3351 = vmul.f32 %v3343, 0.3275911
      %v3352 = vmul.f32 %v3344, 0.3275911
      %v3353 = vmul.f32 %v3345, 0.3275911
      %v3354 = vmul.f32 %v3346, 0.3275911
      %v3355 = vmul.f32 %v3347, 0.3275911
      %v3356 = vadd.f32 %v3348, 1.0
      %v3357 = vadd.f32 %v3349, 1.0
      %v3358 = vadd.f32 %v3350, 1.0
      %v3359 = vadd.f32 %v3351, 1.0
      %v3360 = vadd.f32 %v3352, 1.0
      %v3361 = vadd.f32 %v3353, 1.0
      %v3362 = vadd.f32 %v3354, 1.0
      %v3363 = vadd.f32 %v3355, 1.0
      %v3364 = vrcp.pop %v3356
      %v3365 = vrcp.pop %v3357
      %v3366 = vrcp.pop %v3358
      %v3367 = vrcp.pop %v3359
      %v3368 = vrcp.pop %v3360
      %v3369 = vrcp.pop %v3361
      %v3370 = vrcp.pop %v3362
      %v3371 = vrcp.pop %v3363
      %v3372 = vmul.f32 %v3364, 1.0614054
      %v3373 = vmul.f32 %v3365, 1.0614054
      %v3374 = vmul.f32 %v3366, 1.0614054
      %v3375 = vmul.f32 %v3367, 1.0614054
      %v3376 = vmul.f32 %v3368, 1.0614054
      %v3377 = vmul.f32 %v3369, 1.0614054
      %v3378 = vmul.f32 %v3370, 1.0614054
      %v3379 = vmul.f32 %v3371, 1.0614054
      %v3380 = vadd.f32 %v3372, -1.4531521
      %v3381 = vadd.f32 %v3373, -1.4531521
      %v3382 = vadd.f32 %v3374, -1.4531521
      %v3383 = vadd.f32 %v3375, -1.4531521
      %v3384 = vadd.f32 %v3376, -1.4531521
      %v3385 = vadd.f32 %v3377, -1.4531521
      %v3386 = vadd.f32 %v3378, -1.4531521
      %v3387 = vadd.f32 %v3379, -1.4531521
      %v3388 = vmul.f32 %v3380, %v3364
      %v3389 = vmul.f32 %v3381, %v3365
      %v3390 = vmul.f32 %v3382, %v3366
      %v3391 = vmul.f32 %v3383, %v3367
      %v3392 = vmul.f32 %v3384, %v3368
      %v3393 = vmul.f32 %v3385, %v3369
      %v3394 = vmul.f32 %v3386, %v3370
      %v3395 = vmul.f32 %v3387, %v3371
      %v3396 = vadd.f32 %v3388, 1.4214138
      %v3397 = vadd.f32 %v3389, 1.4214138
      %v3398 = vadd.f32 %v3390, 1.4214138
      %v3399 = vadd.f32 %v3391, 1.4214138
      %v3400 = vadd.f32 %v3392, 1.4214138
      %v3401 = vadd.f32 %v3393, 1.4214138
      %v3402 = vadd.f32 %v3394, 1.4214138
      %v3403 = vadd.f32 %v3395, 1.4214138
      %v3404 = vmul.f32 %v3396, %v3364
      %v3405 = vmul.f32 %v3397, %v3365
      %v3406 = vmul.f32 %v3398, %v3366
      %v3407 = vmul.f32 %v3399, %v3367
      %v3408 = vmul.f32 %v3400, %v3368
      %v3409 = vmul.f32 %v3401, %v3369
      %v3410 = vmul.f32 %v3402, %v3370
      %v3411 = vmul.f32 %v3403, %v3371
      %v3412 = vadd.f32 %v3404, -0.28449672
      %v3413 = vadd.f32 %v3405, -0.28449672
      %v3414 = vadd.f32 %v3406, -0.28449672
      %v3415 = vadd.f32 %v3407, -0.28449672
      %v3416 = vadd.f32 %v3408, -0.28449672
      %v3417 = vadd.f32 %v3409, -0.28449672
      %v3418 = vadd.f32 %v3410, -0.28449672
      %v3419 = vadd.f32 %v3411, -0.28449672
      %v3420 = vmul.f32 %v3412, %v3364
      %v3421 = vmul.f32 %v3413, %v3365
      %v3422 = vmul.f32 %v3414, %v3366
      %v3423 = vmul.f32 %v3415, %v3367
      %v3424 = vmul.f32 %v3416, %v3368
      %v3425 = vmul.f32 %v3417, %v3369
      %v3426 = vmul.f32 %v3418, %v3370
      %v3427 = vmul.f32 %v3419, %v3371
      %v3428 = vadd.f32 %v3420, 0.2548296
      %v3429 = vadd.f32 %v3421, 0.2548296
      %v3430 = vadd.f32 %v3422, 0.2548296
      %v3431 = vadd.f32 %v3423, 0.2548296
      %v3432 = vadd.f32 %v3424, 0.2548296
      %v3433 = vadd.f32 %v3425, 0.2548296
      %v3434 = vadd.f32 %v3426, 0.2548296
      %v3435 = vadd.f32 %v3427, 0.2548296
      %v3436 = vmul.f32 %v3428, %v3364
      %v3437 = vmul.f32 %v3429, %v3365
      %v3438 = vmul.f32 %v3430, %v3366
      %v3439 = vmul.f32 %v3431, %v3367
      %v3440 = vmul.f32 %v3432, %v3368
      %v3441 = vmul.f32 %v3433, %v3369
      %v3442 = vmul.f32 %v3434, %v3370
      %v3443 = vmul.f32 %v3435, %v3371
      %v3444 = vsub.f32 0.0, %v3340
      %v3445 = vsub.f32 0.0, %v3341
      %v3446 = vsub.f32 0.0, %v3342
      %v3447 = vsub.f32 0.0, %v3343
      %v3448 = vsub.f32 0.0, %v3344
      %v3449 = vsub.f32 0.0, %v3345
      %v3450 = vsub.f32 0.0, %v3346
      %v3451 = vsub.f32 0.0, %v3347
      %v3452 = vmul.f32 %v3444, %v3340
      %v3453 = vmul.f32 %v3445, %v3341
      %v3454 = vmul.f32 %v3446, %v3342
      %v3455 = vmul.f32 %v3447, %v3343
      %v3456 = vmul.f32 %v3448, %v3344
      %v3457 = vmul.f32 %v3449, %v3345
      %v3458 = vmul.f32 %v3450, %v3346
      %v3459 = vmul.f32 %v3451, %v3347
      %v3460 = vmul.f32 %v3452, 1.442695
      %v3461 = vpow.pop %v3460
      %v3462 = vmul.f32 %v3453, 1.442695
      %v3463 = vpow.pop %v3462
      %v3464 = vmul.f32 %v3454, 1.442695
      %v3465 = vpow.pop %v3464
      %v3466 = vmul.f32 %v3455, 1.442695
      %v3467 = vpow.pop %v3466
      %v3468 = vmul.f32 %v3456, 1.442695
      %v3469 = vpow.pop %v3468
      %v3470 = vmul.f32 %v3457, 1.442695
      %v3471 = vpow.pop %v3470
      %v3472 = vmul.f32 %v3458, 1.442695
      %v3473 = vpow.pop %v3472
      %v3474 = vmul.f32 %v3459, 1.442695
      %v3475 = vpow.pop %v3474
      %v3476 = vmul.f32 %v3436, %v3461
      %v3477 = vmul.f32 %v3437, %v3463
      %v3478 = vmul.f32 %v3438, %v3465
      %v3479 = vmul.f32 %v3439, %v3467
      %v3480 = vmul.f32 %v3440, %v3469
      %v3481 = vmul.f32 %v3441, %v3471
      %v3482 = vmul.f32 %v3442, %v3473
      %v3483 = vmul.f32 %v3443, %v3475
      %v3484 = vsub.f32 1.0, %v3476
      %v3485 = vsub.f32 1.0, %v3477
      %v3486 = vsub.f32 1.0, %v3478
      %v3487 = vsub.f32 1.0, %v3479
      %v3488 = vsub.f32 1.0, %v3480
      %v3489 = vsub.f32 1.0, %v3481
      %v3490 = vsub.f32 1.0, %v3482
      %v3491 = vsub.f32 1.0, %v3483
      %vm3492 = vcmp.lt.f32.partialorder %v3332, 0.0
      %vm3493 = vcmp.lt.f32.partialorder %v3333, 0.0
      %vm3494 = vcmp.lt.f32.partialorder %v3334, 0.0
      %vm3495 = vcmp.lt.f32.partialorder %v3335, 0.0
      %vm3496 = vcmp.lt.f32.partialorder %v3336, 0.0
      %vm3497 = vcmp.lt.f32.partialorder %v3337, 0.0
      %vm3498 = vcmp.lt.f32.partialorder %v3338, 0.0
      %vm3499 = vcmp.lt.f32.partialorder %v3339, 0.0
      %v3500 = vsub.f32 0.0, %v3484
      %v3501 = vsub.f32 0.0, %v3485
      %v3502 = vsub.f32 0.0, %v3486
      %v3503 = vsub.f32 0.0, %v3487
      %v3504 = vsub.f32 0.0, %v3488
      %v3505 = vsub.f32 0.0, %v3489
      %v3506 = vsub.f32 0.0, %v3490
      %v3507 = vsub.f32 0.0, %v3491
      %v3508 = vsel %vm3492, %v3500, %v3484
      %v3509 = vsel %vm3493, %v3501, %v3485
      %v3510 = vsel %vm3494, %v3502, %v3486
      %v3511 = vsel %vm3495, %v3503, %v3487
      %v3512 = vsel %vm3496, %v3504, %v3488
      %v3513 = vsel %vm3497, %v3505, %v3489
      %v3514 = vsel %vm3498, %v3506, %v3490
      %v3515 = vsel %vm3499, %v3507, %v3491
      %v3516 = vadd.f32 %v3508, 1.0
      %v3517 = vadd.f32 %v3509, 1.0
      %v3518 = vadd.f32 %v3510, 1.0
      %v3519 = vadd.f32 %v3511, 1.0
      %v3520 = vadd.f32 %v3512, 1.0
      %v3521 = vadd.f32 %v3513, 1.0
      %v3522 = vadd.f32 %v3514, 1.0
      %v3523 = vadd.f32 %v3515, 1.0
      %v3524 = vmul.f32 %v3324, %v3516
      %v3525 = vmul.f32 %v3325, %v3517
      %v3526 = vmul.f32 %v3326, %v3518
      %v3527 = vmul.f32 %v3327, %v3519
      %v3528 = vmul.f32 %v3328, %v3520
      %v3529 = vmul.f32 %v3329, %v3521
      %v3530 = vmul.f32 %v3330, %v3522
      %v3531 = vmul.f32 %v3331, %v3523
      %v3532 = vld [vmem:[%s11] sm:$0xf]
      %v3533 = vld [vmem:[%s11 + $0x4] sm:$0xf]
      %v3534 = vld [vmem:[%s11 + $0x8] sm:$0xf]
      %v3535 = vld [vmem:[%s11 + $0xc] sm:$0xf]
      %v3536 = vld [vmem:[%s11 + $0x10] sm:$0xf]
      %v3537 = vld [vmem:[%s11 + $0x14] sm:$0xf]
      %v3538 = vld [vmem:[%s11 + $0x18] sm:$0xf]
      %v3539 = vld [vmem:[%s11 + $0x1c] sm:$0xf]
      %v3540 = vld [vmem:[%s11 + $0x20] sm:$0xf]
      %v3541 = vld [vmem:[%s11 + $0x24] sm:$0xf]
      %v3542 = vld [vmem:[%s11 + $0x28] sm:$0xf]
      %v3543 = vld [vmem:[%s11 + $0x2c] sm:$0xf]
      %v3544 = vld [vmem:[%s11 + $0x30] sm:$0xf]
      %v3545 = vld [vmem:[%s11 + $0x34] sm:$0xf]
      %v3546 = vld [vmem:[%s11 + $0x38] sm:$0xf]
      %v3547 = vld [vmem:[%s11 + $0x3c] sm:$0xf]
      %v3548 = vld [vmem:[%s12] sm:$0x1]
      %v3550 = vlaneseq
      %v3551 = vshrl.u32 %v3550, 7
      %v3552 = vsub.s32 0, %v3551
      %v3553 = vrot.slane %v3548, %v3552
      %v3571 = vunpack.c.l.b16 %v3532
      %v3572 = vunpack.c.l.b16 %v3533
      %v3573 = vunpack.c.l.b16 %v3534
      %v3574 = vunpack.c.l.b16 %v3535
      %v3575 = vunpack.c.l.b16 %v3536
      %v3576 = vunpack.c.l.b16 %v3537
      %v3577 = vunpack.c.l.b16 %v3538
      %v3578 = vunpack.c.l.b16 %v3539
      %v3579 = vunpack.c.l.b16 %v3540
      %v3580 = vunpack.c.l.b16 %v3541
      %v3581 = vunpack.c.l.b16 %v3542
      %v3582 = vunpack.c.l.b16 %v3543
      %v3583 = vunpack.c.l.b16 %v3544
      %v3584 = vunpack.c.l.b16 %v3545
      %v3585 = vunpack.c.l.b16 %v3546
      %v3586 = vunpack.c.l.b16 %v3547
      %v3587 = vpack.c.b16 %v3572, %v3571
      %v3588 = vpack.c.b16 %v3574, %v3573
      %v3589 = vpack.c.b16 %v3576, %v3575
      %v3590 = vpack.c.b16 %v3578, %v3577
      %v3591 = vpack.c.b16 %v3580, %v3579
      %v3592 = vpack.c.b16 %v3582, %v3581
      %v3593 = vpack.c.b16 %v3584, %v3583
      %v3594 = vpack.c.b16 %v3586, %v3585
      %3603 = vmatprep.subr.bf16.mxu0 0
      %3604 = vmatpush1.bf16.msra.mxu0 %v3594
      %3605 = vmatprep.subr.bf16.mxu0 0
      %3606 = vmatpush1.bf16.msra.mxu0 %v3593
      %3607 = vmatprep.subr.bf16.mxu0 0
      %3608 = vmatpush1.bf16.msra.mxu0 %v3592
      %3609 = vmatprep.subr.bf16.mxu0 0
      %3610 = vmatpush1.bf16.msra.mxu0 %v3591
      %3611 = vmatprep.subr.bf16.mxu0 0
      %3612 = vmatpush1.bf16.msra.mxu0 %v3590
      %3613 = vmatprep.subr.bf16.mxu0 0
      %3614 = vmatpush1.bf16.msra.mxu0 %v3589
      %3615 = vmatprep.subr.bf16.mxu0 0
      %3616 = vmatpush1.bf16.msra.mxu0 %v3588
      %3617 = vmatprep.subr.bf16.mxu0 0
      %3618 = vmatpush1.bf16.msra.mxu0 %v3587
      %3619 = vmatprep.subr.bf16.mxu0 0
      %3620 = vmatpush2.bf16.msra.mxu0 0
      %3621 = vmatprep.subr.bf16.mxu0 0
      %3622 = vmatpush2.bf16.msra.mxu0 0
      %3623 = vmatprep.subr.bf16.mxu0 0
      %3624 = vmatpush2.bf16.msra.mxu0 0
      %3625 = vmatprep.subr.bf16.mxu0 0
      %3626 = vmatpush2.bf16.msra.mxu0 0
      %3627 = vmatprep.subr.bf16.mxu0 0
      %3628 = vmatpush2.bf16.msra.mxu0 0
      %3629 = vmatprep.subr.bf16.mxu0 0
      %3630 = vmatpush2.bf16.msra.mxu0 0
      %3631 = vmatprep.subr.bf16.mxu0 0
      %3632 = vmatpush2.bf16.msra.mxu0 0
      %3633 = vmatprep.subr.bf16.mxu0 0
      %3634 = vmatpush2.bf16.msra.mxu0 0
      %3635 = vmatprep.mubr.bf16.mxu0 0
      %3636 = vmatmul.mubr.bf16.gmra.mxu0 %v1144
      %v3637 = vpop.f32.mrf.mxu0
      %v3638 = vadd.f32 %v3553, %v3637
      %v3639 = vpop.f32.mrf.mxu0
      %v3640 = vpop.f32.mrf.mxu0
      %v3641 = vadd.f32 %v3553, %v3640
      %v3642 = vpop.f32.mrf.mxu0
      %3643 = vmatprep.mubr.bf16.mxu0 0
      %3644 = vmatmul.mubr.bf16.gmra.mxu0 %v1145
      %v3645 = vpop.f32.mrf.mxu0
      %v3646 = vadd.f32 %v3553, %v3645
      %v3647 = vpop.f32.mrf.mxu0
      %v3648 = vpop.f32.mrf.mxu0
      %v3649 = vadd.f32 %v3553, %v3648
      %v3650 = vpop.f32.mrf.mxu0
      %3651 = vmatprep.mubr.bf16.mxu0 0
      %3652 = vmatmul.mubr.bf16.gmra.mxu0 %v1146
      %v3653 = vpop.f32.mrf.mxu0
      %v3654 = vadd.f32 %v3553, %v3653
      %v3655 = vpop.f32.mrf.mxu0
      %v3656 = vpop.f32.mrf.mxu0
      %v3657 = vadd.f32 %v3553, %v3656
      %v3658 = vpop.f32.mrf.mxu0
      %3659 = vmatprep.mubr.bf16.mxu0 0
      %3660 = vmatmul.mubr.bf16.gmra.mxu0 %v1147
      %v3661 = vpop.f32.mrf.mxu0
      %v3662 = vadd.f32 %v3553, %v3661
      %v3663 = vpop.f32.mrf.mxu0
      %v3664 = vpop.f32.mrf.mxu0
      %v3665 = vadd.f32 %v3553, %v3664
      %v3666 = vpop.f32.mrf.mxu0
      %3667 = vdwg.mxu0
      %v3668 = vadd.f32 %v3524, %v3638
      %v3669 = vadd.f32 %v3525, %v3641
      %v3670 = vadd.f32 %v3526, %v3646
      %v3671 = vadd.f32 %v3527, %v3649
      %v3672 = vadd.f32 %v3528, %v3654
      %v3673 = vadd.f32 %v3529, %v3657
      %v3674 = vadd.f32 %v3530, %v3662
      %v3675 = vadd.f32 %v3531, %v3665
      %v3676 = vpack.c.bf16 %v3669, %v3668
      %v3677 = vpack.c.bf16 %v3671, %v3670
      %v3678 = vpack.c.bf16 %v3673, %v3672
      %v3679 = vpack.c.bf16 %v3675, %v3674
      %v3684 = vunpack.c.l.b16 %v3676
      %v3685 = vunpack.c.h.b16 %v3676
      %v3686 = vunpack.c.l.b16 %v3677
      %v3687 = vunpack.c.h.b16 %v3677
      %v3688 = vunpack.c.l.b16 %v3678
      %v3689 = vunpack.c.h.b16 %v3678
      %v3690 = vunpack.c.l.b16 %v3679
      %v3691 = vunpack.c.h.b16 %v3679
      %v3692 = vpack.c.b16 %v3684, %v3684
      %v3693 = vpack.c.b16 %v3685, %v3685
      %v3694 = vpack.c.b16 %v3686, %v3686
      %v3695 = vpack.c.b16 %v3687, %v3687
      %v3696 = vpack.c.b16 %v3688, %v3688
      %v3697 = vpack.c.b16 %v3689, %v3689
      %v3698 = vpack.c.b16 %v3690, %v3690
      %v3699 = vpack.c.b16 %v3691, %v3691
      %3708 = vst [vmem:[%s462] sm:$0xf] %v3692
      %3709 = vst [vmem:[%s462 + $0x4] sm:$0xf] %v3693
      %3710 = vst [vmem:[%s462 + $0x8] sm:$0xf] %v3694
      %3711 = vst [vmem:[%s462 + $0xc] sm:$0xf] %v3695
      %3712 = vst [vmem:[%s462 + $0x10] sm:$0xf] %v3696
      %3713 = vst [vmem:[%s462 + $0x14] sm:$0xf] %v3697
      %3714 = vst [vmem:[%s462 + $0x18] sm:$0xf] %v3698
      %3715 = vst [vmem:[%s462 + $0x1c] sm:$0xf] %v3699
      %s3716 = smul.u32 8, %s24
      %p3717 = scmp.lt.s32.totalorder %s3716, 15
      %s3718 = scalar_select %p3717, %s3716, 15
      %s3719 = smul.addr %s3718, 4
      %s3720 = scalar_lea.vmem %s13, %s3719
      // Predicated region
      $region73: #{_lambda_.4} parent=71 // pred_check
        %p3721 = pneg %p325
      $region74: #{_lambda_.4} parent=71 // pred_check_branch
        %3723 = sbr.rel (%p3721) target = $region76
      $region75: #{_lambda_.4} parent=71 // pred_region
        %s3724 = smul.u32 8, %s24
      $region76: #{_lambda_.4} parent=71 // pred_fallthru
        _
    $region72: #{_lambda_.4} parent=5 // pred_fallthru
      _
    %p3725 = scmp.le.s32.totalorder 2, %s19
    // Predicated region
    $region77: #{_lambda_.4} parent=5 // pred_check
      %p3726 = pneg %p3725
    $region78: #{_lambda_.4} parent=5 // pred_check_branch
      %3728 = sbr.rel (%p3726) target = $region80
    $region79: #{_lambda_.4} parent=5 // pred_region
      %s3729 = ssub.s32 %s19, 2
      // Predicated region
      $region81: #{_lambda_.4} parent=79 // pred_check
        %p3730 = pneg %p331
      $region82: #{_lambda_.4} parent=79 // pred_check_branch
        %3732 = sbr.rel (%p3730) target = $region84
      $region83: #{_lambda_.4} parent=79 // pred_region
        %s3733 = smul.u32 8, %s25
        %p3734 = scmp.lt.s32.totalorder %s3733, 15
        %s3735 = scalar_select %p3734, %s3733, 15
        %s3736 = smul.addr %s3735, 4
        %s3737 = scalar_lea.vmem %s13, %s3736
      $region84: #{_lambda_.4} parent=79 // pred_fallthru
        _
    $region80: #{_lambda_.4} parent=5 // pred_fallthru
      _
  $region6: #{_lambda_.4} parent=0 // loop_footer
    %s23 = sadd.s32 1, %s19
  $region7: #{_lambda_.4} parent=0 // loop_footer_branch
    %18 = sbr.rel target = $region3
  $region8: #{_lambda_.4} parent=0 // loop_exit
    _

</llo_original>
